<compile_context>
chip_gen: v6e
topology: v6e:2x2x1
jax: 0.10.0
libtpu: 0.0.40
codegen_flags: <defaults>
</compile_context>

<pallas_src>
import functools

import numpy as np
import jax
import jax.numpy as jnp
from jax.experimental import pallas as pl
from jax.experimental.pallas import tpu as pltpu

_BN_EPS = 1e-5


# ----------------------------------------------------------------------------
# In-kernel helpers
# ----------------------------------------------------------------------------

def _log_sigmoid(s):
    # Numerically stable: log(sigmoid(s)) = min(s, 0) - log(1 + exp(-|s|))
    return jnp.minimum(s, 0.0) - jnp.log(1.0 + jnp.exp(-jnp.abs(s)))


def _vmem_specs(n):
    return [pl.BlockSpec(memory_space=pltpu.MemorySpace.VMEM) for _ in range(n)]


# ----------------------------------------------------------------------------
# Pallas kernels (one per flow; no grid, whole arrays resident in VMEM)
# ----------------------------------------------------------------------------

def _atom_flow_kernel(n_gconv, n_lin, n_edge, *refs):
    """One full GlowOnGraph flow: ActNorm2D -> GraphConvs -> Linears -> coupling."""
    it = iter(refs)
    adjbd_ref = next(it)      # (E, BN, BN) block-diagonal adjacency
    x_ref = next(it)          # (BN, D)
    ans_ref = next(it)        # (BN, 1) ActNorm scale (per node, tiled over batch)
    anl_ref = next(it)        # (BN, 1) ActNorm loc
    mask_ref = next(it)       # (BN, D)
    seg_ref = next(it)        # (B, BN) per-sample segment-sum matrix
    gconvs = [tuple(next(it) for _ in range(6)) for _ in range(n_gconv)]
    lins = [tuple(next(it) for _ in range(4)) for _ in range(n_lin)]
    wfs_ref = next(it)
    wft_ref = next(it)
    bfs_ref = next(it)
    bft_ref = next(it)
    out_ref = next(it)        # (BN, D)
    ld_ref = next(it)         # (B, 1)

    x = x_ref[...]
    z = (x + anl_ref[...]) * ans_ref[...]          # ActNorm2D (per node)
    mask = mask_ref[...]
    h = mask * z

    # GraphConv layers (node-linear + per-edge aggregation + BN(node) + tanh)
    for ws_r, bs_r, we_r, be_r, bnk_r, bnb_r in gconvs:
        agg = jnp.dot(h, ws_r[...], preferred_element_type=jnp.float32) + bs_r[...]
        for e in range(n_edge):
            me = jnp.dot(h, we_r[e], preferred_element_type=jnp.float32) + be_r[e]
            agg = agg + jnp.dot(adjbd_ref[e], me, preferred_element_type=jnp.float32)
        h = jnp.tanh(agg * bnk_r[...] + bnb_r[...])

    # Hidden linear layers (BN(node) + tanh)
    for w_r, b_r, bnk_r, bnb_r in lins:
        y = jnp.dot(h, w_r[...], preferred_element_type=jnp.float32) + b_r[...]
        h = jnp.tanh(y * bnk_r[...] + bnb_r[...])

    # Final linear -> masked graph affine coupling + per-sample log-det.
    s = jnp.dot(h, wfs_ref[...], preferred_element_type=jnp.float32) + bfs_ref[...]
    t = jnp.dot(h, wft_ref[...], preferred_element_type=jnp.float32) + bft_ref[...]
    log_sig = _log_sigmoid(s)
    sig = jnp.exp(log_sig)
    out_ref[...] = mask * z + (1.0 - mask) * (z + t) * sig
    ld_ref[...] = jnp.sum(
        jnp.dot(seg_ref[...], log_sig, preferred_element_type=jnp.float32),
        axis=1, keepdims=True)


def _bond_flow_kernel(n_hidden, half, *refs):
    """One full Glow flow: (ActNorm+InvConv fused) -> 3x3-conv coupling net -> gate."""
    it = iter(refs)
    x_ref = next(it)          # (BHW, C) channels-last, batch flattened into rows
    wa_ref = next(it)         # (C, half)  fused ActNorm+InvConv, first-half columns
    ba_ref = next(it)         # (1, half)
    wb_ref = next(it)         # (C, half)  second-half columns
    bb_ref = next(it)         # (1, half)
    sh_ref = next(it)         # (9, BHW, BHW) per-tap shift matrices (zero-padded, per-sample)
    seg_ref = next(it)        # (B, BHW)
    convs = [tuple(next(it) for _ in range(4)) for _ in range(n_hidden)]
    ws9_ref = next(it)        # (9, Cin, half) final conv -> s
    bs_ref = next(it)         # (1, half)
    wt9_ref = next(it)        # (9, Cin, half) final conv -> t
    bt_ref = next(it)         # (1, half)
    out_ref = next(it)        # (BHW, C)
    ld_ref = next(it)         # (B, 1)

    x = x_ref[...]
    in_a = jnp.dot(x, wa_ref[...], preferred_element_type=jnp.float32) + ba_ref[...]
    in_b = jnp.dot(x, wb_ref[...], preferred_element_type=jnp.float32) + bb_ref[...]

    # Hidden 3x3 convs as 9 shifted matmuls, with fused conv-bias + BN + ReLU.
    h = in_a
    for w9_r, bc_r, bnk_r, bnb_r in convs:
        acc = None
        for k in range(9):
            term = jnp.dot(
                jnp.dot(sh_ref[k], h, preferred_element_type=jnp.float32),
                w9_r[k], preferred_element_type=jnp.float32)
            acc = term if acc is None else acc + term
        h = jnp.maximum((acc + bc_r[...]) * bnk_r[...] + bnb_r[...], 0.0)

    # Final 3x3 conv producing (s, t); shifted input shared between s and t.
    s = None
    t = None
    for k in range(9):
        hk = jnp.dot(sh_ref[k], h, preferred_element_type=jnp.float32)
        sk = jnp.dot(hk, ws9_ref[k], preferred_element_type=jnp.float32)
        tk = jnp.dot(hk, wt9_ref[k], preferred_element_type=jnp.float32)
        s = sk if s is None else s + sk
        t = tk if t is None else t + tk
    s = s + bs_ref[...]
    t = t + bt_ref[...]

    log_sig = _log_sigmoid(s)
    out_b = (in_b + t) * jnp.exp(log_sig)
    out_ref[...] = jnp.concatenate([in_a, out_b], axis=1)
    ld_ref[...] = jnp.sum(
        jnp.dot(seg_ref[...], log_sig, preferred_element_type=jnp.float32),
        axis=1, keepdims=True)


# ----------------------------------------------------------------------------
# pallas_call wrappers (one call per flow)
# ----------------------------------------------------------------------------

def _atom_flow_call(fp, adjbd, h, seg):
    n_edge, bn, _ = adjbd.shape
    d = h.shape[1]
    b = seg.shape[0]
    n_gconv = len(fp["gconvs"])
    n_lin = len(fp["lins"])

    args = [adjbd, h, fp["an_s"], fp["an_l"], fp["mask"], seg]
    for g in fp["gconvs"]:
        args += [g["ws"], g["bs"], g["we"], g["be"], g["bnk"], g["bnb"]]
    for l in fp["lins"]:
        args += [l["w"], l["b"], l["bnk"], l["bnb"]]
    args += [fp["fin"]["ws"], fp["fin"]["wt"], fp["fin"]["bs"], fp["fin"]["bt"]]

    kernel = functools.partial(_atom_flow_kernel, n_gconv, n_lin, n_edge)
    out, ld = pl.pallas_call(
        kernel,
        out_shape=(jax.ShapeDtypeStruct((bn, d), jnp.float32),
                   jax.ShapeDtypeStruct((b, 1), jnp.float32)),
        in_specs=_vmem_specs(len(args)),
        out_specs=(pl.BlockSpec(memory_space=pltpu.MemorySpace.VMEM),
                   pl.BlockSpec(memory_space=pltpu.MemorySpace.VMEM)),
    )(*args)
    return out, ld


def _bond_flow_call(fp, hb, shifts, seg):
    bhw, c = hb.shape
    half = c // 2
    b = seg.shape[0]
    n_hidden = len(fp["convs"])

    args = [hb, fp["wa"], fp["ba"], fp["wb"], fp["bb"], shifts, seg]
    for cv in fp["convs"]:
        args += [cv["w9"], cv["b"], cv["bnk"], cv["bnb"]]
    args += [fp["fin"]["ws9"], fp["fin"]["bs"], fp["fin"]["wt9"], fp["fin"]["bt"]]

    kernel = functools.partial(_bond_flow_kernel, n_hidden, half)
    out, ld = pl.pallas_call(
        kernel,
        out_shape=(jax.ShapeDtypeStruct((bhw, c), jnp.float32),
                   jax.ShapeDtypeStruct((b, 1), jnp.float32)),
        in_specs=_vmem_specs(len(args)),
        out_specs=(pl.BlockSpec(memory_space=pltpu.MemorySpace.VMEM),
                   pl.BlockSpec(memory_space=pltpu.MemorySpace.VMEM)),
    )(*args)
    return out, ld


# ----------------------------------------------------------------------------
# Layout plumbing (once per forward; stays in XLA, tiny)
# ----------------------------------------------------------------------------

def squeeze_nchw(x, fold):
    B, C, H, W = x.shape
    x = x.reshape(B, C, H // fold, fold, W // fold, fold)
    x = x.transpose(0, 1, 3, 5, 2, 4)
    return x.reshape(B, C * fold * fold, H // fold, W // fold)


def unsqueeze_nchw(x, fold):
    B, C, H, W = x.shape
    x = x.reshape(B, C // (fold * fold), fold, fold, H, W)
    x = x.transpose(0, 1, 4, 2, 5, 3)
    return x.reshape(B, C // (fold * fold), H * fold, W * fold)


def _blockdiag_adj(adj):
    """(B, E, N, N) -> (E, B*N, B*N) block-diagonal per batch (computed once)."""
    B, E, N, _ = adj.shape
    adj_t = jnp.transpose(adj.astype(jnp.float32), (1, 0, 2, 3))  # (E, B, N, N)
    out = jnp.zeros((E, B * N, B * N), jnp.float32)
    for b in range(B):
        out = out.at[:, b * N:(b + 1) * N, b * N:(b + 1) * N].set(adj_t[:, b])
    return out


# ----------------------------------------------------------------------------
# MoFlow forward (eval mode) — 4 pallas_calls total for the toy config
# ----------------------------------------------------------------------------

def moflow_forward(prepped, adj, x, *, fold):
    B, _, N, _ = adj.shape
    D = x.shape[-1]

    # ---- atom path (GlowOnGraph) ----
    adjbd = _blockdiag_adj(adj)
    h = x.astype(jnp.float32).reshape(B * N, D)
    ld_x = jnp.zeros((B,), jnp.float32)
    for flow in prepped["atom"]["flows"]:
        h, ld = _atom_flow_call(flow, adjbd, h, prepped["atom"]["seg"])
        ld_x = ld_x + ld[:, 0]
    ld_x = ld_x + prepped["atom"]["const_logdet"]
    h_out = h.reshape(B, N, D)

    # ---- bond path (Glow) ----
    out_nchw = adj.astype(jnp.float32)
    ld_adj = jnp.zeros((B,), jnp.float32)
    for blk in prepped["bond"]["blocks"]:
        sq = squeeze_nchw(out_nchw, fold)
        _, C, Hs, Ws = sq.shape
        hb = jnp.transpose(sq, (0, 2, 3, 1)).reshape(B * Hs * Ws, C)
        for flow in blk:
            hb, ld = _bond_flow_call(flow, hb, prepped["bond"]["shifts"],
                                     prepped["bond"]["seg"])
            ld_adj = ld_adj + ld[:, 0]
        out_nchw = unsqueeze_nchw(
            jnp.transpose(hb.reshape(B, Hs, Ws, C), (0, 3, 1, 2)), fold)
    ld_adj = ld_adj + prepped["bond"]["const_logdet"]

    return h_out, out_nchw, ld_x, ld_adj


# ----------------------------------------------------------------------------
# Parameter preparation (eager, outside jit): all param-only algebra hoisted here
# ----------------------------------------------------------------------------

def _bn_scale_bias(p):
    k = p["gamma"] / jnp.sqrt(p["var"] + _BN_EPS)
    return k, p["beta"] - p["mean"] * k


def _invconv_lu_weight(p):
    C = p["w_p"].shape[0]
    l = p["w_l"] * p["l_mask"] + jnp.eye(C, dtype=jnp.float32)
    u = p["w_u"] * p["u_mask"] + jnp.diag(p["s_sign"] * jnp.exp(p["w_s"]))
    return p["w_p"] @ l @ u


def _make_seg(B, rows):
    seg = np.zeros((B, B * rows), np.float32)
    for b in range(B):
        seg[b, b * rows:(b + 1) * rows] = 1.0
    return jnp.asarray(seg)


def _make_shift_mats(B, H, W):
    """S[k] (k = dy*3+dx) maps rows so that (S[k] @ h)[b,y,x] = h[b, y+dy-1, x+dx-1]
    with zero padding and no cross-sample leakage."""
    HW = H * W
    S = np.zeros((9, B * HW, B * HW), np.float32)
    for dy in range(3):
        for dx in range(3):
            k = dy * 3 + dx
            for b in range(B):
                for y in range(H):
                    for x in range(W):
                        yi, xi = y + dy - 1, x + dx - 1
                        if 0 <= yi < H and 0 <= xi < W:
                            S[k, b * HW + y * W + x, b * HW + yi * W + xi] = 1.0
    return jnp.asarray(S)


def _prepare_atom_flow(fp, B, N, D, E):
    an_s = fp["an_scale"].astype(jnp.float32)
    an_l = fp["an_loc"].astype(jnp.float32)
    cp = fp["coupling"]

    gconvs = []
    for gc, bn in zip(cp["gconvs"], cp["bn_gnn"]):
        k, sh = _bn_scale_bias(bn)
        Din, C = gc["ws"].shape
        we3 = jnp.transpose(gc["we"].reshape(Din, C, E), (2, 0, 1))        # (E, Din, C)
        be3 = jnp.transpose(gc["be"].reshape(C, E), (1, 0)).reshape(E, 1, C)
        gconvs.append(dict(
            ws=gc["ws"].astype(jnp.float32), bs=gc["bs"].reshape(1, C).astype(jnp.float32),
            we=we3.astype(jnp.float32), be=be3.astype(jnp.float32),
            bnk=jnp.tile(k, B).reshape(B * N, 1).astype(jnp.float32),
            bnb=jnp.tile(sh, B).reshape(B * N, 1).astype(jnp.float32)))

    lins = []
    for (w, b), bn in zip(cp["lins"][:-1], cp["bn_lin"]):
        k, sh = _bn_scale_bias(bn)
        lins.append(dict(
            w=w.astype(jnp.float32), b=b.reshape(1, -1).astype(jnp.float32),
            bnk=jnp.tile(k, B).reshape(B * N, 1).astype(jnp.float32),
            bnb=jnp.tile(sh, B).reshape(B * N, 1).astype(jnp.float32)))

    wf, bf = cp["lins"][-1]
    fin = dict(ws=wf[:, :D].astype(jnp.float32), wt=wf[:, D:].astype(jnp.float32),
               bs=bf[:D].reshape(1, D).astype(jnp.float32),
               bt=bf[D:].reshape(1, D).astype(jnp.float32))

    const_ld = D * jnp.sum(jnp.log(jnp.abs(an_s)))
    prepped = dict(
        an_s=jnp.tile(an_s, B).reshape(B * N, 1),
        an_l=jnp.tile(an_l, B).reshape(B * N, 1),
        mask=jnp.tile(cp["mask"].astype(jnp.float32), (B, 1)),
        gconvs=gconvs, lins=lins, fin=fin)
    return prepped, const_ld


def _prepare_bond_flow(fp, half, HW):
    Wmat = _invconv_lu_weight(fp["inv"])
    an_s = fp["an_scale"].astype(jnp.float32)
    an_l = fp["an_loc"].astype(jnp.float32)
    # ActNorm folded into the invertible 1x1 conv: y = x @ (W*s)^T + (W*s) @ l
    Wf = Wmat * an_s[None, :]
    bf = Wf @ an_l
    WfT = Wf.T.astype(jnp.float32)

    convs = []
    conv_list = fp["coupling"]["convs"]
    for (wc, bc), bn in zip(conv_list[:-1], fp["coupling"]["bns"]):
        k, sh = _bn_scale_bias(bn)
        Cout, Cin = wc.shape[0], wc.shape[1]
        w9 = jnp.transpose(wc, (2, 3, 1, 0)).reshape(9, Cin, Cout)
        convs.append(dict(
            w9=w9.astype(jnp.float32), b=bc.reshape(1, Cout).astype(jnp.float32),
            bnk=k.reshape(1, Cout).astype(jnp.float32),
            bnb=sh.reshape(1, Cout).astype(jnp.float32)))

    wcf, bcf = conv_list[-1]
    Cout_f, Cin_f = wcf.shape[0], wcf.shape[1]
    w9f = jnp.transpose(wcf, (2, 3, 1, 0)).reshape(9, Cin_f, Cout_f)
    fin = dict(ws9=w9f[:, :, :half].astype(jnp.float32),
               bs=bcf[:half].reshape(1, half).astype(jnp.float32),
               wt9=w9f[:, :, half:].astype(jnp.float32),
               bt=bcf[half:].reshape(1, half).astype(jnp.float32))

    const_ld = HW * (jnp.sum(jnp.log(jnp.abs(an_s))) + jnp.sum(fp["inv"]["w_s"]))
    prepped = dict(
        wa=WfT[:, :half], ba=bf[:half].reshape(1, half).astype(jnp.float32),
        wb=WfT[:, half:], bb=bf[half:].reshape(1, half).astype(jnp.float32),
        convs=convs, fin=fin)
    return prepped, const_ld


def prepare_moflow_params(params, cfg, batch_size):
    B = batch_size
    E, N, D = cfg["b_n_type"], cfg["a_n_node"], cfg["a_n_type"]
    fold = cfg["bond"]["squeeze_fold"]
    Hs, Ws = N // fold, N // fold
    HW = Hs * Ws
    C = E * fold * fold
    half = C // 2

    atom_flows, a_const = [], jnp.zeros((), jnp.float32)
    for blk in params["atom"]["blocks"]:
        for fp in blk["flows"]:
            pf, c = _prepare_atom_flow(fp, B, N, D, E)
            atom_flows.append(pf)
            a_const = a_const + c

    bond_blocks, b_const = [], jnp.zeros((), jnp.float32)
    for blk in params["bond"]["blocks"]:
        flows = []
        for fp in blk["flows"]:
            pf, c = _prepare_bond_flow(fp, half, HW)
            flows.append(pf)
            b_const = b_const + c
        bond_blocks.append(flows)

    return dict(
        atom=dict(flows=atom_flows, seg=_make_seg(B, N), const_logdet=a_const),
        bond=dict(blocks=bond_blocks, seg=_make_seg(B, HW),
                  shifts=_make_shift_mats(B, Hs, Ws), const_logdet=b_const),
    )


# ----------------------------------------------------------------------------
# Deterministic synthetic parameter initialization (same as reference structure)
# ----------------------------------------------------------------------------

class _Keys:
    def __init__(self, seed):
        self._key = jax.random.PRNGKey(seed)

    def __call__(self):
        self._key, k = jax.random.split(self._key)
        return k


def _init_bn(kg, c):
    return dict(gamma=jax.random.uniform(kg(), (c,), minval=0.8, maxval=1.2),
                beta=0.05 * jax.random.normal(kg(), (c,)),
                mean=0.1 * jax.random.normal(kg(), (c,)),
                var=jax.random.uniform(kg(), (c,), minval=0.8, maxval=1.2))


def _init_bond_flow(kg, c, hidden_ch):
    p = dict(an_scale=jax.random.uniform(kg(), (c,), minval=0.7, maxval=1.3),
             an_loc=0.1 * jax.random.normal(kg(), (c,)))
    w = jax.random.normal(kg(), (c, c))
    q, _ = jnp.linalg.qr(w)
    P, L, U = jax.scipy.linalg.lu(q)
    s = jnp.diag(U)
    p["inv"] = dict(w_p=P.astype(jnp.float32),
                    w_l=L.astype(jnp.float32),
                    w_u=jnp.triu(U, 1).astype(jnp.float32),
                    w_s=jnp.log(jnp.abs(s)).astype(jnp.float32),
                    s_sign=jnp.sign(s).astype(jnp.float32),
                    l_mask=jnp.tril(jnp.ones((c, c), jnp.float32), -1),
                    u_mask=jnp.triu(jnp.ones((c, c), jnp.float32), 1))
    convs, bns = [], []
    last = c // 2
    for hch in tuple(hidden_ch) + (c,):
        convs.append((0.1 * jax.random.normal(kg(), (hch, last, 3, 3)),
                      0.01 * jax.random.normal(kg(), (hch,))))
        last = hch
    for hch in hidden_ch:
        bns.append(_init_bn(kg, hch))
    p["coupling"] = dict(convs=convs, bns=bns)
    return p


def _init_atom_flow(kg, n_node, in_dim, hidden_gnn, hidden_lin, masked_row, n_edge):
    p = dict(an_scale=jax.random.uniform(kg(), (n_node,), minval=0.7, maxval=1.3),
             an_loc=0.1 * jax.random.normal(kg(), (n_node,)))
    mask = jnp.ones((n_node, in_dim), jnp.float32)
    mask = mask.at[jnp.asarray(masked_row)].set(0.0)
    gconvs, bn_gnn = [], []
    last = in_dim
    for hch in hidden_gnn:
        gconvs.append(dict(ws=0.1 * jax.random.normal(kg(), (last, hch)),
                           bs=0.01 * jax.random.normal(kg(), (hch,)),
                           we=0.1 * jax.random.normal(kg(), (last, hch * n_edge)),
                           be=0.01 * jax.random.normal(kg(), (hch * n_edge,))))
        bn_gnn.append(_init_bn(kg, n_node))
        last = hch
    lins, bn_lin = [], []
    for hch in hidden_lin:
        lins.append((0.1 * jax.random.normal(kg(), (last, hch)),
                     0.01 * jax.random.normal(kg(), (hch,))))
        bn_lin.append(_init_bn(kg, n_node))
        last = hch
    lins.append((0.1 * jax.random.normal(kg(), (last, 2 * in_dim)),
                 0.01 * jax.random.normal(kg(), (2 * in_dim,))))
    p["coupling"] = dict(mask=mask, gconvs=gconvs, bn_gnn=bn_gnn,
                         lins=lins, bn_lin=bn_lin)
    return p


def init_moflow_params(seed, cfg):
    kg = _Keys(seed)
    n_edge, n_node, n_feat = cfg["b_n_type"], cfg["a_n_node"], cfg["a_n_type"]
    bc, ac = cfg["bond"], cfg["atom"]
    sq_dim = n_edge * bc["squeeze_fold"] ** 2
    bond_blocks = []
    for _ in range(bc["n_block"]):
        flows = [_init_bond_flow(kg, sq_dim, bc["hidden_ch"]) for _ in range(bc["n_flow"])]
        bond_blocks.append(dict(flows=flows))
    atom_blocks = []
    for bi in range(ac["n_block"]):
        mrs = ac["mask_row_size_list"][bi % len(ac["mask_row_size_list"])]
        mstr = ac["mask_row_stride_list"][bi % len(ac["mask_row_stride_list"])]
        flows = []
        for fi in range(ac["n_flow"]):
            start = fi * mstr
            masked_row = [r % n_node for r in range(start, start + mrs)]
            flows.append(_init_atom_flow(kg, n_node, n_feat, ac["hidden_gnn"],
                                         ac["hidden_lin"], masked_row, n_edge))
        atom_blocks.append(dict(flows=flows))
    return dict(bond=dict(blocks=bond_blocks), atom=dict(blocks=atom_blocks))


# ----------------------------------------------------------------------------
# Main
# ----------------------------------------------------------------------------

if __name__ == "__main__":
    CFG = dict(
        b_n_type=4, a_n_node=9, a_n_type=5, noise_scale=0.6,
        bond=dict(n_flow=2, n_block=1, squeeze_fold=3, hidden_ch=(16, 16), conv_lu=1),
        atom=dict(n_flow=2, n_block=1, hidden_gnn=(16,), hidden_lin=(32,),
                  mask_row_size_list=(1,), mask_row_stride_list=(1,)),
    )
    B = 2
    key = jax.random.PRNGKey(0)
    k1, k2 = jax.random.split(key)
    adj = jax.random.uniform(k1, (B, CFG["b_n_type"], CFG["a_n_node"], CFG["a_n_node"]),
                             dtype=jnp.float32)
    adj = 0.5 * (adj + jnp.transpose(adj, (0, 1, 3, 2)))      # symmetric adjacency
    x = jax.random.uniform(k2, (B, CFG["a_n_node"], CFG["a_n_type"]), dtype=jnp.float32)

    params = init_moflow_params(0, CFG)
    prepped = prepare_moflow_params(params, CFG, B)   # all param algebra hoisted out of jit

    # TODO(synk): training-mode noise injection (torch.rand_like), reverse() sampling,
    # and CUDA-graph / stream plumbing have no Pallas equivalent; eval-mode forward only.
    fwd = jax.jit(functools.partial(moflow_forward, fold=CFG["bond"]["squeeze_fold"]))
    h, adj_h, sldj_x, sldj_adj = fwd(prepped, adj, x)
    jax.tree_util.tree_map(jax.block_until_ready, (h, adj_h, sldj_x, sldj_adj))

    assert h.shape == (B, CFG["a_n_node"], CFG["a_n_type"])
    assert adj_h.shape == (B, CFG["b_n_type"], CFG["a_n_node"], CFG["a_n_node"])
    assert sldj_x.shape == (B,) and sldj_adj.shape == (B,)
    assert bool(jnp.all(jnp.isfinite(h))) and bool(jnp.all(jnp.isfinite(adj_h)))
    assert bool(jnp.all(jnp.isfinite(sldj_x))) and bool(jnp.all(jnp.isfinite(sldj_adj)))
    print("KERNEL_OK")
</pallas_src>

<mosaic_0001>
module attributes {stable_mosaic.version = 11 : i64} {
  func.func @_atom_flow_kernel(%arg0: memref<4x18x18xf32, #tpu.memory_space<vmem>>, %arg1: memref<18x5xf32, #tpu.memory_space<vmem>>, %arg2: memref<18x1xf32, #tpu.memory_space<vmem>>, %arg3: memref<18x1xf32, #tpu.memory_space<vmem>>, %arg4: memref<18x5xf32, #tpu.memory_space<vmem>>, %arg5: memref<2x18xf32, #tpu.memory_space<vmem>>, %arg6: memref<5x16xf32, #tpu.memory_space<vmem>>, %arg7: memref<1x16xf32, #tpu.memory_space<vmem>>, %arg8: memref<4x5x16xf32, #tpu.memory_space<vmem>>, %arg9: memref<4x1x16xf32, #tpu.memory_space<vmem>>, %arg10: memref<18x1xf32, #tpu.memory_space<vmem>>, %arg11: memref<18x1xf32, #tpu.memory_space<vmem>>, %arg12: memref<16x32xf32, #tpu.memory_space<vmem>>, %arg13: memref<1x32xf32, #tpu.memory_space<vmem>>, %arg14: memref<18x1xf32, #tpu.memory_space<vmem>>, %arg15: memref<18x1xf32, #tpu.memory_space<vmem>>, %arg16: memref<32x5xf32, #tpu.memory_space<vmem>>, %arg17: memref<32x5xf32, #tpu.memory_space<vmem>>, %arg18: memref<1x5xf32, #tpu.memory_space<vmem>>, %arg19: memref<1x5xf32, #tpu.memory_space<vmem>>, %arg20: memref<18x5xf32, #tpu.memory_space<vmem>>, %arg21: memref<2x1xf32, #tpu.memory_space<vmem>>) attributes {dimension_semantics = [], scalar_prefetch = 0 : i64, scratch_operands = 0 : i64, tpu.core_type = #tpu.core_type<tc>} {
    %c0 = arith.constant 0 : index
    %c0_0 = arith.constant 0 : index
    %0 = vector.load %arg1[%c0, %c0_0] : memref<18x5xf32, #tpu.memory_space<vmem>>, vector<18x5xf32>
    %c0_1 = arith.constant 0 : index
    %c0_2 = arith.constant 0 : index
    %1 = vector.load %arg3[%c0_1, %c0_2] : memref<18x1xf32, #tpu.memory_space<vmem>>, vector<18x1xf32>
    %2 = vector.broadcast %1 : vector<18x1xf32> to vector<18x5xf32>
    %3 = arith.addf %0, %2 : vector<18x5xf32>
    %c0_3 = arith.constant 0 : index
    %c0_4 = arith.constant 0 : index
    %4 = vector.load %arg2[%c0_3, %c0_4] : memref<18x1xf32, #tpu.memory_space<vmem>>, vector<18x1xf32>
    %5 = vector.broadcast %4 : vector<18x1xf32> to vector<18x5xf32>
    %6 = arith.mulf %3, %5 : vector<18x5xf32>
    %c0_5 = arith.constant 0 : index
    %c0_6 = arith.constant 0 : index
    %7 = vector.load %arg4[%c0_5, %c0_6] : memref<18x5xf32, #tpu.memory_space<vmem>>, vector<18x5xf32>
    %8 = arith.mulf %7, %6 : vector<18x5xf32>
    %c0_7 = arith.constant 0 : index
    %c0_8 = arith.constant 0 : index
    %9 = vector.load %arg6[%c0_7, %c0_8] : memref<5x16xf32, #tpu.memory_space<vmem>>, vector<5x16xf32>
    %cst = arith.constant dense<0.000000e+00> : vector<18x16xf32>
    %10 = tpu.matmul %8, %9, %cst {dimension_numbers = #tpu.dot_dimension_numbers<[1], [0], [0], [1], [0, 0, 1, 1], [], []>} : vector<18x5xf32>, vector<5x16xf32>, vector<18x16xf32> -> vector<18x16xf32>
    %c0_9 = arith.constant 0 : index
    %c0_10 = arith.constant 0 : index
    %11 = vector.load %arg7[%c0_9, %c0_10] : memref<1x16xf32, #tpu.memory_space<vmem>>, vector<1x16xf32>
    %12 = vector.broadcast %11 : vector<1x16xf32> to vector<18x16xf32>
    %13 = arith.addf %10, %12 : vector<18x16xf32>
    %c0_11 = arith.constant 0 : index
    %c0_12 = arith.constant 0 : index
    %c0_13 = arith.constant 0 : index
    %14 = vector.load %arg8[%c0_11, %c0_12, %c0_13] : memref<4x5x16xf32, #tpu.memory_space<vmem>>, vector<1x5x16xf32>
    %15 = vector.shape_cast %14 : vector<1x5x16xf32> to vector<5x16xf32>
    %cst_14 = arith.constant dense<0.000000e+00> : vector<18x16xf32>
    %16 = tpu.matmul %8, %15, %cst_14 {dimension_numbers = #tpu.dot_dimension_numbers<[1], [0], [0], [1], [0, 0, 1, 1], [], []>} : vector<18x5xf32>, vector<5x16xf32>, vector<18x16xf32> -> vector<18x16xf32>
    %c0_15 = arith.constant 0 : index
    %c0_16 = arith.constant 0 : index
    %c0_17 = arith.constant 0 : index
    %17 = vector.load %arg9[%c0_15, %c0_16, %c0_17] : memref<4x1x16xf32, #tpu.memory_space<vmem>>, vector<1x1x16xf32>
    %18 = vector.shape_cast %17 : vector<1x1x16xf32> to vector<1x16xf32>
    %19 = vector.broadcast %18 : vector<1x16xf32> to vector<18x16xf32>
    %20 = arith.addf %16, %19 : vector<18x16xf32>
    %c0_18 = arith.constant 0 : index
    %c0_19 = arith.constant 0 : index
    %c0_20 = arith.constant 0 : index
    %21 = vector.load %arg0[%c0_18, %c0_19, %c0_20] : memref<4x18x18xf32, #tpu.memory_space<vmem>>, vector<1x18x18xf32>
    %22 = vector.shape_cast %21 : vector<1x18x18xf32> to vector<18x18xf32>
    %cst_21 = arith.constant dense<0.000000e+00> : vector<18x16xf32>
    %23 = tpu.matmul %22, %20, %cst_21 {dimension_numbers = #tpu.dot_dimension_numbers<[1], [0], [0], [1], [0, 0, 1, 1], [], []>} : vector<18x18xf32>, vector<18x16xf32>, vector<18x16xf32> -> vector<18x16xf32>
    %24 = arith.addf %13, %23 : vector<18x16xf32>
    %c1 = arith.constant 1 : index
    %c0_22 = arith.constant 0 : index
    %c0_23 = arith.constant 0 : index
    %25 = vector.load %arg8[%c1, %c0_22, %c0_23] : memref<4x5x16xf32, #tpu.memory_space<vmem>>, vector<1x5x16xf32>
    %26 = vector.shape_cast %25 : vector<1x5x16xf32> to vector<5x16xf32>
    %cst_24 = arith.constant dense<0.000000e+00> : vector<18x16xf32>
    %27 = tpu.matmul %8, %26, %cst_24 {dimension_numbers = #tpu.dot_dimension_numbers<[1], [0], [0], [1], [0, 0, 1, 1], [], []>} : vector<18x5xf32>, vector<5x16xf32>, vector<18x16xf32> -> vector<18x16xf32>
    %c1_25 = arith.constant 1 : index
    %c0_26 = arith.constant 0 : index
    %c0_27 = arith.constant 0 : index
    %28 = vector.load %arg9[%c1_25, %c0_26, %c0_27] : memref<4x1x16xf32, #tpu.memory_space<vmem>>, vector<1x1x16xf32>
    %29 = vector.shape_cast %28 : vector<1x1x16xf32> to vector<1x16xf32>
    %30 = vector.broadcast %29 : vector<1x16xf32> to vector<18x16xf32>
    %31 = arith.addf %27, %30 : vector<18x16xf32>
    %c1_28 = arith.constant 1 : index
    %c0_29 = arith.constant 0 : index
    %c0_30 = arith.constant 0 : index
    %32 = vector.load %arg0[%c1_28, %c0_29, %c0_30] : memref<4x18x18xf32, #tpu.memory_space<vmem>>, vector<1x18x18xf32>
    %33 = vector.shape_cast %32 : vector<1x18x18xf32> to vector<18x18xf32>
    %cst_31 = arith.constant dense<0.000000e+00> : vector<18x16xf32>
    %34 = tpu.matmul %33, %31, %cst_31 {dimension_numbers = #tpu.dot_dimension_numbers<[1], [0], [0], [1], [0, 0, 1, 1], [], []>} : vector<18x18xf32>, vector<18x16xf32>, vector<18x16xf32> -> vector<18x16xf32>
    %35 = arith.addf %24, %34 : vector<18x16xf32>
    %c2 = arith.constant 2 : index
    %c0_32 = arith.constant 0 : index
    %c0_33 = arith.constant 0 : index
    %36 = vector.load %arg8[%c2, %c0_32, %c0_33] : memref<4x5x16xf32, #tpu.memory_space<vmem>>, vector<1x5x16xf32>
    %37 = vector.shape_cast %36 : vector<1x5x16xf32> to vector<5x16xf32>
    %cst_34 = arith.constant dense<0.000000e+00> : vector<18x16xf32>
    %38 = tpu.matmul %8, %37, %cst_34 {dimension_numbers = #tpu.dot_dimension_numbers<[1], [0], [0], [1], [0, 0, 1, 1], [], []>} : vector<18x5xf32>, vector<5x16xf32>, vector<18x16xf32> -> vector<18x16xf32>
    %c2_35 = arith.constant 2 : index
    %c0_36 = arith.constant 0 : index
    %c0_37 = arith.constant 0 : index
    %39 = vector.load %arg9[%c2_35, %c0_36, %c0_37] : memref<4x1x16xf32, #tpu.memory_space<vmem>>, vector<1x1x16xf32>
    %40 = vector.shape_cast %39 : vector<1x1x16xf32> to vector<1x16xf32>
    %41 = vector.broadcast %40 : vector<1x16xf32> to vector<18x16xf32>
    %42 = arith.addf %38, %41 : vector<18x16xf32>
    %c2_38 = arith.constant 2 : index
    %c0_39 = arith.constant 0 : index
    %c0_40 = arith.constant 0 : index
    %43 = vector.load %arg0[%c2_38, %c0_39, %c0_40] : memref<4x18x18xf32, #tpu.memory_space<vmem>>, vector<1x18x18xf32>
    %44 = vector.shape_cast %43 : vector<1x18x18xf32> to vector<18x18xf32>
    %cst_41 = arith.constant dense<0.000000e+00> : vector<18x16xf32>
    %45 = tpu.matmul %44, %42, %cst_41 {dimension_numbers = #tpu.dot_dimension_numbers<[1], [0], [0], [1], [0, 0, 1, 1], [], []>} : vector<18x18xf32>, vector<18x16xf32>, vector<18x16xf32> -> vector<18x16xf32>
    %46 = arith.addf %35, %45 : vector<18x16xf32>
    %c3 = arith.constant 3 : index
    %c0_42 = arith.constant 0 : index
    %c0_43 = arith.constant 0 : index
    %47 = vector.load %arg8[%c3, %c0_42, %c0_43] : memref<4x5x16xf32, #tpu.memory_space<vmem>>, vector<1x5x16xf32>
    %48 = vector.shape_cast %47 : vector<1x5x16xf32> to vector<5x16xf32>
    %cst_44 = arith.constant dense<0.000000e+00> : vector<18x16xf32>
    %49 = tpu.matmul %8, %48, %cst_44 {dimension_numbers = #tpu.dot_dimension_numbers<[1], [0], [0], [1], [0, 0, 1, 1], [], []>} : vector<18x5xf32>, vector<5x16xf32>, vector<18x16xf32> -> vector<18x16xf32>
    %c3_45 = arith.constant 3 : index
    %c0_46 = arith.constant 0 : index
    %c0_47 = arith.constant 0 : index
    %50 = vector.load %arg9[%c3_45, %c0_46, %c0_47] : memref<4x1x16xf32, #tpu.memory_space<vmem>>, vector<1x1x16xf32>
    %51 = vector.shape_cast %50 : vector<1x1x16xf32> to vector<1x16xf32>
    %52 = vector.broadcast %51 : vector<1x16xf32> to vector<18x16xf32>
    %53 = arith.addf %49, %52 : vector<18x16xf32>
    %c3_48 = arith.constant 3 : index
    %c0_49 = arith.constant 0 : index
    %c0_50 = arith.constant 0 : index
    %54 = vector.load %arg0[%c3_48, %c0_49, %c0_50] : memref<4x18x18xf32, #tpu.memory_space<vmem>>, vector<1x18x18xf32>
    %55 = vector.shape_cast %54 : vector<1x18x18xf32> to vector<18x18xf32>
    %cst_51 = arith.constant dense<0.000000e+00> : vector<18x16xf32>
    %56 = tpu.matmul %55, %53, %cst_51 {dimension_numbers = #tpu.dot_dimension_numbers<[1], [0], [0], [1], [0, 0, 1, 1], [], []>} : vector<18x18xf32>, vector<18x16xf32>, vector<18x16xf32> -> vector<18x16xf32>
    %57 = arith.addf %46, %56 : vector<18x16xf32>
    %c0_52 = arith.constant 0 : index
    %c0_53 = arith.constant 0 : index
    %58 = vector.load %arg10[%c0_52, %c0_53] : memref<18x1xf32, #tpu.memory_space<vmem>>, vector<18x1xf32>
    %59 = vector.broadcast %58 : vector<18x1xf32> to vector<18x16xf32>
    %60 = arith.mulf %57, %59 : vector<18x16xf32>
    %c0_54 = arith.constant 0 : index
    %c0_55 = arith.constant 0 : index
    %61 = vector.load %arg11[%c0_54, %c0_55] : memref<18x1xf32, #tpu.memory_space<vmem>>, vector<18x1xf32>
    %62 = vector.broadcast %61 : vector<18x1xf32> to vector<18x16xf32>
    %63 = arith.addf %60, %62 : vector<18x16xf32>
    %64 = math.tanh %63 : vector<18x16xf32>
    %c0_56 = arith.constant 0 : index
    %c0_57 = arith.constant 0 : index
    %65 = vector.load %arg12[%c0_56, %c0_57] : memref<16x32xf32, #tpu.memory_space<vmem>>, vector<16x32xf32>
    %cst_58 = arith.constant dense<0.000000e+00> : vector<18x32xf32>
    %66 = tpu.matmul %64, %65, %cst_58 {dimension_numbers = #tpu.dot_dimension_numbers<[1], [0], [0], [1], [0, 0, 1, 1], [], []>} : vector<18x16xf32>, vector<16x32xf32>, vector<18x32xf32> -> vector<18x32xf32>
    %c0_59 = arith.constant 0 : index
    %c0_60 = arith.constant 0 : index
    %67 = vector.load %arg13[%c0_59, %c0_60] : memref<1x32xf32, #tpu.memory_space<vmem>>, vector<1x32xf32>
    %68 = vector.broadcast %67 : vector<1x32xf32> to vector<18x32xf32>
    %69 = arith.addf %66, %68 : vector<18x32xf32>
    %c0_61 = arith.constant 0 : index
    %c0_62 = arith.constant 0 : index
    %70 = vector.load %arg14[%c0_61, %c0_62] : memref<18x1xf32, #tpu.memory_space<vmem>>, vector<18x1xf32>
    %71 = vector.broadcast %70 : vector<18x1xf32> to vector<18x32xf32>
    %72 = arith.mulf %69, %71 : vector<18x32xf32>
    %c0_63 = arith.constant 0 : index
    %c0_64 = arith.constant 0 : index
    %73 = vector.load %arg15[%c0_63, %c0_64] : memref<18x1xf32, #tpu.memory_space<vmem>>, vector<18x1xf32>
    %74 = vector.broadcast %73 : vector<18x1xf32> to vector<18x32xf32>
    %75 = arith.addf %72, %74 : vector<18x32xf32>
    %76 = math.tanh %75 : vector<18x32xf32>
    %c0_65 = arith.constant 0 : index
    %c0_66 = arith.constant 0 : index
    %77 = vector.load %arg16[%c0_65, %c0_66] : memref<32x5xf32, #tpu.memory_space<vmem>>, vector<32x5xf32>
    %cst_67 = arith.constant dense<0.000000e+00> : vector<18x5xf32>
    %78 = tpu.matmul %76, %77, %cst_67 {dimension_numbers = #tpu.dot_dimension_numbers<[1], [0], [0], [1], [0, 0, 1, 1], [], []>} : vector<18x32xf32>, vector<32x5xf32>, vector<18x5xf32> -> vector<18x5xf32>
    %c0_68 = arith.constant 0 : index
    %c0_69 = arith.constant 0 : index
    %79 = vector.load %arg18[%c0_68, %c0_69] : memref<1x5xf32, #tpu.memory_space<vmem>>, vector<1x5xf32>
    %80 = vector.broadcast %79 : vector<1x5xf32> to vector<18x5xf32>
    %81 = arith.addf %78, %80 : vector<18x5xf32>
    %c0_70 = arith.constant 0 : index
    %c0_71 = arith.constant 0 : index
    %82 = vector.load %arg17[%c0_70, %c0_71] : memref<32x5xf32, #tpu.memory_space<vmem>>, vector<32x5xf32>
    %cst_72 = arith.constant dense<0.000000e+00> : vector<18x5xf32>
    %83 = tpu.matmul %76, %82, %cst_72 {dimension_numbers = #tpu.dot_dimension_numbers<[1], [0], [0], [1], [0, 0, 1, 1], [], []>} : vector<18x32xf32>, vector<32x5xf32>, vector<18x5xf32> -> vector<18x5xf32>
    %c0_73 = arith.constant 0 : index
    %c0_74 = arith.constant 0 : index
    %84 = vector.load %arg19[%c0_73, %c0_74] : memref<1x5xf32, #tpu.memory_space<vmem>>, vector<1x5xf32>
    %85 = vector.broadcast %84 : vector<1x5xf32> to vector<18x5xf32>
    %86 = arith.addf %83, %85 : vector<18x5xf32>
    %cst_75 = arith.constant 0.000000e+00 : f32
    %87 = vector.broadcast %cst_75 : f32 to vector<18x5xf32>
    %88 = arith.minimumf %81, %87 : vector<18x5xf32>
    %89 = math.absf %81 : vector<18x5xf32>
    %cst_76 = arith.constant 0.000000e+00 : f32
    %90 = vector.broadcast %cst_76 : f32 to vector<18x5xf32>
    %91 = arith.subf %90, %89 : vector<18x5xf32>
    %92 = math.exp %91 : vector<18x5xf32>
    %cst_77 = arith.constant 1.000000e+00 : f32
    %93 = vector.broadcast %cst_77 : f32 to vector<18x5xf32>
    %94 = arith.addf %93, %92 : vector<18x5xf32>
    %95 = math.log %94 : vector<18x5xf32>
    %96 = arith.subf %88, %95 : vector<18x5xf32>
    %97 = math.exp %96 : vector<18x5xf32>
    %98 = arith.mulf %7, %6 : vector<18x5xf32>
    %cst_78 = arith.constant 1.000000e+00 : f32
    %99 = vector.broadcast %cst_78 : f32 to vector<18x5xf32>
    %100 = arith.subf %99, %7 : vector<18x5xf32>
    %101 = arith.addf %6, %86 : vector<18x5xf32>
    %102 = arith.mulf %100, %101 : vector<18x5xf32>
    %103 = arith.mulf %102, %97 : vector<18x5xf32>
    %104 = arith.addf %98, %103 : vector<18x5xf32>
    %c0_79 = arith.constant 0 : index
    %c0_80 = arith.constant 0 : index
    %105 = vector.load %arg20[%c0_79, %c0_80] : memref<18x5xf32, #tpu.memory_space<vmem>>, vector<18x5xf32>
    tpu.vector_store %arg20[%c0_79, %c0_80], %104 {strides = array<i32>} : memref<18x5xf32, #tpu.memory_space<vmem>>, vector<18x5xf32>,
    %c0_81 = arith.constant 0 : index
    %c0_82 = arith.constant 0 : index
    %106 = vector.load %arg5[%c0_81, %c0_82] : memref<2x18xf32, #tpu.memory_space<vmem>>, vector<2x18xf32>
    %cst_83 = arith.constant dense<0.000000e+00> : vector<2x5xf32>
    %107 = tpu.matmul %106, %96, %cst_83 {dimension_numbers = #tpu.dot_dimension_numbers<[1], [0], [0], [1], [0, 0, 1, 1], [], []>} : vector<2x18xf32>, vector<18x5xf32>, vector<2x5xf32> -> vector<2x5xf32>
    %cst_84 = arith.constant dense<0.000000e+00> : vector<2xf32>
    %108 = vector.multi_reduction <add>, %107, %cst_84 [1] : vector<2x5xf32> to vector<2xf32>
    %109 = vector.shape_cast %108 : vector<2xf32> to vector<2x1xf32>
    %c0_85 = arith.constant 0 : index
    %c0_86 = arith.constant 0 : index
    %110 = vector.load %arg21[%c0_85, %c0_86] : memref<2x1xf32, #tpu.memory_space<vmem>>, vector<2x1xf32>
    tpu.vector_store %arg21[%c0_85, %c0_86], %109 {strides = array<i32>} : memref<2x1xf32, #tpu.memory_space<vmem>>, vector<2x1xf32>,
    return
  }
}

module attributes {stable_mosaic.version = 11 : i64} {
  func.func @_bond_flow_kernel(%arg0: memref<18x36xf32, #tpu.memory_space<vmem>>, %arg1: memref<36x18xf32, #tpu.memory_space<vmem>>, %arg2: memref<1x18xf32, #tpu.memory_space<vmem>>, %arg3: memref<36x18xf32, #tpu.memory_space<vmem>>, %arg4: memref<1x18xf32, #tpu.memory_space<vmem>>, %arg5: memref<9x18x18xf32, #tpu.memory_space<vmem>>, %arg6: memref<2x18xf32, #tpu.memory_space<vmem>>, %arg7: memref<9x18x16xf32, #tpu.memory_space<vmem>>, %arg8: memref<1x16xf32, #tpu.memory_space<vmem>>, %arg9: memref<1x16xf32, #tpu.memory_space<vmem>>, %arg10: memref<1x16xf32, #tpu.memory_space<vmem>>, %arg11: memref<9x16x16xf32, #tpu.memory_space<vmem>>, %arg12: memref<1x16xf32, #tpu.memory_space<vmem>>, %arg13: memref<1x16xf32, #tpu.memory_space<vmem>>, %arg14: memref<1x16xf32, #tpu.memory_space<vmem>>, %arg15: memref<9x16x18xf32, #tpu.memory_space<vmem>>, %arg16: memref<1x18xf32, #tpu.memory_space<vmem>>, %arg17: memref<9x16x18xf32, #tpu.memory_space<vmem>>, %arg18: memref<1x18xf32, #tpu.memory_space<vmem>>, %arg19: memref<18x36xf32, #tpu.memory_space<vmem>>, %arg20: memref<2x1xf32, #tpu.memory_space<vmem>>) attributes {dimension_semantics = [], scalar_prefetch = 0 : i64, scratch_operands = 0 : i64, tpu.core_type = #tpu.core_type<tc>} {
    %c0 = arith.constant 0 : index
    %c0_0 = arith.constant 0 : index
    %0 = vector.load %arg0[%c0, %c0_0] : memref<18x36xf32, #tpu.memory_space<vmem>>, vector<18x36xf32>
    %c0_1 = arith.constant 0 : index
    %c0_2 = arith.constant 0 : index
    %1 = vector.load %arg1[%c0_1, %c0_2] : memref<36x18xf32, #tpu.memory_space<vmem>>, vector<36x18xf32>
    %cst = arith.constant dense<0.000000e+00> : vector<18x18xf32>
    %2 = tpu.matmul %0, %1, %cst {dimension_numbers = #tpu.dot_dimension_numbers<[1], [0], [0], [1], [0, 0, 1, 1], [], []>} : vector<18x36xf32>, vector<36x18xf32>, vector<18x18xf32> -> vector<18x18xf32>
    %c0_3 = arith.constant 0 : index
    %c0_4 = arith.constant 0 : index
    %3 = vector.load %arg2[%c0_3, %c0_4] : memref<1x18xf32, #tpu.memory_space<vmem>>, vector<1x18xf32>
    %4 = vector.broadcast %3 : vector<1x18xf32> to vector<18x18xf32>
    %5 = arith.addf %2, %4 : vector<18x18xf32>
    %c0_5 = arith.constant 0 : index
    %c0_6 = arith.constant 0 : index
    %6 = vector.load %arg3[%c0_5, %c0_6] : memref<36x18xf32, #tpu.memory_space<vmem>>, vector<36x18xf32>
    %cst_7 = arith.constant dense<0.000000e+00> : vector<18x18xf32>
    %7 = tpu.matmul %0, %6, %cst_7 {dimension_numbers = #tpu.dot_dimension_numbers<[1], [0], [0], [1], [0, 0, 1, 1], [], []>} : vector<18x36xf32>, vector<36x18xf32>, vector<18x18xf32> -> vector<18x18xf32>
    %c0_8 = arith.constant 0 : index
    %c0_9 = arith.constant 0 : index
    %8 = vector.load %arg4[%c0_8, %c0_9] : memref<1x18xf32, #tpu.memory_space<vmem>>, vector<1x18xf32>
    %9 = vector.broadcast %8 : vector<1x18xf32> to vector<18x18xf32>
    %10 = arith.addf %7, %9 : vector<18x18xf32>
    %c0_10 = arith.constant 0 : index
    %c0_11 = arith.constant 0 : index
    %c0_12 = arith.constant 0 : index
    %11 = vector.load %arg5[%c0_10, %c0_11, %c0_12] : memref<9x18x18xf32, #tpu.memory_space<vmem>>, vector<1x18x18xf32>
    %12 = vector.shape_cast %11 : vector<1x18x18xf32> to vector<18x18xf32>
    %cst_13 = arith.constant dense<0.000000e+00> : vector<18x18xf32>
    %13 = tpu.matmul %12, %5, %cst_13 {dimension_numbers = #tpu.dot_dimension_numbers<[1], [0], [0], [1], [0, 0, 1, 1], [], []>} : vector<18x18xf32>, vector<18x18xf32>, vector<18x18xf32> -> vector<18x18xf32>
    %c0_14 = arith.constant 0 : index
    %c0_15 = arith.constant 0 : index
    %c0_16 = arith.constant 0 : index
    %14 = vector.load %arg7[%c0_14, %c0_15, %c0_16] : memref<9x18x16xf32, #tpu.memory_space<vmem>>, vector<1x18x16xf32>
    %15 = vector.shape_cast %14 : vector<1x18x16xf32> to vector<18x16xf32>
    %cst_17 = arith.constant dense<0.000000e+00> : vector<18x16xf32>
    %16 = tpu.matmul %13, %15, %cst_17 {dimension_numbers = #tpu.dot_dimension_numbers<[1], [0], [0], [1], [0, 0, 1, 1], [], []>} : vector<18x18xf32>, vector<18x16xf32>, vector<18x16xf32> -> vector<18x16xf32>
    %c1 = arith.constant 1 : index
    %c0_18 = arith.constant 0 : index
    %c0_19 = arith.constant 0 : index
    %17 = vector.load %arg5[%c1, %c0_18, %c0_19] : memref<9x18x18xf32, #tpu.memory_space<vmem>>, vector<1x18x18xf32>
    %18 = vector.shape_cast %17 : vector<1x18x18xf32> to vector<18x18xf32>
    %cst_20 = arith.constant dense<0.000000e+00> : vector<18x18xf32>
    %19 = tpu.matmul %18, %5, %cst_20 {dimension_numbers = #tpu.dot_dimension_numbers<[1], [0], [0], [1], [0, 0, 1, 1], [], []>} : vector<18x18xf32>, vector<18x18xf32>, vector<18x18xf32> -> vector<18x18xf32>
    %c1_21 = arith.constant 1 : index
    %c0_22 = arith.constant 0 : index
    %c0_23 = arith.constant 0 : index
    %20 = vector.load %arg7[%c1_21, %c0_22, %c0_23] : memref<9x18x16xf32, #tpu.memory_space<vmem>>, vector<1x18x16xf32>
    %21 = vector.shape_cast %20 : vector<1x18x16xf32> to vector<18x16xf32>
    %cst_24 = arith.constant dense<0.000000e+00> : vector<18x16xf32>
    %22 = tpu.matmul %19, %21, %cst_24 {dimension_numbers = #tpu.dot_dimension_numbers<[1], [0], [0], [1], [0, 0, 1, 1], [], []>} : vector<18x18xf32>, vector<18x16xf32>, vector<18x16xf32> -> vector<18x16xf32>
    %23 = arith.addf %16, %22 : vector<18x16xf32>
    %c2 = arith.constant 2 : index
    %c0_25 = arith.constant 0 : index
    %c0_26 = arith.constant 0 : index
    %24 = vector.load %arg5[%c2, %c0_25, %c0_26] : memref<9x18x18xf32, #tpu.memory_space<vmem>>, vector<1x18x18xf32>
    %25 = vector.shape_cast %24 : vector<1x18x18xf32> to vector<18x18xf32>
    %cst_27 = arith.constant dense<0.000000e+00> : vector<18x18xf32>
    %26 = tpu.matmul %25, %5, %cst_27 {dimension_numbers = #tpu.dot_dimension_numbers<[1], [0], [0], [1], [0, 0, 1, 1], [], []>} : vector<18x18xf32>, vector<18x18xf32>, vector<18x18xf32> -> vector<18x18xf32>
    %c2_28 = arith.constant 2 : index
    %c0_29 = arith.constant 0 : index
    %c0_30 = arith.constant 0 : index
    %27 = vector.load %arg7[%c2_28, %c0_29, %c0_30] : memref<9x18x16xf32, #tpu.memory_space<vmem>>, vector<1x18x16xf32>
    %28 = vector.shape_cast %27 : vector<1x18x16xf32> to vector<18x16xf32>
    %cst_31 = arith.constant dense<0.000000e+00> : vector<18x16xf32>
    %29 = tpu.matmul %26, %28, %cst_31 {dimension_numbers = #tpu.dot_dimension_numbers<[1], [0], [0], [1], [0, 0, 1, 1], [], []>} : vector<18x18xf32>, vector<18x16xf32>, vector<18x16xf32> -> vector<18x16xf32>
    %30 = arith.addf %23, %29 : vector<18x16xf32>
    %c3 = arith.constant 3 : index
    %c0_32 = arith.constant 0 : index
    %c0_33 = arith.constant 0 : index
    %31 = vector.load %arg5[%c3, %c0_32, %c0_33] : memref<9x18x18xf32, #tpu.memory_space<vmem>>, vector<1x18x18xf32>
    %32 = vector.shape_cast %31 : vector<1x18x18xf32> to vector<18x18xf32>
    %cst_34 = arith.constant dense<0.000000e+00> : vector<18x18xf32>
    %33 = tpu.matmul %32, %5, %cst_34 {dimension_numbers = #tpu.dot_dimension_numbers<[1], [0], [0], [1], [0, 0, 1, 1], [], []>} : vector<18x18xf32>, vector<18x18xf32>, vector<18x18xf32> -> vector<18x18xf32>
    %c3_35 = arith.constant 3 : index
    %c0_36 = arith.constant 0 : index
    %c0_37 = arith.constant 0 : index
    %34 = vector.load %arg7[%c3_35, %c0_36, %c0_37] : memref<9x18x16xf32, #tpu.memory_space<vmem>>, vector<1x18x16xf32>
    %35 = vector.shape_cast %34 : vector<1x18x16xf32> to vector<18x16xf32>
    %cst_38 = arith.constant dense<0.000000e+00> : vector<18x16xf32>
    %36 = tpu.matmul %33, %35, %cst_38 {dimension_numbers = #tpu.dot_dimension_numbers<[1], [0], [0], [1], [0, 0, 1, 1], [], []>} : vector<18x18xf32>, vector<18x16xf32>, vector<18x16xf32> -> vector<18x16xf32>
    %37 = arith.addf %30, %36 : vector<18x16xf32>
    %c4 = arith.constant 4 : index
    %c0_39 = arith.constant 0 : index
    %c0_40 = arith.constant 0 : index
    %38 = vector.load %arg5[%c4, %c0_39, %c0_40] : memref<9x18x18xf32, #tpu.memory_space<vmem>>, vector<1x18x18xf32>
    %39 = vector.shape_cast %38 : vector<1x18x18xf32> to vector<18x18xf32>
    %cst_41 = arith.constant dense<0.000000e+00> : vector<18x18xf32>
    %40 = tpu.matmul %39, %5, %cst_41 {dimension_numbers = #tpu.dot_dimension_numbers<[1], [0], [0], [1], [0, 0, 1, 1], [], []>} : vector<18x18xf32>, vector<18x18xf32>, vector<18x18xf32> -> vector<18x18xf32>
    %c4_42 = arith.constant 4 : index
    %c0_43 = arith.constant 0 : index
    %c0_44 = arith.constant 0 : index
    %41 = vector.load %arg7[%c4_42, %c0_43, %c0_44] : memref<9x18x16xf32, #tpu.memory_space<vmem>>, vector<1x18x16xf32>
    %42 = vector.shape_cast %41 : vector<1x18x16xf32> to vector<18x16xf32>
    %cst_45 = arith.constant dense<0.000000e+00> : vector<18x16xf32>
    %43 = tpu.matmul %40, %42, %cst_45 {dimension_numbers = #tpu.dot_dimension_numbers<[1], [0], [0], [1], [0, 0, 1, 1], [], []>} : vector<18x18xf32>, vector<18x16xf32>, vector<18x16xf32> -> vector<18x16xf32>
    %44 = arith.addf %37, %43 : vector<18x16xf32>
    %c5 = arith.constant 5 : index
    %c0_46 = arith.constant 0 : index
    %c0_47 = arith.constant 0 : index
    %45 = vector.load %arg5[%c5, %c0_46, %c0_47] : memref<9x18x18xf32, #tpu.memory_space<vmem>>, vector<1x18x18xf32>
    %46 = vector.shape_cast %45 : vector<1x18x18xf32> to vector<18x18xf32>
    %cst_48 = arith.constant dense<0.000000e+00> : vector<18x18xf32>
    %47 = tpu.matmul %46, %5, %cst_48 {dimension_numbers = #tpu.dot_dimension_numbers<[1], [0], [0], [1], [0, 0, 1, 1], [], []>} : vector<18x18xf32>, vector<18x18xf32>, vector<18x18xf32> -> vector<18x18xf32>
    %c5_49 = arith.constant 5 : index
    %c0_50 = arith.constant 0 : index
    %c0_51 = arith.constant 0 : index
    %48 = vector.load %arg7[%c5_49, %c0_50, %c0_51] : memref<9x18x16xf32, #tpu.memory_space<vmem>>, vector<1x18x16xf32>
    %49 = vector.shape_cast %48 : vector<1x18x16xf32> to vector<18x16xf32>
    %cst_52 = arith.constant dense<0.000000e+00> : vector<18x16xf32>
    %50 = tpu.matmul %47, %49, %cst_52 {dimension_numbers = #tpu.dot_dimension_numbers<[1], [0], [0], [1], [0, 0, 1, 1], [], []>} : vector<18x18xf32>, vector<18x16xf32>, vector<18x16xf32> -> vector<18x16xf32>
    %51 = arith.addf %44, %50 : vector<18x16xf32>
    %c6 = arith.constant 6 : index
    %c0_53 = arith.constant 0 : index
    %c0_54 = arith.constant 0 : index
    %52 = vector.load %arg5[%c6, %c0_53, %c0_54] : memref<9x18x18xf32, #tpu.memory_space<vmem>>, vector<1x18x18xf32>
    %53 = vector.shape_cast %52 : vector<1x18x18xf32> to vector<18x18xf32>
    %cst_55 = arith.constant dense<0.000000e+00> : vector<18x18xf32>
    %54 = tpu.matmul %53, %5, %cst_55 {dimension_numbers = #tpu.dot_dimension_numbers<[1], [0], [0], [1], [0, 0, 1, 1], [], []>} : vector<18x18xf32>, vector<18x18xf32>, vector<18x18xf32> -> vector<18x18xf32>
    %c6_56 = arith.constant 6 : index
    %c0_57 = arith.constant 0 : index
    %c0_58 = arith.constant 0 : index
    %55 = vector.load %arg7[%c6_56, %c0_57, %c0_58] : memref<9x18x16xf32, #tpu.memory_space<vmem>>, vector<1x18x16xf32>
    %56 = vector.shape_cast %55 : vector<1x18x16xf32> to vector<18x16xf32>
    %cst_59 = arith.constant dense<0.000000e+00> : vector<18x16xf32>
    %57 = tpu.matmul %54, %56, %cst_59 {dimension_numbers = #tpu.dot_dimension_numbers<[1], [0], [0], [1], [0, 0, 1, 1], [], []>} : vector<18x18xf32>, vector<18x16xf32>, vector<18x16xf32> -> vector<18x16xf32>
    %58 = arith.addf %51, %57 : vector<18x16xf32>
    %c7 = arith.constant 7 : index
    %c0_60 = arith.constant 0 : index
    %c0_61 = arith.constant 0 : index
    %59 = vector.load %arg5[%c7, %c0_60, %c0_61] : memref<9x18x18xf32, #tpu.memory_space<vmem>>, vector<1x18x18xf32>
    %60 = vector.shape_cast %59 : vector<1x18x18xf32> to vector<18x18xf32>
    %cst_62 = arith.constant dense<0.000000e+00> : vector<18x18xf32>
    %61 = tpu.matmul %60, %5, %cst_62 {dimension_numbers = #tpu.dot_dimension_numbers<[1], [0], [0], [1], [0, 0, 1, 1], [], []>} : vector<18x18xf32>, vector<18x18xf32>, vector<18x18xf32> -> vector<18x18xf32>
    %c7_63 = arith.constant 7 : index
    %c0_64 = arith.constant 0 : index
    %c0_65 = arith.constant 0 : index
    %62 = vector.load %arg7[%c7_63, %c0_64, %c0_65] : memref<9x18x16xf32, #tpu.memory_space<vmem>>, vector<1x18x16xf32>
    %63 = vector.shape_cast %62 : vector<1x18x16xf32> to vector<18x16xf32>
    %cst_66 = arith.constant dense<0.000000e+00> : vector<18x16xf32>
    %64 = tpu.matmul %61, %63, %cst_66 {dimension_numbers = #tpu.dot_dimension_numbers<[1], [0], [0], [1], [0, 0, 1, 1], [], []>} : vector<18x18xf32>, vector<18x16xf32>, vector<18x16xf32> -> vector<18x16xf32>
    %65 = arith.addf %58, %64 : vector<18x16xf32>
    %c8 = arith.constant 8 : index
    %c0_67 = arith.constant 0 : index
    %c0_68 = arith.constant 0 : index
    %66 = vector.load %arg5[%c8, %c0_67, %c0_68] : memref<9x18x18xf32, #tpu.memory_space<vmem>>, vector<1x18x18xf32>
    %67 = vector.shape_cast %66 : vector<1x18x18xf32> to vector<18x18xf32>
    %cst_69 = arith.constant dense<0.000000e+00> : vector<18x18xf32>
    %68 = tpu.matmul %67, %5, %cst_69 {dimension_numbers = #tpu.dot_dimension_numbers<[1], [0], [0], [1], [0, 0, 1, 1], [], []>} : vector<18x18xf32>, vector<18x18xf32>, vector<18x18xf32> -> vector<18x18xf32>
    %c8_70 = arith.constant 8 : index
    %c0_71 = arith.constant 0 : index
    %c0_72 = arith.constant 0 : index
    %69 = vector.load %arg7[%c8_70, %c0_71, %c0_72] : memref<9x18x16xf32, #tpu.memory_space<vmem>>, vector<1x18x16xf32>
    %70 = vector.shape_cast %69 : vector<1x18x16xf32> to vector<18x16xf32>
    %cst_73 = arith.constant dense<0.000000e+00> : vector<18x16xf32>
    %71 = tpu.matmul %68, %70, %cst_73 {dimension_numbers = #tpu.dot_dimension_numbers<[1], [0], [0], [1], [0, 0, 1, 1], [], []>} : vector<18x18xf32>, vector<18x16xf32>, vector<18x16xf32> -> vector<18x16xf32>
    %72 = arith.addf %65, %71 : vector<18x16xf32>
    %c0_74 = arith.constant 0 : index
    %c0_75 = arith.constant 0 : index
    %73 = vector.load %arg8[%c0_74, %c0_75] : memref<1x16xf32, #tpu.memory_space<vmem>>, vector<1x16xf32>
    %74 = vector.broadcast %73 : vector<1x16xf32> to vector<18x16xf32>
    %75 = arith.addf %72, %74 : vector<18x16xf32>
    %c0_76 = arith.constant 0 : index
    %c0_77 = arith.constant 0 : index
    %76 = vector.load %arg9[%c0_76, %c0_77] : memref<1x16xf32, #tpu.memory_space<vmem>>, vector<1x16xf32>
    %77 = vector.broadcast %76 : vector<1x16xf32> to vector<18x16xf32>
    %78 = arith.mulf %75, %77 : vector<18x16xf32>
    %c0_78 = arith.constant 0 : index
    %c0_79 = arith.constant 0 : index
    %79 = vector.load %arg10[%c0_78, %c0_79] : memref<1x16xf32, #tpu.memory_space<vmem>>, vector<1x16xf32>
    %80 = vector.broadcast %79 : vector<1x16xf32> to vector<18x16xf32>
    %81 = arith.addf %78, %80 : vector<18x16xf32>
    %cst_80 = arith.constant 0.000000e+00 : f32
    %82 = vector.broadcast %cst_80 : f32 to vector<18x16xf32>
    %83 = arith.maximumf %81, %82 : vector<18x16xf32>
    %c0_81 = arith.constant 0 : index
    %c0_82 = arith.constant 0 : index
    %c0_83 = arith.constant 0 : index
    %84 = vector.load %arg5[%c0_81, %c0_82, %c0_83] : memref<9x18x18xf32, #tpu.memory_space<vmem>>, vector<1x18x18xf32>
    %85 = vector.shape_cast %84 : vector<1x18x18xf32> to vector<18x18xf32>
    %cst_84 = arith.constant dense<0.000000e+00> : vector<18x16xf32>
    %86 = tpu.matmul %85, %83, %cst_84 {dimension_numbers = #tpu.dot_dimension_numbers<[1], [0], [0], [1], [0, 0, 1, 1], [], []>} : vector<18x18xf32>, vector<18x16xf32>, vector<18x16xf32> -> vector<18x16xf32>
    %c0_85 = arith.constant 0 : index
    %c0_86 = arith.constant 0 : index
    %c0_87 = arith.constant 0 : index
    %87 = vector.load %arg11[%c0_85, %c0_86, %c0_87] : memref<9x16x16xf32, #tpu.memory_space<vmem>>, vector<1x16x16xf32>
    %88 = vector.shape_cast %87 : vector<1x16x16xf32> to vector<16x16xf32>
    %cst_88 = arith.constant dense<0.000000e+00> : vector<18x16xf32>
    %89 = tpu.matmul %86, %88, %cst_88 {dimension_numbers = #tpu.dot_dimension_numbers<[1], [0], [0], [1], [0, 0, 1, 1], [], []>} : vector<18x16xf32>, vector<16x16xf32>, vector<18x16xf32> -> vector<18x16xf32>
    %c1_89 = arith.constant 1 : index
    %c0_90 = arith.constant 0 : index
    %c0_91 = arith.constant 0 : index
    %90 = vector.load %arg5[%c1_89, %c0_90, %c0_91] : memref<9x18x18xf32, #tpu.memory_space<vmem>>, vector<1x18x18xf32>
    %91 = vector.shape_cast %90 : vector<1x18x18xf32> to vector<18x18xf32>
    %cst_92 = arith.constant dense<0.000000e+00> : vector<18x16xf32>
    %92 = tpu.matmul %91, %83, %cst_92 {dimension_numbers = #tpu.dot_dimension_numbers<[1], [0], [0], [1], [0, 0, 1, 1], [], []>} : vector<18x18xf32>, vector<18x16xf32>, vector<18x16xf32> -> vector<18x16xf32>
    %c1_93 = arith.constant 1 : index
    %c0_94 = arith.constant 0 : index
    %c0_95 = arith.constant 0 : index
    %93 = vector.load %arg11[%c1_93, %c0_94, %c0_95] : memref<9x16x16xf32, #tpu.memory_space<vmem>>, vector<1x16x16xf32>
    %94 = vector.shape_cast %93 : vector<1x16x16xf32> to vector<16x16xf32>
    %cst_96 = arith.constant dense<0.000000e+00> : vector<18x16xf32>
    %95 = tpu.matmul %92, %94, %cst_96 {dimension_numbers = #tpu.dot_dimension_numbers<[1], [0], [0], [1], [0, 0, 1, 1], [], []>} : vector<18x16xf32>, vector<16x16xf32>, vector<18x16xf32> -> vector<18x16xf32>
    %96 = arith.addf %89, %95 : vector<18x16xf32>
    %c2_97 = arith.constant 2 : index
    %c0_98 = arith.constant 0 : index
    %c0_99 = arith.constant 0 : index
    %97 = vector.load %arg5[%c2_97, %c0_98, %c0_99] : memref<9x18x18xf32, #tpu.memory_space<vmem>>, vector<1x18x18xf32>
    %98 = vector.shape_cast %97 : vector<1x18x18xf32> to vector<18x18xf32>
    %cst_100 = arith.constant dense<0.000000e+00> : vector<18x16xf32>
    %99 = tpu.matmul %98, %83, %cst_100 {dimension_numbers = #tpu.dot_dimension_numbers<[1], [0], [0], [1], [0, 0, 1, 1], [], []>} : vector<18x18xf32>, vector<18x16xf32>, vector<18x16xf32> -> vector<18x16xf32>
    %c2_101 = arith.constant 2 : index
    %c0_102 = arith.constant 0 : index
    %c0_103 = arith.constant 0 : index
    %100 = vector.load %arg11[%c2_101, %c0_102, %c0_103] : memref<9x16x16xf32, #tpu.memory_space<vmem>>, vector<1x16x16xf32>
    %101 = vector.shape_cast %100 : vector<1x16x16xf32> to vector<16x16xf32>
    %cst_104 = arith.constant dense<0.000000e+00> : vector<18x16xf32>
    %102 = tpu.matmul %99, %101, %cst_104 {dimension_numbers = #tpu.dot_dimension_numbers<[1], [0], [0], [1], [0, 0, 1, 1], [], []>} : vector<18x16xf32>, vector<16x16xf32>, vector<18x16xf32> -> vector<18x16xf32>
    %103 = arith.addf %96, %102 : vector<18x16xf32>
    %c3_105 = arith.constant 3 : index
    %c0_106 = arith.constant 0 : index
    %c0_107 = arith.constant 0 : index
    %104 = vector.load %arg5[%c3_105, %c0_106, %c0_107] : memref<9x18x18xf32, #tpu.memory_space<vmem>>, vector<1x18x18xf32>
    %105 = vector.shape_cast %104 : vector<1x18x18xf32> to vector<18x18xf32>
    %cst_108 = arith.constant dense<0.000000e+00> : vector<18x16xf32>
    %106 = tpu.matmul %105, %83, %cst_108 {dimension_numbers = #tpu.dot_dimension_numbers<[1], [0], [0], [1], [0, 0, 1, 1], [], []>} : vector<18x18xf32>, vector<18x16xf32>, vector<18x16xf32> -> vector<18x16xf32>
    %c3_109 = arith.constant 3 : index
    %c0_110 = arith.constant 0 : index
    %c0_111 = arith.constant 0 : index
    %107 = vector.load %arg11[%c3_109, %c0_110, %c0_111] : memref<9x16x16xf32, #tpu.memory_space<vmem>>, vector<1x16x16xf32>
    %108 = vector.shape_cast %107 : vector<1x16x16xf32> to vector<16x16xf32>
    %cst_112 = arith.constant dense<0.000000e+00> : vector<18x16xf32>
    %109 = tpu.matmul %106, %108, %cst_112 {dimension_numbers = #tpu.dot_dimension_numbers<[1], [0], [0], [1], [0, 0, 1, 1], [], []>} : vector<18x16xf32>, vector<16x16xf32>, vector<18x16xf32> -> vector<18x16xf32>
    %110 = arith.addf %103, %109 : vector<18x16xf32>
    %c4_113 = arith.constant 4 : index
    %c0_114 = arith.constant 0 : index
    %c0_115 = arith.constant 0 : index
    %111 = vector.load %arg5[%c4_113, %c0_114, %c0_115] : memref<9x18x18xf32, #tpu.memory_space<vmem>>, vector<1x18x18xf32>
    %112 = vector.shape_cast %111 : vector<1x18x18xf32> to vector<18x18xf32>
    %cst_116 = arith.constant dense<0.000000e+00> : vector<18x16xf32>
    %113 = tpu.matmul %112, %83, %cst_116 {dimension_numbers = #tpu.dot_dimension_numbers<[1], [0], [0], [1], [0, 0, 1, 1], [], []>} : vector<18x18xf32>, vector<18x16xf32>, vector<18x16xf32> -> vector<18x16xf32>
    %c4_117 = arith.constant 4 : index
    %c0_118 = arith.constant 0 : index
    %c0_119 = arith.constant 0 : index
    %114 = vector.load %arg11[%c4_117, %c0_118, %c0_119] : memref<9x16x16xf32, #tpu.memory_space<vmem>>, vector<1x16x16xf32>
    %115 = vector.shape_cast %114 : vector<1x16x16xf32> to vector<16x16xf32>
    %cst_120 = arith.constant dense<0.000000e+00> : vector<18x16xf32>
    %116 = tpu.matmul %113, %115, %cst_120 {dimension_numbers = #tpu.dot_dimension_numbers<[1], [0], [0], [1], [0, 0, 1, 1], [], []>} : vector<18x16xf32>, vector<16x16xf32>, vector<18x16xf32> -> vector<18x16xf32>
    %117 = arith.addf %110, %116 : vector<18x16xf32>
    %c5_121 = arith.constant 5 : index
    %c0_122 = arith.constant 0 : index
    %c0_123 = arith.constant 0 : index
    %118 = vector.load %arg5[%c5_121, %c0_122, %c0_123] : memref<9x18x18xf32, #tpu.memory_space<vmem>>, vector<1x18x18xf32>
    %119 = vector.shape_cast %118 : vector<1x18x18xf32> to vector<18x18xf32>
    %cst_124 = arith.constant dense<0.000000e+00> : vector<18x16xf32>
    %120 = tpu.matmul %119, %83, %cst_124 {dimension_numbers = #tpu.dot_dimension_numbers<[1], [0], [0], [1], [0, 0, 1, 1], [], []>} : vector<18x18xf32>, vector<18x16xf32>, vector<18x16xf32> -> vector<18x16xf32>
    %c5_125 = arith.constant 5 : index
    %c0_126 = arith.constant 0 : index
    %c0_127 = arith.constant 0 : index
    %121 = vector.load %arg11[%c5_125, %c0_126, %c0_127] : memref<9x16x16xf32, #tpu.memory_space<vmem>>, vector<1x16x16xf32>
    %122 = vector.shape_cast %121 : vector<1x16x16xf32> to vector<16x16xf32>
    %cst_128 = arith.constant dense<0.000000e+00> : vector<18x16xf32>
    %123 = tpu.matmul %120, %122, %cst_128 {dimension_numbers = #tpu.dot_dimension_numbers<[1], [0], [0], [1], [0, 0, 1, 1], [], []>} : vector<18x16xf32>, vector<16x16xf32>, vector<18x16xf32> -> vector<18x16xf32>
    %124 = arith.addf %117, %123 : vector<18x16xf32>
    %c6_129 = arith.constant 6 : index
    %c0_130 = arith.constant 0 : index
    %c0_131 = arith.constant 0 : index
    %125 = vector.load %arg5[%c6_129, %c0_130, %c0_131] : memref<9x18x18xf32, #tpu.memory_space<vmem>>, vector<1x18x18xf32>
    %126 = vector.shape_cast %125 : vector<1x18x18xf32> to vector<18x18xf32>
    %cst_132 = arith.constant dense<0.000000e+00> : vector<18x16xf32>
    %127 = tpu.matmul %126, %83, %cst_132 {dimension_numbers = #tpu.dot_dimension_numbers<[1], [0], [0], [1], [0, 0, 1, 1], [], []>} : vector<18x18xf32>, vector<18x16xf32>, vector<18x16xf32> -> vector<18x16xf32>
    %c6_133 = arith.constant 6 : index
    %c0_134 = arith.constant 0 : index
    %c0_135 = arith.constant 0 : index
    %128 = vector.load %arg11[%c6_133, %c0_134, %c0_135] : memref<9x16x16xf32, #tpu.memory_space<vmem>>, vector<1x16x16xf32>
    %129 = vector.shape_cast %128 : vector<1x16x16xf32> to vector<16x16xf32>
    %cst_136 = arith.constant dense<0.000000e+00> : vector<18x16xf32>
    %130 = tpu.matmul %127, %129, %cst_136 {dimension_numbers = #tpu.dot_dimension_numbers<[1], [0], [0], [1], [0, 0, 1, 1], [], []>} : vector<18x16xf32>, vector<16x16xf32>, vector<18x16xf32> -> vector<18x16xf32>
    %131 = arith.addf %124, %130 : vector<18x16xf32>
    %c7_137 = arith.constant 7 : index
    %c0_138 = arith.constant 0 : index
    %c0_139 = arith.constant 0 : index
    %132 = vector.load %arg5[%c7_137, %c0_138, %c0_139] : memref<9x18x18xf32, #tpu.memory_space<vmem>>, vector<1x18x18xf32>
    %133 = vector.shape_cast %132 : vector<1x18x18xf32> to vector<18x18xf32>
    %cst_140 = arith.constant dense<0.000000e+00> : vector<18x16xf32>
    %134 = tpu.matmul %133, %83, %cst_140 {dimension_numbers = #tpu.dot_dimension_numbers<[1], [0], [0], [1], [0, 0, 1, 1], [], []>} : vector<18x18xf32>, vector<18x16xf32>, vector<18x16xf32> -> vector<18x16xf32>
    %c7_141 = arith.constant 7 : index
    %c0_142 = arith.constant 0 : index
    %c0_143 = arith.constant 0 : index
    %135 = vector.load %arg11[%c7_141, %c0_142, %c0_143] : memref<9x16x16xf32, #tpu.memory_space<vmem>>, vector<1x16x16xf32>
    %136 = vector.shape_cast %135 : vector<1x16x16xf32> to vector<16x16xf32>
    %cst_144 = arith.constant dense<0.000000e+00> : vector<18x16xf32>
    %137 = tpu.matmul %134, %136, %cst_144 {dimension_numbers = #tpu.dot_dimension_numbers<[1], [0], [0], [1], [0, 0, 1, 1], [], []>} : vector<18x16xf32>, vector<16x16xf32>, vector<18x16xf32> -> vector<18x16xf32>
    %138 = arith.addf %131, %137 : vector<18x16xf32>
    %c8_145 = arith.constant 8 : index
    %c0_146 = arith.constant 0 : index
    %c0_147 = arith.constant 0 : index
    %139 = vector.load %arg5[%c8_145, %c0_146, %c0_147] : memref<9x18x18xf32, #tpu.memory_space<vmem>>, vector<1x18x18xf32>
    %140 = vector.shape_cast %139 : vector<1x18x18xf32> to vector<18x18xf32>
    %cst_148 = arith.constant dense<0.000000e+00> : vector<18x16xf32>
    %141 = tpu.matmul %140, %83, %cst_148 {dimension_numbers = #tpu.dot_dimension_numbers<[1], [0], [0], [1], [0, 0, 1, 1], [], []>} : vector<18x18xf32>, vector<18x16xf32>, vector<18x16xf32> -> vector<18x16xf32>
    %c8_149 = arith.constant 8 : index
    %c0_150 = arith.constant 0 : index
    %c0_151 = arith.constant 0 : index
    %142 = vector.load %arg11[%c8_149, %c0_150, %c0_151] : memref<9x16x16xf32, #tpu.memory_space<vmem>>, vector<1x16x16xf32>
    %143 = vector.shape_cast %142 : vector<1x16x16xf32> to vector<16x16xf32>
    %cst_152 = arith.constant dense<0.000000e+00> : vector<18x16xf32>
    %144 = tpu.matmul %141, %143, %cst_152 {dimension_numbers = #tpu.dot_dimension_numbers<[1], [0], [0], [1], [0, 0, 1, 1], [], []>} : vector<18x16xf32>, vector<16x16xf32>, vector<18x16xf32> -> vector<18x16xf32>
    %145 = arith.addf %138, %144 : vector<18x16xf32>
    %c0_153 = arith.constant 0 : index
    %c0_154 = arith.constant 0 : index
    %146 = vector.load %arg12[%c0_153, %c0_154] : memref<1x16xf32, #tpu.memory_space<vmem>>, vector<1x16xf32>
    %147 = vector.broadcast %146 : vector<1x16xf32> to vector<18x16xf32>
    %148 = arith.addf %145, %147 : vector<18x16xf32>
    %c0_155 = arith.constant 0 : index
    %c0_156 = arith.constant 0 : index
    %149 = vector.load %arg13[%c0_155, %c0_156] : memref<1x16xf32, #tpu.memory_space<vmem>>, vector<1x16xf32>
    %150 = vector.broadcast %149 : vector<1x16xf32> to vector<18x16xf32>
    %151 = arith.mulf %148, %150 : vector<18x16xf32>
    %c0_157 = arith.constant 0 : index
    %c0_158 = arith.constant 0 : index
    %152 = vector.load %arg14[%c0_157, %c0_158] : memref<1x16xf32, #tpu.memory_space<vmem>>, vector<1x16xf32>
    %153 = vector.broadcast %152 : vector<1x16xf32> to vector<18x16xf32>
    %154 = arith.addf %151, %153 : vector<18x16xf32>
    %cst_159 = arith.constant 0.000000e+00 : f32
    %155 = vector.broadcast %cst_159 : f32 to vector<18x16xf32>
    %156 = arith.maximumf %154, %155 : vector<18x16xf32>
    %c0_160 = arith.constant 0 : index
    %c0_161 = arith.constant 0 : index
    %c0_162 = arith.constant 0 : index
    %157 = vector.load %arg5[%c0_160, %c0_161, %c0_162] : memref<9x18x18xf32, #tpu.memory_space<vmem>>, vector<1x18x18xf32>
    %158 = vector.shape_cast %157 : vector<1x18x18xf32> to vector<18x18xf32>
    %cst_163 = arith.constant dense<0.000000e+00> : vector<18x16xf32>
    %159 = tpu.matmul %158, %156, %cst_163 {dimension_numbers = #tpu.dot_dimension_numbers<[1], [0], [0], [1], [0, 0, 1, 1], [], []>} : vector<18x18xf32>, vector<18x16xf32>, vector<18x16xf32> -> vector<18x16xf32>
    %c0_164 = arith.constant 0 : index
    %c0_165 = arith.constant 0 : index
    %c0_166 = arith.constant 0 : index
    %160 = vector.load %arg15[%c0_164, %c0_165, %c0_166] : memref<9x16x18xf32, #tpu.memory_space<vmem>>, vector<1x16x18xf32>
    %161 = vector.shape_cast %160 : vector<1x16x18xf32> to vector<16x18xf32>
    %cst_167 = arith.constant dense<0.000000e+00> : vector<18x18xf32>
    %162 = tpu.matmul %159, %161, %cst_167 {dimension_numbers = #tpu.dot_dimension_numbers<[1], [0], [0], [1], [0, 0, 1, 1], [], []>} : vector<18x16xf32>, vector<16x18xf32>, vector<18x18xf32> -> vector<18x18xf32>
    %c0_168 = arith.constant 0 : index
    %c0_169 = arith.constant 0 : index
    %c0_170 = arith.constant 0 : index
    %163 = vector.load %arg17[%c0_168, %c0_169, %c0_170] : memref<9x16x18xf32, #tpu.memory_space<vmem>>, vector<1x16x18xf32>
    %164 = vector.shape_cast %163 : vector<1x16x18xf32> to vector<16x18xf32>
    %cst_171 = arith.constant dense<0.000000e+00> : vector<18x18xf32>
    %165 = tpu.matmul %159, %164, %cst_171 {dimension_numbers = #tpu.dot_dimension_numbers<[1], [0], [0], [1], [0, 0, 1, 1], [], []>} : vector<18x16xf32>, vector<16x18xf32>, vector<18x18xf32> -> vector<18x18xf32>
    %c1_172 = arith.constant 1 : index
    %c0_173 = arith.constant 0 : index
    %c0_174 = arith.constant 0 : index
    %166 = vector.load %arg5[%c1_172, %c0_173, %c0_174] : memref<9x18x18xf32, #tpu.memory_space<vmem>>, vector<1x18x18xf32>
    %167 = vector.shape_cast %166 : vector<1x18x18xf32> to vector<18x18xf32>
    %cst_175 = arith.constant dense<0.000000e+00> : vector<18x16xf32>
    %168 = tpu.matmul %167, %156, %cst_175 {dimension_numbers = #tpu.dot_dimension_numbers<[1], [0], [0], [1], [0, 0, 1, 1], [], []>} : vector<18x18xf32>, vector<18x16xf32>, vector<18x16xf32> -> vector<18x16xf32>
    %c1_176 = arith.constant 1 : index
    %c0_177 = arith.constant 0 : index
    %c0_178 = arith.constant 0 : index
    %169 = vector.load %arg15[%c1_176, %c0_177, %c0_178] : memref<9x16x18xf32, #tpu.memory_space<vmem>>, vector<1x16x18xf32>
    %170 = vector.shape_cast %169 : vector<1x16x18xf32> to vector<16x18xf32>
    %cst_179 = arith.constant dense<0.000000e+00> : vector<18x18xf32>
    %171 = tpu.matmul %168, %170, %cst_179 {dimension_numbers = #tpu.dot_dimension_numbers<[1], [0], [0], [1], [0, 0, 1, 1], [], []>} : vector<18x16xf32>, vector<16x18xf32>, vector<18x18xf32> -> vector<18x18xf32>
    %c1_180 = arith.constant 1 : index
    %c0_181 = arith.constant 0 : index
    %c0_182 = arith.constant 0 : index
    %172 = vector.load %arg17[%c1_180, %c0_181, %c0_182] : memref<9x16x18xf32, #tpu.memory_space<vmem>>, vector<1x16x18xf32>
    %173 = vector.shape_cast %172 : vector<1x16x18xf32> to vector<16x18xf32>
    %cst_183 = arith.constant dense<0.000000e+00> : vector<18x18xf32>
    %174 = tpu.matmul %168, %173, %cst_183 {dimension_numbers = #tpu.dot_dimension_numbers<[1], [0], [0], [1], [0, 0, 1, 1], [], []>} : vector<18x16xf32>, vector<16x18xf32>, vector<18x18xf32> -> vector<18x18xf32>
    %175 = arith.addf %162, %171 : vector<18x18xf32>
    %176 = arith.addf %165, %174 : vector<18x18xf32>
    %c2_184 = arith.constant 2 : index
    %c0_185 = arith.constant 0 : index
    %c0_186 = arith.constant 0 : index
    %177 = vector.load %arg5[%c2_184, %c0_185, %c0_186] : memref<9x18x18xf32, #tpu.memory_space<vmem>>, vector<1x18x18xf32>
    %178 = vector.shape_cast %177 : vector<1x18x18xf32> to vector<18x18xf32>
    %cst_187 = arith.constant dense<0.000000e+00> : vector<18x16xf32>
    %179 = tpu.matmul %178, %156, %cst_187 {dimension_numbers = #tpu.dot_dimension_numbers<[1], [0], [0], [1], [0, 0, 1, 1], [], []>} : vector<18x18xf32>, vector<18x16xf32>, vector<18x16xf32> -> vector<18x16xf32>
    %c2_188 = arith.constant 2 : index
    %c0_189 = arith.constant 0 : index
    %c0_190 = arith.constant 0 : index
    %180 = vector.load %arg15[%c2_188, %c0_189, %c0_190] : memref<9x16x18xf32, #tpu.memory_space<vmem>>, vector<1x16x18xf32>
    %181 = vector.shape_cast %180 : vector<1x16x18xf32> to vector<16x18xf32>
    %cst_191 = arith.constant dense<0.000000e+00> : vector<18x18xf32>
    %182 = tpu.matmul %179, %181, %cst_191 {dimension_numbers = #tpu.dot_dimension_numbers<[1], [0], [0], [1], [0, 0, 1, 1], [], []>} : vector<18x16xf32>, vector<16x18xf32>, vector<18x18xf32> -> vector<18x18xf32>
    %c2_192 = arith.constant 2 : index
    %c0_193 = arith.constant 0 : index
    %c0_194 = arith.constant 0 : index
    %183 = vector.load %arg17[%c2_192, %c0_193, %c0_194] : memref<9x16x18xf32, #tpu.memory_space<vmem>>, vector<1x16x18xf32>
    %184 = vector.shape_cast %183 : vector<1x16x18xf32> to vector<16x18xf32>
    %cst_195 = arith.constant dense<0.000000e+00> : vector<18x18xf32>
    %185 = tpu.matmul %179, %184, %cst_195 {dimension_numbers = #tpu.dot_dimension_numbers<[1], [0], [0], [1], [0, 0, 1, 1], [], []>} : vector<18x16xf32>, vector<16x18xf32>, vector<18x18xf32> -> vector<18x18xf32>
    %186 = arith.addf %175, %182 : vector<18x18xf32>
    %187 = arith.addf %176, %185 : vector<18x18xf32>
    %c3_196 = arith.constant 3 : index
    %c0_197 = arith.constant 0 : index
    %c0_198 = arith.constant 0 : index
    %188 = vector.load %arg5[%c3_196, %c0_197, %c0_198] : memref<9x18x18xf32, #tpu.memory_space<vmem>>, vector<1x18x18xf32>
    %189 = vector.shape_cast %188 : vector<1x18x18xf32> to vector<18x18xf32>
    %cst_199 = arith.constant dense<0.000000e+00> : vector<18x16xf32>
    %190 = tpu.matmul %189, %156, %cst_199 {dimension_numbers = #tpu.dot_dimension_numbers<[1], [0], [0], [1], [0, 0, 1, 1], [], []>} : vector<18x18xf32>, vector<18x16xf32>, vector<18x16xf32> -> vector<18x16xf32>
    %c3_200 = arith.constant 3 : index
    %c0_201 = arith.constant 0 : index
    %c0_202 = arith.constant 0 : index
    %191 = vector.load %arg15[%c3_200, %c0_201, %c0_202] : memref<9x16x18xf32, #tpu.memory_space<vmem>>, vector<1x16x18xf32>
    %192 = vector.shape_cast %191 : vector<1x16x18xf32> to vector<16x18xf32>
    %cst_203 = arith.constant dense<0.000000e+00> : vector<18x18xf32>
    %193 = tpu.matmul %190, %192, %cst_203 {dimension_numbers = #tpu.dot_dimension_numbers<[1], [0], [0], [1], [0, 0, 1, 1], [], []>} : vector<18x16xf32>, vector<16x18xf32>, vector<18x18xf32> -> vector<18x18xf32>
    %c3_204 = arith.constant 3 : index
    %c0_205 = arith.constant 0 : index
    %c0_206 = arith.constant 0 : index
    %194 = vector.load %arg17[%c3_204, %c0_205, %c0_206] : memref<9x16x18xf32, #tpu.memory_space<vmem>>, vector<1x16x18xf32>
    %195 = vector.shape_cast %194 : vector<1x16x18xf32> to vector<16x18xf32>
    %cst_207 = arith.constant dense<0.000000e+00> : vector<18x18xf32>
    %196 = tpu.matmul %190, %195, %cst_207 {dimension_numbers = #tpu.dot_dimension_numbers<[1], [0], [0], [1], [0, 0, 1, 1], [], []>} : vector<18x16xf32>, vector<16x18xf32>, vector<18x18xf32> -> vector<18x18xf32>
    %197 = arith.addf %186, %193 : vector<18x18xf32>
    %198 = arith.addf %187, %196 : vector<18x18xf32>
    %c4_208 = arith.constant 4 : index
    %c0_209 = arith.constant 0 : index
    %c0_210 = arith.constant 0 : index
    %199 = vector.load %arg5[%c4_208, %c0_209, %c0_210] : memref<9x18x18xf32, #tpu.memory_space<vmem>>, vector<1x18x18xf32>
    %200 = vector.shape_cast %199 : vector<1x18x18xf32> to vector<18x18xf32>
    %cst_211 = arith.constant dense<0.000000e+00> : vector<18x16xf32>
    %201 = tpu.matmul %200, %156, %cst_211 {dimension_numbers = #tpu.dot_dimension_numbers<[1], [0], [0], [1], [0, 0, 1, 1], [], []>} : vector<18x18xf32>, vector<18x16xf32>, vector<18x16xf32> -> vector<18x16xf32>
    %c4_212 = arith.constant 4 : index
    %c0_213 = arith.constant 0 : index
    %c0_214 = arith.constant 0 : index
    %202 = vector.load %arg15[%c4_212, %c0_213, %c0_214] : memref<9x16x18xf32, #tpu.memory_space<vmem>>, vector<1x16x18xf32>
    %203 = vector.shape_cast %202 : vector<1x16x18xf32> to vector<16x18xf32>
    %cst_215 = arith.constant dense<0.000000e+00> : vector<18x18xf32>
    %204 = tpu.matmul %201, %203, %cst_215 {dimension_numbers = #tpu.dot_dimension_numbers<[1], [0], [0], [1], [0, 0, 1, 1], [], []>} : vector<18x16xf32>, vector<16x18xf32>, vector<18x18xf32> -> vector<18x18xf32>
    %c4_216 = arith.constant 4 : index
    %c0_217 = arith.constant 0 : index
    %c0_218 = arith.constant 0 : index
    %205 = vector.load %arg17[%c4_216, %c0_217, %c0_218] : memref<9x16x18xf32, #tpu.memory_space<vmem>>, vector<1x16x18xf32>
    %206 = vector.shape_cast %205 : vector<1x16x18xf32> to vector<16x18xf32>
    %cst_219 = arith.constant dense<0.000000e+00> : vector<18x18xf32>
    %207 = tpu.matmul %201, %206, %cst_219 {dimension_numbers = #tpu.dot_dimension_numbers<[1], [0], [0], [1], [0, 0, 1, 1], [], []>} : vector<18x16xf32>, vector<16x18xf32>, vector<18x18xf32> -> vector<18x18xf32>
    %208 = arith.addf %197, %204 : vector<18x18xf32>
    %209 = arith.addf %198, %207 : vector<18x18xf32>
    %c5_220 = arith.constant 5 : index
    %c0_221 = arith.constant 0 : index
    %c0_222 = arith.constant 0 : index
    %210 = vector.load %arg5[%c5_220, %c0_221, %c0_222] : memref<9x18x18xf32, #tpu.memory_space<vmem>>, vector<1x18x18xf32>
    %211 = vector.shape_cast %210 : vector<1x18x18xf32> to vector<18x18xf32>
    %cst_223 = arith.constant dense<0.000000e+00> : vector<18x16xf32>
    %212 = tpu.matmul %211, %156, %cst_223 {dimension_numbers = #tpu.dot_dimension_numbers<[1], [0], [0], [1], [0, 0, 1, 1], [], []>} : vector<18x18xf32>, vector<18x16xf32>, vector<18x16xf32> -> vector<18x16xf32>
    %c5_224 = arith.constant 5 : index
    %c0_225 = arith.constant 0 : index
    %c0_226 = arith.constant 0 : index
    %213 = vector.load %arg15[%c5_224, %c0_225, %c0_226] : memref<9x16x18xf32, #tpu.memory_space<vmem>>, vector<1x16x18xf32>
    %214 = vector.shape_cast %213 : vector<1x16x18xf32> to vector<16x18xf32>
    %cst_227 = arith.constant dense<0.000000e+00> : vector<18x18xf32>
    %215 = tpu.matmul %212, %214, %cst_227 {dimension_numbers = #tpu.dot_dimension_numbers<[1], [0], [0], [1], [0, 0, 1, 1], [], []>} : vector<18x16xf32>, vector<16x18xf32>, vector<18x18xf32> -> vector<18x18xf32>
    %c5_228 = arith.constant 5 : index
    %c0_229 = arith.constant 0 : index
    %c0_230 = arith.constant 0 : index
    %216 = vector.load %arg17[%c5_228, %c0_229, %c0_230] : memref<9x16x18xf32, #tpu.memory_space<vmem>>, vector<1x16x18xf32>
    %217 = vector.shape_cast %216 : vector<1x16x18xf32> to vector<16x18xf32>
    %cst_231 = arith.constant dense<0.000000e+00> : vector<18x18xf32>
    %218 = tpu.matmul %212, %217, %cst_231 {dimension_numbers = #tpu.dot_dimension_numbers<[1], [0], [0], [1], [0, 0, 1, 1], [], []>} : vector<18x16xf32>, vector<16x18xf32>, vector<18x18xf32> -> vector<18x18xf32>
    %219 = arith.addf %208, %215 : vector<18x18xf32>
    %220 = arith.addf %209, %218 : vector<18x18xf32>
    %c6_232 = arith.constant 6 : index
    %c0_233 = arith.constant 0 : index
    %c0_234 = arith.constant 0 : index
    %221 = vector.load %arg5[%c6_232, %c0_233, %c0_234] : memref<9x18x18xf32, #tpu.memory_space<vmem>>, vector<1x18x18xf32>
    %222 = vector.shape_cast %221 : vector<1x18x18xf32> to vector<18x18xf32>
    %cst_235 = arith.constant dense<0.000000e+00> : vector<18x16xf32>
    %223 = tpu.matmul %222, %156, %cst_235 {dimension_numbers = #tpu.dot_dimension_numbers<[1], [0], [0], [1], [0, 0, 1, 1], [], []>} : vector<18x18xf32>, vector<18x16xf32>, vector<18x16xf32> -> vector<18x16xf32>
    %c6_236 = arith.constant 6 : index
    %c0_237 = arith.constant 0 : index
    %c0_238 = arith.constant 0 : index
    %224 = vector.load %arg15[%c6_236, %c0_237, %c0_238] : memref<9x16x18xf32, #tpu.memory_space<vmem>>, vector<1x16x18xf32>
    %225 = vector.shape_cast %224 : vector<1x16x18xf32> to vector<16x18xf32>
    %cst_239 = arith.constant dense<0.000000e+00> : vector<18x18xf32>
    %226 = tpu.matmul %223, %225, %cst_239 {dimension_numbers = #tpu.dot_dimension_numbers<[1], [0], [0], [1], [0, 0, 1, 1], [], []>} : vector<18x16xf32>, vector<16x18xf32>, vector<18x18xf32> -> vector<18x18xf32>
    %c6_240 = arith.constant 6 : index
    %c0_241 = arith.constant 0 : index
    %c0_242 = arith.constant 0 : index
    %227 = vector.load %arg17[%c6_240, %c0_241, %c0_242] : memref<9x16x18xf32, #tpu.memory_space<vmem>>, vector<1x16x18xf32>
    %228 = vector.shape_cast %227 : vector<1x16x18xf32> to vector<16x18xf32>
    %cst_243 = arith.constant dense<0.000000e+00> : vector<18x18xf32>
    %229 = tpu.matmul %223, %228, %cst_243 {dimension_numbers = #tpu.dot_dimension_numbers<[1], [0], [0], [1], [0, 0, 1, 1], [], []>} : vector<18x16xf32>, vector<16x18xf32>, vector<18x18xf32> -> vector<18x18xf32>
    %230 = arith.addf %219, %226 : vector<18x18xf32>
    %231 = arith.addf %220, %229 : vector<18x18xf32>
    %c7_244 = arith.constant 7 : index
    %c0_245 = arith.constant 0 : index
    %c0_246 = arith.constant 0 : index
    %232 = vector.load %arg5[%c7_244, %c0_245, %c0_246] : memref<9x18x18xf32, #tpu.memory_space<vmem>>, vector<1x18x18xf32>
    %233 = vector.shape_cast %232 : vector<1x18x18xf32> to vector<18x18xf32>
    %cst_247 = arith.constant dense<0.000000e+00> : vector<18x16xf32>
    %234 = tpu.matmul %233, %156, %cst_247 {dimension_numbers = #tpu.dot_dimension_numbers<[1], [0], [0], [1], [0, 0, 1, 1], [], []>} : vector<18x18xf32>, vector<18x16xf32>, vector<18x16xf32> -> vector<18x16xf32>
    %c7_248 = arith.constant 7 : index
    %c0_249 = arith.constant 0 : index
    %c0_250 = arith.constant 0 : index
    %235 = vector.load %arg15[%c7_248, %c0_249, %c0_250] : memref<9x16x18xf32, #tpu.memory_space<vmem>>, vector<1x16x18xf32>
    %236 = vector.shape_cast %235 : vector<1x16x18xf32> to vector<16x18xf32>
    %cst_251 = arith.constant dense<0.000000e+00> : vector<18x18xf32>
    %237 = tpu.matmul %234, %236, %cst_251 {dimension_numbers = #tpu.dot_dimension_numbers<[1], [0], [0], [1], [0, 0, 1, 1], [], []>} : vector<18x16xf32>, vector<16x18xf32>, vector<18x18xf32> -> vector<18x18xf32>
    %c7_252 = arith.constant 7 : index
    %c0_253 = arith.constant 0 : index
    %c0_254 = arith.constant 0 : index
    %238 = vector.load %arg17[%c7_252, %c0_253, %c0_254] : memref<9x16x18xf32, #tpu.memory_space<vmem>>, vector<1x16x18xf32>
    %239 = vector.shape_cast %238 : vector<1x16x18xf32> to vector<16x18xf32>
    %cst_255 = arith.constant dense<0.000000e+00> : vector<18x18xf32>
    %240 = tpu.matmul %234, %239, %cst_255 {dimension_numbers = #tpu.dot_dimension_numbers<[1], [0], [0], [1], [0, 0, 1, 1], [], []>} : vector<18x16xf32>, vector<16x18xf32>, vector<18x18xf32> -> vector<18x18xf32>
    %241 = arith.addf %230, %237 : vector<18x18xf32>
    %242 = arith.addf %231, %240 : vector<18x18xf32>
    %c8_256 = arith.constant 8 : index
    %c0_257 = arith.constant 0 : index
    %c0_258 = arith.constant 0 : index
    %243 = vector.load %arg5[%c8_256, %c0_257, %c0_258] : memref<9x18x18xf32, #tpu.memory_space<vmem>>, vector<1x18x18xf32>
    %244 = vector.shape_cast %243 : vector<1x18x18xf32> to vector<18x18xf32>
    %cst_259 = arith.constant dense<0.000000e+00> : vector<18x16xf32>
    %245 = tpu.matmul %244, %156, %cst_259 {dimension_numbers = #tpu.dot_dimension_numbers<[1], [0], [0], [1], [0, 0, 1, 1], [], []>} : vector<18x18xf32>, vector<18x16xf32>, vector<18x16xf32> -> vector<18x16xf32>
    %c8_260 = arith.constant 8 : index
    %c0_261 = arith.constant 0 : index
    %c0_262 = arith.constant 0 : index
    %246 = vector.load %arg15[%c8_260, %c0_261, %c0_262] : memref<9x16x18xf32, #tpu.memory_space<vmem>>, vector<1x16x18xf32>
    %247 = vector.shape_cast %246 : vector<1x16x18xf32> to vector<16x18xf32>
    %cst_263 = arith.constant dense<0.000000e+00> : vector<18x18xf32>
    %248 = tpu.matmul %245, %247, %cst_263 {dimension_numbers = #tpu.dot_dimension_numbers<[1], [0], [0], [1], [0, 0, 1, 1], [], []>} : vector<18x16xf32>, vector<16x18xf32>, vector<18x18xf32> -> vector<18x18xf32>
    %c8_264 = arith.constant 8 : index
    %c0_265 = arith.constant 0 : index
    %c0_266 = arith.constant 0 : index
    %249 = vector.load %arg17[%c8_264, %c0_265, %c0_266] : memref<9x16x18xf32, #tpu.memory_space<vmem>>, vector<1x16x18xf32>
    %250 = vector.shape_cast %249 : vector<1x16x18xf32> to vector<16x18xf32>
    %cst_267 = arith.constant dense<0.000000e+00> : vector<18x18xf32>
    %251 = tpu.matmul %245, %250, %cst_267 {dimension_numbers = #tpu.dot_dimension_numbers<[1], [0], [0], [1], [0, 0, 1, 1], [], []>} : vector<18x16xf32>, vector<16x18xf32>, vector<18x18xf32> -> vector<18x18xf32>
    %252 = arith.addf %241, %248 : vector<18x18xf32>
    %253 = arith.addf %242, %251 : vector<18x18xf32>
    %c0_268 = arith.constant 0 : index
    %c0_269 = arith.constant 0 : index
    %254 = vector.load %arg16[%c0_268, %c0_269] : memref<1x18xf32, #tpu.memory_space<vmem>>, vector<1x18xf32>
    %255 = vector.broadcast %254 : vector<1x18xf32> to vector<18x18xf32>
    %256 = arith.addf %252, %255 : vector<18x18xf32>
    %c0_270 = arith.constant 0 : index
    %c0_271 = arith.constant 0 : index
    %257 = vector.load %arg18[%c0_270, %c0_271] : memref<1x18xf32, #tpu.memory_space<vmem>>, vector<1x18xf32>
    %258 = vector.broadcast %257 : vector<1x18xf32> to vector<18x18xf32>
    %259 = arith.addf %253, %258 : vector<18x18xf32>
    %cst_272 = arith.constant 0.000000e+00 : f32
    %260 = vector.broadcast %cst_272 : f32 to vector<18x18xf32>
    %261 = arith.minimumf %256, %260 : vector<18x18xf32>
    %262 = math.absf %256 : vector<18x18xf32>
    %cst_273 = arith.constant 0.000000e+00 : f32
    %263 = vector.broadcast %cst_273 : f32 to vector<18x18xf32>
    %264 = arith.subf %263, %262 : vector<18x18xf32>
    %265 = math.exp %264 : vector<18x18xf32>
    %cst_274 = arith.constant 1.000000e+00 : f32
    %266 = vector.broadcast %cst_274 : f32 to vector<18x18xf32>
    %267 = arith.addf %266, %265 : vector<18x18xf32>
    %268 = math.log %267 : vector<18x18xf32>
    %269 = arith.subf %261, %268 : vector<18x18xf32>
    %270 = arith.addf %10, %259 : vector<18x18xf32>
    %271 = math.exp %269 : vector<18x18xf32>
    %272 = arith.mulf %270, %271 : vector<18x18xf32>
    %273 = tpu.concatenate %5, %272 in 1 : vector<18x18xf32>, vector<18x18xf32> -> vector<18x36xf32>
    %c0_275 = arith.constant 0 : index
    %c0_276 = arith.constant 0 : index
    %274 = vector.load %arg19[%c0_275, %c0_276] : memref<18x36xf32, #tpu.memory_space<vmem>>, vector<18x36xf32>
    tpu.vector_store %arg19[%c0_275, %c0_276], %273 {strides = array<i32>} : memref<18x36xf32, #tpu.memory_space<vmem>>, vector<18x36xf32>,
    %c0_277 = arith.constant 0 : index
    %c0_278 = arith.constant 0 : index
    %275 = vector.load %arg6[%c0_277, %c0_278] : memref<2x18xf32, #tpu.memory_space<vmem>>, vector<2x18xf32>
    %cst_279 = arith.constant dense<0.000000e+00> : vector<2x18xf32>
    %276 = tpu.matmul %275, %269, %cst_279 {dimension_numbers = #tpu.dot_dimension_numbers<[1], [0], [0], [1], [0, 0, 1, 1], [], []>} : vector<2x18xf32>, vector<18x18xf32>, vector<2x18xf32> -> vector<2x18xf32>
    %cst_280 = arith.constant dense<0.000000e+00> : vector<2xf32>
    %277 = vector.multi_reduction <add>, %276, %cst_280 [1] : vector<2x18xf32> to vector<2xf32>
    %278 = vector.shape_cast %277 : vector<2xf32> to vector<2x1xf32>
    %c0_281 = arith.constant 0 : index
    %c0_282 = arith.constant 0 : index
    %279 = vector.load %arg20[%c0_281, %c0_282] : memref<2x1xf32, #tpu.memory_space<vmem>>, vector<2x1xf32>
    tpu.vector_store %arg20[%c0_281, %c0_282], %278 {strides = array<i32>} : memref<2x1xf32, #tpu.memory_space<vmem>>, vector<2x1xf32>,
    return
  }
}

</mosaic_0001>

<llo_original>
// kernel: moflow_forward.4
$region0: #{moflow_forward.4}
  #allocation0 [shape = 'u32[]', space=smem, size = 0x4, offset = 0x4, fixed_abs, tag = 'smem constant byte address 0x4 - core index']
  #allocation1 [shape = 'u32[144,128]{1,0:T(1,128)}', space=vmem, size = 0x12000, scoped, tag = 'internal scratch']
  %s0 = inlined_call_operand.vmem [shape: f32[4,18,18], index: 0, kind: input, shape index: {}]
  %s1 = inlined_call_operand.vmem [shape: f32[18,5], index: 1, kind: input, shape index: {}]
  %s2 = inlined_call_operand.vmem [shape: f32[18,1], index: 2, kind: input, shape index: {}]
  %s3 = inlined_call_operand.vmem [shape: f32[18,1], index: 3, kind: input, shape index: {}]
  %s4 = inlined_call_operand.vmem [shape: f32[18,5], index: 4, kind: input, shape index: {}]
  %s5 = inlined_call_operand.vmem [shape: f32[2,18], index: 5, kind: input, shape index: {}]
  %s6 = inlined_call_operand.vmem [shape: f32[5,16], index: 6, kind: input, shape index: {}]
  %s7 = inlined_call_operand.vmem [shape: f32[1,16], index: 7, kind: input, shape index: {}]
  %s8 = inlined_call_operand.vmem [shape: f32[4,5,16], index: 8, kind: input, shape index: {}]
  %s9 = inlined_call_operand.vmem [shape: f32[4,1,16], index: 9, kind: input, shape index: {}]
  %s10 = inlined_call_operand.vmem [shape: f32[18,1], index: 10, kind: input, shape index: {}]
  %s11 = inlined_call_operand.vmem [shape: f32[18,1], index: 11, kind: input, shape index: {}]
  %s12 = inlined_call_operand.vmem [shape: f32[16,32], index: 12, kind: input, shape index: {}]
  %s13 = inlined_call_operand.vmem [shape: f32[1,32], index: 13, kind: input, shape index: {}]
  %s14 = inlined_call_operand.vmem [shape: f32[18,1], index: 14, kind: input, shape index: {}]
  %s15 = inlined_call_operand.vmem [shape: f32[18,1], index: 15, kind: input, shape index: {}]
  %s16 = inlined_call_operand.vmem [shape: f32[32,5], index: 16, kind: input, shape index: {}]
  %s17 = inlined_call_operand.vmem [shape: f32[32,5], index: 17, kind: input, shape index: {}]
  %s18 = inlined_call_operand.vmem [shape: f32[1,5], index: 18, kind: input, shape index: {}]
  %s19 = inlined_call_operand.vmem [shape: f32[1,5], index: 19, kind: input, shape index: {}]
  %s20 = inlined_call_operand.vmem [shape: f32[18,5], index: 20, kind: output, shape index: {0}]
  %s21 = inlined_call_operand.vmem [shape: f32[2,1], index: 21, kind: output, shape index: {1}]
  %22 = xla_tuple %s20, %s21
  %s23 = sld [smem:[#allocation0]]
  $region98: #{moflow_forward.4} parent=0
    _
  %s25 = ssub.s32 1, %s23
  %s26 = scalar_select 0, %s25, %s23
  // Predicated region
  $region2: #{moflow_forward.4} parent=0 // pred_check
    _
  $region3: #{moflow_forward.4} parent=0 // pred_check_branch
    %28 = sbr.rel (0) target = $region5
  $region4: #{moflow_forward.4} parent=0 // pred_region
    _
  $region5: #{moflow_forward.4} parent=0 // pred_fallthru
    _
  // Predicated region
  $region6: #{moflow_forward.4} parent=0 // pred_check
    _
  $region7: #{moflow_forward.4} parent=0 // pred_check_branch
    %30 = sbr.rel (0) target = $region9
  $region8: #{moflow_forward.4} parent=0 // pred_region
    _
  $region9: #{moflow_forward.4} parent=0 // pred_fallthru
    _
  // Predicated region
  $region10: #{moflow_forward.4} parent=0 // pred_check
    _
  $region11: #{moflow_forward.4} parent=0 // pred_check_branch
    %32 = sbr.rel (0) target = $region13
  $region12: #{moflow_forward.4} parent=0 // pred_region
    _
  $region13: #{moflow_forward.4} parent=0 // pred_fallthru
    _
  // Predicated region
  $region14: #{moflow_forward.4} parent=0 // pred_check
    _
  $region15: #{moflow_forward.4} parent=0 // pred_check_branch
    %34 = sbr.rel (0) target = $region17
  $region16: #{moflow_forward.4} parent=0 // pred_region
    _
  $region17: #{moflow_forward.4} parent=0 // pred_fallthru
    _
  // Predicated region
  $region18: #{moflow_forward.4} parent=0 // pred_check
    _
  $region19: #{moflow_forward.4} parent=0 // pred_check_branch
    %36 = sbr.rel (0) target = $region21
  $region20: #{moflow_forward.4} parent=0 // pred_region
    _
  $region21: #{moflow_forward.4} parent=0 // pred_fallthru
    _
  // Predicated region
  $region22: #{moflow_forward.4} parent=0 // pred_check
    _
  $region23: #{moflow_forward.4} parent=0 // pred_check_branch
    %38 = sbr.rel (0) target = $region25
  $region24: #{moflow_forward.4} parent=0 // pred_region
    _
  $region25: #{moflow_forward.4} parent=0 // pred_fallthru
    _
  // Predicated region
  $region26: #{moflow_forward.4} parent=0 // pred_check
    _
  $region27: #{moflow_forward.4} parent=0 // pred_check_branch
    %40 = sbr.rel (0) target = $region29
  $region28: #{moflow_forward.4} parent=0 // pred_region
    _
  $region29: #{moflow_forward.4} parent=0 // pred_fallthru
    _
  // Predicated region
  $region30: #{moflow_forward.4} parent=0 // pred_check
    _
  $region31: #{moflow_forward.4} parent=0 // pred_check_branch
    %42 = sbr.rel (0) target = $region33
  $region32: #{moflow_forward.4} parent=0 // pred_region
    _
  $region33: #{moflow_forward.4} parent=0 // pred_fallthru
    _
  // Predicated region
  $region34: #{moflow_forward.4} parent=0 // pred_check
    _
  $region35: #{moflow_forward.4} parent=0 // pred_check_branch
    %44 = sbr.rel (0) target = $region37
  $region36: #{moflow_forward.4} parent=0 // pred_region
    _
  $region37: #{moflow_forward.4} parent=0 // pred_fallthru
    _
  // Predicated region
  $region38: #{moflow_forward.4} parent=0 // pred_check
    _
  $region39: #{moflow_forward.4} parent=0 // pred_check_branch
    %46 = sbr.rel (0) target = $region41
  $region40: #{moflow_forward.4} parent=0 // pred_region
    _
  $region41: #{moflow_forward.4} parent=0 // pred_fallthru
    _
  // Predicated region
  $region42: #{moflow_forward.4} parent=0 // pred_check
    _
  $region43: #{moflow_forward.4} parent=0 // pred_check_branch
    %48 = sbr.rel (0) target = $region45
  $region44: #{moflow_forward.4} parent=0 // pred_region
    _
  $region45: #{moflow_forward.4} parent=0 // pred_fallthru
    _
  // Predicated region
  $region46: #{moflow_forward.4} parent=0 // pred_check
    _
  $region47: #{moflow_forward.4} parent=0 // pred_check_branch
    %50 = sbr.rel (0) target = $region49
  $region48: #{moflow_forward.4} parent=0 // pred_region
    _
  $region49: #{moflow_forward.4} parent=0 // pred_fallthru
    _
  // Predicated region
  $region50: #{moflow_forward.4} parent=0 // pred_check
    _
  $region51: #{moflow_forward.4} parent=0 // pred_check_branch
    %52 = sbr.rel (0) target = $region53
  $region52: #{moflow_forward.4} parent=0 // pred_region
    _
  $region53: #{moflow_forward.4} parent=0 // pred_fallthru
    _
  // Predicated region
  $region54: #{moflow_forward.4} parent=0 // pred_check
    _
  $region55: #{moflow_forward.4} parent=0 // pred_check_branch
    %54 = sbr.rel (0) target = $region57
  $region56: #{moflow_forward.4} parent=0 // pred_region
    _
  $region57: #{moflow_forward.4} parent=0 // pred_fallthru
    _
  // Predicated region
  $region58: #{moflow_forward.4} parent=0 // pred_check
    _
  $region59: #{moflow_forward.4} parent=0 // pred_check_branch
    %56 = sbr.rel (0) target = $region61
  $region60: #{moflow_forward.4} parent=0 // pred_region
    _
  $region61: #{moflow_forward.4} parent=0 // pred_fallthru
    _
  // Predicated region
  $region62: #{moflow_forward.4} parent=0 // pred_check
    _
  $region63: #{moflow_forward.4} parent=0 // pred_check_branch
    %58 = sbr.rel (0) target = $region65
  $region64: #{moflow_forward.4} parent=0 // pred_region
    _
  $region65: #{moflow_forward.4} parent=0 // pred_fallthru
    _
  // Predicated region
  $region66: #{moflow_forward.4} parent=0 // pred_check
    _
  $region67: #{moflow_forward.4} parent=0 // pred_check_branch
    %60 = sbr.rel (0) target = $region69
  $region68: #{moflow_forward.4} parent=0 // pred_region
    _
  $region69: #{moflow_forward.4} parent=0 // pred_fallthru
    _
  // Predicated region
  $region70: #{moflow_forward.4} parent=0 // pred_check
    _
  $region71: #{moflow_forward.4} parent=0 // pred_check_branch
    %62 = sbr.rel (0) target = $region73
  $region72: #{moflow_forward.4} parent=0 // pred_region
    _
  $region73: #{moflow_forward.4} parent=0 // pred_fallthru
    _
  // Predicated region
  $region74: #{moflow_forward.4} parent=0 // pred_check
    _
  $region75: #{moflow_forward.4} parent=0 // pred_check_branch
    %64 = sbr.rel (0) target = $region77
  $region76: #{moflow_forward.4} parent=0 // pred_region
    _
  $region77: #{moflow_forward.4} parent=0 // pred_fallthru
    _
  // Predicated region
  $region78: #{moflow_forward.4} parent=0 // pred_check
    _
  $region79: #{moflow_forward.4} parent=0 // pred_check_branch
    %66 = sbr.rel (0) target = $region81
  $region80: #{moflow_forward.4} parent=0 // pred_region
    _
  $region81: #{moflow_forward.4} parent=0 // pred_fallthru
    _
  %v67 = vld [vmem:[%s1] sm:$0xff]
  %v68 = vld [vmem:[%s1 + $0x8] sm:$0xff]
  %v69 = vld [vmem:[%s1 + $0x10] sm:$0x3]
  %v70 = vld [vmem:[%s3] sm:$0xff]
  %v71 = vld [vmem:[%s3 + $0x8] sm:$0xff]
  %v72 = vld [vmem:[%s3 + $0x10] sm:$0x3]
  %74 = vset.pattern.permute.xlu0 0
  %75 = vperm.xlu0 %74, %v70
  %v76 = vpop.permute.xlu0 %75
  %79 = vset.pattern.permute.xlu0 0
  %80 = vperm.xlu0 %79, %v71
  %v81 = vpop.permute.xlu0 %80
  %84 = vset.pattern.permute.xlu0 0
  %85 = vperm.xlu0 %84, %v72
  %v86 = vpop.permute.xlu0 %85
  %v88 = vadd.f32 %v67, %v76
  %v89 = vadd.f32 %v68, %v81
  %v90 = vadd.f32 %v69, %v86
  %v91 = vld [vmem:[%s2] sm:$0xff]
  %v92 = vld [vmem:[%s2 + $0x8] sm:$0xff]
  %v93 = vld [vmem:[%s2 + $0x10] sm:$0x3]
  %95 = vset.pattern.permute.xlu0 0
  %96 = vperm.xlu0 %95, %v91
  %v97 = vpop.permute.xlu0 %96
  %100 = vset.pattern.permute.xlu0 0
  %101 = vperm.xlu0 %100, %v92
  %v102 = vpop.permute.xlu0 %101
  %105 = vset.pattern.permute.xlu0 0
  %106 = vperm.xlu0 %105, %v93
  %v107 = vpop.permute.xlu0 %106
  %v109 = vmul.f32 %v88, %v97
  %v110 = vmul.f32 %v89, %v102
  %v111 = vmul.f32 %v90, %v107
  %v112 = vld [vmem:[%s4] sm:$0xff]
  %v113 = vld [vmem:[%s4 + $0x8] sm:$0xff]
  %v114 = vld [vmem:[%s4 + $0x10] sm:$0x3]
  %v115 = vmul.f32 %v112, %v109
  %v116 = vmul.f32 %v113, %v110
  %v117 = vmul.f32 %v114, %v111
  %v118 = vld [vmem:[%s6] sm:$0x1f]
  %v119 = vld [vmem:[%s7] sm:$0x1]
  %v121 = vlaneseq
  %v122 = vshrl.u32 %v121, 7
  %v123 = vsub.s32 0, %v122
  %v124 = vrot.slane %v119, %v123
  %vm126 = vcmask 39936
  %v128 = vsel %vm126, %v115, 0
  %v131 = vsel %vm126, %v116, 0
  %v134 = vsel %vm126, %v117, 0
  %vm136 = vcmask 1044480
  %v138 = vsel %vm136, %v118, 0
  %140 = vmatprep.subr.mxu0 0.0
  %141 = vmatpush1.msra.mxu0 0.0
  %142 = vmatprep.subr.mxu0 0.0
  %143 = vmatpush1.msra.mxu0 0.0
  %144 = vmatprep.subr.mxu0 0.0
  %145 = vmatpush1.msra.mxu0 0.0
  %146 = vmatprep.subr.mxu0 0.0
  %147 = vmatpush1.msra.mxu0 0.0
  %148 = vmatprep.subr.mxu0 0.0
  %149 = vmatpush1.msra.mxu0 0.0
  %150 = vmatprep.subr.mxu0 0.0
  %151 = vmatpush1.msra.mxu0 0.0
  %152 = vmatprep.subr.mxu0 0.0
  %153 = vmatpush1.msra.mxu0 0.0
  %154 = vmatprep.subr.mxu0 0.0
  %155 = vmatpush1.msra.mxu0 0.0
  %156 = vmatprep.subr.mxu0 0.0
  %157 = vmatpush1.msra.mxu0 0.0
  %158 = vmatprep.subr.mxu0 0.0
  %159 = vmatpush1.msra.mxu0 0.0
  %160 = vmatprep.subr.mxu0 0.0
  %161 = vmatpush1.msra.mxu0 0.0
  %162 = vmatprep.subr.mxu0 0.0
  %163 = vmatpush1.msra.mxu0 0.0
  %164 = vmatprep.subr.mxu0 0.0
  %165 = vmatpush1.msra.mxu0 0.0
  %166 = vmatprep.subr.mxu0 0.0
  %167 = vmatpush1.msra.mxu0 0.0
  %168 = vmatprep.subr.mxu0 0.0
  %169 = vmatpush1.msra.mxu0 0.0
  %170 = vmatprep.subr.mxu0 0.0
  %171 = vmatpush1.msra.mxu0 %v138
  %172 = vmatprep.subr.mxu0 0.0
  %173 = vmatpush2.msra.mxu0 0.0
  %174 = vmatprep.subr.mxu0 0.0
  %175 = vmatpush2.msra.mxu0 0.0
  %176 = vmatprep.subr.mxu0 0.0
  %177 = vmatpush2.msra.mxu0 0.0
  %178 = vmatprep.subr.mxu0 0.0
  %179 = vmatpush2.msra.mxu0 0.0
  %180 = vmatprep.subr.mxu0 0.0
  %181 = vmatpush2.msra.mxu0 0.0
  %182 = vmatprep.subr.mxu0 0.0
  %183 = vmatpush2.msra.mxu0 0.0
  %184 = vmatprep.subr.mxu0 0.0
  %185 = vmatpush2.msra.mxu0 0.0
  %186 = vmatprep.subr.mxu0 0.0
  %187 = vmatpush2.msra.mxu0 0.0
  %188 = vmatprep.subr.mxu0 0.0
  %189 = vmatpush2.msra.mxu0 0.0
  %190 = vmatprep.subr.mxu0 0.0
  %191 = vmatpush2.msra.mxu0 0.0
  %192 = vmatprep.subr.mxu0 0.0
  %193 = vmatpush2.msra.mxu0 0.0
  %194 = vmatprep.subr.mxu0 0.0
  %195 = vmatpush2.msra.mxu0 0.0
  %196 = vmatprep.subr.mxu0 0.0
  %197 = vmatpush2.msra.mxu0 0.0
  %198 = vmatprep.subr.mxu0 0.0
  %199 = vmatpush2.msra.mxu0 0.0
  %200 = vmatprep.subr.mxu0 0.0
  %201 = vmatpush2.msra.mxu0 0.0
  %202 = vmatprep.subr.mxu0 0.0
  %203 = vmatpush2.msra.mxu0 0.0
  %204 = vmatprep.mubr.f32.mxu0 0.0
  %205 = vmatmul.mubr.f32.gmra.mxu0 %v128
  %v206 = vpop.f32.mrf.mxu0
  %v207 = vadd.f32 %v124, %v206
  %v208 = vpop.f32.mrf.mxu0
  %209 = vmatprep.mubr.f32.mxu0 0.0
  %210 = vmatmul.mubr.f32.gmra.mxu0 %v131
  %v211 = vpop.f32.mrf.mxu0
  %v212 = vadd.f32 %v124, %v211
  %v213 = vpop.f32.mrf.mxu0
  %214 = vmatprep.mubr.f32.mxu0 0.0
  %215 = vmatmul.mubr.f32.gmra.mxu0 %v134
  %v216 = vpop.f32.mrf.mxu0
  %v217 = vadd.f32 %v124, %v216
  %v218 = vpop.f32.mrf.mxu0
  %219 = vdwg.mxu0
  %v220 = vld [vmem:[%s8] sm:$0x1f]
  %v221 = vld [vmem:[%s9] sm:$0x1]
  %v223 = vlaneseq
  %v224 = vshrl.u32 %v223, 7
  %v225 = vsub.s32 0, %v224
  %v226 = vrot.slane %v221, %v225
  %v229 = vsel %vm136, %v220, 0
  %231 = vmatprep.subr.mxu0 0.0
  %232 = vmatpush1.msra.mxu0 0.0
  %233 = vmatprep.subr.mxu0 0.0
  %234 = vmatpush1.msra.mxu0 0.0
  %235 = vmatprep.subr.mxu0 0.0
  %236 = vmatpush1.msra.mxu0 0.0
  %237 = vmatprep.subr.mxu0 0.0
  %238 = vmatpush1.msra.mxu0 0.0
  %239 = vmatprep.subr.mxu0 0.0
  %240 = vmatpush1.msra.mxu0 0.0
  %241 = vmatprep.subr.mxu0 0.0
  %242 = vmatpush1.msra.mxu0 0.0
  %243 = vmatprep.subr.mxu0 0.0
  %244 = vmatpush1.msra.mxu0 0.0
  %245 = vmatprep.subr.mxu0 0.0
  %246 = vmatpush1.msra.mxu0 0.0
  %247 = vmatprep.subr.mxu0 0.0
  %248 = vmatpush1.msra.mxu0 0.0
  %249 = vmatprep.subr.mxu0 0.0
  %250 = vmatpush1.msra.mxu0 0.0
  %251 = vmatprep.subr.mxu0 0.0
  %252 = vmatpush1.msra.mxu0 0.0
  %253 = vmatprep.subr.mxu0 0.0
  %254 = vmatpush1.msra.mxu0 0.0
  %255 = vmatprep.subr.mxu0 0.0
  %256 = vmatpush1.msra.mxu0 0.0
  %257 = vmatprep.subr.mxu0 0.0
  %258 = vmatpush1.msra.mxu0 0.0
  %259 = vmatprep.subr.mxu0 0.0
  %260 = vmatpush1.msra.mxu0 0.0
  %261 = vmatprep.subr.mxu0 0.0
  %262 = vmatpush1.msra.mxu0 %v229
  %263 = vmatprep.subr.mxu0 0.0
  %264 = vmatpush2.msra.mxu0 0.0
  %265 = vmatprep.subr.mxu0 0.0
  %266 = vmatpush2.msra.mxu0 0.0
  %267 = vmatprep.subr.mxu0 0.0
  %268 = vmatpush2.msra.mxu0 0.0
  %269 = vmatprep.subr.mxu0 0.0
  %270 = vmatpush2.msra.mxu0 0.0
  %271 = vmatprep.subr.mxu0 0.0
  %272 = vmatpush2.msra.mxu0 0.0
  %273 = vmatprep.subr.mxu0 0.0
  %274 = vmatpush2.msra.mxu0 0.0
  %275 = vmatprep.subr.mxu0 0.0
  %276 = vmatpush2.msra.mxu0 0.0
  %277 = vmatprep.subr.mxu0 0.0
  %278 = vmatpush2.msra.mxu0 0.0
  %279 = vmatprep.subr.mxu0 0.0
  %280 = vmatpush2.msra.mxu0 0.0
  %281 = vmatprep.subr.mxu0 0.0
  %282 = vmatpush2.msra.mxu0 0.0
  %283 = vmatprep.subr.mxu0 0.0
  %284 = vmatpush2.msra.mxu0 0.0
  %285 = vmatprep.subr.mxu0 0.0
  %286 = vmatpush2.msra.mxu0 0.0
  %287 = vmatprep.subr.mxu0 0.0
  %288 = vmatpush2.msra.mxu0 0.0
  %289 = vmatprep.subr.mxu0 0.0
  %290 = vmatpush2.msra.mxu0 0.0
  %291 = vmatprep.subr.mxu0 0.0
  %292 = vmatpush2.msra.mxu0 0.0
  %293 = vmatprep.subr.mxu0 0.0
  %294 = vmatpush2.msra.mxu0 0.0
  %295 = vmatprep.mubr.f32.mxu0 0.0
  %296 = vmatmul.mubr.f32.gmra.mxu0 %v128
  %v297 = vpop.f32.mrf.mxu0
  %v298 = vadd.f32 %v226, %v297
  %v299 = vpop.f32.mrf.mxu0
  %300 = vmatprep.mubr.f32.mxu0 0.0
  %301 = vmatmul.mubr.f32.gmra.mxu0 %v131
  %v302 = vpop.f32.mrf.mxu0
  %v303 = vadd.f32 %v226, %v302
  %v304 = vpop.f32.mrf.mxu0
  %305 = vmatprep.mubr.f32.mxu0 0.0
  %306 = vmatmul.mubr.f32.gmra.mxu0 %v134
  %v307 = vpop.f32.mrf.mxu0
  %v308 = vadd.f32 %v226, %v307
  %v309 = vpop.f32.mrf.mxu0
  %310 = vdwg.mxu0
  %v311 = vld [vmem:[%s0] sm:$0xff]
  %v312 = vld [vmem:[%s0 + $0x8] sm:$0xff]
  %v313 = vld [vmem:[%s0 + $0x10] sm:$0x3]
  %vm314 = vcmask 146432
  %v316 = vsel %vm314, %v311, 0
  %v319 = vsel %vm314, %v312, 0
  %v322 = vsel %vm314, %v313, 0
  %vm324 = vcmask 1041408
  %v326 = vsel %vm324, %v308, 0
  %328 = vmatprep.subr.mxu0 0.0
  %329 = vmatpush1.msra.mxu0 0.0
  %330 = vmatprep.subr.mxu0 0.0
  %331 = vmatpush1.msra.mxu0 0.0
  %332 = vmatprep.subr.mxu0 0.0
  %333 = vmatpush1.msra.mxu0 0.0
  %334 = vmatprep.subr.mxu0 0.0
  %335 = vmatpush1.msra.mxu0 0.0
  %336 = vmatprep.subr.mxu0 0.0
  %337 = vmatpush1.msra.mxu0 0.0
  %338 = vmatprep.subr.mxu0 0.0
  %339 = vmatpush1.msra.mxu0 0.0
  %340 = vmatprep.subr.mxu0 0.0
  %341 = vmatpush1.msra.mxu0 0.0
  %342 = vmatprep.subr.mxu0 0.0
  %343 = vmatpush1.msra.mxu0 0.0
  %344 = vmatprep.subr.mxu0 0.0
  %345 = vmatpush1.msra.mxu0 0.0
  %346 = vmatprep.subr.mxu0 0.0
  %347 = vmatpush1.msra.mxu0 0.0
  %348 = vmatprep.subr.mxu0 0.0
  %349 = vmatpush1.msra.mxu0 0.0
  %350 = vmatprep.subr.mxu0 0.0
  %351 = vmatpush1.msra.mxu0 0.0
  %352 = vmatprep.subr.mxu0 0.0
  %353 = vmatpush1.msra.mxu0 0.0
  %354 = vmatprep.subr.mxu0 0.0
  %355 = vmatpush1.msra.mxu0 %v326
  %356 = vmatprep.subr.mxu0 0.0
  %357 = vmatpush1.msra.mxu0 %v303
  %358 = vmatprep.subr.mxu0 0.0
  %359 = vmatpush1.msra.mxu0 %v298
  %360 = vmatprep.subr.mxu0 0.0
  %361 = vmatpush2.msra.mxu0 0.0
  %362 = vmatprep.subr.mxu0 0.0
  %363 = vmatpush2.msra.mxu0 0.0
  %364 = vmatprep.subr.mxu0 0.0
  %365 = vmatpush2.msra.mxu0 0.0
  %366 = vmatprep.subr.mxu0 0.0
  %367 = vmatpush2.msra.mxu0 0.0
  %368 = vmatprep.subr.mxu0 0.0
  %369 = vmatpush2.msra.mxu0 0.0
  %370 = vmatprep.subr.mxu0 0.0
  %371 = vmatpush2.msra.mxu0 0.0
  %372 = vmatprep.subr.mxu0 0.0
  %373 = vmatpush2.msra.mxu0 0.0
  %374 = vmatprep.subr.mxu0 0.0
  %375 = vmatpush2.msra.mxu0 0.0
  %376 = vmatprep.subr.mxu0 0.0
  %377 = vmatpush2.msra.mxu0 0.0
  %378 = vmatprep.subr.mxu0 0.0
  %379 = vmatpush2.msra.mxu0 0.0
  %380 = vmatprep.subr.mxu0 0.0
  %381 = vmatpush2.msra.mxu0 0.0
  %382 = vmatprep.subr.mxu0 0.0
  %383 = vmatpush2.msra.mxu0 0.0
  %384 = vmatprep.subr.mxu0 0.0
  %385 = vmatpush2.msra.mxu0 0.0
  %386 = vmatprep.subr.mxu0 0.0
  %387 = vmatpush2.msra.mxu0 0.0
  %388 = vmatprep.subr.mxu0 0.0
  %389 = vmatpush2.msra.mxu0 0.0
  %390 = vmatprep.subr.mxu0 0.0
  %391 = vmatpush2.msra.mxu0 0.0
  %392 = vmatprep.mubr.f32.mxu0 0.0
  %393 = vmatmul.mubr.f32.gmra.mxu0 %v316
  %v394 = vpop.f32.mrf.mxu0
  %v395 = vadd.f32 0.0, %v394
  %v396 = vpop.f32.mrf.mxu0
  %397 = vmatprep.mubr.f32.mxu0 0.0
  %398 = vmatmul.mubr.f32.gmra.mxu0 %v319
  %v399 = vpop.f32.mrf.mxu0
  %v400 = vadd.f32 0.0, %v399
  %v401 = vpop.f32.mrf.mxu0
  %402 = vmatprep.mubr.f32.mxu0 0.0
  %403 = vmatmul.mubr.f32.gmra.mxu0 %v322
  %v404 = vpop.f32.mrf.mxu0
  %v405 = vadd.f32 0.0, %v404
  %v406 = vpop.f32.mrf.mxu0
  %407 = vdwg.mxu0
  %v408 = vadd.f32 %v207, %v395
  %v409 = vadd.f32 %v212, %v400
  %v410 = vadd.f32 %v217, %v405
  %s411 = scalar_lea.vmem %s8, 8
  %v412 = vld [vmem:[%s411] sm:$0x1f]
  %s413 = scalar_lea.vmem %s9, 1
  %v414 = vld [vmem:[%s413] sm:$0x1]
  %v416 = vlaneseq
  %v417 = vshrl.u32 %v416, 7
  %v418 = vsub.s32 0, %v417
  %v419 = vrot.slane %v414, %v418
  %v422 = vsel %vm136, %v412, 0
  %424 = vmatprep.subr.mxu0 0.0
  %425 = vmatpush1.msra.mxu0 0.0
  %426 = vmatprep.subr.mxu0 0.0
  %427 = vmatpush1.msra.mxu0 0.0
  %428 = vmatprep.subr.mxu0 0.0
  %429 = vmatpush1.msra.mxu0 0.0
  %430 = vmatprep.subr.mxu0 0.0
  %431 = vmatpush1.msra.mxu0 0.0
  %432 = vmatprep.subr.mxu0 0.0
  %433 = vmatpush1.msra.mxu0 0.0
  %434 = vmatprep.subr.mxu0 0.0
  %435 = vmatpush1.msra.mxu0 0.0
  %436 = vmatprep.subr.mxu0 0.0
  %437 = vmatpush1.msra.mxu0 0.0
  %438 = vmatprep.subr.mxu0 0.0
  %439 = vmatpush1.msra.mxu0 0.0
  %440 = vmatprep.subr.mxu0 0.0
  %441 = vmatpush1.msra.mxu0 0.0
  %442 = vmatprep.subr.mxu0 0.0
  %443 = vmatpush1.msra.mxu0 0.0
  %444 = vmatprep.subr.mxu0 0.0
  %445 = vmatpush1.msra.mxu0 0.0
  %446 = vmatprep.subr.mxu0 0.0
  %447 = vmatpush1.msra.mxu0 0.0
  %448 = vmatprep.subr.mxu0 0.0
  %449 = vmatpush1.msra.mxu0 0.0
  %450 = vmatprep.subr.mxu0 0.0
  %451 = vmatpush1.msra.mxu0 0.0
  %452 = vmatprep.subr.mxu0 0.0
  %453 = vmatpush1.msra.mxu0 0.0
  %454 = vmatprep.subr.mxu0 0.0
  %455 = vmatpush1.msra.mxu0 %v422
  %456 = vmatprep.subr.mxu0 0.0
  %457 = vmatpush2.msra.mxu0 0.0
  %458 = vmatprep.subr.mxu0 0.0
  %459 = vmatpush2.msra.mxu0 0.0
  %460 = vmatprep.subr.mxu0 0.0
  %461 = vmatpush2.msra.mxu0 0.0
  %462 = vmatprep.subr.mxu0 0.0
  %463 = vmatpush2.msra.mxu0 0.0
  %464 = vmatprep.subr.mxu0 0.0
  %465 = vmatpush2.msra.mxu0 0.0
  %466 = vmatprep.subr.mxu0 0.0
  %467 = vmatpush2.msra.mxu0 0.0
  %468 = vmatprep.subr.mxu0 0.0
  %469 = vmatpush2.msra.mxu0 0.0
  %470 = vmatprep.subr.mxu0 0.0
  %471 = vmatpush2.msra.mxu0 0.0
  %472 = vmatprep.subr.mxu0 0.0
  %473 = vmatpush2.msra.mxu0 0.0
  %474 = vmatprep.subr.mxu0 0.0
  %475 = vmatpush2.msra.mxu0 0.0
  %476 = vmatprep.subr.mxu0 0.0
  %477 = vmatpush2.msra.mxu0 0.0
  %478 = vmatprep.subr.mxu0 0.0
  %479 = vmatpush2.msra.mxu0 0.0
  %480 = vmatprep.subr.mxu0 0.0
  %481 = vmatpush2.msra.mxu0 0.0
  %482 = vmatprep.subr.mxu0 0.0
  %483 = vmatpush2.msra.mxu0 0.0
  %484 = vmatprep.subr.mxu0 0.0
  %485 = vmatpush2.msra.mxu0 0.0
  %486 = vmatprep.subr.mxu0 0.0
  %487 = vmatpush2.msra.mxu0 0.0
  %488 = vmatprep.mubr.f32.mxu0 0.0
  %489 = vmatmul.mubr.f32.gmra.mxu0 %v128
  %v490 = vpop.f32.mrf.mxu0
  %v491 = vadd.f32 %v419, %v490
  %v492 = vpop.f32.mrf.mxu0
  %493 = vmatprep.mubr.f32.mxu0 0.0
  %494 = vmatmul.mubr.f32.gmra.mxu0 %v131
  %v495 = vpop.f32.mrf.mxu0
  %v496 = vadd.f32 %v419, %v495
  %v497 = vpop.f32.mrf.mxu0
  %498 = vmatprep.mubr.f32.mxu0 0.0
  %499 = vmatmul.mubr.f32.gmra.mxu0 %v134
  %v500 = vpop.f32.mrf.mxu0
  %v501 = vadd.f32 %v419, %v500
  %v502 = vpop.f32.mrf.mxu0
  %503 = vdwg.mxu0
  %s504 = scalar_lea.vmem %s0, 24
  %v505 = vld [vmem:[%s504] sm:$0xff]
  %v506 = vld [vmem:[%s504 + $0x8] sm:$0xff]
  %v507 = vld [vmem:[%s504 + $0x10] sm:$0x3]
  %v509 = vsel %vm314, %v505, 0
  %v512 = vsel %vm314, %v506, 0
  %v515 = vsel %vm314, %v507, 0
  %v518 = vsel %vm324, %v501, 0
  %520 = vmatprep.subr.mxu0 0.0
  %521 = vmatpush1.msra.mxu0 0.0
  %522 = vmatprep.subr.mxu0 0.0
  %523 = vmatpush1.msra.mxu0 0.0
  %524 = vmatprep.subr.mxu0 0.0
  %525 = vmatpush1.msra.mxu0 0.0
  %526 = vmatprep.subr.mxu0 0.0
  %527 = vmatpush1.msra.mxu0 0.0
  %528 = vmatprep.subr.mxu0 0.0
  %529 = vmatpush1.msra.mxu0 0.0
  %530 = vmatprep.subr.mxu0 0.0
  %531 = vmatpush1.msra.mxu0 0.0
  %532 = vmatprep.subr.mxu0 0.0
  %533 = vmatpush1.msra.mxu0 0.0
  %534 = vmatprep.subr.mxu0 0.0
  %535 = vmatpush1.msra.mxu0 0.0
  %536 = vmatprep.subr.mxu0 0.0
  %537 = vmatpush1.msra.mxu0 0.0
  %538 = vmatprep.subr.mxu0 0.0
  %539 = vmatpush1.msra.mxu0 0.0
  %540 = vmatprep.subr.mxu0 0.0
  %541 = vmatpush1.msra.mxu0 0.0
  %542 = vmatprep.subr.mxu0 0.0
  %543 = vmatpush1.msra.mxu0 0.0
  %544 = vmatprep.subr.mxu0 0.0
  %545 = vmatpush1.msra.mxu0 0.0
  %546 = vmatprep.subr.mxu0 0.0
  %547 = vmatpush1.msra.mxu0 %v518
  %548 = vmatprep.subr.mxu0 0.0
  %549 = vmatpush1.msra.mxu0 %v496
  %550 = vmatprep.subr.mxu0 0.0
  %551 = vmatpush1.msra.mxu0 %v491
  %552 = vmatprep.subr.mxu0 0.0
  %553 = vmatpush2.msra.mxu0 0.0
  %554 = vmatprep.subr.mxu0 0.0
  %555 = vmatpush2.msra.mxu0 0.0
  %556 = vmatprep.subr.mxu0 0.0
  %557 = vmatpush2.msra.mxu0 0.0
  %558 = vmatprep.subr.mxu0 0.0
  %559 = vmatpush2.msra.mxu0 0.0
  %560 = vmatprep.subr.mxu0 0.0
  %561 = vmatpush2.msra.mxu0 0.0
  %562 = vmatprep.subr.mxu0 0.0
  %563 = vmatpush2.msra.mxu0 0.0
  %564 = vmatprep.subr.mxu0 0.0
  %565 = vmatpush2.msra.mxu0 0.0
  %566 = vmatprep.subr.mxu0 0.0
  %567 = vmatpush2.msra.mxu0 0.0
  %568 = vmatprep.subr.mxu0 0.0
  %569 = vmatpush2.msra.mxu0 0.0
  %570 = vmatprep.subr.mxu0 0.0
  %571 = vmatpush2.msra.mxu0 0.0
  %572 = vmatprep.subr.mxu0 0.0
  %573 = vmatpush2.msra.mxu0 0.0
  %574 = vmatprep.subr.mxu0 0.0
  %575 = vmatpush2.msra.mxu0 0.0
  %576 = vmatprep.subr.mxu0 0.0
  %577 = vmatpush2.msra.mxu0 0.0
  %578 = vmatprep.subr.mxu0 0.0
  %579 = vmatpush2.msra.mxu0 0.0
  %580 = vmatprep.subr.mxu0 0.0
  %581 = vmatpush2.msra.mxu0 0.0
  %582 = vmatprep.subr.mxu0 0.0
  %583 = vmatpush2.msra.mxu0 0.0
  %584 = vmatprep.mubr.f32.mxu0 0.0
  %585 = vmatmul.mubr.f32.gmra.mxu0 %v509
  %v586 = vpop.f32.mrf.mxu0
  %v587 = vadd.f32 0.0, %v586
  %v588 = vpop.f32.mrf.mxu0
  %589 = vmatprep.mubr.f32.mxu0 0.0
  %590 = vmatmul.mubr.f32.gmra.mxu0 %v512
  %v591 = vpop.f32.mrf.mxu0
  %v592 = vadd.f32 0.0, %v591
  %v593 = vpop.f32.mrf.mxu0
  %594 = vmatprep.mubr.f32.mxu0 0.0
  %595 = vmatmul.mubr.f32.gmra.mxu0 %v515
  %v596 = vpop.f32.mrf.mxu0
  %v597 = vadd.f32 0.0, %v596
  %v598 = vpop.f32.mrf.mxu0
  %599 = vdwg.mxu0
  %v600 = vadd.f32 %v408, %v587
  %v601 = vadd.f32 %v409, %v592
  %v602 = vadd.f32 %v410, %v597
  %s603 = scalar_lea.vmem %s8, 16
  %v604 = vld [vmem:[%s603] sm:$0x1f]
  %s605 = scalar_lea.vmem %s9, 2
  %v606 = vld [vmem:[%s605] sm:$0x1]
  %v608 = vlaneseq
  %v609 = vshrl.u32 %v608, 7
  %v610 = vsub.s32 0, %v609
  %v611 = vrot.slane %v606, %v610
  %v614 = vsel %vm136, %v604, 0
  %616 = vmatprep.subr.mxu0 0.0
  %617 = vmatpush1.msra.mxu0 0.0
  %618 = vmatprep.subr.mxu0 0.0
  %619 = vmatpush1.msra.mxu0 0.0
  %620 = vmatprep.subr.mxu0 0.0
  %621 = vmatpush1.msra.mxu0 0.0
  %622 = vmatprep.subr.mxu0 0.0
  %623 = vmatpush1.msra.mxu0 0.0
  %624 = vmatprep.subr.mxu0 0.0
  %625 = vmatpush1.msra.mxu0 0.0
  %626 = vmatprep.subr.mxu0 0.0
  %627 = vmatpush1.msra.mxu0 0.0
  %628 = vmatprep.subr.mxu0 0.0
  %629 = vmatpush1.msra.mxu0 0.0
  %630 = vmatprep.subr.mxu0 0.0
  %631 = vmatpush1.msra.mxu0 0.0
  %632 = vmatprep.subr.mxu0 0.0
  %633 = vmatpush1.msra.mxu0 0.0
  %634 = vmatprep.subr.mxu0 0.0
  %635 = vmatpush1.msra.mxu0 0.0
  %636 = vmatprep.subr.mxu0 0.0
  %637 = vmatpush1.msra.mxu0 0.0
  %638 = vmatprep.subr.mxu0 0.0
  %639 = vmatpush1.msra.mxu0 0.0
  %640 = vmatprep.subr.mxu0 0.0
  %641 = vmatpush1.msra.mxu0 0.0
  %642 = vmatprep.subr.mxu0 0.0
  %643 = vmatpush1.msra.mxu0 0.0
  %644 = vmatprep.subr.mxu0 0.0
  %645 = vmatpush1.msra.mxu0 0.0
  %646 = vmatprep.subr.mxu0 0.0
  %647 = vmatpush1.msra.mxu0 %v614
  %648 = vmatprep.subr.mxu0 0.0
  %649 = vmatpush2.msra.mxu0 0.0
  %650 = vmatprep.subr.mxu0 0.0
  %651 = vmatpush2.msra.mxu0 0.0
  %652 = vmatprep.subr.mxu0 0.0
  %653 = vmatpush2.msra.mxu0 0.0
  %654 = vmatprep.subr.mxu0 0.0
  %655 = vmatpush2.msra.mxu0 0.0
  %656 = vmatprep.subr.mxu0 0.0
  %657 = vmatpush2.msra.mxu0 0.0
  %658 = vmatprep.subr.mxu0 0.0
  %659 = vmatpush2.msra.mxu0 0.0
  %660 = vmatprep.subr.mxu0 0.0
  %661 = vmatpush2.msra.mxu0 0.0
  %662 = vmatprep.subr.mxu0 0.0
  %663 = vmatpush2.msra.mxu0 0.0
  %664 = vmatprep.subr.mxu0 0.0
  %665 = vmatpush2.msra.mxu0 0.0
  %666 = vmatprep.subr.mxu0 0.0
  %667 = vmatpush2.msra.mxu0 0.0
  %668 = vmatprep.subr.mxu0 0.0
  %669 = vmatpush2.msra.mxu0 0.0
  %670 = vmatprep.subr.mxu0 0.0
  %671 = vmatpush2.msra.mxu0 0.0
  %672 = vmatprep.subr.mxu0 0.0
  %673 = vmatpush2.msra.mxu0 0.0
  %674 = vmatprep.subr.mxu0 0.0
  %675 = vmatpush2.msra.mxu0 0.0
  %676 = vmatprep.subr.mxu0 0.0
  %677 = vmatpush2.msra.mxu0 0.0
  %678 = vmatprep.subr.mxu0 0.0
  %679 = vmatpush2.msra.mxu0 0.0
  %680 = vmatprep.mubr.f32.mxu0 0.0
  %681 = vmatmul.mubr.f32.gmra.mxu0 %v128
  %v682 = vpop.f32.mrf.mxu0
  %v683 = vadd.f32 %v611, %v682
  %v684 = vpop.f32.mrf.mxu0
  %685 = vmatprep.mubr.f32.mxu0 0.0
  %686 = vmatmul.mubr.f32.gmra.mxu0 %v131
  %v687 = vpop.f32.mrf.mxu0
  %v688 = vadd.f32 %v611, %v687
  %v689 = vpop.f32.mrf.mxu0
  %690 = vmatprep.mubr.f32.mxu0 0.0
  %691 = vmatmul.mubr.f32.gmra.mxu0 %v134
  %v692 = vpop.f32.mrf.mxu0
  %v693 = vadd.f32 %v611, %v692
  %v694 = vpop.f32.mrf.mxu0
  %695 = vdwg.mxu0
  %s696 = scalar_lea.vmem %s0, 48
  %v697 = vld [vmem:[%s696] sm:$0xff]
  %v698 = vld [vmem:[%s696 + $0x8] sm:$0xff]
  %v699 = vld [vmem:[%s696 + $0x10] sm:$0x3]
  %v701 = vsel %vm314, %v697, 0
  %v704 = vsel %vm314, %v698, 0
  %v707 = vsel %vm314, %v699, 0
  %v710 = vsel %vm324, %v693, 0
  %712 = vmatprep.subr.mxu0 0.0
  %713 = vmatpush1.msra.mxu0 0.0
  %714 = vmatprep.subr.mxu0 0.0
  %715 = vmatpush1.msra.mxu0 0.0
  %716 = vmatprep.subr.mxu0 0.0
  %717 = vmatpush1.msra.mxu0 0.0
  %718 = vmatprep.subr.mxu0 0.0
  %719 = vmatpush1.msra.mxu0 0.0
  %720 = vmatprep.subr.mxu0 0.0
  %721 = vmatpush1.msra.mxu0 0.0
  %722 = vmatprep.subr.mxu0 0.0
  %723 = vmatpush1.msra.mxu0 0.0
  %724 = vmatprep.subr.mxu0 0.0
  %725 = vmatpush1.msra.mxu0 0.0
  %726 = vmatprep.subr.mxu0 0.0
  %727 = vmatpush1.msra.mxu0 0.0
  %728 = vmatprep.subr.mxu0 0.0
  %729 = vmatpush1.msra.mxu0 0.0
  %730 = vmatprep.subr.mxu0 0.0
  %731 = vmatpush1.msra.mxu0 0.0
  %732 = vmatprep.subr.mxu0 0.0
  %733 = vmatpush1.msra.mxu0 0.0
  %734 = vmatprep.subr.mxu0 0.0
  %735 = vmatpush1.msra.mxu0 0.0
  %736 = vmatprep.subr.mxu0 0.0
  %737 = vmatpush1.msra.mxu0 0.0
  %738 = vmatprep.subr.mxu0 0.0
  %739 = vmatpush1.msra.mxu0 %v710
  %740 = vmatprep.subr.mxu0 0.0
  %741 = vmatpush1.msra.mxu0 %v688
  %742 = vmatprep.subr.mxu0 0.0
  %743 = vmatpush1.msra.mxu0 %v683
  %744 = vmatprep.subr.mxu0 0.0
  %745 = vmatpush2.msra.mxu0 0.0
  %746 = vmatprep.subr.mxu0 0.0
  %747 = vmatpush2.msra.mxu0 0.0
  %748 = vmatprep.subr.mxu0 0.0
  %749 = vmatpush2.msra.mxu0 0.0
  %750 = vmatprep.subr.mxu0 0.0
  %751 = vmatpush2.msra.mxu0 0.0
  %752 = vmatprep.subr.mxu0 0.0
  %753 = vmatpush2.msra.mxu0 0.0
  %754 = vmatprep.subr.mxu0 0.0
  %755 = vmatpush2.msra.mxu0 0.0
  %756 = vmatprep.subr.mxu0 0.0
  %757 = vmatpush2.msra.mxu0 0.0
  %758 = vmatprep.subr.mxu0 0.0
  %759 = vmatpush2.msra.mxu0 0.0
  %760 = vmatprep.subr.mxu0 0.0
  %761 = vmatpush2.msra.mxu0 0.0
  %762 = vmatprep.subr.mxu0 0.0
  %763 = vmatpush2.msra.mxu0 0.0
  %764 = vmatprep.subr.mxu0 0.0
  %765 = vmatpush2.msra.mxu0 0.0
  %766 = vmatprep.subr.mxu0 0.0
  %767 = vmatpush2.msra.mxu0 0.0
  %768 = vmatprep.subr.mxu0 0.0
  %769 = vmatpush2.msra.mxu0 0.0
  %770 = vmatprep.subr.mxu0 0.0
  %771 = vmatpush2.msra.mxu0 0.0
  %772 = vmatprep.subr.mxu0 0.0
  %773 = vmatpush2.msra.mxu0 0.0
  %774 = vmatprep.subr.mxu0 0.0
  %775 = vmatpush2.msra.mxu0 0.0
  %776 = vmatprep.mubr.f32.mxu0 0.0
  %777 = vmatmul.mubr.f32.gmra.mxu0 %v701
  %v778 = vpop.f32.mrf.mxu0
  %v779 = vadd.f32 0.0, %v778
  %v780 = vpop.f32.mrf.mxu0
  %781 = vmatprep.mubr.f32.mxu0 0.0
  %782 = vmatmul.mubr.f32.gmra.mxu0 %v704
  %v783 = vpop.f32.mrf.mxu0
  %v784 = vadd.f32 0.0, %v783
  %v785 = vpop.f32.mrf.mxu0
  %786 = vmatprep.mubr.f32.mxu0 0.0
  %787 = vmatmul.mubr.f32.gmra.mxu0 %v707
  %v788 = vpop.f32.mrf.mxu0
  %v789 = vadd.f32 0.0, %v788
  %v790 = vpop.f32.mrf.mxu0
  %791 = vdwg.mxu0
  %v792 = vadd.f32 %v600, %v779
  %v793 = vadd.f32 %v601, %v784
  %v794 = vadd.f32 %v602, %v789
  %s795 = scalar_lea.vmem %s8, 24
  %v796 = vld [vmem:[%s795] sm:$0x1f]
  %s797 = scalar_lea.vmem %s9, 3
  %v798 = vld [vmem:[%s797] sm:$0x1]
  %v800 = vlaneseq
  %v801 = vshrl.u32 %v800, 7
  %v802 = vsub.s32 0, %v801
  %v803 = vrot.slane %v798, %v802
  %v806 = vsel %vm136, %v796, 0
  %808 = vmatprep.subr.mxu0 0.0
  %809 = vmatpush1.msra.mxu0 0.0
  %810 = vmatprep.subr.mxu0 0.0
  %811 = vmatpush1.msra.mxu0 0.0
  %812 = vmatprep.subr.mxu0 0.0
  %813 = vmatpush1.msra.mxu0 0.0
  %814 = vmatprep.subr.mxu0 0.0
  %815 = vmatpush1.msra.mxu0 0.0
  %816 = vmatprep.subr.mxu0 0.0
  %817 = vmatpush1.msra.mxu0 0.0
  %818 = vmatprep.subr.mxu0 0.0
  %819 = vmatpush1.msra.mxu0 0.0
  %820 = vmatprep.subr.mxu0 0.0
  %821 = vmatpush1.msra.mxu0 0.0
  %822 = vmatprep.subr.mxu0 0.0
  %823 = vmatpush1.msra.mxu0 0.0
  %824 = vmatprep.subr.mxu0 0.0
  %825 = vmatpush1.msra.mxu0 0.0
  %826 = vmatprep.subr.mxu0 0.0
  %827 = vmatpush1.msra.mxu0 0.0
  %828 = vmatprep.subr.mxu0 0.0
  %829 = vmatpush1.msra.mxu0 0.0
  %830 = vmatprep.subr.mxu0 0.0
  %831 = vmatpush1.msra.mxu0 0.0
  %832 = vmatprep.subr.mxu0 0.0
  %833 = vmatpush1.msra.mxu0 0.0
  %834 = vmatprep.subr.mxu0 0.0
  %835 = vmatpush1.msra.mxu0 0.0
  %836 = vmatprep.subr.mxu0 0.0
  %837 = vmatpush1.msra.mxu0 0.0
  %838 = vmatprep.subr.mxu0 0.0
  %839 = vmatpush1.msra.mxu0 %v806
  %840 = vmatprep.subr.mxu0 0.0
  %841 = vmatpush2.msra.mxu0 0.0
  %842 = vmatprep.subr.mxu0 0.0
  %843 = vmatpush2.msra.mxu0 0.0
  %844 = vmatprep.subr.mxu0 0.0
  %845 = vmatpush2.msra.mxu0 0.0
  %846 = vmatprep.subr.mxu0 0.0
  %847 = vmatpush2.msra.mxu0 0.0
  %848 = vmatprep.subr.mxu0 0.0
  %849 = vmatpush2.msra.mxu0 0.0
  %850 = vmatprep.subr.mxu0 0.0
  %851 = vmatpush2.msra.mxu0 0.0
  %852 = vmatprep.subr.mxu0 0.0
  %853 = vmatpush2.msra.mxu0 0.0
  %854 = vmatprep.subr.mxu0 0.0
  %855 = vmatpush2.msra.mxu0 0.0
  %856 = vmatprep.subr.mxu0 0.0
  %857 = vmatpush2.msra.mxu0 0.0
  %858 = vmatprep.subr.mxu0 0.0
  %859 = vmatpush2.msra.mxu0 0.0
  %860 = vmatprep.subr.mxu0 0.0
  %861 = vmatpush2.msra.mxu0 0.0
  %862 = vmatprep.subr.mxu0 0.0
  %863 = vmatpush2.msra.mxu0 0.0
  %864 = vmatprep.subr.mxu0 0.0
  %865 = vmatpush2.msra.mxu0 0.0
  %866 = vmatprep.subr.mxu0 0.0
  %867 = vmatpush2.msra.mxu0 0.0
  %868 = vmatprep.subr.mxu0 0.0
  %869 = vmatpush2.msra.mxu0 0.0
  %870 = vmatprep.subr.mxu0 0.0
  %871 = vmatpush2.msra.mxu0 0.0
  %872 = vmatprep.mubr.f32.mxu0 0.0
  %873 = vmatmul.mubr.f32.gmra.mxu0 %v128
  %v874 = vpop.f32.mrf.mxu0
  %v875 = vadd.f32 %v803, %v874
  %v876 = vpop.f32.mrf.mxu0
  %877 = vmatprep.mubr.f32.mxu0 0.0
  %878 = vmatmul.mubr.f32.gmra.mxu0 %v131
  %v879 = vpop.f32.mrf.mxu0
  %v880 = vadd.f32 %v803, %v879
  %v881 = vpop.f32.mrf.mxu0
  %882 = vmatprep.mubr.f32.mxu0 0.0
  %883 = vmatmul.mubr.f32.gmra.mxu0 %v134
  %v884 = vpop.f32.mrf.mxu0
  %v885 = vadd.f32 %v803, %v884
  %v886 = vpop.f32.mrf.mxu0
  %887 = vdwg.mxu0
  %s888 = scalar_lea.vmem %s0, 72
  %v889 = vld [vmem:[%s888] sm:$0xff]
  %v890 = vld [vmem:[%s888 + $0x8] sm:$0xff]
  %v891 = vld [vmem:[%s888 + $0x10] sm:$0x3]
  %v893 = vsel %vm314, %v889, 0
  %v896 = vsel %vm314, %v890, 0
  %v899 = vsel %vm314, %v891, 0
  %v902 = vsel %vm324, %v885, 0
  %904 = vmatprep.subr.mxu0 0.0
  %905 = vmatpush1.msra.mxu0 0.0
  %906 = vmatprep.subr.mxu0 0.0
  %907 = vmatpush1.msra.mxu0 0.0
  %908 = vmatprep.subr.mxu0 0.0
  %909 = vmatpush1.msra.mxu0 0.0
  %910 = vmatprep.subr.mxu0 0.0
  %911 = vmatpush1.msra.mxu0 0.0
  %912 = vmatprep.subr.mxu0 0.0
  %913 = vmatpush1.msra.mxu0 0.0
  %914 = vmatprep.subr.mxu0 0.0
  %915 = vmatpush1.msra.mxu0 0.0
  %916 = vmatprep.subr.mxu0 0.0
  %917 = vmatpush1.msra.mxu0 0.0
  %918 = vmatprep.subr.mxu0 0.0
  %919 = vmatpush1.msra.mxu0 0.0
  %920 = vmatprep.subr.mxu0 0.0
  %921 = vmatpush1.msra.mxu0 0.0
  %922 = vmatprep.subr.mxu0 0.0
  %923 = vmatpush1.msra.mxu0 0.0
  %924 = vmatprep.subr.mxu0 0.0
  %925 = vmatpush1.msra.mxu0 0.0
  %926 = vmatprep.subr.mxu0 0.0
  %927 = vmatpush1.msra.mxu0 0.0
  %928 = vmatprep.subr.mxu0 0.0
  %929 = vmatpush1.msra.mxu0 0.0
  %930 = vmatprep.subr.mxu0 0.0
  %931 = vmatpush1.msra.mxu0 %v902
  %932 = vmatprep.subr.mxu0 0.0
  %933 = vmatpush1.msra.mxu0 %v880
  %934 = vmatprep.subr.mxu0 0.0
  %935 = vmatpush1.msra.mxu0 %v875
  %936 = vmatprep.subr.mxu0 0.0
  %937 = vmatpush2.msra.mxu0 0.0
  %938 = vmatprep.subr.mxu0 0.0
  %939 = vmatpush2.msra.mxu0 0.0
  %940 = vmatprep.subr.mxu0 0.0
  %941 = vmatpush2.msra.mxu0 0.0
  %942 = vmatprep.subr.mxu0 0.0
  %943 = vmatpush2.msra.mxu0 0.0
  %944 = vmatprep.subr.mxu0 0.0
  %945 = vmatpush2.msra.mxu0 0.0
  %946 = vmatprep.subr.mxu0 0.0
  %947 = vmatpush2.msra.mxu0 0.0
  %948 = vmatprep.subr.mxu0 0.0
  %949 = vmatpush2.msra.mxu0 0.0
  %950 = vmatprep.subr.mxu0 0.0
  %951 = vmatpush2.msra.mxu0 0.0
  %952 = vmatprep.subr.mxu0 0.0
  %953 = vmatpush2.msra.mxu0 0.0
  %954 = vmatprep.subr.mxu0 0.0
  %955 = vmatpush2.msra.mxu0 0.0
  %956 = vmatprep.subr.mxu0 0.0
  %957 = vmatpush2.msra.mxu0 0.0
  %958 = vmatprep.subr.mxu0 0.0
  %959 = vmatpush2.msra.mxu0 0.0
  %960 = vmatprep.subr.mxu0 0.0
  %961 = vmatpush2.msra.mxu0 0.0
  %962 = vmatprep.subr.mxu0 0.0
  %963 = vmatpush2.msra.mxu0 0.0
  %964 = vmatprep.subr.mxu0 0.0
  %965 = vmatpush2.msra.mxu0 0.0
  %966 = vmatprep.subr.mxu0 0.0
  %967 = vmatpush2.msra.mxu0 0.0
  %968 = vmatprep.mubr.f32.mxu0 0.0
  %969 = vmatmul.mubr.f32.gmra.mxu0 %v893
  %v970 = vpop.f32.mrf.mxu0
  %v971 = vadd.f32 0.0, %v970
  %v972 = vpop.f32.mrf.mxu0
  %973 = vmatprep.mubr.f32.mxu0 0.0
  %974 = vmatmul.mubr.f32.gmra.mxu0 %v896
  %v975 = vpop.f32.mrf.mxu0
  %v976 = vadd.f32 0.0, %v975
  %v977 = vpop.f32.mrf.mxu0
  %978 = vmatprep.mubr.f32.mxu0 0.0
  %979 = vmatmul.mubr.f32.gmra.mxu0 %v899
  %v980 = vpop.f32.mrf.mxu0
  %v981 = vadd.f32 0.0, %v980
  %v982 = vpop.f32.mrf.mxu0
  %983 = vdwg.mxu0
  %v984 = vadd.f32 %v792, %v971
  %v985 = vadd.f32 %v793, %v976
  %v986 = vadd.f32 %v794, %v981
  %v987 = vld [vmem:[%s10] sm:$0xff]
  %v988 = vld [vmem:[%s10 + $0x8] sm:$0xff]
  %v989 = vld [vmem:[%s10 + $0x10] sm:$0x3]
  %991 = vset.pattern.permute.xlu0 0
  %992 = vperm.xlu0 %991, %v987
  %v993 = vpop.permute.xlu0 %992
  %996 = vset.pattern.permute.xlu0 0
  %997 = vperm.xlu0 %996, %v988
  %v998 = vpop.permute.xlu0 %997
  %1001 = vset.pattern.permute.xlu0 0
  %1002 = vperm.xlu0 %1001, %v989
  %v1003 = vpop.permute.xlu0 %1002
  %v1005 = vmul.f32 %v984, %v993
  %v1006 = vmul.f32 %v985, %v998
  %v1007 = vmul.f32 %v986, %v1003
  %v1008 = vld [vmem:[%s11] sm:$0xff]
  %v1009 = vld [vmem:[%s11 + $0x8] sm:$0xff]
  %v1010 = vld [vmem:[%s11 + $0x10] sm:$0x3]
  %1012 = vset.pattern.permute.xlu0 0
  %1013 = vperm.xlu0 %1012, %v1008
  %v1014 = vpop.permute.xlu0 %1013
  %1017 = vset.pattern.permute.xlu0 0
  %1018 = vperm.xlu0 %1017, %v1009
  %v1019 = vpop.permute.xlu0 %1018
  %1022 = vset.pattern.permute.xlu0 0
  %1023 = vperm.xlu0 %1022, %v1010
  %v1024 = vpop.permute.xlu0 %1023
  %v1026 = vadd.f32 %v1005, %v1014
  %v1027 = vadd.f32 %v1006, %v1019
  %v1028 = vadd.f32 %v1007, %v1024
  %v1029 = vtanh.pop %v1026
  %v1030 = vtanh.pop %v1027
  %v1031 = vtanh.pop %v1028
  %v1032 = vld [vmem:[%s12] sm:$0xff]
  %v1033 = vld [vmem:[%s12 + $0x8] sm:$0xff]
  %v1034 = vld [vmem:[%s13] sm:$0x1]
  %v1036 = vlaneseq
  %v1037 = vshrl.u32 %v1036, 7
  %v1038 = vsub.s32 0, %v1037
  %v1039 = vrot.slane %v1034, %v1038
  %vm1041 = vcmask 130048
  %v1043 = vsel %vm1041, %v1029, 0
  %v1046 = vsel %vm1041, %v1030, 0
  %v1049 = vsel %vm1041, %v1031, 0
  %1051 = vmatprep.subr.mxu0 0.0
  %1052 = vmatpush1.msra.mxu0 0.0
  %1053 = vmatprep.subr.mxu0 0.0
  %1054 = vmatpush1.msra.mxu0 0.0
  %1055 = vmatprep.subr.mxu0 0.0
  %1056 = vmatpush1.msra.mxu0 0.0
  %1057 = vmatprep.subr.mxu0 0.0
  %1058 = vmatpush1.msra.mxu0 0.0
  %1059 = vmatprep.subr.mxu0 0.0
  %1060 = vmatpush1.msra.mxu0 0.0
  %1061 = vmatprep.subr.mxu0 0.0
  %1062 = vmatpush1.msra.mxu0 0.0
  %1063 = vmatprep.subr.mxu0 0.0
  %1064 = vmatpush1.msra.mxu0 0.0
  %1065 = vmatprep.subr.mxu0 0.0
  %1066 = vmatpush1.msra.mxu0 0.0
  %1067 = vmatprep.subr.mxu0 0.0
  %1068 = vmatpush1.msra.mxu0 0.0
  %1069 = vmatprep.subr.mxu0 0.0
  %1070 = vmatpush1.msra.mxu0 0.0
  %1071 = vmatprep.subr.mxu0 0.0
  %1072 = vmatpush1.msra.mxu0 0.0
  %1073 = vmatprep.subr.mxu0 0.0
  %1074 = vmatpush1.msra.mxu0 0.0
  %1075 = vmatprep.subr.mxu0 0.0
  %1076 = vmatpush1.msra.mxu0 0.0
  %1077 = vmatprep.subr.mxu0 0.0
  %1078 = vmatpush1.msra.mxu0 0.0
  %1079 = vmatprep.subr.mxu0 0.0
  %1080 = vmatpush1.msra.mxu0 %v1033
  %1081 = vmatprep.subr.mxu0 0.0
  %1082 = vmatpush1.msra.mxu0 %v1032
  %1083 = vmatprep.subr.mxu0 0.0
  %1084 = vmatpush2.msra.mxu0 0.0
  %1085 = vmatprep.subr.mxu0 0.0
  %1086 = vmatpush2.msra.mxu0 0.0
  %1087 = vmatprep.subr.mxu0 0.0
  %1088 = vmatpush2.msra.mxu0 0.0
  %1089 = vmatprep.subr.mxu0 0.0
  %1090 = vmatpush2.msra.mxu0 0.0
  %1091 = vmatprep.subr.mxu0 0.0
  %1092 = vmatpush2.msra.mxu0 0.0
  %1093 = vmatprep.subr.mxu0 0.0
  %1094 = vmatpush2.msra.mxu0 0.0
  %1095 = vmatprep.subr.mxu0 0.0
  %1096 = vmatpush2.msra.mxu0 0.0
  %1097 = vmatprep.subr.mxu0 0.0
  %1098 = vmatpush2.msra.mxu0 0.0
  %1099 = vmatprep.subr.mxu0 0.0
  %1100 = vmatpush2.msra.mxu0 0.0
  %1101 = vmatprep.subr.mxu0 0.0
  %1102 = vmatpush2.msra.mxu0 0.0
  %1103 = vmatprep.subr.mxu0 0.0
  %1104 = vmatpush2.msra.mxu0 0.0
  %1105 = vmatprep.subr.mxu0 0.0
  %1106 = vmatpush2.msra.mxu0 0.0
  %1107 = vmatprep.subr.mxu0 0.0
  %1108 = vmatpush2.msra.mxu0 0.0
  %1109 = vmatprep.subr.mxu0 0.0
  %1110 = vmatpush2.msra.mxu0 0.0
  %1111 = vmatprep.subr.mxu0 0.0
  %1112 = vmatpush2.msra.mxu0 0.0
  %1113 = vmatprep.subr.mxu0 0.0
  %1114 = vmatpush2.msra.mxu0 0.0
  %1115 = vmatprep.mubr.f32.mxu0 0.0
  %1116 = vmatmul.mubr.f32.gmra.mxu0 %v1043
  %v1117 = vpop.f32.mrf.mxu0
  %v1118 = vadd.f32 %v1039, %v1117
  %v1119 = vpop.f32.mrf.mxu0
  %1120 = vmatprep.mubr.f32.mxu0 0.0
  %1121 = vmatmul.mubr.f32.gmra.mxu0 %v1046
  %v1122 = vpop.f32.mrf.mxu0
  %v1123 = vadd.f32 %v1039, %v1122
  %v1124 = vpop.f32.mrf.mxu0
  %1125 = vmatprep.mubr.f32.mxu0 0.0
  %1126 = vmatmul.mubr.f32.gmra.mxu0 %v1049
  %v1127 = vpop.f32.mrf.mxu0
  %v1128 = vadd.f32 %v1039, %v1127
  %v1129 = vpop.f32.mrf.mxu0
  %1130 = vdwg.mxu0
  %v1131 = vld [vmem:[%s14] sm:$0xff]
  %v1132 = vld [vmem:[%s14 + $0x8] sm:$0xff]
  %v1133 = vld [vmem:[%s14 + $0x10] sm:$0x3]
  %1135 = vset.pattern.permute.xlu0 0
  %1136 = vperm.xlu0 %1135, %v1131
  %v1137 = vpop.permute.xlu0 %1136
  %1140 = vset.pattern.permute.xlu0 0
  %1141 = vperm.xlu0 %1140, %v1132
  %v1142 = vpop.permute.xlu0 %1141
  %1145 = vset.pattern.permute.xlu0 0
  %1146 = vperm.xlu0 %1145, %v1133
  %v1147 = vpop.permute.xlu0 %1146
  %v1149 = vmul.f32 %v1118, %v1137
  %v1150 = vmul.f32 %v1123, %v1142
  %v1151 = vmul.f32 %v1128, %v1147
  %v1152 = vld [vmem:[%s15] sm:$0xff]
  %v1153 = vld [vmem:[%s15 + $0x8] sm:$0xff]
  %v1154 = vld [vmem:[%s15 + $0x10] sm:$0x3]
  %1156 = vset.pattern.permute.xlu0 0
  %1157 = vperm.xlu0 %1156, %v1152
  %v1158 = vpop.permute.xlu0 %1157
  %1161 = vset.pattern.permute.xlu0 0
  %1162 = vperm.xlu0 %1161, %v1153
  %v1163 = vpop.permute.xlu0 %1162
  %1166 = vset.pattern.permute.xlu0 0
  %1167 = vperm.xlu0 %1166, %v1154
  %v1168 = vpop.permute.xlu0 %1167
  %v1170 = vadd.f32 %v1149, %v1158
  %v1171 = vadd.f32 %v1150, %v1163
  %v1172 = vadd.f32 %v1151, %v1168
  %v1173 = vtanh.pop %v1170
  %v1174 = vtanh.pop %v1171
  %v1175 = vtanh.pop %v1172
  %v1176 = vld [vmem:[%s16] sm:$0xff]
  %v1177 = vld [vmem:[%s16 + $0x8] sm:$0xff]
  %v1178 = vld [vmem:[%s16 + $0x10] sm:$0xff]
  %v1179 = vld [vmem:[%s16 + $0x18] sm:$0xff]
  %v1180 = vld [vmem:[%s18] sm:$0x1]
  %v1182 = vlaneseq
  %v1183 = vshrl.u32 %v1182, 7
  %v1184 = vsub.s32 0, %v1183
  %v1185 = vrot.slane %v1180, %v1184
  %vm1187 = vcmask 261120
  %v1189 = vsel %vm1187, %v1173, 0
  %v1192 = vsel %vm1187, %v1174, 0
  %v1195 = vsel %vm1187, %v1175, 0
  %1197 = vmatprep.subr.mxu0 0.0
  %1198 = vmatpush1.msra.mxu0 0.0
  %1199 = vmatprep.subr.mxu0 0.0
  %1200 = vmatpush1.msra.mxu0 0.0
  %1201 = vmatprep.subr.mxu0 0.0
  %1202 = vmatpush1.msra.mxu0 0.0
  %1203 = vmatprep.subr.mxu0 0.0
  %1204 = vmatpush1.msra.mxu0 0.0
  %1205 = vmatprep.subr.mxu0 0.0
  %1206 = vmatpush1.msra.mxu0 0.0
  %1207 = vmatprep.subr.mxu0 0.0
  %1208 = vmatpush1.msra.mxu0 0.0
  %1209 = vmatprep.subr.mxu0 0.0
  %1210 = vmatpush1.msra.mxu0 0.0
  %1211 = vmatprep.subr.mxu0 0.0
  %1212 = vmatpush1.msra.mxu0 0.0
  %1213 = vmatprep.subr.mxu0 0.0
  %1214 = vmatpush1.msra.mxu0 0.0
  %1215 = vmatprep.subr.mxu0 0.0
  %1216 = vmatpush1.msra.mxu0 0.0
  %1217 = vmatprep.subr.mxu0 0.0
  %1218 = vmatpush1.msra.mxu0 0.0
  %1219 = vmatprep.subr.mxu0 0.0
  %1220 = vmatpush1.msra.mxu0 0.0
  %1221 = vmatprep.subr.mxu0 0.0
  %1222 = vmatpush1.msra.mxu0 %v1179
  %1223 = vmatprep.subr.mxu0 0.0
  %1224 = vmatpush1.msra.mxu0 %v1178
  %1225 = vmatprep.subr.mxu0 0.0
  %1226 = vmatpush1.msra.mxu0 %v1177
  %1227 = vmatprep.subr.mxu0 0.0
  %1228 = vmatpush1.msra.mxu0 %v1176
  %1229 = vmatprep.subr.mxu0 0.0
  %1230 = vmatpush2.msra.mxu0 0.0
  %1231 = vmatprep.subr.mxu0 0.0
  %1232 = vmatpush2.msra.mxu0 0.0
  %1233 = vmatprep.subr.mxu0 0.0
  %1234 = vmatpush2.msra.mxu0 0.0
  %1235 = vmatprep.subr.mxu0 0.0
  %1236 = vmatpush2.msra.mxu0 0.0
  %1237 = vmatprep.subr.mxu0 0.0
  %1238 = vmatpush2.msra.mxu0 0.0
  %1239 = vmatprep.subr.mxu0 0.0
  %1240 = vmatpush2.msra.mxu0 0.0
  %1241 = vmatprep.subr.mxu0 0.0
  %1242 = vmatpush2.msra.mxu0 0.0
  %1243 = vmatprep.subr.mxu0 0.0
  %1244 = vmatpush2.msra.mxu0 0.0
  %1245 = vmatprep.subr.mxu0 0.0
  %1246 = vmatpush2.msra.mxu0 0.0
  %1247 = vmatprep.subr.mxu0 0.0
  %1248 = vmatpush2.msra.mxu0 0.0
  %1249 = vmatprep.subr.mxu0 0.0
  %1250 = vmatpush2.msra.mxu0 0.0
  %1251 = vmatprep.subr.mxu0 0.0
  %1252 = vmatpush2.msra.mxu0 0.0
  %1253 = vmatprep.subr.mxu0 0.0
  %1254 = vmatpush2.msra.mxu0 0.0
  %1255 = vmatprep.subr.mxu0 0.0
  %1256 = vmatpush2.msra.mxu0 0.0
  %1257 = vmatprep.subr.mxu0 0.0
  %1258 = vmatpush2.msra.mxu0 0.0
  %1259 = vmatprep.subr.mxu0 0.0
  %1260 = vmatpush2.msra.mxu0 0.0
  %1261 = vmatprep.mubr.f32.mxu0 0.0
  %1262 = vmatmul.mubr.f32.gmra.mxu0 %v1189
  %v1263 = vpop.f32.mrf.mxu0
  %v1264 = vadd.f32 %v1185, %v1263
  %v1265 = vpop.f32.mrf.mxu0
  %1266 = vmatprep.mubr.f32.mxu0 0.0
  %1267 = vmatmul.mubr.f32.gmra.mxu0 %v1192
  %v1268 = vpop.f32.mrf.mxu0
  %v1269 = vadd.f32 %v1185, %v1268
  %v1270 = vpop.f32.mrf.mxu0
  %1271 = vmatprep.mubr.f32.mxu0 0.0
  %1272 = vmatmul.mubr.f32.gmra.mxu0 %v1195
  %v1273 = vpop.f32.mrf.mxu0
  %v1274 = vadd.f32 %v1185, %v1273
  %v1275 = vpop.f32.mrf.mxu0
  %1276 = vdwg.mxu0
  %v1277 = vld [vmem:[%s17] sm:$0xff]
  %v1278 = vld [vmem:[%s17 + $0x8] sm:$0xff]
  %v1279 = vld [vmem:[%s17 + $0x10] sm:$0xff]
  %v1280 = vld [vmem:[%s17 + $0x18] sm:$0xff]
  %v1281 = vld [vmem:[%s19] sm:$0x1]
  %v1283 = vlaneseq
  %v1284 = vshrl.u32 %v1283, 7
  %v1285 = vsub.s32 0, %v1284
  %v1286 = vrot.slane %v1281, %v1285
  %1288 = vmatprep.subr.mxu0 0.0
  %1289 = vmatpush1.msra.mxu0 0.0
  %1290 = vmatprep.subr.mxu0 0.0
  %1291 = vmatpush1.msra.mxu0 0.0
  %1292 = vmatprep.subr.mxu0 0.0
  %1293 = vmatpush1.msra.mxu0 0.0
  %1294 = vmatprep.subr.mxu0 0.0
  %1295 = vmatpush1.msra.mxu0 0.0
  %1296 = vmatprep.subr.mxu0 0.0
  %1297 = vmatpush1.msra.mxu0 0.0
  %1298 = vmatprep.subr.mxu0 0.0
  %1299 = vmatpush1.msra.mxu0 0.0
  %1300 = vmatprep.subr.mxu0 0.0
  %1301 = vmatpush1.msra.mxu0 0.0
  %1302 = vmatprep.subr.mxu0 0.0
  %1303 = vmatpush1.msra.mxu0 0.0
  %1304 = vmatprep.subr.mxu0 0.0
  %1305 = vmatpush1.msra.mxu0 0.0
  %1306 = vmatprep.subr.mxu0 0.0
  %1307 = vmatpush1.msra.mxu0 0.0
  %1308 = vmatprep.subr.mxu0 0.0
  %1309 = vmatpush1.msra.mxu0 0.0
  %1310 = vmatprep.subr.mxu0 0.0
  %1311 = vmatpush1.msra.mxu0 0.0
  %1312 = vmatprep.subr.mxu0 0.0
  %1313 = vmatpush1.msra.mxu0 %v1280
  %1314 = vmatprep.subr.mxu0 0.0
  %1315 = vmatpush1.msra.mxu0 %v1279
  %1316 = vmatprep.subr.mxu0 0.0
  %1317 = vmatpush1.msra.mxu0 %v1278
  %1318 = vmatprep.subr.mxu0 0.0
  %1319 = vmatpush1.msra.mxu0 %v1277
  %1320 = vmatprep.subr.mxu0 0.0
  %1321 = vmatpush2.msra.mxu0 0.0
  %1322 = vmatprep.subr.mxu0 0.0
  %1323 = vmatpush2.msra.mxu0 0.0
  %1324 = vmatprep.subr.mxu0 0.0
  %1325 = vmatpush2.msra.mxu0 0.0
  %1326 = vmatprep.subr.mxu0 0.0
  %1327 = vmatpush2.msra.mxu0 0.0
  %1328 = vmatprep.subr.mxu0 0.0
  %1329 = vmatpush2.msra.mxu0 0.0
  %1330 = vmatprep.subr.mxu0 0.0
  %1331 = vmatpush2.msra.mxu0 0.0
  %1332 = vmatprep.subr.mxu0 0.0
  %1333 = vmatpush2.msra.mxu0 0.0
  %1334 = vmatprep.subr.mxu0 0.0
  %1335 = vmatpush2.msra.mxu0 0.0
  %1336 = vmatprep.subr.mxu0 0.0
  %1337 = vmatpush2.msra.mxu0 0.0
  %1338 = vmatprep.subr.mxu0 0.0
  %1339 = vmatpush2.msra.mxu0 0.0
  %1340 = vmatprep.subr.mxu0 0.0
  %1341 = vmatpush2.msra.mxu0 0.0
  %1342 = vmatprep.subr.mxu0 0.0
  %1343 = vmatpush2.msra.mxu0 0.0
  %1344 = vmatprep.subr.mxu0 0.0
  %1345 = vmatpush2.msra.mxu0 0.0
  %1346 = vmatprep.subr.mxu0 0.0
  %1347 = vmatpush2.msra.mxu0 0.0
  %1348 = vmatprep.subr.mxu0 0.0
  %1349 = vmatpush2.msra.mxu0 0.0
  %1350 = vmatprep.subr.mxu0 0.0
  %1351 = vmatpush2.msra.mxu0 0.0
  %1352 = vmatprep.mubr.f32.mxu0 0.0
  %1353 = vmatmul.mubr.f32.gmra.mxu0 %v1189
  %v1354 = vpop.f32.mrf.mxu0
  %v1355 = vadd.f32 %v1286, %v1354
  %v1356 = vpop.f32.mrf.mxu0
  %1357 = vmatprep.mubr.f32.mxu0 0.0
  %1358 = vmatmul.mubr.f32.gmra.mxu0 %v1192
  %v1359 = vpop.f32.mrf.mxu0
  %v1360 = vadd.f32 %v1286, %v1359
  %v1361 = vpop.f32.mrf.mxu0
  %1362 = vmatprep.mubr.f32.mxu0 0.0
  %1363 = vmatmul.mubr.f32.gmra.mxu0 %v1195
  %v1364 = vpop.f32.mrf.mxu0
  %v1365 = vadd.f32 %v1286, %v1364
  %v1366 = vpop.f32.mrf.mxu0
  %1367 = vdwg.mxu0
  %v1368 = vmin.f32 %v1264, 0.0
  %v1369 = vmin.f32 %v1269, 0.0
  %v1370 = vmin.f32 %v1274, 0.0
  %v1371 = vand.u32 2147483647, %v1264
  %v1372 = vand.u32 2147483647, %v1269
  %v1373 = vand.u32 2147483647, %v1274
  %v1374 = vsub.f32 0.0, %v1371
  %v1375 = vsub.f32 0.0, %v1372
  %v1376 = vsub.f32 0.0, %v1373
  %v1377 = vmul.f32 %v1374, 1.442695
  %v1378 = vpow.pop %v1377
  %v1379 = vmul.f32 %v1375, 1.442695
  %v1380 = vpow.pop %v1379
  %v1381 = vmul.f32 %v1376, 1.442695
  %v1382 = vpow.pop %v1381
  %v1383 = vadd.f32 %v1378, 1.0
  %v1384 = vadd.f32 %v1380, 1.0
  %v1385 = vadd.f32 %v1382, 1.0
  %v1386 = vlog2.pop %v1383
  %v1387 = vmul.f32 %v1386, 0.6931472
  %v1388 = vlog2.pop %v1384
  %v1389 = vmul.f32 %v1388, 0.6931472
  %v1390 = vlog2.pop %v1385
  %v1391 = vmul.f32 %v1390, 0.6931472
  %v1392 = vsub.f32 %v1368, %v1387
  %v1393 = vsub.f32 %v1369, %v1389
  %v1394 = vsub.f32 %v1370, %v1391
  %v1395 = vmul.f32 %v1392, 1.442695
  %v1396 = vpow.pop %v1395
  %v1397 = vmul.f32 %v1393, 1.442695
  %v1398 = vpow.pop %v1397
  %v1399 = vmul.f32 %v1394, 1.442695
  %v1400 = vpow.pop %v1399
  %v1401 = vsub.f32 1.0, %v112
  %v1402 = vsub.f32 1.0, %v113
  %v1403 = vsub.f32 1.0, %v114
  %v1404 = vadd.f32 %v109, %v1355
  %v1405 = vadd.f32 %v110, %v1360
  %v1406 = vadd.f32 %v111, %v1365
  %v1407 = vmul.f32 %v1401, %v1404
  %v1408 = vmul.f32 %v1402, %v1405
  %v1409 = vmul.f32 %v1403, %v1406
  %v1410 = vmul.f32 %v1407, %v1396
  %v1411 = vmul.f32 %v1408, %v1398
  %v1412 = vmul.f32 %v1409, %v1400
  %v1413 = vadd.f32 %v115, %v1410
  %v1414 = vadd.f32 %v116, %v1411
  %v1415 = vadd.f32 %v117, %v1412
  %1416 = vst.msk [vmem:[%s20] sm:$0xff] %vm126, %v1413
  %1417 = vst.msk [vmem:[%s20 + $0x8] sm:$0xff] %vm126, %v1414
  %vm1418 = vcmask 33792
  %1419 = vst.msk [vmem:[%s20 + $0x10] sm:$0x3] %vm1418, %v1415
  %v1420 = vld [vmem:[%s5] sm:$0x3]
  %v1422 = vsel %vm314, %v1420, 0
  %v1425 = vsel %vm324, %v1394, 0
  %1427 = vmatprep.subr.mxu0 0.0
  %1428 = vmatpush1.msra.mxu0 0.0
  %1429 = vmatprep.subr.mxu0 0.0
  %1430 = vmatpush1.msra.mxu0 0.0
  %1431 = vmatprep.subr.mxu0 0.0
  %1432 = vmatpush1.msra.mxu0 0.0
  %1433 = vmatprep.subr.mxu0 0.0
  %1434 = vmatpush1.msra.mxu0 0.0
  %1435 = vmatprep.subr.mxu0 0.0
  %1436 = vmatpush1.msra.mxu0 0.0
  %1437 = vmatprep.subr.mxu0 0.0
  %1438 = vmatpush1.msra.mxu0 0.0
  %1439 = vmatprep.subr.mxu0 0.0
  %1440 = vmatpush1.msra.mxu0 0.0
  %1441 = vmatprep.subr.mxu0 0.0
  %1442 = vmatpush1.msra.mxu0 0.0
  %1443 = vmatprep.subr.mxu0 0.0
  %1444 = vmatpush1.msra.mxu0 0.0
  %1445 = vmatprep.subr.mxu0 0.0
  %1446 = vmatpush1.msra.mxu0 0.0
  %1447 = vmatprep.subr.mxu0 0.0
  %1448 = vmatpush1.msra.mxu0 0.0
  %1449 = vmatprep.subr.mxu0 0.0
  %1450 = vmatpush1.msra.mxu0 0.0
  %1451 = vmatprep.subr.mxu0 0.0
  %1452 = vmatpush1.msra.mxu0 0.0
  %1453 = vmatprep.subr.mxu0 0.0
  %1454 = vmatpush1.msra.mxu0 %v1425
  %1455 = vmatprep.subr.mxu0 0.0
  %1456 = vmatpush1.msra.mxu0 %v1393
  %1457 = vmatprep.subr.mxu0 0.0
  %1458 = vmatpush1.msra.mxu0 %v1392
  %1459 = vmatprep.subr.mxu0 0.0
  %1460 = vmatpush2.msra.mxu0 0.0
  %1461 = vmatprep.subr.mxu0 0.0
  %1462 = vmatpush2.msra.mxu0 0.0
  %1463 = vmatprep.subr.mxu0 0.0
  %1464 = vmatpush2.msra.mxu0 0.0
  %1465 = vmatprep.subr.mxu0 0.0
  %1466 = vmatpush2.msra.mxu0 0.0
  %1467 = vmatprep.subr.mxu0 0.0
  %1468 = vmatpush2.msra.mxu0 0.0
  %1469 = vmatprep.subr.mxu0 0.0
  %1470 = vmatpush2.msra.mxu0 0.0
  %1471 = vmatprep.subr.mxu0 0.0
  %1472 = vmatpush2.msra.mxu0 0.0
  %1473 = vmatprep.subr.mxu0 0.0
  %1474 = vmatpush2.msra.mxu0 0.0
  %1475 = vmatprep.subr.mxu0 0.0
  %1476 = vmatpush2.msra.mxu0 0.0
  %1477 = vmatprep.subr.mxu0 0.0
  %1478 = vmatpush2.msra.mxu0 0.0
  %1479 = vmatprep.subr.mxu0 0.0
  %1480 = vmatpush2.msra.mxu0 0.0
  %1481 = vmatprep.subr.mxu0 0.0
  %1482 = vmatpush2.msra.mxu0 0.0
  %1483 = vmatprep.subr.mxu0 0.0
  %1484 = vmatpush2.msra.mxu0 0.0
  %1485 = vmatprep.subr.mxu0 0.0
  %1486 = vmatpush2.msra.mxu0 0.0
  %1487 = vmatprep.subr.mxu0 0.0
  %1488 = vmatpush2.msra.mxu0 0.0
  %1489 = vmatprep.subr.mxu0 0.0
  %1490 = vmatpush2.msra.mxu0 0.0
  %1491 = vmatprep.mubr.f32.mxu0 0.0
  %1492 = vmatmul.mubr.f32.gmra.mxu0 %v1422
  %v1493 = vpop.f32.mrf.mxu0
  %v1494 = vadd.f32 0.0, %v1493
  %v1495 = vpop.f32.mrf.mxu0
  %1496 = vdwg.mxu0
  %v1497 = vsel %vm1418, %v1494, 0.0
  %1498 = vadd.xlane.f32.xlu0 %v1497
  %v1499 = vpop.xlane.xlu0 %1498
  %vm1500 = vcmask 1024
  %1501 = vst.msk [vmem:[%s21] sm:$0x3] %vm1500, %v1499
  // Predicated region
  $region82: #{moflow_forward.4} parent=0 // pred_check
    _
  $region83: #{moflow_forward.4} parent=0 // pred_check_branch
    %1503 = sbr.rel (0) target = $region85
  $region84: #{moflow_forward.4} parent=0 // pred_region
    _
  $region85: #{moflow_forward.4} parent=0 // pred_fallthru
    _
  // Predicated region
  $region86: #{moflow_forward.4} parent=0 // pred_check
    _
  $region87: #{moflow_forward.4} parent=0 // pred_check_branch
    %1505 = sbr.rel (0) target = $region89
  $region88: #{moflow_forward.4} parent=0 // pred_region
    _
  $region89: #{moflow_forward.4} parent=0 // pred_fallthru
    _
  // Predicated region
  $region90: #{moflow_forward.4} parent=0 // pred_check
    _
  $region91: #{moflow_forward.4} parent=0 // pred_check_branch
    %1507 = sbr.rel (0) target = $region93
  $region92: #{moflow_forward.4} parent=0 // pred_region
    _
  $region93: #{moflow_forward.4} parent=0 // pred_fallthru
    _
  // Predicated region
  $region94: #{moflow_forward.4} parent=0 // pred_check
    _
  $region95: #{moflow_forward.4} parent=0 // pred_check_branch
    %1509 = sbr.rel (0) target = $region97
  $region96: #{moflow_forward.4} parent=0 // pred_region
    _
  $region97: #{moflow_forward.4} parent=0 // pred_fallthru
    _

// kernel: moflow_forward.6
$region0: #{moflow_forward.6}
  #allocation0 [shape = 'u32[]', space=smem, size = 0x4, offset = 0x4, fixed_abs, tag = 'smem constant byte address 0x4 - core index']
  #allocation1 [shape = 'u32[144,128]{1,0:T(1,128)}', space=vmem, size = 0x12000, scoped, tag = 'internal scratch']
  %s0 = inlined_call_operand.vmem [shape: f32[18,36], index: 0, kind: input, shape index: {}]
  %s1 = inlined_call_operand.vmem [shape: f32[36,18], index: 1, kind: input, shape index: {}]
  %s2 = inlined_call_operand.vmem [shape: f32[1,18], index: 2, kind: input, shape index: {}]
  %s3 = inlined_call_operand.vmem [shape: f32[36,18], index: 3, kind: input, shape index: {}]
  %s4 = inlined_call_operand.vmem [shape: f32[1,18], index: 4, kind: input, shape index: {}]
  %s5 = inlined_call_operand.vmem [shape: f32[9,18,18], index: 5, kind: input, shape index: {}]
  %s6 = inlined_call_operand.vmem [shape: f32[2,18], index: 6, kind: input, shape index: {}]
  %s7 = inlined_call_operand.vmem [shape: f32[9,18,16], index: 7, kind: input, shape index: {}]
  %s8 = inlined_call_operand.vmem [shape: f32[1,16], index: 8, kind: input, shape index: {}]
  %s9 = inlined_call_operand.vmem [shape: f32[1,16], index: 9, kind: input, shape index: {}]
  %s10 = inlined_call_operand.vmem [shape: f32[1,16], index: 10, kind: input, shape index: {}]
  %s11 = inlined_call_operand.vmem [shape: f32[9,16,16], index: 11, kind: input, shape index: {}]
  %s12 = inlined_call_operand.vmem [shape: f32[1,16], index: 12, kind: input, shape index: {}]
  %s13 = inlined_call_operand.vmem [shape: f32[1,16], index: 13, kind: input, shape index: {}]
  %s14 = inlined_call_operand.vmem [shape: f32[1,16], index: 14, kind: input, shape index: {}]
  %s15 = inlined_call_operand.vmem [shape: f32[9,16,18], index: 15, kind: input, shape index: {}]
  %s16 = inlined_call_operand.vmem [shape: f32[1,18], index: 16, kind: input, shape index: {}]
  %s17 = inlined_call_operand.vmem [shape: f32[9,16,18], index: 17, kind: input, shape index: {}]
  %s18 = inlined_call_operand.vmem [shape: f32[1,18], index: 18, kind: input, shape index: {}]
  %s19 = inlined_call_operand.vmem [shape: f32[18,36], index: 19, kind: output, shape index: {0}]
  %s20 = inlined_call_operand.vmem [shape: f32[2,1], index: 20, kind: output, shape index: {1}]
  %21 = xla_tuple %s19, %s20
  %s22 = sld [smem:[#allocation0]]
  $region94: #{moflow_forward.6} parent=0
    _
  %s24 = ssub.s32 1, %s22
  %s25 = scalar_select 0, %s24, %s22
  // Predicated region
  $region2: #{moflow_forward.6} parent=0 // pred_check
    _
  $region3: #{moflow_forward.6} parent=0 // pred_check_branch
    %27 = sbr.rel (0) target = $region5
  $region4: #{moflow_forward.6} parent=0 // pred_region
    _
  $region5: #{moflow_forward.6} parent=0 // pred_fallthru
    _
  // Predicated region
  $region6: #{moflow_forward.6} parent=0 // pred_check
    _
  $region7: #{moflow_forward.6} parent=0 // pred_check_branch
    %29 = sbr.rel (0) target = $region9
  $region8: #{moflow_forward.6} parent=0 // pred_region
    _
  $region9: #{moflow_forward.6} parent=0 // pred_fallthru
    _
  // Predicated region
  $region10: #{moflow_forward.6} parent=0 // pred_check
    _
  $region11: #{moflow_forward.6} parent=0 // pred_check_branch
    %31 = sbr.rel (0) target = $region13
  $region12: #{moflow_forward.6} parent=0 // pred_region
    _
  $region13: #{moflow_forward.6} parent=0 // pred_fallthru
    _
  // Predicated region
  $region14: #{moflow_forward.6} parent=0 // pred_check
    _
  $region15: #{moflow_forward.6} parent=0 // pred_check_branch
    %33 = sbr.rel (0) target = $region17
  $region16: #{moflow_forward.6} parent=0 // pred_region
    _
  $region17: #{moflow_forward.6} parent=0 // pred_fallthru
    _
  // Predicated region
  $region18: #{moflow_forward.6} parent=0 // pred_check
    _
  $region19: #{moflow_forward.6} parent=0 // pred_check_branch
    %35 = sbr.rel (0) target = $region21
  $region20: #{moflow_forward.6} parent=0 // pred_region
    _
  $region21: #{moflow_forward.6} parent=0 // pred_fallthru
    _
  // Predicated region
  $region22: #{moflow_forward.6} parent=0 // pred_check
    _
  $region23: #{moflow_forward.6} parent=0 // pred_check_branch
    %37 = sbr.rel (0) target = $region25
  $region24: #{moflow_forward.6} parent=0 // pred_region
    _
  $region25: #{moflow_forward.6} parent=0 // pred_fallthru
    _
  // Predicated region
  $region26: #{moflow_forward.6} parent=0 // pred_check
    _
  $region27: #{moflow_forward.6} parent=0 // pred_check_branch
    %39 = sbr.rel (0) target = $region29
  $region28: #{moflow_forward.6} parent=0 // pred_region
    _
  $region29: #{moflow_forward.6} parent=0 // pred_fallthru
    _
  // Predicated region
  $region30: #{moflow_forward.6} parent=0 // pred_check
    _
  $region31: #{moflow_forward.6} parent=0 // pred_check_branch
    %41 = sbr.rel (0) target = $region33
  $region32: #{moflow_forward.6} parent=0 // pred_region
    _
  $region33: #{moflow_forward.6} parent=0 // pred_fallthru
    _
  // Predicated region
  $region34: #{moflow_forward.6} parent=0 // pred_check
    _
  $region35: #{moflow_forward.6} parent=0 // pred_check_branch
    %43 = sbr.rel (0) target = $region37
  $region36: #{moflow_forward.6} parent=0 // pred_region
    _
  $region37: #{moflow_forward.6} parent=0 // pred_fallthru
    _
  // Predicated region
  $region38: #{moflow_forward.6} parent=0 // pred_check
    _
  $region39: #{moflow_forward.6} parent=0 // pred_check_branch
    %45 = sbr.rel (0) target = $region41
  $region40: #{moflow_forward.6} parent=0 // pred_region
    _
  $region41: #{moflow_forward.6} parent=0 // pred_fallthru
    _
  // Predicated region
  $region42: #{moflow_forward.6} parent=0 // pred_check
    _
  $region43: #{moflow_forward.6} parent=0 // pred_check_branch
    %47 = sbr.rel (0) target = $region45
  $region44: #{moflow_forward.6} parent=0 // pred_region
    _
  $region45: #{moflow_forward.6} parent=0 // pred_fallthru
    _
  // Predicated region
  $region46: #{moflow_forward.6} parent=0 // pred_check
    _
  $region47: #{moflow_forward.6} parent=0 // pred_check_branch
    %49 = sbr.rel (0) target = $region49
  $region48: #{moflow_forward.6} parent=0 // pred_region
    _
  $region49: #{moflow_forward.6} parent=0 // pred_fallthru
    _
  // Predicated region
  $region50: #{moflow_forward.6} parent=0 // pred_check
    _
  $region51: #{moflow_forward.6} parent=0 // pred_check_branch
    %51 = sbr.rel (0) target = $region53
  $region52: #{moflow_forward.6} parent=0 // pred_region
    _
  $region53: #{moflow_forward.6} parent=0 // pred_fallthru
    _
  // Predicated region
  $region54: #{moflow_forward.6} parent=0 // pred_check
    _
  $region55: #{moflow_forward.6} parent=0 // pred_check_branch
    %53 = sbr.rel (0) target = $region57
  $region56: #{moflow_forward.6} parent=0 // pred_region
    _
  $region57: #{moflow_forward.6} parent=0 // pred_fallthru
    _
  // Predicated region
  $region58: #{moflow_forward.6} parent=0 // pred_check
    _
  $region59: #{moflow_forward.6} parent=0 // pred_check_branch
    %55 = sbr.rel (0) target = $region61
  $region60: #{moflow_forward.6} parent=0 // pred_region
    _
  $region61: #{moflow_forward.6} parent=0 // pred_fallthru
    _
  // Predicated region
  $region62: #{moflow_forward.6} parent=0 // pred_check
    _
  $region63: #{moflow_forward.6} parent=0 // pred_check_branch
    %57 = sbr.rel (0) target = $region65
  $region64: #{moflow_forward.6} parent=0 // pred_region
    _
  $region65: #{moflow_forward.6} parent=0 // pred_fallthru
    _
  // Predicated region
  $region66: #{moflow_forward.6} parent=0 // pred_check
    _
  $region67: #{moflow_forward.6} parent=0 // pred_check_branch
    %59 = sbr.rel (0) target = $region69
  $region68: #{moflow_forward.6} parent=0 // pred_region
    _
  $region69: #{moflow_forward.6} parent=0 // pred_fallthru
    _
  // Predicated region
  $region70: #{moflow_forward.6} parent=0 // pred_check
    _
  $region71: #{moflow_forward.6} parent=0 // pred_check_branch
    %61 = sbr.rel (0) target = $region73
  $region72: #{moflow_forward.6} parent=0 // pred_region
    _
  $region73: #{moflow_forward.6} parent=0 // pred_fallthru
    _
  // Predicated region
  $region74: #{moflow_forward.6} parent=0 // pred_check
    _
  $region75: #{moflow_forward.6} parent=0 // pred_check_branch
    %63 = sbr.rel (0) target = $region77
  $region76: #{moflow_forward.6} parent=0 // pred_region
    _
  $region77: #{moflow_forward.6} parent=0 // pred_fallthru
    _
  %v64 = vld [vmem:[%s0] sm:$0xff]
  %v65 = vld [vmem:[%s0 + $0x8] sm:$0xff]
  %v66 = vld [vmem:[%s0 + $0x10] sm:$0x3]
  %v67 = vld [vmem:[%s1] sm:$0xff]
  %v68 = vld [vmem:[%s1 + $0x8] sm:$0xff]
  %v69 = vld [vmem:[%s1 + $0x10] sm:$0xff]
  %v70 = vld [vmem:[%s1 + $0x18] sm:$0xff]
  %v71 = vld [vmem:[%s1 + $0x20] sm:$0xf]
  %v72 = vld [vmem:[%s2] sm:$0x1]
  %v74 = vlaneseq
  %v75 = vshrl.u32 %v74, 7
  %v76 = vsub.s32 0, %v75
  %v77 = vrot.slane %v72, %v76
  %vm79 = vcmask 293888
  %v81 = vsel %vm79, %v64, 0
  %v84 = vsel %vm79, %v65, 0
  %v87 = vsel %vm79, %v66, 0
  %vm89 = vcmask 1043456
  %v91 = vsel %vm89, %v71, 0
  %93 = vmatprep.subr.mxu0 0.0
  %94 = vmatpush1.msra.mxu0 0.0
  %95 = vmatprep.subr.mxu0 0.0
  %96 = vmatpush1.msra.mxu0 0.0
  %97 = vmatprep.subr.mxu0 0.0
  %98 = vmatpush1.msra.mxu0 0.0
  %99 = vmatprep.subr.mxu0 0.0
  %100 = vmatpush1.msra.mxu0 0.0
  %101 = vmatprep.subr.mxu0 0.0
  %102 = vmatpush1.msra.mxu0 0.0
  %103 = vmatprep.subr.mxu0 0.0
  %104 = vmatpush1.msra.mxu0 0.0
  %105 = vmatprep.subr.mxu0 0.0
  %106 = vmatpush1.msra.mxu0 0.0
  %107 = vmatprep.subr.mxu0 0.0
  %108 = vmatpush1.msra.mxu0 0.0
  %109 = vmatprep.subr.mxu0 0.0
  %110 = vmatpush1.msra.mxu0 0.0
  %111 = vmatprep.subr.mxu0 0.0
  %112 = vmatpush1.msra.mxu0 0.0
  %113 = vmatprep.subr.mxu0 0.0
  %114 = vmatpush1.msra.mxu0 0.0
  %115 = vmatprep.subr.mxu0 0.0
  %116 = vmatpush1.msra.mxu0 %v91
  %117 = vmatprep.subr.mxu0 0.0
  %118 = vmatpush1.msra.mxu0 %v70
  %119 = vmatprep.subr.mxu0 0.0
  %120 = vmatpush1.msra.mxu0 %v69
  %121 = vmatprep.subr.mxu0 0.0
  %122 = vmatpush1.msra.mxu0 %v68
  %123 = vmatprep.subr.mxu0 0.0
  %124 = vmatpush1.msra.mxu0 %v67
  %125 = vmatprep.subr.mxu0 0.0
  %126 = vmatpush2.msra.mxu0 0.0
  %127 = vmatprep.subr.mxu0 0.0
  %128 = vmatpush2.msra.mxu0 0.0
  %129 = vmatprep.subr.mxu0 0.0
  %130 = vmatpush2.msra.mxu0 0.0
  %131 = vmatprep.subr.mxu0 0.0
  %132 = vmatpush2.msra.mxu0 0.0
  %133 = vmatprep.subr.mxu0 0.0
  %134 = vmatpush2.msra.mxu0 0.0
  %135 = vmatprep.subr.mxu0 0.0
  %136 = vmatpush2.msra.mxu0 0.0
  %137 = vmatprep.subr.mxu0 0.0
  %138 = vmatpush2.msra.mxu0 0.0
  %139 = vmatprep.subr.mxu0 0.0
  %140 = vmatpush2.msra.mxu0 0.0
  %141 = vmatprep.subr.mxu0 0.0
  %142 = vmatpush2.msra.mxu0 0.0
  %143 = vmatprep.subr.mxu0 0.0
  %144 = vmatpush2.msra.mxu0 0.0
  %145 = vmatprep.subr.mxu0 0.0
  %146 = vmatpush2.msra.mxu0 0.0
  %147 = vmatprep.subr.mxu0 0.0
  %148 = vmatpush2.msra.mxu0 0.0
  %149 = vmatprep.subr.mxu0 0.0
  %150 = vmatpush2.msra.mxu0 0.0
  %151 = vmatprep.subr.mxu0 0.0
  %152 = vmatpush2.msra.mxu0 0.0
  %153 = vmatprep.subr.mxu0 0.0
  %154 = vmatpush2.msra.mxu0 0.0
  %155 = vmatprep.subr.mxu0 0.0
  %156 = vmatpush2.msra.mxu0 0.0
  %157 = vmatprep.mubr.f32.mxu0 0.0
  %158 = vmatmul.mubr.f32.gmra.mxu0 %v81
  %v159 = vpop.f32.mrf.mxu0
  %v160 = vadd.f32 %v77, %v159
  %v161 = vpop.f32.mrf.mxu0
  %162 = vmatprep.mubr.f32.mxu0 0.0
  %163 = vmatmul.mubr.f32.gmra.mxu0 %v84
  %v164 = vpop.f32.mrf.mxu0
  %v165 = vadd.f32 %v77, %v164
  %v166 = vpop.f32.mrf.mxu0
  %167 = vmatprep.mubr.f32.mxu0 0.0
  %168 = vmatmul.mubr.f32.gmra.mxu0 %v87
  %v169 = vpop.f32.mrf.mxu0
  %v170 = vadd.f32 %v77, %v169
  %v171 = vpop.f32.mrf.mxu0
  %172 = vdwg.mxu0
  %v173 = vld [vmem:[%s3] sm:$0xff]
  %v174 = vld [vmem:[%s3 + $0x8] sm:$0xff]
  %v175 = vld [vmem:[%s3 + $0x10] sm:$0xff]
  %v176 = vld [vmem:[%s3 + $0x18] sm:$0xff]
  %v177 = vld [vmem:[%s3 + $0x20] sm:$0xf]
  %v178 = vld [vmem:[%s4] sm:$0x1]
  %v180 = vlaneseq
  %v181 = vshrl.u32 %v180, 7
  %v182 = vsub.s32 0, %v181
  %v183 = vrot.slane %v178, %v182
  %v186 = vsel %vm89, %v177, 0
  %188 = vmatprep.subr.mxu0 0.0
  %189 = vmatpush1.msra.mxu0 0.0
  %190 = vmatprep.subr.mxu0 0.0
  %191 = vmatpush1.msra.mxu0 0.0
  %192 = vmatprep.subr.mxu0 0.0
  %193 = vmatpush1.msra.mxu0 0.0
  %194 = vmatprep.subr.mxu0 0.0
  %195 = vmatpush1.msra.mxu0 0.0
  %196 = vmatprep.subr.mxu0 0.0
  %197 = vmatpush1.msra.mxu0 0.0
  %198 = vmatprep.subr.mxu0 0.0
  %199 = vmatpush1.msra.mxu0 0.0
  %200 = vmatprep.subr.mxu0 0.0
  %201 = vmatpush1.msra.mxu0 0.0
  %202 = vmatprep.subr.mxu0 0.0
  %203 = vmatpush1.msra.mxu0 0.0
  %204 = vmatprep.subr.mxu0 0.0
  %205 = vmatpush1.msra.mxu0 0.0
  %206 = vmatprep.subr.mxu0 0.0
  %207 = vmatpush1.msra.mxu0 0.0
  %208 = vmatprep.subr.mxu0 0.0
  %209 = vmatpush1.msra.mxu0 0.0
  %210 = vmatprep.subr.mxu0 0.0
  %211 = vmatpush1.msra.mxu0 %v186
  %212 = vmatprep.subr.mxu0 0.0
  %213 = vmatpush1.msra.mxu0 %v176
  %214 = vmatprep.subr.mxu0 0.0
  %215 = vmatpush1.msra.mxu0 %v175
  %216 = vmatprep.subr.mxu0 0.0
  %217 = vmatpush1.msra.mxu0 %v174
  %218 = vmatprep.subr.mxu0 0.0
  %219 = vmatpush1.msra.mxu0 %v173
  %220 = vmatprep.subr.mxu0 0.0
  %221 = vmatpush2.msra.mxu0 0.0
  %222 = vmatprep.subr.mxu0 0.0
  %223 = vmatpush2.msra.mxu0 0.0
  %224 = vmatprep.subr.mxu0 0.0
  %225 = vmatpush2.msra.mxu0 0.0
  %226 = vmatprep.subr.mxu0 0.0
  %227 = vmatpush2.msra.mxu0 0.0
  %228 = vmatprep.subr.mxu0 0.0
  %229 = vmatpush2.msra.mxu0 0.0
  %230 = vmatprep.subr.mxu0 0.0
  %231 = vmatpush2.msra.mxu0 0.0
  %232 = vmatprep.subr.mxu0 0.0
  %233 = vmatpush2.msra.mxu0 0.0
  %234 = vmatprep.subr.mxu0 0.0
  %235 = vmatpush2.msra.mxu0 0.0
  %236 = vmatprep.subr.mxu0 0.0
  %237 = vmatpush2.msra.mxu0 0.0
  %238 = vmatprep.subr.mxu0 0.0
  %239 = vmatpush2.msra.mxu0 0.0
  %240 = vmatprep.subr.mxu0 0.0
  %241 = vmatpush2.msra.mxu0 0.0
  %242 = vmatprep.subr.mxu0 0.0
  %243 = vmatpush2.msra.mxu0 0.0
  %244 = vmatprep.subr.mxu0 0.0
  %245 = vmatpush2.msra.mxu0 0.0
  %246 = vmatprep.subr.mxu0 0.0
  %247 = vmatpush2.msra.mxu0 0.0
  %248 = vmatprep.subr.mxu0 0.0
  %249 = vmatpush2.msra.mxu0 0.0
  %250 = vmatprep.subr.mxu0 0.0
  %251 = vmatpush2.msra.mxu0 0.0
  %252 = vmatprep.mubr.f32.mxu0 0.0
  %253 = vmatmul.mubr.f32.gmra.mxu0 %v81
  %v254 = vpop.f32.mrf.mxu0
  %v255 = vadd.f32 %v183, %v254
  %v256 = vpop.f32.mrf.mxu0
  %257 = vmatprep.mubr.f32.mxu0 0.0
  %258 = vmatmul.mubr.f32.gmra.mxu0 %v84
  %v259 = vpop.f32.mrf.mxu0
  %v260 = vadd.f32 %v183, %v259
  %v261 = vpop.f32.mrf.mxu0
  %262 = vmatprep.mubr.f32.mxu0 0.0
  %263 = vmatmul.mubr.f32.gmra.mxu0 %v87
  %v264 = vpop.f32.mrf.mxu0
  %v265 = vadd.f32 %v183, %v264
  %v266 = vpop.f32.mrf.mxu0
  %267 = vdwg.mxu0
  %v268 = vld [vmem:[%s5] sm:$0xff]
  %v269 = vld [vmem:[%s5 + $0x8] sm:$0xff]
  %v270 = vld [vmem:[%s5 + $0x10] sm:$0x3]
  %vm271 = vcmask 146432
  %v273 = vsel %vm271, %v268, 0
  %v276 = vsel %vm271, %v269, 0
  %v279 = vsel %vm271, %v270, 0
  %vm281 = vcmask 1041408
  %v283 = vsel %vm281, %v170, 0
  %285 = vmatprep.subr.mxu0 0.0
  %286 = vmatpush1.msra.mxu0 0.0
  %287 = vmatprep.subr.mxu0 0.0
  %288 = vmatpush1.msra.mxu0 0.0
  %289 = vmatprep.subr.mxu0 0.0
  %290 = vmatpush1.msra.mxu0 0.0
  %291 = vmatprep.subr.mxu0 0.0
  %292 = vmatpush1.msra.mxu0 0.0
  %293 = vmatprep.subr.mxu0 0.0
  %294 = vmatpush1.msra.mxu0 0.0
  %295 = vmatprep.subr.mxu0 0.0
  %296 = vmatpush1.msra.mxu0 0.0
  %297 = vmatprep.subr.mxu0 0.0
  %298 = vmatpush1.msra.mxu0 0.0
  %299 = vmatprep.subr.mxu0 0.0
  %300 = vmatpush1.msra.mxu0 0.0
  %301 = vmatprep.subr.mxu0 0.0
  %302 = vmatpush1.msra.mxu0 0.0
  %303 = vmatprep.subr.mxu0 0.0
  %304 = vmatpush1.msra.mxu0 0.0
  %305 = vmatprep.subr.mxu0 0.0
  %306 = vmatpush1.msra.mxu0 0.0
  %307 = vmatprep.subr.mxu0 0.0
  %308 = vmatpush1.msra.mxu0 0.0
  %309 = vmatprep.subr.mxu0 0.0
  %310 = vmatpush1.msra.mxu0 0.0
  %311 = vmatprep.subr.mxu0 0.0
  %312 = vmatpush1.msra.mxu0 %v283
  %313 = vmatprep.subr.mxu0 0.0
  %314 = vmatpush1.msra.mxu0 %v165
  %315 = vmatprep.subr.mxu0 0.0
  %316 = vmatpush1.msra.mxu0 %v160
  %317 = vmatprep.subr.mxu0 0.0
  %318 = vmatpush2.msra.mxu0 0.0
  %319 = vmatprep.subr.mxu0 0.0
  %320 = vmatpush2.msra.mxu0 0.0
  %321 = vmatprep.subr.mxu0 0.0
  %322 = vmatpush2.msra.mxu0 0.0
  %323 = vmatprep.subr.mxu0 0.0
  %324 = vmatpush2.msra.mxu0 0.0
  %325 = vmatprep.subr.mxu0 0.0
  %326 = vmatpush2.msra.mxu0 0.0
  %327 = vmatprep.subr.mxu0 0.0
  %328 = vmatpush2.msra.mxu0 0.0
  %329 = vmatprep.subr.mxu0 0.0
  %330 = vmatpush2.msra.mxu0 0.0
  %331 = vmatprep.subr.mxu0 0.0
  %332 = vmatpush2.msra.mxu0 0.0
  %333 = vmatprep.subr.mxu0 0.0
  %334 = vmatpush2.msra.mxu0 0.0
  %335 = vmatprep.subr.mxu0 0.0
  %336 = vmatpush2.msra.mxu0 0.0
  %337 = vmatprep.subr.mxu0 0.0
  %338 = vmatpush2.msra.mxu0 0.0
  %339 = vmatprep.subr.mxu0 0.0
  %340 = vmatpush2.msra.mxu0 0.0
  %341 = vmatprep.subr.mxu0 0.0
  %342 = vmatpush2.msra.mxu0 0.0
  %343 = vmatprep.subr.mxu0 0.0
  %344 = vmatpush2.msra.mxu0 0.0
  %345 = vmatprep.subr.mxu0 0.0
  %346 = vmatpush2.msra.mxu0 0.0
  %347 = vmatprep.subr.mxu0 0.0
  %348 = vmatpush2.msra.mxu0 0.0
  %349 = vmatprep.mubr.f32.mxu0 0.0
  %350 = vmatmul.mubr.f32.gmra.mxu0 %v273
  %v351 = vpop.f32.mrf.mxu0
  %v352 = vadd.f32 0.0, %v351
  %v353 = vpop.f32.mrf.mxu0
  %354 = vmatprep.mubr.f32.mxu0 0.0
  %355 = vmatmul.mubr.f32.gmra.mxu0 %v276
  %v356 = vpop.f32.mrf.mxu0
  %v357 = vadd.f32 0.0, %v356
  %v358 = vpop.f32.mrf.mxu0
  %359 = vmatprep.mubr.f32.mxu0 0.0
  %360 = vmatmul.mubr.f32.gmra.mxu0 %v279
  %v361 = vpop.f32.mrf.mxu0
  %v362 = vadd.f32 0.0, %v361
  %v363 = vpop.f32.mrf.mxu0
  %364 = vdwg.mxu0
  %v365 = vld [vmem:[%s7] sm:$0xff]
  %v366 = vld [vmem:[%s7 + $0x8] sm:$0xff]
  %v367 = vld [vmem:[%s7 + $0x10] sm:$0x3]
  %s368 = scalar_lea.vmem %s5, 24
  %v369 = vld [vmem:[%s368] sm:$0xff]
  %v370 = vld [vmem:[%s368 + $0x8] sm:$0xff]
  %v371 = vld [vmem:[%s368 + $0x10] sm:$0x3]
  %v373 = vsel %vm271, %v369, 0
  %v376 = vsel %vm271, %v370, 0
  %v379 = vsel %vm271, %v371, 0
  %381 = vmatprep.subr.mxu0 0.0
  %382 = vmatpush1.msra.mxu0 0.0
  %383 = vmatprep.subr.mxu0 0.0
  %384 = vmatpush1.msra.mxu0 0.0
  %385 = vmatprep.subr.mxu0 0.0
  %386 = vmatpush1.msra.mxu0 0.0
  %387 = vmatprep.subr.mxu0 0.0
  %388 = vmatpush1.msra.mxu0 0.0
  %389 = vmatprep.subr.mxu0 0.0
  %390 = vmatpush1.msra.mxu0 0.0
  %391 = vmatprep.subr.mxu0 0.0
  %392 = vmatpush1.msra.mxu0 0.0
  %393 = vmatprep.subr.mxu0 0.0
  %394 = vmatpush1.msra.mxu0 0.0
  %395 = vmatprep.subr.mxu0 0.0
  %396 = vmatpush1.msra.mxu0 0.0
  %397 = vmatprep.subr.mxu0 0.0
  %398 = vmatpush1.msra.mxu0 0.0
  %399 = vmatprep.subr.mxu0 0.0
  %400 = vmatpush1.msra.mxu0 0.0
  %401 = vmatprep.subr.mxu0 0.0
  %402 = vmatpush1.msra.mxu0 0.0
  %403 = vmatprep.subr.mxu0 0.0
  %404 = vmatpush1.msra.mxu0 0.0
  %405 = vmatprep.subr.mxu0 0.0
  %406 = vmatpush1.msra.mxu0 0.0
  %407 = vmatprep.subr.mxu0 0.0
  %408 = vmatpush1.msra.mxu0 %v283
  %409 = vmatprep.subr.mxu0 0.0
  %410 = vmatpush1.msra.mxu0 %v165
  %411 = vmatprep.subr.mxu0 0.0
  %412 = vmatpush1.msra.mxu0 %v160
  %413 = vmatprep.subr.mxu0 0.0
  %414 = vmatpush2.msra.mxu0 0.0
  %415 = vmatprep.subr.mxu0 0.0
  %416 = vmatpush2.msra.mxu0 0.0
  %417 = vmatprep.subr.mxu0 0.0
  %418 = vmatpush2.msra.mxu0 0.0
  %419 = vmatprep.subr.mxu0 0.0
  %420 = vmatpush2.msra.mxu0 0.0
  %421 = vmatprep.subr.mxu0 0.0
  %422 = vmatpush2.msra.mxu0 0.0
  %423 = vmatprep.subr.mxu0 0.0
  %424 = vmatpush2.msra.mxu0 0.0
  %425 = vmatprep.subr.mxu0 0.0
  %426 = vmatpush2.msra.mxu0 0.0
  %427 = vmatprep.subr.mxu0 0.0
  %428 = vmatpush2.msra.mxu0 0.0
  %429 = vmatprep.subr.mxu0 0.0
  %430 = vmatpush2.msra.mxu0 0.0
  %431 = vmatprep.subr.mxu0 0.0
  %432 = vmatpush2.msra.mxu0 0.0
  %433 = vmatprep.subr.mxu0 0.0
  %434 = vmatpush2.msra.mxu0 0.0
  %435 = vmatprep.subr.mxu0 0.0
  %436 = vmatpush2.msra.mxu0 0.0
  %437 = vmatprep.subr.mxu0 0.0
  %438 = vmatpush2.msra.mxu0 0.0
  %439 = vmatprep.subr.mxu0 0.0
  %440 = vmatpush2.msra.mxu0 0.0
  %441 = vmatprep.subr.mxu0 0.0
  %442 = vmatpush2.msra.mxu0 0.0
  %443 = vmatprep.subr.mxu0 0.0
  %444 = vmatpush2.msra.mxu0 0.0
  %445 = vmatprep.mubr.f32.mxu0 0.0
  %446 = vmatmul.mubr.f32.gmra.mxu0 %v373
  %v447 = vpop.f32.mrf.mxu0
  %v448 = vadd.f32 0.0, %v447
  %v449 = vpop.f32.mrf.mxu0
  %450 = vmatprep.mubr.f32.mxu0 0.0
  %451 = vmatmul.mubr.f32.gmra.mxu0 %v376
  %v452 = vpop.f32.mrf.mxu0
  %v453 = vadd.f32 0.0, %v452
  %v454 = vpop.f32.mrf.mxu0
  %455 = vmatprep.mubr.f32.mxu0 0.0
  %456 = vmatmul.mubr.f32.gmra.mxu0 %v379
  %v457 = vpop.f32.mrf.mxu0
  %v458 = vadd.f32 0.0, %v457
  %v459 = vpop.f32.mrf.mxu0
  %460 = vdwg.mxu0
  %s461 = scalar_lea.vmem %s7, 24
  %v462 = vld [vmem:[%s461] sm:$0xff]
  %v463 = vld [vmem:[%s461 + $0x8] sm:$0xff]
  %v464 = vld [vmem:[%s461 + $0x10] sm:$0x3]
  %v466 = vsel %vm271, %v448, 0
  %v469 = vsel %vm271, %v453, 0
  %v472 = vsel %vm271, %v458, 0
  %v475 = vsel %vm281, %v464, 0
  %477 = vmatprep.subr.mxu0 0.0
  %478 = vmatpush1.msra.mxu0 0.0
  %479 = vmatprep.subr.mxu0 0.0
  %480 = vmatpush1.msra.mxu0 0.0
  %481 = vmatprep.subr.mxu0 0.0
  %482 = vmatpush1.msra.mxu0 0.0
  %483 = vmatprep.subr.mxu0 0.0
  %484 = vmatpush1.msra.mxu0 0.0
  %485 = vmatprep.subr.mxu0 0.0
  %486 = vmatpush1.msra.mxu0 0.0
  %487 = vmatprep.subr.mxu0 0.0
  %488 = vmatpush1.msra.mxu0 0.0
  %489 = vmatprep.subr.mxu0 0.0
  %490 = vmatpush1.msra.mxu0 0.0
  %491 = vmatprep.subr.mxu0 0.0
  %492 = vmatpush1.msra.mxu0 0.0
  %493 = vmatprep.subr.mxu0 0.0
  %494 = vmatpush1.msra.mxu0 0.0
  %495 = vmatprep.subr.mxu0 0.0
  %496 = vmatpush1.msra.mxu0 0.0
  %497 = vmatprep.subr.mxu0 0.0
  %498 = vmatpush1.msra.mxu0 0.0
  %499 = vmatprep.subr.mxu0 0.0
  %500 = vmatpush1.msra.mxu0 0.0
  %501 = vmatprep.subr.mxu0 0.0
  %502 = vmatpush1.msra.mxu0 0.0
  %503 = vmatprep.subr.mxu0 0.0
  %504 = vmatpush1.msra.mxu0 %v475
  %505 = vmatprep.subr.mxu0 0.0
  %506 = vmatpush1.msra.mxu0 %v463
  %507 = vmatprep.subr.mxu0 0.0
  %508 = vmatpush1.msra.mxu0 %v462
  %509 = vmatprep.subr.mxu0 0.0
  %510 = vmatpush2.msra.mxu0 0.0
  %511 = vmatprep.subr.mxu0 0.0
  %512 = vmatpush2.msra.mxu0 0.0
  %513 = vmatprep.subr.mxu0 0.0
  %514 = vmatpush2.msra.mxu0 0.0
  %515 = vmatprep.subr.mxu0 0.0
  %516 = vmatpush2.msra.mxu0 0.0
  %517 = vmatprep.subr.mxu0 0.0
  %518 = vmatpush2.msra.mxu0 0.0
  %519 = vmatprep.subr.mxu0 0.0
  %520 = vmatpush2.msra.mxu0 0.0
  %521 = vmatprep.subr.mxu0 0.0
  %522 = vmatpush2.msra.mxu0 0.0
  %523 = vmatprep.subr.mxu0 0.0
  %524 = vmatpush2.msra.mxu0 0.0
  %525 = vmatprep.subr.mxu0 0.0
  %526 = vmatpush2.msra.mxu0 0.0
  %527 = vmatprep.subr.mxu0 0.0
  %528 = vmatpush2.msra.mxu0 0.0
  %529 = vmatprep.subr.mxu0 0.0
  %530 = vmatpush2.msra.mxu0 0.0
  %531 = vmatprep.subr.mxu0 0.0
  %532 = vmatpush2.msra.mxu0 0.0
  %533 = vmatprep.subr.mxu0 0.0
  %534 = vmatpush2.msra.mxu0 0.0
  %535 = vmatprep.subr.mxu0 0.0
  %536 = vmatpush2.msra.mxu0 0.0
  %537 = vmatprep.subr.mxu0 0.0
  %538 = vmatpush2.msra.mxu0 0.0
  %539 = vmatprep.subr.mxu0 0.0
  %540 = vmatpush2.msra.mxu0 0.0
  %541 = vmatprep.mubr.f32.mxu0 0.0
  %542 = vmatmul.mubr.f32.gmra.mxu0 %v466
  %v543 = vpop.f32.mrf.mxu0
  %v544 = vadd.f32 0.0, %v543
  %v545 = vpop.f32.mrf.mxu0
  %546 = vmatprep.mubr.f32.mxu0 0.0
  %547 = vmatmul.mubr.f32.gmra.mxu0 %v469
  %v548 = vpop.f32.mrf.mxu0
  %v549 = vadd.f32 0.0, %v548
  %v550 = vpop.f32.mrf.mxu0
  %551 = vmatprep.mubr.f32.mxu0 0.0
  %552 = vmatmul.mubr.f32.gmra.mxu0 %v472
  %v553 = vpop.f32.mrf.mxu0
  %v554 = vadd.f32 0.0, %v553
  %v555 = vpop.f32.mrf.mxu0
  %556 = vdwg.mxu0
  %v558 = vsel %vm271, %v352, 0
  %v561 = vsel %vm271, %v357, 0
  %v564 = vsel %vm271, %v362, 0
  %v567 = vsel %vm281, %v367, 0
  %569 = vmatprep.subr.mxu0 0.0
  %570 = vmatpush1.msra.mxu0 0.0
  %571 = vmatprep.subr.mxu0 0.0
  %572 = vmatpush1.msra.mxu0 0.0
  %573 = vmatprep.subr.mxu0 0.0
  %574 = vmatpush1.msra.mxu0 0.0
  %575 = vmatprep.subr.mxu0 0.0
  %576 = vmatpush1.msra.mxu0 0.0
  %577 = vmatprep.subr.mxu0 0.0
  %578 = vmatpush1.msra.mxu0 0.0
  %579 = vmatprep.subr.mxu0 0.0
  %580 = vmatpush1.msra.mxu0 0.0
  %581 = vmatprep.subr.mxu0 0.0
  %582 = vmatpush1.msra.mxu0 0.0
  %583 = vmatprep.subr.mxu0 0.0
  %584 = vmatpush1.msra.mxu0 0.0
  %585 = vmatprep.subr.mxu0 0.0
  %586 = vmatpush1.msra.mxu0 0.0
  %587 = vmatprep.subr.mxu0 0.0
  %588 = vmatpush1.msra.mxu0 0.0
  %589 = vmatprep.subr.mxu0 0.0
  %590 = vmatpush1.msra.mxu0 0.0
  %591 = vmatprep.subr.mxu0 0.0
  %592 = vmatpush1.msra.mxu0 0.0
  %593 = vmatprep.subr.mxu0 0.0
  %594 = vmatpush1.msra.mxu0 0.0
  %595 = vmatprep.subr.mxu0 0.0
  %596 = vmatpush1.msra.mxu0 %v567
  %597 = vmatprep.subr.mxu0 0.0
  %598 = vmatpush1.msra.mxu0 %v366
  %599 = vmatprep.subr.mxu0 0.0
  %600 = vmatpush1.msra.mxu0 %v365
  %601 = vmatprep.subr.mxu0 0.0
  %602 = vmatpush2.msra.mxu0 0.0
  %603 = vmatprep.subr.mxu0 0.0
  %604 = vmatpush2.msra.mxu0 0.0
  %605 = vmatprep.subr.mxu0 0.0
  %606 = vmatpush2.msra.mxu0 0.0
  %607 = vmatprep.subr.mxu0 0.0
  %608 = vmatpush2.msra.mxu0 0.0
  %609 = vmatprep.subr.mxu0 0.0
  %610 = vmatpush2.msra.mxu0 0.0
  %611 = vmatprep.subr.mxu0 0.0
  %612 = vmatpush2.msra.mxu0 0.0
  %613 = vmatprep.subr.mxu0 0.0
  %614 = vmatpush2.msra.mxu0 0.0
  %615 = vmatprep.subr.mxu0 0.0
  %616 = vmatpush2.msra.mxu0 0.0
  %617 = vmatprep.subr.mxu0 0.0
  %618 = vmatpush2.msra.mxu0 0.0
  %619 = vmatprep.subr.mxu0 0.0
  %620 = vmatpush2.msra.mxu0 0.0
  %621 = vmatprep.subr.mxu0 0.0
  %622 = vmatpush2.msra.mxu0 0.0
  %623 = vmatprep.subr.mxu0 0.0
  %624 = vmatpush2.msra.mxu0 0.0
  %625 = vmatprep.subr.mxu0 0.0
  %626 = vmatpush2.msra.mxu0 0.0
  %627 = vmatprep.subr.mxu0 0.0
  %628 = vmatpush2.msra.mxu0 0.0
  %629 = vmatprep.subr.mxu0 0.0
  %630 = vmatpush2.msra.mxu0 0.0
  %631 = vmatprep.subr.mxu0 0.0
  %632 = vmatpush2.msra.mxu0 0.0
  %633 = vmatprep.mubr.f32.mxu0 0.0
  %634 = vmatmul.mubr.f32.gmra.mxu0 %v558
  %v635 = vpop.f32.mrf.mxu0
  %v636 = vadd.f32 %v544, %v635
  %v637 = vpop.f32.mrf.mxu0
  %638 = vmatprep.mubr.f32.mxu0 0.0
  %639 = vmatmul.mubr.f32.gmra.mxu0 %v561
  %v640 = vpop.f32.mrf.mxu0
  %v641 = vadd.f32 %v549, %v640
  %v642 = vpop.f32.mrf.mxu0
  %643 = vmatprep.mubr.f32.mxu0 0.0
  %644 = vmatmul.mubr.f32.gmra.mxu0 %v564
  %v645 = vpop.f32.mrf.mxu0
  %v646 = vadd.f32 %v554, %v645
  %v647 = vpop.f32.mrf.mxu0
  %648 = vdwg.mxu0
  %s649 = scalar_lea.vmem %s5, 48
  %v650 = vld [vmem:[%s649] sm:$0xff]
  %v651 = vld [vmem:[%s649 + $0x8] sm:$0xff]
  %v652 = vld [vmem:[%s649 + $0x10] sm:$0x3]
  %v654 = vsel %vm271, %v650, 0
  %v657 = vsel %vm271, %v651, 0
  %v660 = vsel %vm271, %v652, 0
  %662 = vmatprep.subr.mxu0 0.0
  %663 = vmatpush1.msra.mxu0 0.0
  %664 = vmatprep.subr.mxu0 0.0
  %665 = vmatpush1.msra.mxu0 0.0
  %666 = vmatprep.subr.mxu0 0.0
  %667 = vmatpush1.msra.mxu0 0.0
  %668 = vmatprep.subr.mxu0 0.0
  %669 = vmatpush1.msra.mxu0 0.0
  %670 = vmatprep.subr.mxu0 0.0
  %671 = vmatpush1.msra.mxu0 0.0
  %672 = vmatprep.subr.mxu0 0.0
  %673 = vmatpush1.msra.mxu0 0.0
  %674 = vmatprep.subr.mxu0 0.0
  %675 = vmatpush1.msra.mxu0 0.0
  %676 = vmatprep.subr.mxu0 0.0
  %677 = vmatpush1.msra.mxu0 0.0
  %678 = vmatprep.subr.mxu0 0.0
  %679 = vmatpush1.msra.mxu0 0.0
  %680 = vmatprep.subr.mxu0 0.0
  %681 = vmatpush1.msra.mxu0 0.0
  %682 = vmatprep.subr.mxu0 0.0
  %683 = vmatpush1.msra.mxu0 0.0
  %684 = vmatprep.subr.mxu0 0.0
  %685 = vmatpush1.msra.mxu0 0.0
  %686 = vmatprep.subr.mxu0 0.0
  %687 = vmatpush1.msra.mxu0 0.0
  %688 = vmatprep.subr.mxu0 0.0
  %689 = vmatpush1.msra.mxu0 %v283
  %690 = vmatprep.subr.mxu0 0.0
  %691 = vmatpush1.msra.mxu0 %v165
  %692 = vmatprep.subr.mxu0 0.0
  %693 = vmatpush1.msra.mxu0 %v160
  %694 = vmatprep.subr.mxu0 0.0
  %695 = vmatpush2.msra.mxu0 0.0
  %696 = vmatprep.subr.mxu0 0.0
  %697 = vmatpush2.msra.mxu0 0.0
  %698 = vmatprep.subr.mxu0 0.0
  %699 = vmatpush2.msra.mxu0 0.0
  %700 = vmatprep.subr.mxu0 0.0
  %701 = vmatpush2.msra.mxu0 0.0
  %702 = vmatprep.subr.mxu0 0.0
  %703 = vmatpush2.msra.mxu0 0.0
  %704 = vmatprep.subr.mxu0 0.0
  %705 = vmatpush2.msra.mxu0 0.0
  %706 = vmatprep.subr.mxu0 0.0
  %707 = vmatpush2.msra.mxu0 0.0
  %708 = vmatprep.subr.mxu0 0.0
  %709 = vmatpush2.msra.mxu0 0.0
  %710 = vmatprep.subr.mxu0 0.0
  %711 = vmatpush2.msra.mxu0 0.0
  %712 = vmatprep.subr.mxu0 0.0
  %713 = vmatpush2.msra.mxu0 0.0
  %714 = vmatprep.subr.mxu0 0.0
  %715 = vmatpush2.msra.mxu0 0.0
  %716 = vmatprep.subr.mxu0 0.0
  %717 = vmatpush2.msra.mxu0 0.0
  %718 = vmatprep.subr.mxu0 0.0
  %719 = vmatpush2.msra.mxu0 0.0
  %720 = vmatprep.subr.mxu0 0.0
  %721 = vmatpush2.msra.mxu0 0.0
  %722 = vmatprep.subr.mxu0 0.0
  %723 = vmatpush2.msra.mxu0 0.0
  %724 = vmatprep.subr.mxu0 0.0
  %725 = vmatpush2.msra.mxu0 0.0
  %726 = vmatprep.mubr.f32.mxu0 0.0
  %727 = vmatmul.mubr.f32.gmra.mxu0 %v654
  %v728 = vpop.f32.mrf.mxu0
  %v729 = vadd.f32 0.0, %v728
  %v730 = vpop.f32.mrf.mxu0
  %731 = vmatprep.mubr.f32.mxu0 0.0
  %732 = vmatmul.mubr.f32.gmra.mxu0 %v657
  %v733 = vpop.f32.mrf.mxu0
  %v734 = vadd.f32 0.0, %v733
  %v735 = vpop.f32.mrf.mxu0
  %736 = vmatprep.mubr.f32.mxu0 0.0
  %737 = vmatmul.mubr.f32.gmra.mxu0 %v660
  %v738 = vpop.f32.mrf.mxu0
  %v739 = vadd.f32 0.0, %v738
  %v740 = vpop.f32.mrf.mxu0
  %741 = vdwg.mxu0
  %s742 = scalar_lea.vmem %s7, 48
  %v743 = vld [vmem:[%s742] sm:$0xff]
  %v744 = vld [vmem:[%s742 + $0x8] sm:$0xff]
  %v745 = vld [vmem:[%s742 + $0x10] sm:$0x3]
  %v747 = vsel %vm271, %v729, 0
  %v750 = vsel %vm271, %v734, 0
  %v753 = vsel %vm271, %v739, 0
  %v756 = vsel %vm281, %v745, 0
  %758 = vmatprep.subr.mxu0 0.0
  %759 = vmatpush1.msra.mxu0 0.0
  %760 = vmatprep.subr.mxu0 0.0
  %761 = vmatpush1.msra.mxu0 0.0
  %762 = vmatprep.subr.mxu0 0.0
  %763 = vmatpush1.msra.mxu0 0.0
  %764 = vmatprep.subr.mxu0 0.0
  %765 = vmatpush1.msra.mxu0 0.0
  %766 = vmatprep.subr.mxu0 0.0
  %767 = vmatpush1.msra.mxu0 0.0
  %768 = vmatprep.subr.mxu0 0.0
  %769 = vmatpush1.msra.mxu0 0.0
  %770 = vmatprep.subr.mxu0 0.0
  %771 = vmatpush1.msra.mxu0 0.0
  %772 = vmatprep.subr.mxu0 0.0
  %773 = vmatpush1.msra.mxu0 0.0
  %774 = vmatprep.subr.mxu0 0.0
  %775 = vmatpush1.msra.mxu0 0.0
  %776 = vmatprep.subr.mxu0 0.0
  %777 = vmatpush1.msra.mxu0 0.0
  %778 = vmatprep.subr.mxu0 0.0
  %779 = vmatpush1.msra.mxu0 0.0
  %780 = vmatprep.subr.mxu0 0.0
  %781 = vmatpush1.msra.mxu0 0.0
  %782 = vmatprep.subr.mxu0 0.0
  %783 = vmatpush1.msra.mxu0 0.0
  %784 = vmatprep.subr.mxu0 0.0
  %785 = vmatpush1.msra.mxu0 %v756
  %786 = vmatprep.subr.mxu0 0.0
  %787 = vmatpush1.msra.mxu0 %v744
  %788 = vmatprep.subr.mxu0 0.0
  %789 = vmatpush1.msra.mxu0 %v743
  %790 = vmatprep.subr.mxu0 0.0
  %791 = vmatpush2.msra.mxu0 0.0
  %792 = vmatprep.subr.mxu0 0.0
  %793 = vmatpush2.msra.mxu0 0.0
  %794 = vmatprep.subr.mxu0 0.0
  %795 = vmatpush2.msra.mxu0 0.0
  %796 = vmatprep.subr.mxu0 0.0
  %797 = vmatpush2.msra.mxu0 0.0
  %798 = vmatprep.subr.mxu0 0.0
  %799 = vmatpush2.msra.mxu0 0.0
  %800 = vmatprep.subr.mxu0 0.0
  %801 = vmatpush2.msra.mxu0 0.0
  %802 = vmatprep.subr.mxu0 0.0
  %803 = vmatpush2.msra.mxu0 0.0
  %804 = vmatprep.subr.mxu0 0.0
  %805 = vmatpush2.msra.mxu0 0.0
  %806 = vmatprep.subr.mxu0 0.0
  %807 = vmatpush2.msra.mxu0 0.0
  %808 = vmatprep.subr.mxu0 0.0
  %809 = vmatpush2.msra.mxu0 0.0
  %810 = vmatprep.subr.mxu0 0.0
  %811 = vmatpush2.msra.mxu0 0.0
  %812 = vmatprep.subr.mxu0 0.0
  %813 = vmatpush2.msra.mxu0 0.0
  %814 = vmatprep.subr.mxu0 0.0
  %815 = vmatpush2.msra.mxu0 0.0
  %816 = vmatprep.subr.mxu0 0.0
  %817 = vmatpush2.msra.mxu0 0.0
  %818 = vmatprep.subr.mxu0 0.0
  %819 = vmatpush2.msra.mxu0 0.0
  %820 = vmatprep.subr.mxu0 0.0
  %821 = vmatpush2.msra.mxu0 0.0
  %822 = vmatprep.mubr.f32.mxu0 0.0
  %823 = vmatmul.mubr.f32.gmra.mxu0 %v747
  %v824 = vpop.f32.mrf.mxu0
  %v825 = vadd.f32 0.0, %v824
  %v826 = vpop.f32.mrf.mxu0
  %827 = vmatprep.mubr.f32.mxu0 0.0
  %828 = vmatmul.mubr.f32.gmra.mxu0 %v750
  %v829 = vpop.f32.mrf.mxu0
  %v830 = vadd.f32 0.0, %v829
  %v831 = vpop.f32.mrf.mxu0
  %832 = vmatprep.mubr.f32.mxu0 0.0
  %833 = vmatmul.mubr.f32.gmra.mxu0 %v753
  %v834 = vpop.f32.mrf.mxu0
  %v835 = vadd.f32 0.0, %v834
  %v836 = vpop.f32.mrf.mxu0
  %837 = vdwg.mxu0
  %v838 = vadd.f32 %v636, %v825
  %v839 = vadd.f32 %v641, %v830
  %v840 = vadd.f32 %v646, %v835
  %s841 = scalar_lea.vmem %s5, 72
  %v842 = vld [vmem:[%s841] sm:$0xff]
  %v843 = vld [vmem:[%s841 + $0x8] sm:$0xff]
  %v844 = vld [vmem:[%s841 + $0x10] sm:$0x3]
  %v846 = vsel %vm271, %v842, 0
  %v849 = vsel %vm271, %v843, 0
  %v852 = vsel %vm271, %v844, 0
  %854 = vmatprep.subr.mxu0 0.0
  %855 = vmatpush1.msra.mxu0 0.0
  %856 = vmatprep.subr.mxu0 0.0
  %857 = vmatpush1.msra.mxu0 0.0
  %858 = vmatprep.subr.mxu0 0.0
  %859 = vmatpush1.msra.mxu0 0.0
  %860 = vmatprep.subr.mxu0 0.0
  %861 = vmatpush1.msra.mxu0 0.0
  %862 = vmatprep.subr.mxu0 0.0
  %863 = vmatpush1.msra.mxu0 0.0
  %864 = vmatprep.subr.mxu0 0.0
  %865 = vmatpush1.msra.mxu0 0.0
  %866 = vmatprep.subr.mxu0 0.0
  %867 = vmatpush1.msra.mxu0 0.0
  %868 = vmatprep.subr.mxu0 0.0
  %869 = vmatpush1.msra.mxu0 0.0
  %870 = vmatprep.subr.mxu0 0.0
  %871 = vmatpush1.msra.mxu0 0.0
  %872 = vmatprep.subr.mxu0 0.0
  %873 = vmatpush1.msra.mxu0 0.0
  %874 = vmatprep.subr.mxu0 0.0
  %875 = vmatpush1.msra.mxu0 0.0
  %876 = vmatprep.subr.mxu0 0.0
  %877 = vmatpush1.msra.mxu0 0.0
  %878 = vmatprep.subr.mxu0 0.0
  %879 = vmatpush1.msra.mxu0 0.0
  %880 = vmatprep.subr.mxu0 0.0
  %881 = vmatpush1.msra.mxu0 %v283
  %882 = vmatprep.subr.mxu0 0.0
  %883 = vmatpush1.msra.mxu0 %v165
  %884 = vmatprep.subr.mxu0 0.0
  %885 = vmatpush1.msra.mxu0 %v160
  %886 = vmatprep.subr.mxu0 0.0
  %887 = vmatpush2.msra.mxu0 0.0
  %888 = vmatprep.subr.mxu0 0.0
  %889 = vmatpush2.msra.mxu0 0.0
  %890 = vmatprep.subr.mxu0 0.0
  %891 = vmatpush2.msra.mxu0 0.0
  %892 = vmatprep.subr.mxu0 0.0
  %893 = vmatpush2.msra.mxu0 0.0
  %894 = vmatprep.subr.mxu0 0.0
  %895 = vmatpush2.msra.mxu0 0.0
  %896 = vmatprep.subr.mxu0 0.0
  %897 = vmatpush2.msra.mxu0 0.0
  %898 = vmatprep.subr.mxu0 0.0
  %899 = vmatpush2.msra.mxu0 0.0
  %900 = vmatprep.subr.mxu0 0.0
  %901 = vmatpush2.msra.mxu0 0.0
  %902 = vmatprep.subr.mxu0 0.0
  %903 = vmatpush2.msra.mxu0 0.0
  %904 = vmatprep.subr.mxu0 0.0
  %905 = vmatpush2.msra.mxu0 0.0
  %906 = vmatprep.subr.mxu0 0.0
  %907 = vmatpush2.msra.mxu0 0.0
  %908 = vmatprep.subr.mxu0 0.0
  %909 = vmatpush2.msra.mxu0 0.0
  %910 = vmatprep.subr.mxu0 0.0
  %911 = vmatpush2.msra.mxu0 0.0
  %912 = vmatprep.subr.mxu0 0.0
  %913 = vmatpush2.msra.mxu0 0.0
  %914 = vmatprep.subr.mxu0 0.0
  %915 = vmatpush2.msra.mxu0 0.0
  %916 = vmatprep.subr.mxu0 0.0
  %917 = vmatpush2.msra.mxu0 0.0
  %918 = vmatprep.mubr.f32.mxu0 0.0
  %919 = vmatmul.mubr.f32.gmra.mxu0 %v846
  %v920 = vpop.f32.mrf.mxu0
  %v921 = vadd.f32 0.0, %v920
  %v922 = vpop.f32.mrf.mxu0
  %923 = vmatprep.mubr.f32.mxu0 0.0
  %924 = vmatmul.mubr.f32.gmra.mxu0 %v849
  %v925 = vpop.f32.mrf.mxu0
  %v926 = vadd.f32 0.0, %v925
  %v927 = vpop.f32.mrf.mxu0
  %928 = vmatprep.mubr.f32.mxu0 0.0
  %929 = vmatmul.mubr.f32.gmra.mxu0 %v852
  %v930 = vpop.f32.mrf.mxu0
  %v931 = vadd.f32 0.0, %v930
  %v932 = vpop.f32.mrf.mxu0
  %933 = vdwg.mxu0
  %s934 = scalar_lea.vmem %s7, 72
  %v935 = vld [vmem:[%s934] sm:$0xff]
  %v936 = vld [vmem:[%s934 + $0x8] sm:$0xff]
  %v937 = vld [vmem:[%s934 + $0x10] sm:$0x3]
  %v939 = vsel %vm271, %v921, 0
  %v942 = vsel %vm271, %v926, 0
  %v945 = vsel %vm271, %v931, 0
  %v948 = vsel %vm281, %v937, 0
  %950 = vmatprep.subr.mxu0 0.0
  %951 = vmatpush1.msra.mxu0 0.0
  %952 = vmatprep.subr.mxu0 0.0
  %953 = vmatpush1.msra.mxu0 0.0
  %954 = vmatprep.subr.mxu0 0.0
  %955 = vmatpush1.msra.mxu0 0.0
  %956 = vmatprep.subr.mxu0 0.0
  %957 = vmatpush1.msra.mxu0 0.0
  %958 = vmatprep.subr.mxu0 0.0
  %959 = vmatpush1.msra.mxu0 0.0
  %960 = vmatprep.subr.mxu0 0.0
  %961 = vmatpush1.msra.mxu0 0.0
  %962 = vmatprep.subr.mxu0 0.0
  %963 = vmatpush1.msra.mxu0 0.0
  %964 = vmatprep.subr.mxu0 0.0
  %965 = vmatpush1.msra.mxu0 0.0
  %966 = vmatprep.subr.mxu0 0.0
  %967 = vmatpush1.msra.mxu0 0.0
  %968 = vmatprep.subr.mxu0 0.0
  %969 = vmatpush1.msra.mxu0 0.0
  %970 = vmatprep.subr.mxu0 0.0
  %971 = vmatpush1.msra.mxu0 0.0
  %972 = vmatprep.subr.mxu0 0.0
  %973 = vmatpush1.msra.mxu0 0.0
  %974 = vmatprep.subr.mxu0 0.0
  %975 = vmatpush1.msra.mxu0 0.0
  %976 = vmatprep.subr.mxu0 0.0
  %977 = vmatpush1.msra.mxu0 %v948
  %978 = vmatprep.subr.mxu0 0.0
  %979 = vmatpush1.msra.mxu0 %v936
  %980 = vmatprep.subr.mxu0 0.0
  %981 = vmatpush1.msra.mxu0 %v935
  %982 = vmatprep.subr.mxu0 0.0
  %983 = vmatpush2.msra.mxu0 0.0
  %984 = vmatprep.subr.mxu0 0.0
  %985 = vmatpush2.msra.mxu0 0.0
  %986 = vmatprep.subr.mxu0 0.0
  %987 = vmatpush2.msra.mxu0 0.0
  %988 = vmatprep.subr.mxu0 0.0
  %989 = vmatpush2.msra.mxu0 0.0
  %990 = vmatprep.subr.mxu0 0.0
  %991 = vmatpush2.msra.mxu0 0.0
  %992 = vmatprep.subr.mxu0 0.0
  %993 = vmatpush2.msra.mxu0 0.0
  %994 = vmatprep.subr.mxu0 0.0
  %995 = vmatpush2.msra.mxu0 0.0
  %996 = vmatprep.subr.mxu0 0.0
  %997 = vmatpush2.msra.mxu0 0.0
  %998 = vmatprep.subr.mxu0 0.0
  %999 = vmatpush2.msra.mxu0 0.0
  %1000 = vmatprep.subr.mxu0 0.0
  %1001 = vmatpush2.msra.mxu0 0.0
  %1002 = vmatprep.subr.mxu0 0.0
  %1003 = vmatpush2.msra.mxu0 0.0
  %1004 = vmatprep.subr.mxu0 0.0
  %1005 = vmatpush2.msra.mxu0 0.0
  %1006 = vmatprep.subr.mxu0 0.0
  %1007 = vmatpush2.msra.mxu0 0.0
  %1008 = vmatprep.subr.mxu0 0.0
  %1009 = vmatpush2.msra.mxu0 0.0
  %1010 = vmatprep.subr.mxu0 0.0
  %1011 = vmatpush2.msra.mxu0 0.0
  %1012 = vmatprep.subr.mxu0 0.0
  %1013 = vmatpush2.msra.mxu0 0.0
  %1014 = vmatprep.mubr.f32.mxu0 0.0
  %1015 = vmatmul.mubr.f32.gmra.mxu0 %v939
  %v1016 = vpop.f32.mrf.mxu0
  %v1017 = vadd.f32 0.0, %v1016
  %v1018 = vpop.f32.mrf.mxu0
  %1019 = vmatprep.mubr.f32.mxu0 0.0
  %1020 = vmatmul.mubr.f32.gmra.mxu0 %v942
  %v1021 = vpop.f32.mrf.mxu0
  %v1022 = vadd.f32 0.0, %v1021
  %v1023 = vpop.f32.mrf.mxu0
  %1024 = vmatprep.mubr.f32.mxu0 0.0
  %1025 = vmatmul.mubr.f32.gmra.mxu0 %v945
  %v1026 = vpop.f32.mrf.mxu0
  %v1027 = vadd.f32 0.0, %v1026
  %v1028 = vpop.f32.mrf.mxu0
  %1029 = vdwg.mxu0
  %v1030 = vadd.f32 %v838, %v1017
  %v1031 = vadd.f32 %v839, %v1022
  %v1032 = vadd.f32 %v840, %v1027
  %s1033 = scalar_lea.vmem %s5, 96
  %v1034 = vld [vmem:[%s1033] sm:$0xff]
  %v1035 = vld [vmem:[%s1033 + $0x8] sm:$0xff]
  %v1036 = vld [vmem:[%s1033 + $0x10] sm:$0x3]
  %v1038 = vsel %vm271, %v1034, 0
  %v1041 = vsel %vm271, %v1035, 0
  %v1044 = vsel %vm271, %v1036, 0
  %1046 = vmatprep.subr.mxu0 0.0
  %1047 = vmatpush1.msra.mxu0 0.0
  %1048 = vmatprep.subr.mxu0 0.0
  %1049 = vmatpush1.msra.mxu0 0.0
  %1050 = vmatprep.subr.mxu0 0.0
  %1051 = vmatpush1.msra.mxu0 0.0
  %1052 = vmatprep.subr.mxu0 0.0
  %1053 = vmatpush1.msra.mxu0 0.0
  %1054 = vmatprep.subr.mxu0 0.0
  %1055 = vmatpush1.msra.mxu0 0.0
  %1056 = vmatprep.subr.mxu0 0.0
  %1057 = vmatpush1.msra.mxu0 0.0
  %1058 = vmatprep.subr.mxu0 0.0
  %1059 = vmatpush1.msra.mxu0 0.0
  %1060 = vmatprep.subr.mxu0 0.0
  %1061 = vmatpush1.msra.mxu0 0.0
  %1062 = vmatprep.subr.mxu0 0.0
  %1063 = vmatpush1.msra.mxu0 0.0
  %1064 = vmatprep.subr.mxu0 0.0
  %1065 = vmatpush1.msra.mxu0 0.0
  %1066 = vmatprep.subr.mxu0 0.0
  %1067 = vmatpush1.msra.mxu0 0.0
  %1068 = vmatprep.subr.mxu0 0.0
  %1069 = vmatpush1.msra.mxu0 0.0
  %1070 = vmatprep.subr.mxu0 0.0
  %1071 = vmatpush1.msra.mxu0 0.0
  %1072 = vmatprep.subr.mxu0 0.0
  %1073 = vmatpush1.msra.mxu0 %v283
  %1074 = vmatprep.subr.mxu0 0.0
  %1075 = vmatpush1.msra.mxu0 %v165
  %1076 = vmatprep.subr.mxu0 0.0
  %1077 = vmatpush1.msra.mxu0 %v160
  %1078 = vmatprep.subr.mxu0 0.0
  %1079 = vmatpush2.msra.mxu0 0.0
  %1080 = vmatprep.subr.mxu0 0.0
  %1081 = vmatpush2.msra.mxu0 0.0
  %1082 = vmatprep.subr.mxu0 0.0
  %1083 = vmatpush2.msra.mxu0 0.0
  %1084 = vmatprep.subr.mxu0 0.0
  %1085 = vmatpush2.msra.mxu0 0.0
  %1086 = vmatprep.subr.mxu0 0.0
  %1087 = vmatpush2.msra.mxu0 0.0
  %1088 = vmatprep.subr.mxu0 0.0
  %1089 = vmatpush2.msra.mxu0 0.0
  %1090 = vmatprep.subr.mxu0 0.0
  %1091 = vmatpush2.msra.mxu0 0.0
  %1092 = vmatprep.subr.mxu0 0.0
  %1093 = vmatpush2.msra.mxu0 0.0
  %1094 = vmatprep.subr.mxu0 0.0
  %1095 = vmatpush2.msra.mxu0 0.0
  %1096 = vmatprep.subr.mxu0 0.0
  %1097 = vmatpush2.msra.mxu0 0.0
  %1098 = vmatprep.subr.mxu0 0.0
  %1099 = vmatpush2.msra.mxu0 0.0
  %1100 = vmatprep.subr.mxu0 0.0
  %1101 = vmatpush2.msra.mxu0 0.0
  %1102 = vmatprep.subr.mxu0 0.0
  %1103 = vmatpush2.msra.mxu0 0.0
  %1104 = vmatprep.subr.mxu0 0.0
  %1105 = vmatpush2.msra.mxu0 0.0
  %1106 = vmatprep.subr.mxu0 0.0
  %1107 = vmatpush2.msra.mxu0 0.0
  %1108 = vmatprep.subr.mxu0 0.0
  %1109 = vmatpush2.msra.mxu0 0.0
  %1110 = vmatprep.mubr.f32.mxu0 0.0
  %1111 = vmatmul.mubr.f32.gmra.mxu0 %v1038
  %v1112 = vpop.f32.mrf.mxu0
  %v1113 = vadd.f32 0.0, %v1112
  %v1114 = vpop.f32.mrf.mxu0
  %1115 = vmatprep.mubr.f32.mxu0 0.0
  %1116 = vmatmul.mubr.f32.gmra.mxu0 %v1041
  %v1117 = vpop.f32.mrf.mxu0
  %v1118 = vadd.f32 0.0, %v1117
  %v1119 = vpop.f32.mrf.mxu0
  %1120 = vmatprep.mubr.f32.mxu0 0.0
  %1121 = vmatmul.mubr.f32.gmra.mxu0 %v1044
  %v1122 = vpop.f32.mrf.mxu0
  %v1123 = vadd.f32 0.0, %v1122
  %v1124 = vpop.f32.mrf.mxu0
  %1125 = vdwg.mxu0
  %s1126 = scalar_lea.vmem %s7, 96
  %v1127 = vld [vmem:[%s1126] sm:$0xff]
  %v1128 = vld [vmem:[%s1126 + $0x8] sm:$0xff]
  %v1129 = vld [vmem:[%s1126 + $0x10] sm:$0x3]
  %v1131 = vsel %vm271, %v1113, 0
  %v1134 = vsel %vm271, %v1118, 0
  %v1137 = vsel %vm271, %v1123, 0
  %v1140 = vsel %vm281, %v1129, 0
  %1142 = vmatprep.subr.mxu0 0.0
  %1143 = vmatpush1.msra.mxu0 0.0
  %1144 = vmatprep.subr.mxu0 0.0
  %1145 = vmatpush1.msra.mxu0 0.0
  %1146 = vmatprep.subr.mxu0 0.0
  %1147 = vmatpush1.msra.mxu0 0.0
  %1148 = vmatprep.subr.mxu0 0.0
  %1149 = vmatpush1.msra.mxu0 0.0
  %1150 = vmatprep.subr.mxu0 0.0
  %1151 = vmatpush1.msra.mxu0 0.0
  %1152 = vmatprep.subr.mxu0 0.0
  %1153 = vmatpush1.msra.mxu0 0.0
  %1154 = vmatprep.subr.mxu0 0.0
  %1155 = vmatpush1.msra.mxu0 0.0
  %1156 = vmatprep.subr.mxu0 0.0
  %1157 = vmatpush1.msra.mxu0 0.0
  %1158 = vmatprep.subr.mxu0 0.0
  %1159 = vmatpush1.msra.mxu0 0.0
  %1160 = vmatprep.subr.mxu0 0.0
  %1161 = vmatpush1.msra.mxu0 0.0
  %1162 = vmatprep.subr.mxu0 0.0
  %1163 = vmatpush1.msra.mxu0 0.0
  %1164 = vmatprep.subr.mxu0 0.0
  %1165 = vmatpush1.msra.mxu0 0.0
  %1166 = vmatprep.subr.mxu0 0.0
  %1167 = vmatpush1.msra.mxu0 0.0
  %1168 = vmatprep.subr.mxu0 0.0
  %1169 = vmatpush1.msra.mxu0 %v1140
  %1170 = vmatprep.subr.mxu0 0.0
  %1171 = vmatpush1.msra.mxu0 %v1128
  %1172 = vmatprep.subr.mxu0 0.0
  %1173 = vmatpush1.msra.mxu0 %v1127
  %1174 = vmatprep.subr.mxu0 0.0
  %1175 = vmatpush2.msra.mxu0 0.0
  %1176 = vmatprep.subr.mxu0 0.0
  %1177 = vmatpush2.msra.mxu0 0.0
  %1178 = vmatprep.subr.mxu0 0.0
  %1179 = vmatpush2.msra.mxu0 0.0
  %1180 = vmatprep.subr.mxu0 0.0
  %1181 = vmatpush2.msra.mxu0 0.0
  %1182 = vmatprep.subr.mxu0 0.0
  %1183 = vmatpush2.msra.mxu0 0.0
  %1184 = vmatprep.subr.mxu0 0.0
  %1185 = vmatpush2.msra.mxu0 0.0
  %1186 = vmatprep.subr.mxu0 0.0
  %1187 = vmatpush2.msra.mxu0 0.0
  %1188 = vmatprep.subr.mxu0 0.0
  %1189 = vmatpush2.msra.mxu0 0.0
  %1190 = vmatprep.subr.mxu0 0.0
  %1191 = vmatpush2.msra.mxu0 0.0
  %1192 = vmatprep.subr.mxu0 0.0
  %1193 = vmatpush2.msra.mxu0 0.0
  %1194 = vmatprep.subr.mxu0 0.0
  %1195 = vmatpush2.msra.mxu0 0.0
  %1196 = vmatprep.subr.mxu0 0.0
  %1197 = vmatpush2.msra.mxu0 0.0
  %1198 = vmatprep.subr.mxu0 0.0
  %1199 = vmatpush2.msra.mxu0 0.0
  %1200 = vmatprep.subr.mxu0 0.0
  %1201 = vmatpush2.msra.mxu0 0.0
  %1202 = vmatprep.subr.mxu0 0.0
  %1203 = vmatpush2.msra.mxu0 0.0
  %1204 = vmatprep.subr.mxu0 0.0
  %1205 = vmatpush2.msra.mxu0 0.0
  %1206 = vmatprep.mubr.f32.mxu0 0.0
  %1207 = vmatmul.mubr.f32.gmra.mxu0 %v1131
  %v1208 = vpop.f32.mrf.mxu0
  %v1209 = vadd.f32 0.0, %v1208
  %v1210 = vpop.f32.mrf.mxu0
  %1211 = vmatprep.mubr.f32.mxu0 0.0
  %1212 = vmatmul.mubr.f32.gmra.mxu0 %v1134
  %v1213 = vpop.f32.mrf.mxu0
  %v1214 = vadd.f32 0.0, %v1213
  %v1215 = vpop.f32.mrf.mxu0
  %1216 = vmatprep.mubr.f32.mxu0 0.0
  %1217 = vmatmul.mubr.f32.gmra.mxu0 %v1137
  %v1218 = vpop.f32.mrf.mxu0
  %v1219 = vadd.f32 0.0, %v1218
  %v1220 = vpop.f32.mrf.mxu0
  %1221 = vdwg.mxu0
  %v1222 = vadd.f32 %v1030, %v1209
  %v1223 = vadd.f32 %v1031, %v1214
  %v1224 = vadd.f32 %v1032, %v1219
  %s1225 = scalar_lea.vmem %s5, 120
  %v1226 = vld [vmem:[%s1225] sm:$0xff]
  %v1227 = vld [vmem:[%s1225 + $0x8] sm:$0xff]
  %v1228 = vld [vmem:[%s1225 + $0x10] sm:$0x3]
  %v1230 = vsel %vm271, %v1226, 0
  %v1233 = vsel %vm271, %v1227, 0
  %v1236 = vsel %vm271, %v1228, 0
  %1238 = vmatprep.subr.mxu0 0.0
  %1239 = vmatpush1.msra.mxu0 0.0
  %1240 = vmatprep.subr.mxu0 0.0
  %1241 = vmatpush1.msra.mxu0 0.0
  %1242 = vmatprep.subr.mxu0 0.0
  %1243 = vmatpush1.msra.mxu0 0.0
  %1244 = vmatprep.subr.mxu0 0.0
  %1245 = vmatpush1.msra.mxu0 0.0
  %1246 = vmatprep.subr.mxu0 0.0
  %1247 = vmatpush1.msra.mxu0 0.0
  %1248 = vmatprep.subr.mxu0 0.0
  %1249 = vmatpush1.msra.mxu0 0.0
  %1250 = vmatprep.subr.mxu0 0.0
  %1251 = vmatpush1.msra.mxu0 0.0
  %1252 = vmatprep.subr.mxu0 0.0
  %1253 = vmatpush1.msra.mxu0 0.0
  %1254 = vmatprep.subr.mxu0 0.0
  %1255 = vmatpush1.msra.mxu0 0.0
  %1256 = vmatprep.subr.mxu0 0.0
  %1257 = vmatpush1.msra.mxu0 0.0
  %1258 = vmatprep.subr.mxu0 0.0
  %1259 = vmatpush1.msra.mxu0 0.0
  %1260 = vmatprep.subr.mxu0 0.0
  %1261 = vmatpush1.msra.mxu0 0.0
  %1262 = vmatprep.subr.mxu0 0.0
  %1263 = vmatpush1.msra.mxu0 0.0
  %1264 = vmatprep.subr.mxu0 0.0
  %1265 = vmatpush1.msra.mxu0 %v283
  %1266 = vmatprep.subr.mxu0 0.0
  %1267 = vmatpush1.msra.mxu0 %v165
  %1268 = vmatprep.subr.mxu0 0.0
  %1269 = vmatpush1.msra.mxu0 %v160
  %1270 = vmatprep.subr.mxu0 0.0
  %1271 = vmatpush2.msra.mxu0 0.0
  %1272 = vmatprep.subr.mxu0 0.0
  %1273 = vmatpush2.msra.mxu0 0.0
  %1274 = vmatprep.subr.mxu0 0.0
  %1275 = vmatpush2.msra.mxu0 0.0
  %1276 = vmatprep.subr.mxu0 0.0
  %1277 = vmatpush2.msra.mxu0 0.0
  %1278 = vmatprep.subr.mxu0 0.0
  %1279 = vmatpush2.msra.mxu0 0.0
  %1280 = vmatprep.subr.mxu0 0.0
  %1281 = vmatpush2.msra.mxu0 0.0
  %1282 = vmatprep.subr.mxu0 0.0
  %1283 = vmatpush2.msra.mxu0 0.0
  %1284 = vmatprep.subr.mxu0 0.0
  %1285 = vmatpush2.msra.mxu0 0.0
  %1286 = vmatprep.subr.mxu0 0.0
  %1287 = vmatpush2.msra.mxu0 0.0
  %1288 = vmatprep.subr.mxu0 0.0
  %1289 = vmatpush2.msra.mxu0 0.0
  %1290 = vmatprep.subr.mxu0 0.0
  %1291 = vmatpush2.msra.mxu0 0.0
  %1292 = vmatprep.subr.mxu0 0.0
  %1293 = vmatpush2.msra.mxu0 0.0
  %1294 = vmatprep.subr.mxu0 0.0
  %1295 = vmatpush2.msra.mxu0 0.0
  %1296 = vmatprep.subr.mxu0 0.0
  %1297 = vmatpush2.msra.mxu0 0.0
  %1298 = vmatprep.subr.mxu0 0.0
  %1299 = vmatpush2.msra.mxu0 0.0
  %1300 = vmatprep.subr.mxu0 0.0
  %1301 = vmatpush2.msra.mxu0 0.0
  %1302 = vmatprep.mubr.f32.mxu0 0.0
  %1303 = vmatmul.mubr.f32.gmra.mxu0 %v1230
  %v1304 = vpop.f32.mrf.mxu0
  %v1305 = vadd.f32 0.0, %v1304
  %v1306 = vpop.f32.mrf.mxu0
  %1307 = vmatprep.mubr.f32.mxu0 0.0
  %1308 = vmatmul.mubr.f32.gmra.mxu0 %v1233
  %v1309 = vpop.f32.mrf.mxu0
  %v1310 = vadd.f32 0.0, %v1309
  %v1311 = vpop.f32.mrf.mxu0
  %1312 = vmatprep.mubr.f32.mxu0 0.0
  %1313 = vmatmul.mubr.f32.gmra.mxu0 %v1236
  %v1314 = vpop.f32.mrf.mxu0
  %v1315 = vadd.f32 0.0, %v1314
  %v1316 = vpop.f32.mrf.mxu0
  %1317 = vdwg.mxu0
  %s1318 = scalar_lea.vmem %s7, 120
  %v1319 = vld [vmem:[%s1318] sm:$0xff]
  %v1320 = vld [vmem:[%s1318 + $0x8] sm:$0xff]
  %v1321 = vld [vmem:[%s1318 + $0x10] sm:$0x3]
  %v1323 = vsel %vm271, %v1305, 0
  %v1326 = vsel %vm271, %v1310, 0
  %v1329 = vsel %vm271, %v1315, 0
  %v1332 = vsel %vm281, %v1321, 0
  %1334 = vmatprep.subr.mxu0 0.0
  %1335 = vmatpush1.msra.mxu0 0.0
  %1336 = vmatprep.subr.mxu0 0.0
  %1337 = vmatpush1.msra.mxu0 0.0
  %1338 = vmatprep.subr.mxu0 0.0
  %1339 = vmatpush1.msra.mxu0 0.0
  %1340 = vmatprep.subr.mxu0 0.0
  %1341 = vmatpush1.msra.mxu0 0.0
  %1342 = vmatprep.subr.mxu0 0.0
  %1343 = vmatpush1.msra.mxu0 0.0
  %1344 = vmatprep.subr.mxu0 0.0
  %1345 = vmatpush1.msra.mxu0 0.0
  %1346 = vmatprep.subr.mxu0 0.0
  %1347 = vmatpush1.msra.mxu0 0.0
  %1348 = vmatprep.subr.mxu0 0.0
  %1349 = vmatpush1.msra.mxu0 0.0
  %1350 = vmatprep.subr.mxu0 0.0
  %1351 = vmatpush1.msra.mxu0 0.0
  %1352 = vmatprep.subr.mxu0 0.0
  %1353 = vmatpush1.msra.mxu0 0.0
  %1354 = vmatprep.subr.mxu0 0.0
  %1355 = vmatpush1.msra.mxu0 0.0
  %1356 = vmatprep.subr.mxu0 0.0
  %1357 = vmatpush1.msra.mxu0 0.0
  %1358 = vmatprep.subr.mxu0 0.0
  %1359 = vmatpush1.msra.mxu0 0.0
  %1360 = vmatprep.subr.mxu0 0.0
  %1361 = vmatpush1.msra.mxu0 %v1332
  %1362 = vmatprep.subr.mxu0 0.0
  %1363 = vmatpush1.msra.mxu0 %v1320
  %1364 = vmatprep.subr.mxu0 0.0
  %1365 = vmatpush1.msra.mxu0 %v1319
  %1366 = vmatprep.subr.mxu0 0.0
  %1367 = vmatpush2.msra.mxu0 0.0
  %1368 = vmatprep.subr.mxu0 0.0
  %1369 = vmatpush2.msra.mxu0 0.0
  %1370 = vmatprep.subr.mxu0 0.0
  %1371 = vmatpush2.msra.mxu0 0.0
  %1372 = vmatprep.subr.mxu0 0.0
  %1373 = vmatpush2.msra.mxu0 0.0
  %1374 = vmatprep.subr.mxu0 0.0
  %1375 = vmatpush2.msra.mxu0 0.0
  %1376 = vmatprep.subr.mxu0 0.0
  %1377 = vmatpush2.msra.mxu0 0.0
  %1378 = vmatprep.subr.mxu0 0.0
  %1379 = vmatpush2.msra.mxu0 0.0
  %1380 = vmatprep.subr.mxu0 0.0
  %1381 = vmatpush2.msra.mxu0 0.0
  %1382 = vmatprep.subr.mxu0 0.0
  %1383 = vmatpush2.msra.mxu0 0.0
  %1384 = vmatprep.subr.mxu0 0.0
  %1385 = vmatpush2.msra.mxu0 0.0
  %1386 = vmatprep.subr.mxu0 0.0
  %1387 = vmatpush2.msra.mxu0 0.0
  %1388 = vmatprep.subr.mxu0 0.0
  %1389 = vmatpush2.msra.mxu0 0.0
  %1390 = vmatprep.subr.mxu0 0.0
  %1391 = vmatpush2.msra.mxu0 0.0
  %1392 = vmatprep.subr.mxu0 0.0
  %1393 = vmatpush2.msra.mxu0 0.0
  %1394 = vmatprep.subr.mxu0 0.0
  %1395 = vmatpush2.msra.mxu0 0.0
  %1396 = vmatprep.subr.mxu0 0.0
  %1397 = vmatpush2.msra.mxu0 0.0
  %1398 = vmatprep.mubr.f32.mxu0 0.0
  %1399 = vmatmul.mubr.f32.gmra.mxu0 %v1323
  %v1400 = vpop.f32.mrf.mxu0
  %v1401 = vadd.f32 0.0, %v1400
  %v1402 = vpop.f32.mrf.mxu0
  %1403 = vmatprep.mubr.f32.mxu0 0.0
  %1404 = vmatmul.mubr.f32.gmra.mxu0 %v1326
  %v1405 = vpop.f32.mrf.mxu0
  %v1406 = vadd.f32 0.0, %v1405
  %v1407 = vpop.f32.mrf.mxu0
  %1408 = vmatprep.mubr.f32.mxu0 0.0
  %1409 = vmatmul.mubr.f32.gmra.mxu0 %v1329
  %v1410 = vpop.f32.mrf.mxu0
  %v1411 = vadd.f32 0.0, %v1410
  %v1412 = vpop.f32.mrf.mxu0
  %1413 = vdwg.mxu0
  %v1414 = vadd.f32 %v1222, %v1401
  %v1415 = vadd.f32 %v1223, %v1406
  %v1416 = vadd.f32 %v1224, %v1411
  %s1417 = scalar_lea.vmem %s5, 144
  %v1418 = vld [vmem:[%s1417] sm:$0xff]
  %v1419 = vld [vmem:[%s1417 + $0x8] sm:$0xff]
  %v1420 = vld [vmem:[%s1417 + $0x10] sm:$0x3]
  %v1422 = vsel %vm271, %v1418, 0
  %v1425 = vsel %vm271, %v1419, 0
  %v1428 = vsel %vm271, %v1420, 0
  %1430 = vmatprep.subr.mxu0 0.0
  %1431 = vmatpush1.msra.mxu0 0.0
  %1432 = vmatprep.subr.mxu0 0.0
  %1433 = vmatpush1.msra.mxu0 0.0
  %1434 = vmatprep.subr.mxu0 0.0
  %1435 = vmatpush1.msra.mxu0 0.0
  %1436 = vmatprep.subr.mxu0 0.0
  %1437 = vmatpush1.msra.mxu0 0.0
  %1438 = vmatprep.subr.mxu0 0.0
  %1439 = vmatpush1.msra.mxu0 0.0
  %1440 = vmatprep.subr.mxu0 0.0
  %1441 = vmatpush1.msra.mxu0 0.0
  %1442 = vmatprep.subr.mxu0 0.0
  %1443 = vmatpush1.msra.mxu0 0.0
  %1444 = vmatprep.subr.mxu0 0.0
  %1445 = vmatpush1.msra.mxu0 0.0
  %1446 = vmatprep.subr.mxu0 0.0
  %1447 = vmatpush1.msra.mxu0 0.0
  %1448 = vmatprep.subr.mxu0 0.0
  %1449 = vmatpush1.msra.mxu0 0.0
  %1450 = vmatprep.subr.mxu0 0.0
  %1451 = vmatpush1.msra.mxu0 0.0
  %1452 = vmatprep.subr.mxu0 0.0
  %1453 = vmatpush1.msra.mxu0 0.0
  %1454 = vmatprep.subr.mxu0 0.0
  %1455 = vmatpush1.msra.mxu0 0.0
  %1456 = vmatprep.subr.mxu0 0.0
  %1457 = vmatpush1.msra.mxu0 %v283
  %1458 = vmatprep.subr.mxu0 0.0
  %1459 = vmatpush1.msra.mxu0 %v165
  %1460 = vmatprep.subr.mxu0 0.0
  %1461 = vmatpush1.msra.mxu0 %v160
  %1462 = vmatprep.subr.mxu0 0.0
  %1463 = vmatpush2.msra.mxu0 0.0
  %1464 = vmatprep.subr.mxu0 0.0
  %1465 = vmatpush2.msra.mxu0 0.0
  %1466 = vmatprep.subr.mxu0 0.0
  %1467 = vmatpush2.msra.mxu0 0.0
  %1468 = vmatprep.subr.mxu0 0.0
  %1469 = vmatpush2.msra.mxu0 0.0
  %1470 = vmatprep.subr.mxu0 0.0
  %1471 = vmatpush2.msra.mxu0 0.0
  %1472 = vmatprep.subr.mxu0 0.0
  %1473 = vmatpush2.msra.mxu0 0.0
  %1474 = vmatprep.subr.mxu0 0.0
  %1475 = vmatpush2.msra.mxu0 0.0
  %1476 = vmatprep.subr.mxu0 0.0
  %1477 = vmatpush2.msra.mxu0 0.0
  %1478 = vmatprep.subr.mxu0 0.0
  %1479 = vmatpush2.msra.mxu0 0.0
  %1480 = vmatprep.subr.mxu0 0.0
  %1481 = vmatpush2.msra.mxu0 0.0
  %1482 = vmatprep.subr.mxu0 0.0
  %1483 = vmatpush2.msra.mxu0 0.0
  %1484 = vmatprep.subr.mxu0 0.0
  %1485 = vmatpush2.msra.mxu0 0.0
  %1486 = vmatprep.subr.mxu0 0.0
  %1487 = vmatpush2.msra.mxu0 0.0
  %1488 = vmatprep.subr.mxu0 0.0
  %1489 = vmatpush2.msra.mxu0 0.0
  %1490 = vmatprep.subr.mxu0 0.0
  %1491 = vmatpush2.msra.mxu0 0.0
  %1492 = vmatprep.subr.mxu0 0.0
  %1493 = vmatpush2.msra.mxu0 0.0
  %1494 = vmatprep.mubr.f32.mxu0 0.0
  %1495 = vmatmul.mubr.f32.gmra.mxu0 %v1422
  %v1496 = vpop.f32.mrf.mxu0
  %v1497 = vadd.f32 0.0, %v1496
  %v1498 = vpop.f32.mrf.mxu0
  %1499 = vmatprep.mubr.f32.mxu0 0.0
  %1500 = vmatmul.mubr.f32.gmra.mxu0 %v1425
  %v1501 = vpop.f32.mrf.mxu0
  %v1502 = vadd.f32 0.0, %v1501
  %v1503 = vpop.f32.mrf.mxu0
  %1504 = vmatprep.mubr.f32.mxu0 0.0
  %1505 = vmatmul.mubr.f32.gmra.mxu0 %v1428
  %v1506 = vpop.f32.mrf.mxu0
  %v1507 = vadd.f32 0.0, %v1506
  %v1508 = vpop.f32.mrf.mxu0
  %1509 = vdwg.mxu0
  %s1510 = scalar_lea.vmem %s7, 144
  %v1511 = vld [vmem:[%s1510] sm:$0xff]
  %v1512 = vld [vmem:[%s1510 + $0x8] sm:$0xff]
  %v1513 = vld [vmem:[%s1510 + $0x10] sm:$0x3]
  %v1515 = vsel %vm271, %v1497, 0
  %v1518 = vsel %vm271, %v1502, 0
  %v1521 = vsel %vm271, %v1507, 0
  %v1524 = vsel %vm281, %v1513, 0
  %1526 = vmatprep.subr.mxu0 0.0
  %1527 = vmatpush1.msra.mxu0 0.0
  %1528 = vmatprep.subr.mxu0 0.0
  %1529 = vmatpush1.msra.mxu0 0.0
  %1530 = vmatprep.subr.mxu0 0.0
  %1531 = vmatpush1.msra.mxu0 0.0
  %1532 = vmatprep.subr.mxu0 0.0
  %1533 = vmatpush1.msra.mxu0 0.0
  %1534 = vmatprep.subr.mxu0 0.0
  %1535 = vmatpush1.msra.mxu0 0.0
  %1536 = vmatprep.subr.mxu0 0.0
  %1537 = vmatpush1.msra.mxu0 0.0
  %1538 = vmatprep.subr.mxu0 0.0
  %1539 = vmatpush1.msra.mxu0 0.0
  %1540 = vmatprep.subr.mxu0 0.0
  %1541 = vmatpush1.msra.mxu0 0.0
  %1542 = vmatprep.subr.mxu0 0.0
  %1543 = vmatpush1.msra.mxu0 0.0
  %1544 = vmatprep.subr.mxu0 0.0
  %1545 = vmatpush1.msra.mxu0 0.0
  %1546 = vmatprep.subr.mxu0 0.0
  %1547 = vmatpush1.msra.mxu0 0.0
  %1548 = vmatprep.subr.mxu0 0.0
  %1549 = vmatpush1.msra.mxu0 0.0
  %1550 = vmatprep.subr.mxu0 0.0
  %1551 = vmatpush1.msra.mxu0 0.0
  %1552 = vmatprep.subr.mxu0 0.0
  %1553 = vmatpush1.msra.mxu0 %v1524
  %1554 = vmatprep.subr.mxu0 0.0
  %1555 = vmatpush1.msra.mxu0 %v1512
  %1556 = vmatprep.subr.mxu0 0.0
  %1557 = vmatpush1.msra.mxu0 %v1511
  %1558 = vmatprep.subr.mxu0 0.0
  %1559 = vmatpush2.msra.mxu0 0.0
  %1560 = vmatprep.subr.mxu0 0.0
  %1561 = vmatpush2.msra.mxu0 0.0
  %1562 = vmatprep.subr.mxu0 0.0
  %1563 = vmatpush2.msra.mxu0 0.0
  %1564 = vmatprep.subr.mxu0 0.0
  %1565 = vmatpush2.msra.mxu0 0.0
  %1566 = vmatprep.subr.mxu0 0.0
  %1567 = vmatpush2.msra.mxu0 0.0
  %1568 = vmatprep.subr.mxu0 0.0
  %1569 = vmatpush2.msra.mxu0 0.0
  %1570 = vmatprep.subr.mxu0 0.0
  %1571 = vmatpush2.msra.mxu0 0.0
  %1572 = vmatprep.subr.mxu0 0.0
  %1573 = vmatpush2.msra.mxu0 0.0
  %1574 = vmatprep.subr.mxu0 0.0
  %1575 = vmatpush2.msra.mxu0 0.0
  %1576 = vmatprep.subr.mxu0 0.0
  %1577 = vmatpush2.msra.mxu0 0.0
  %1578 = vmatprep.subr.mxu0 0.0
  %1579 = vmatpush2.msra.mxu0 0.0
  %1580 = vmatprep.subr.mxu0 0.0
  %1581 = vmatpush2.msra.mxu0 0.0
  %1582 = vmatprep.subr.mxu0 0.0
  %1583 = vmatpush2.msra.mxu0 0.0
  %1584 = vmatprep.subr.mxu0 0.0
  %1585 = vmatpush2.msra.mxu0 0.0
  %1586 = vmatprep.subr.mxu0 0.0
  %1587 = vmatpush2.msra.mxu0 0.0
  %1588 = vmatprep.subr.mxu0 0.0
  %1589 = vmatpush2.msra.mxu0 0.0
  %1590 = vmatprep.mubr.f32.mxu0 0.0
  %1591 = vmatmul.mubr.f32.gmra.mxu0 %v1515
  %v1592 = vpop.f32.mrf.mxu0
  %v1593 = vadd.f32 0.0, %v1592
  %v1594 = vpop.f32.mrf.mxu0
  %1595 = vmatprep.mubr.f32.mxu0 0.0
  %1596 = vmatmul.mubr.f32.gmra.mxu0 %v1518
  %v1597 = vpop.f32.mrf.mxu0
  %v1598 = vadd.f32 0.0, %v1597
  %v1599 = vpop.f32.mrf.mxu0
  %1600 = vmatprep.mubr.f32.mxu0 0.0
  %1601 = vmatmul.mubr.f32.gmra.mxu0 %v1521
  %v1602 = vpop.f32.mrf.mxu0
  %v1603 = vadd.f32 0.0, %v1602
  %v1604 = vpop.f32.mrf.mxu0
  %1605 = vdwg.mxu0
  %v1606 = vadd.f32 %v1414, %v1593
  %v1607 = vadd.f32 %v1415, %v1598
  %v1608 = vadd.f32 %v1416, %v1603
  %s1609 = scalar_lea.vmem %s5, 168
  %v1610 = vld [vmem:[%s1609] sm:$0xff]
  %v1611 = vld [vmem:[%s1609 + $0x8] sm:$0xff]
  %v1612 = vld [vmem:[%s1609 + $0x10] sm:$0x3]
  %v1614 = vsel %vm271, %v1610, 0
  %v1617 = vsel %vm271, %v1611, 0
  %v1620 = vsel %vm271, %v1612, 0
  %1622 = vmatprep.subr.mxu0 0.0
  %1623 = vmatpush1.msra.mxu0 0.0
  %1624 = vmatprep.subr.mxu0 0.0
  %1625 = vmatpush1.msra.mxu0 0.0
  %1626 = vmatprep.subr.mxu0 0.0
  %1627 = vmatpush1.msra.mxu0 0.0
  %1628 = vmatprep.subr.mxu0 0.0
  %1629 = vmatpush1.msra.mxu0 0.0
  %1630 = vmatprep.subr.mxu0 0.0
  %1631 = vmatpush1.msra.mxu0 0.0
  %1632 = vmatprep.subr.mxu0 0.0
  %1633 = vmatpush1.msra.mxu0 0.0
  %1634 = vmatprep.subr.mxu0 0.0
  %1635 = vmatpush1.msra.mxu0 0.0
  %1636 = vmatprep.subr.mxu0 0.0
  %1637 = vmatpush1.msra.mxu0 0.0
  %1638 = vmatprep.subr.mxu0 0.0
  %1639 = vmatpush1.msra.mxu0 0.0
  %1640 = vmatprep.subr.mxu0 0.0
  %1641 = vmatpush1.msra.mxu0 0.0
  %1642 = vmatprep.subr.mxu0 0.0
  %1643 = vmatpush1.msra.mxu0 0.0
  %1644 = vmatprep.subr.mxu0 0.0
  %1645 = vmatpush1.msra.mxu0 0.0
  %1646 = vmatprep.subr.mxu0 0.0
  %1647 = vmatpush1.msra.mxu0 0.0
  %1648 = vmatprep.subr.mxu0 0.0
  %1649 = vmatpush1.msra.mxu0 %v283
  %1650 = vmatprep.subr.mxu0 0.0
  %1651 = vmatpush1.msra.mxu0 %v165
  %1652 = vmatprep.subr.mxu0 0.0
  %1653 = vmatpush1.msra.mxu0 %v160
  %1654 = vmatprep.subr.mxu0 0.0
  %1655 = vmatpush2.msra.mxu0 0.0
  %1656 = vmatprep.subr.mxu0 0.0
  %1657 = vmatpush2.msra.mxu0 0.0
  %1658 = vmatprep.subr.mxu0 0.0
  %1659 = vmatpush2.msra.mxu0 0.0
  %1660 = vmatprep.subr.mxu0 0.0
  %1661 = vmatpush2.msra.mxu0 0.0
  %1662 = vmatprep.subr.mxu0 0.0
  %1663 = vmatpush2.msra.mxu0 0.0
  %1664 = vmatprep.subr.mxu0 0.0
  %1665 = vmatpush2.msra.mxu0 0.0
  %1666 = vmatprep.subr.mxu0 0.0
  %1667 = vmatpush2.msra.mxu0 0.0
  %1668 = vmatprep.subr.mxu0 0.0
  %1669 = vmatpush2.msra.mxu0 0.0
  %1670 = vmatprep.subr.mxu0 0.0
  %1671 = vmatpush2.msra.mxu0 0.0
  %1672 = vmatprep.subr.mxu0 0.0
  %1673 = vmatpush2.msra.mxu0 0.0
  %1674 = vmatprep.subr.mxu0 0.0
  %1675 = vmatpush2.msra.mxu0 0.0
  %1676 = vmatprep.subr.mxu0 0.0
  %1677 = vmatpush2.msra.mxu0 0.0
  %1678 = vmatprep.subr.mxu0 0.0
  %1679 = vmatpush2.msra.mxu0 0.0
  %1680 = vmatprep.subr.mxu0 0.0
  %1681 = vmatpush2.msra.mxu0 0.0
  %1682 = vmatprep.subr.mxu0 0.0
  %1683 = vmatpush2.msra.mxu0 0.0
  %1684 = vmatprep.subr.mxu0 0.0
  %1685 = vmatpush2.msra.mxu0 0.0
  %1686 = vmatprep.mubr.f32.mxu0 0.0
  %1687 = vmatmul.mubr.f32.gmra.mxu0 %v1614
  %v1688 = vpop.f32.mrf.mxu0
  %v1689 = vadd.f32 0.0, %v1688
  %v1690 = vpop.f32.mrf.mxu0
  %1691 = vmatprep.mubr.f32.mxu0 0.0
  %1692 = vmatmul.mubr.f32.gmra.mxu0 %v1617
  %v1693 = vpop.f32.mrf.mxu0
  %v1694 = vadd.f32 0.0, %v1693
  %v1695 = vpop.f32.mrf.mxu0
  %1696 = vmatprep.mubr.f32.mxu0 0.0
  %1697 = vmatmul.mubr.f32.gmra.mxu0 %v1620
  %v1698 = vpop.f32.mrf.mxu0
  %v1699 = vadd.f32 0.0, %v1698
  %v1700 = vpop.f32.mrf.mxu0
  %1701 = vdwg.mxu0
  %s1702 = scalar_lea.vmem %s7, 168
  %v1703 = vld [vmem:[%s1702] sm:$0xff]
  %v1704 = vld [vmem:[%s1702 + $0x8] sm:$0xff]
  %v1705 = vld [vmem:[%s1702 + $0x10] sm:$0x3]
  %v1707 = vsel %vm271, %v1689, 0
  %v1710 = vsel %vm271, %v1694, 0
  %v1713 = vsel %vm271, %v1699, 0
  %v1716 = vsel %vm281, %v1705, 0
  %1718 = vmatprep.subr.mxu0 0.0
  %1719 = vmatpush1.msra.mxu0 0.0
  %1720 = vmatprep.subr.mxu0 0.0
  %1721 = vmatpush1.msra.mxu0 0.0
  %1722 = vmatprep.subr.mxu0 0.0
  %1723 = vmatpush1.msra.mxu0 0.0
  %1724 = vmatprep.subr.mxu0 0.0
  %1725 = vmatpush1.msra.mxu0 0.0
  %1726 = vmatprep.subr.mxu0 0.0
  %1727 = vmatpush1.msra.mxu0 0.0
  %1728 = vmatprep.subr.mxu0 0.0
  %1729 = vmatpush1.msra.mxu0 0.0
  %1730 = vmatprep.subr.mxu0 0.0
  %1731 = vmatpush1.msra.mxu0 0.0
  %1732 = vmatprep.subr.mxu0 0.0
  %1733 = vmatpush1.msra.mxu0 0.0
  %1734 = vmatprep.subr.mxu0 0.0
  %1735 = vmatpush1.msra.mxu0 0.0
  %1736 = vmatprep.subr.mxu0 0.0
  %1737 = vmatpush1.msra.mxu0 0.0
  %1738 = vmatprep.subr.mxu0 0.0
  %1739 = vmatpush1.msra.mxu0 0.0
  %1740 = vmatprep.subr.mxu0 0.0
  %1741 = vmatpush1.msra.mxu0 0.0
  %1742 = vmatprep.subr.mxu0 0.0
  %1743 = vmatpush1.msra.mxu0 0.0
  %1744 = vmatprep.subr.mxu0 0.0
  %1745 = vmatpush1.msra.mxu0 %v1716
  %1746 = vmatprep.subr.mxu0 0.0
  %1747 = vmatpush1.msra.mxu0 %v1704
  %1748 = vmatprep.subr.mxu0 0.0
  %1749 = vmatpush1.msra.mxu0 %v1703
  %1750 = vmatprep.subr.mxu0 0.0
  %1751 = vmatpush2.msra.mxu0 0.0
  %1752 = vmatprep.subr.mxu0 0.0
  %1753 = vmatpush2.msra.mxu0 0.0
  %1754 = vmatprep.subr.mxu0 0.0
  %1755 = vmatpush2.msra.mxu0 0.0
  %1756 = vmatprep.subr.mxu0 0.0
  %1757 = vmatpush2.msra.mxu0 0.0
  %1758 = vmatprep.subr.mxu0 0.0
  %1759 = vmatpush2.msra.mxu0 0.0
  %1760 = vmatprep.subr.mxu0 0.0
  %1761 = vmatpush2.msra.mxu0 0.0
  %1762 = vmatprep.subr.mxu0 0.0
  %1763 = vmatpush2.msra.mxu0 0.0
  %1764 = vmatprep.subr.mxu0 0.0
  %1765 = vmatpush2.msra.mxu0 0.0
  %1766 = vmatprep.subr.mxu0 0.0
  %1767 = vmatpush2.msra.mxu0 0.0
  %1768 = vmatprep.subr.mxu0 0.0
  %1769 = vmatpush2.msra.mxu0 0.0
  %1770 = vmatprep.subr.mxu0 0.0
  %1771 = vmatpush2.msra.mxu0 0.0
  %1772 = vmatprep.subr.mxu0 0.0
  %1773 = vmatpush2.msra.mxu0 0.0
  %1774 = vmatprep.subr.mxu0 0.0
  %1775 = vmatpush2.msra.mxu0 0.0
  %1776 = vmatprep.subr.mxu0 0.0
  %1777 = vmatpush2.msra.mxu0 0.0
  %1778 = vmatprep.subr.mxu0 0.0
  %1779 = vmatpush2.msra.mxu0 0.0
  %1780 = vmatprep.subr.mxu0 0.0
  %1781 = vmatpush2.msra.mxu0 0.0
  %1782 = vmatprep.mubr.f32.mxu0 0.0
  %1783 = vmatmul.mubr.f32.gmra.mxu0 %v1707
  %v1784 = vpop.f32.mrf.mxu0
  %v1785 = vadd.f32 0.0, %v1784
  %v1786 = vpop.f32.mrf.mxu0
  %1787 = vmatprep.mubr.f32.mxu0 0.0
  %1788 = vmatmul.mubr.f32.gmra.mxu0 %v1710
  %v1789 = vpop.f32.mrf.mxu0
  %v1790 = vadd.f32 0.0, %v1789
  %v1791 = vpop.f32.mrf.mxu0
  %1792 = vmatprep.mubr.f32.mxu0 0.0
  %1793 = vmatmul.mubr.f32.gmra.mxu0 %v1713
  %v1794 = vpop.f32.mrf.mxu0
  %v1795 = vadd.f32 0.0, %v1794
  %v1796 = vpop.f32.mrf.mxu0
  %1797 = vdwg.mxu0
  %v1798 = vadd.f32 %v1606, %v1785
  %v1799 = vadd.f32 %v1607, %v1790
  %v1800 = vadd.f32 %v1608, %v1795
  %s1801 = scalar_lea.vmem %s5, 192
  %v1802 = vld [vmem:[%s1801] sm:$0xff]
  %v1803 = vld [vmem:[%s1801 + $0x8] sm:$0xff]
  %v1804 = vld [vmem:[%s1801 + $0x10] sm:$0x3]
  %v1806 = vsel %vm271, %v1802, 0
  %v1809 = vsel %vm271, %v1803, 0
  %v1812 = vsel %vm271, %v1804, 0
  %1814 = vmatprep.subr.mxu0 0.0
  %1815 = vmatpush1.msra.mxu0 0.0
  %1816 = vmatprep.subr.mxu0 0.0
  %1817 = vmatpush1.msra.mxu0 0.0
  %1818 = vmatprep.subr.mxu0 0.0
  %1819 = vmatpush1.msra.mxu0 0.0
  %1820 = vmatprep.subr.mxu0 0.0
  %1821 = vmatpush1.msra.mxu0 0.0
  %1822 = vmatprep.subr.mxu0 0.0
  %1823 = vmatpush1.msra.mxu0 0.0
  %1824 = vmatprep.subr.mxu0 0.0
  %1825 = vmatpush1.msra.mxu0 0.0
  %1826 = vmatprep.subr.mxu0 0.0
  %1827 = vmatpush1.msra.mxu0 0.0
  %1828 = vmatprep.subr.mxu0 0.0
  %1829 = vmatpush1.msra.mxu0 0.0
  %1830 = vmatprep.subr.mxu0 0.0
  %1831 = vmatpush1.msra.mxu0 0.0
  %1832 = vmatprep.subr.mxu0 0.0
  %1833 = vmatpush1.msra.mxu0 0.0
  %1834 = vmatprep.subr.mxu0 0.0
  %1835 = vmatpush1.msra.mxu0 0.0
  %1836 = vmatprep.subr.mxu0 0.0
  %1837 = vmatpush1.msra.mxu0 0.0
  %1838 = vmatprep.subr.mxu0 0.0
  %1839 = vmatpush1.msra.mxu0 0.0
  %1840 = vmatprep.subr.mxu0 0.0
  %1841 = vmatpush1.msra.mxu0 %v283
  %1842 = vmatprep.subr.mxu0 0.0
  %1843 = vmatpush1.msra.mxu0 %v165
  %1844 = vmatprep.subr.mxu0 0.0
  %1845 = vmatpush1.msra.mxu0 %v160
  %1846 = vmatprep.subr.mxu0 0.0
  %1847 = vmatpush2.msra.mxu0 0.0
  %1848 = vmatprep.subr.mxu0 0.0
  %1849 = vmatpush2.msra.mxu0 0.0
  %1850 = vmatprep.subr.mxu0 0.0
  %1851 = vmatpush2.msra.mxu0 0.0
  %1852 = vmatprep.subr.mxu0 0.0
  %1853 = vmatpush2.msra.mxu0 0.0
  %1854 = vmatprep.subr.mxu0 0.0
  %1855 = vmatpush2.msra.mxu0 0.0
  %1856 = vmatprep.subr.mxu0 0.0
  %1857 = vmatpush2.msra.mxu0 0.0
  %1858 = vmatprep.subr.mxu0 0.0
  %1859 = vmatpush2.msra.mxu0 0.0
  %1860 = vmatprep.subr.mxu0 0.0
  %1861 = vmatpush2.msra.mxu0 0.0
  %1862 = vmatprep.subr.mxu0 0.0
  %1863 = vmatpush2.msra.mxu0 0.0
  %1864 = vmatprep.subr.mxu0 0.0
  %1865 = vmatpush2.msra.mxu0 0.0
  %1866 = vmatprep.subr.mxu0 0.0
  %1867 = vmatpush2.msra.mxu0 0.0
  %1868 = vmatprep.subr.mxu0 0.0
  %1869 = vmatpush2.msra.mxu0 0.0
  %1870 = vmatprep.subr.mxu0 0.0
  %1871 = vmatpush2.msra.mxu0 0.0
  %1872 = vmatprep.subr.mxu0 0.0
  %1873 = vmatpush2.msra.mxu0 0.0
  %1874 = vmatprep.subr.mxu0 0.0
  %1875 = vmatpush2.msra.mxu0 0.0
  %1876 = vmatprep.subr.mxu0 0.0
  %1877 = vmatpush2.msra.mxu0 0.0
  %1878 = vmatprep.mubr.f32.mxu0 0.0
  %1879 = vmatmul.mubr.f32.gmra.mxu0 %v1806
  %v1880 = vpop.f32.mrf.mxu0
  %v1881 = vadd.f32 0.0, %v1880
  %v1882 = vpop.f32.mrf.mxu0
  %1883 = vmatprep.mubr.f32.mxu0 0.0
  %1884 = vmatmul.mubr.f32.gmra.mxu0 %v1809
  %v1885 = vpop.f32.mrf.mxu0
  %v1886 = vadd.f32 0.0, %v1885
  %v1887 = vpop.f32.mrf.mxu0
  %1888 = vmatprep.mubr.f32.mxu0 0.0
  %1889 = vmatmul.mubr.f32.gmra.mxu0 %v1812
  %v1890 = vpop.f32.mrf.mxu0
  %v1891 = vadd.f32 0.0, %v1890
  %v1892 = vpop.f32.mrf.mxu0
  %1893 = vdwg.mxu0
  %s1894 = scalar_lea.vmem %s7, 192
  %v1895 = vld [vmem:[%s1894] sm:$0xff]
  %v1896 = vld [vmem:[%s1894 + $0x8] sm:$0xff]
  %v1897 = vld [vmem:[%s1894 + $0x10] sm:$0x3]
  %v1899 = vsel %vm271, %v1881, 0
  %v1902 = vsel %vm271, %v1886, 0
  %v1905 = vsel %vm271, %v1891, 0
  %v1908 = vsel %vm281, %v1897, 0
  %1910 = vmatprep.subr.mxu0 0.0
  %1911 = vmatpush1.msra.mxu0 0.0
  %1912 = vmatprep.subr.mxu0 0.0
  %1913 = vmatpush1.msra.mxu0 0.0
  %1914 = vmatprep.subr.mxu0 0.0
  %1915 = vmatpush1.msra.mxu0 0.0
  %1916 = vmatprep.subr.mxu0 0.0
  %1917 = vmatpush1.msra.mxu0 0.0
  %1918 = vmatprep.subr.mxu0 0.0
  %1919 = vmatpush1.msra.mxu0 0.0
  %1920 = vmatprep.subr.mxu0 0.0
  %1921 = vmatpush1.msra.mxu0 0.0
  %1922 = vmatprep.subr.mxu0 0.0
  %1923 = vmatpush1.msra.mxu0 0.0
  %1924 = vmatprep.subr.mxu0 0.0
  %1925 = vmatpush1.msra.mxu0 0.0
  %1926 = vmatprep.subr.mxu0 0.0
  %1927 = vmatpush1.msra.mxu0 0.0
  %1928 = vmatprep.subr.mxu0 0.0
  %1929 = vmatpush1.msra.mxu0 0.0
  %1930 = vmatprep.subr.mxu0 0.0
  %1931 = vmatpush1.msra.mxu0 0.0
  %1932 = vmatprep.subr.mxu0 0.0
  %1933 = vmatpush1.msra.mxu0 0.0
  %1934 = vmatprep.subr.mxu0 0.0
  %1935 = vmatpush1.msra.mxu0 0.0
  %1936 = vmatprep.subr.mxu0 0.0
  %1937 = vmatpush1.msra.mxu0 %v1908
  %1938 = vmatprep.subr.mxu0 0.0
  %1939 = vmatpush1.msra.mxu0 %v1896
  %1940 = vmatprep.subr.mxu0 0.0
  %1941 = vmatpush1.msra.mxu0 %v1895
  %1942 = vmatprep.subr.mxu0 0.0
  %1943 = vmatpush2.msra.mxu0 0.0
  %1944 = vmatprep.subr.mxu0 0.0
  %1945 = vmatpush2.msra.mxu0 0.0
  %1946 = vmatprep.subr.mxu0 0.0
  %1947 = vmatpush2.msra.mxu0 0.0
  %1948 = vmatprep.subr.mxu0 0.0
  %1949 = vmatpush2.msra.mxu0 0.0
  %1950 = vmatprep.subr.mxu0 0.0
  %1951 = vmatpush2.msra.mxu0 0.0
  %1952 = vmatprep.subr.mxu0 0.0
  %1953 = vmatpush2.msra.mxu0 0.0
  %1954 = vmatprep.subr.mxu0 0.0
  %1955 = vmatpush2.msra.mxu0 0.0
  %1956 = vmatprep.subr.mxu0 0.0
  %1957 = vmatpush2.msra.mxu0 0.0
  %1958 = vmatprep.subr.mxu0 0.0
  %1959 = vmatpush2.msra.mxu0 0.0
  %1960 = vmatprep.subr.mxu0 0.0
  %1961 = vmatpush2.msra.mxu0 0.0
  %1962 = vmatprep.subr.mxu0 0.0
  %1963 = vmatpush2.msra.mxu0 0.0
  %1964 = vmatprep.subr.mxu0 0.0
  %1965 = vmatpush2.msra.mxu0 0.0
  %1966 = vmatprep.subr.mxu0 0.0
  %1967 = vmatpush2.msra.mxu0 0.0
  %1968 = vmatprep.subr.mxu0 0.0
  %1969 = vmatpush2.msra.mxu0 0.0
  %1970 = vmatprep.subr.mxu0 0.0
  %1971 = vmatpush2.msra.mxu0 0.0
  %1972 = vmatprep.subr.mxu0 0.0
  %1973 = vmatpush2.msra.mxu0 0.0
  %1974 = vmatprep.mubr.f32.mxu0 0.0
  %1975 = vmatmul.mubr.f32.gmra.mxu0 %v1899
  %v1976 = vpop.f32.mrf.mxu0
  %v1977 = vadd.f32 0.0, %v1976
  %v1978 = vpop.f32.mrf.mxu0
  %1979 = vmatprep.mubr.f32.mxu0 0.0
  %1980 = vmatmul.mubr.f32.gmra.mxu0 %v1902
  %v1981 = vpop.f32.mrf.mxu0
  %v1982 = vadd.f32 0.0, %v1981
  %v1983 = vpop.f32.mrf.mxu0
  %1984 = vmatprep.mubr.f32.mxu0 0.0
  %1985 = vmatmul.mubr.f32.gmra.mxu0 %v1905
  %v1986 = vpop.f32.mrf.mxu0
  %v1987 = vadd.f32 0.0, %v1986
  %v1988 = vpop.f32.mrf.mxu0
  %1989 = vdwg.mxu0
  %v1990 = vadd.f32 %v1798, %v1977
  %v1991 = vadd.f32 %v1799, %v1982
  %v1992 = vadd.f32 %v1800, %v1987
  %v1993 = vld [vmem:[%s8] sm:$0x1]
  %v1995 = vlaneseq
  %v1996 = vshrl.u32 %v1995, 7
  %v1997 = vsub.s32 0, %v1996
  %v1998 = vrot.slane %v1993, %v1997
  %v2000 = vadd.f32 %v1990, %v1998
  %v2001 = vadd.f32 %v1991, %v1998
  %v2002 = vadd.f32 %v1992, %v1998
  %v2003 = vld [vmem:[%s9] sm:$0x1]
  %v2005 = vlaneseq
  %v2006 = vshrl.u32 %v2005, 7
  %v2007 = vsub.s32 0, %v2006
  %v2008 = vrot.slane %v2003, %v2007
  %v2010 = vmul.f32 %v2000, %v2008
  %v2011 = vmul.f32 %v2001, %v2008
  %v2012 = vmul.f32 %v2002, %v2008
  %v2013 = vld [vmem:[%s10] sm:$0x1]
  %v2015 = vlaneseq
  %v2016 = vshrl.u32 %v2015, 7
  %v2017 = vsub.s32 0, %v2016
  %v2018 = vrot.slane %v2013, %v2017
  %v2020 = vadd.f32 %v2010, %v2018
  %v2021 = vadd.f32 %v2011, %v2018
  %v2022 = vadd.f32 %v2012, %v2018
  %v2023 = vmax.f32 %v2020, 0.0
  %v2024 = vmax.f32 %v2021, 0.0
  %v2025 = vmax.f32 %v2022, 0.0
  %v2027 = vsel %vm281, %v2025, 0
  %2029 = vmatprep.subr.mxu0 0.0
  %2030 = vmatpush1.msra.mxu0 0.0
  %2031 = vmatprep.subr.mxu0 0.0
  %2032 = vmatpush1.msra.mxu0 0.0
  %2033 = vmatprep.subr.mxu0 0.0
  %2034 = vmatpush1.msra.mxu0 0.0
  %2035 = vmatprep.subr.mxu0 0.0
  %2036 = vmatpush1.msra.mxu0 0.0
  %2037 = vmatprep.subr.mxu0 0.0
  %2038 = vmatpush1.msra.mxu0 0.0
  %2039 = vmatprep.subr.mxu0 0.0
  %2040 = vmatpush1.msra.mxu0 0.0
  %2041 = vmatprep.subr.mxu0 0.0
  %2042 = vmatpush1.msra.mxu0 0.0
  %2043 = vmatprep.subr.mxu0 0.0
  %2044 = vmatpush1.msra.mxu0 0.0
  %2045 = vmatprep.subr.mxu0 0.0
  %2046 = vmatpush1.msra.mxu0 0.0
  %2047 = vmatprep.subr.mxu0 0.0
  %2048 = vmatpush1.msra.mxu0 0.0
  %2049 = vmatprep.subr.mxu0 0.0
  %2050 = vmatpush1.msra.mxu0 0.0
  %2051 = vmatprep.subr.mxu0 0.0
  %2052 = vmatpush1.msra.mxu0 0.0
  %2053 = vmatprep.subr.mxu0 0.0
  %2054 = vmatpush1.msra.mxu0 0.0
  %2055 = vmatprep.subr.mxu0 0.0
  %2056 = vmatpush1.msra.mxu0 %v2027
  %2057 = vmatprep.subr.mxu0 0.0
  %2058 = vmatpush1.msra.mxu0 %v2024
  %2059 = vmatprep.subr.mxu0 0.0
  %2060 = vmatpush1.msra.mxu0 %v2023
  %2061 = vmatprep.subr.mxu0 0.0
  %2062 = vmatpush2.msra.mxu0 0.0
  %2063 = vmatprep.subr.mxu0 0.0
  %2064 = vmatpush2.msra.mxu0 0.0
  %2065 = vmatprep.subr.mxu0 0.0
  %2066 = vmatpush2.msra.mxu0 0.0
  %2067 = vmatprep.subr.mxu0 0.0
  %2068 = vmatpush2.msra.mxu0 0.0
  %2069 = vmatprep.subr.mxu0 0.0
  %2070 = vmatpush2.msra.mxu0 0.0
  %2071 = vmatprep.subr.mxu0 0.0
  %2072 = vmatpush2.msra.mxu0 0.0
  %2073 = vmatprep.subr.mxu0 0.0
  %2074 = vmatpush2.msra.mxu0 0.0
  %2075 = vmatprep.subr.mxu0 0.0
  %2076 = vmatpush2.msra.mxu0 0.0
  %2077 = vmatprep.subr.mxu0 0.0
  %2078 = vmatpush2.msra.mxu0 0.0
  %2079 = vmatprep.subr.mxu0 0.0
  %2080 = vmatpush2.msra.mxu0 0.0
  %2081 = vmatprep.subr.mxu0 0.0
  %2082 = vmatpush2.msra.mxu0 0.0
  %2083 = vmatprep.subr.mxu0 0.0
  %2084 = vmatpush2.msra.mxu0 0.0
  %2085 = vmatprep.subr.mxu0 0.0
  %2086 = vmatpush2.msra.mxu0 0.0
  %2087 = vmatprep.subr.mxu0 0.0
  %2088 = vmatpush2.msra.mxu0 0.0
  %2089 = vmatprep.subr.mxu0 0.0
  %2090 = vmatpush2.msra.mxu0 0.0
  %2091 = vmatprep.subr.mxu0 0.0
  %2092 = vmatpush2.msra.mxu0 0.0
  %2093 = vmatprep.mubr.f32.mxu0 0.0
  %2094 = vmatmul.mubr.f32.gmra.mxu0 %v273
  %v2095 = vpop.f32.mrf.mxu0
  %v2096 = vadd.f32 0.0, %v2095
  %v2097 = vpop.f32.mrf.mxu0
  %2098 = vmatprep.mubr.f32.mxu0 0.0
  %2099 = vmatmul.mubr.f32.gmra.mxu0 %v276
  %v2100 = vpop.f32.mrf.mxu0
  %v2101 = vadd.f32 0.0, %v2100
  %v2102 = vpop.f32.mrf.mxu0
  %2103 = vmatprep.mubr.f32.mxu0 0.0
  %2104 = vmatmul.mubr.f32.gmra.mxu0 %v279
  %v2105 = vpop.f32.mrf.mxu0
  %v2106 = vadd.f32 0.0, %v2105
  %v2107 = vpop.f32.mrf.mxu0
  %2108 = vdwg.mxu0
  %v2109 = vld [vmem:[%s11] sm:$0xff]
  %v2110 = vld [vmem:[%s11 + $0x8] sm:$0xff]
  %2111 = vmatprep.subr.mxu0 0.0
  %2112 = vmatpush1.msra.mxu0 0.0
  %2113 = vmatprep.subr.mxu0 0.0
  %2114 = vmatpush1.msra.mxu0 0.0
  %2115 = vmatprep.subr.mxu0 0.0
  %2116 = vmatpush1.msra.mxu0 0.0
  %2117 = vmatprep.subr.mxu0 0.0
  %2118 = vmatpush1.msra.mxu0 0.0
  %2119 = vmatprep.subr.mxu0 0.0
  %2120 = vmatpush1.msra.mxu0 0.0
  %2121 = vmatprep.subr.mxu0 0.0
  %2122 = vmatpush1.msra.mxu0 0.0
  %2123 = vmatprep.subr.mxu0 0.0
  %2124 = vmatpush1.msra.mxu0 0.0
  %2125 = vmatprep.subr.mxu0 0.0
  %2126 = vmatpush1.msra.mxu0 0.0
  %2127 = vmatprep.subr.mxu0 0.0
  %2128 = vmatpush1.msra.mxu0 0.0
  %2129 = vmatprep.subr.mxu0 0.0
  %2130 = vmatpush1.msra.mxu0 0.0
  %2131 = vmatprep.subr.mxu0 0.0
  %2132 = vmatpush1.msra.mxu0 0.0
  %2133 = vmatprep.subr.mxu0 0.0
  %2134 = vmatpush1.msra.mxu0 0.0
  %2135 = vmatprep.subr.mxu0 0.0
  %2136 = vmatpush1.msra.mxu0 0.0
  %2137 = vmatprep.subr.mxu0 0.0
  %2138 = vmatpush1.msra.mxu0 %v2027
  %2139 = vmatprep.subr.mxu0 0.0
  %2140 = vmatpush1.msra.mxu0 %v2024
  %2141 = vmatprep.subr.mxu0 0.0
  %2142 = vmatpush1.msra.mxu0 %v2023
  %2143 = vmatprep.subr.mxu0 0.0
  %2144 = vmatpush2.msra.mxu0 0.0
  %2145 = vmatprep.subr.mxu0 0.0
  %2146 = vmatpush2.msra.mxu0 0.0
  %2147 = vmatprep.subr.mxu0 0.0
  %2148 = vmatpush2.msra.mxu0 0.0
  %2149 = vmatprep.subr.mxu0 0.0
  %2150 = vmatpush2.msra.mxu0 0.0
  %2151 = vmatprep.subr.mxu0 0.0
  %2152 = vmatpush2.msra.mxu0 0.0
  %2153 = vmatprep.subr.mxu0 0.0
  %2154 = vmatpush2.msra.mxu0 0.0
  %2155 = vmatprep.subr.mxu0 0.0
  %2156 = vmatpush2.msra.mxu0 0.0
  %2157 = vmatprep.subr.mxu0 0.0
  %2158 = vmatpush2.msra.mxu0 0.0
  %2159 = vmatprep.subr.mxu0 0.0
  %2160 = vmatpush2.msra.mxu0 0.0
  %2161 = vmatprep.subr.mxu0 0.0
  %2162 = vmatpush2.msra.mxu0 0.0
  %2163 = vmatprep.subr.mxu0 0.0
  %2164 = vmatpush2.msra.mxu0 0.0
  %2165 = vmatprep.subr.mxu0 0.0
  %2166 = vmatpush2.msra.mxu0 0.0
  %2167 = vmatprep.subr.mxu0 0.0
  %2168 = vmatpush2.msra.mxu0 0.0
  %2169 = vmatprep.subr.mxu0 0.0
  %2170 = vmatpush2.msra.mxu0 0.0
  %2171 = vmatprep.subr.mxu0 0.0
  %2172 = vmatpush2.msra.mxu0 0.0
  %2173 = vmatprep.subr.mxu0 0.0
  %2174 = vmatpush2.msra.mxu0 0.0
  %2175 = vmatprep.mubr.f32.mxu0 0.0
  %2176 = vmatmul.mubr.f32.gmra.mxu0 %v373
  %v2177 = vpop.f32.mrf.mxu0
  %v2178 = vadd.f32 0.0, %v2177
  %v2179 = vpop.f32.mrf.mxu0
  %2180 = vmatprep.mubr.f32.mxu0 0.0
  %2181 = vmatmul.mubr.f32.gmra.mxu0 %v376
  %v2182 = vpop.f32.mrf.mxu0
  %v2183 = vadd.f32 0.0, %v2182
  %v2184 = vpop.f32.mrf.mxu0
  %2185 = vmatprep.mubr.f32.mxu0 0.0
  %2186 = vmatmul.mubr.f32.gmra.mxu0 %v379
  %v2187 = vpop.f32.mrf.mxu0
  %v2188 = vadd.f32 0.0, %v2187
  %v2189 = vpop.f32.mrf.mxu0
  %2190 = vdwg.mxu0
  %s2191 = scalar_lea.vmem %s11, 16
  %v2192 = vld [vmem:[%s2191] sm:$0xff]
  %v2193 = vld [vmem:[%s2191 + $0x8] sm:$0xff]
  %vm2194 = vcmask 130048
  %v2196 = vsel %vm2194, %v2178, 0
  %v2199 = vsel %vm2194, %v2183, 0
  %v2202 = vsel %vm2194, %v2188, 0
  %2204 = vmatprep.subr.mxu0 0.0
  %2205 = vmatpush1.msra.mxu0 0.0
  %2206 = vmatprep.subr.mxu0 0.0
  %2207 = vmatpush1.msra.mxu0 0.0
  %2208 = vmatprep.subr.mxu0 0.0
  %2209 = vmatpush1.msra.mxu0 0.0
  %2210 = vmatprep.subr.mxu0 0.0
  %2211 = vmatpush1.msra.mxu0 0.0
  %2212 = vmatprep.subr.mxu0 0.0
  %2213 = vmatpush1.msra.mxu0 0.0
  %2214 = vmatprep.subr.mxu0 0.0
  %2215 = vmatpush1.msra.mxu0 0.0
  %2216 = vmatprep.subr.mxu0 0.0
  %2217 = vmatpush1.msra.mxu0 0.0
  %2218 = vmatprep.subr.mxu0 0.0
  %2219 = vmatpush1.msra.mxu0 0.0
  %2220 = vmatprep.subr.mxu0 0.0
  %2221 = vmatpush1.msra.mxu0 0.0
  %2222 = vmatprep.subr.mxu0 0.0
  %2223 = vmatpush1.msra.mxu0 0.0
  %2224 = vmatprep.subr.mxu0 0.0
  %2225 = vmatpush1.msra.mxu0 0.0
  %2226 = vmatprep.subr.mxu0 0.0
  %2227 = vmatpush1.msra.mxu0 0.0
  %2228 = vmatprep.subr.mxu0 0.0
  %2229 = vmatpush1.msra.mxu0 0.0
  %2230 = vmatprep.subr.mxu0 0.0
  %2231 = vmatpush1.msra.mxu0 0.0
  %2232 = vmatprep.subr.mxu0 0.0
  %2233 = vmatpush1.msra.mxu0 %v2193
  %2234 = vmatprep.subr.mxu0 0.0
  %2235 = vmatpush1.msra.mxu0 %v2192
  %2236 = vmatprep.subr.mxu0 0.0
  %2237 = vmatpush2.msra.mxu0 0.0
  %2238 = vmatprep.subr.mxu0 0.0
  %2239 = vmatpush2.msra.mxu0 0.0
  %2240 = vmatprep.subr.mxu0 0.0
  %2241 = vmatpush2.msra.mxu0 0.0
  %2242 = vmatprep.subr.mxu0 0.0
  %2243 = vmatpush2.msra.mxu0 0.0
  %2244 = vmatprep.subr.mxu0 0.0
  %2245 = vmatpush2.msra.mxu0 0.0
  %2246 = vmatprep.subr.mxu0 0.0
  %2247 = vmatpush2.msra.mxu0 0.0
  %2248 = vmatprep.subr.mxu0 0.0
  %2249 = vmatpush2.msra.mxu0 0.0
  %2250 = vmatprep.subr.mxu0 0.0
  %2251 = vmatpush2.msra.mxu0 0.0
  %2252 = vmatprep.subr.mxu0 0.0
  %2253 = vmatpush2.msra.mxu0 0.0
  %2254 = vmatprep.subr.mxu0 0.0
  %2255 = vmatpush2.msra.mxu0 0.0
  %2256 = vmatprep.subr.mxu0 0.0
  %2257 = vmatpush2.msra.mxu0 0.0
  %2258 = vmatprep.subr.mxu0 0.0
  %2259 = vmatpush2.msra.mxu0 0.0
  %2260 = vmatprep.subr.mxu0 0.0
  %2261 = vmatpush2.msra.mxu0 0.0
  %2262 = vmatprep.subr.mxu0 0.0
  %2263 = vmatpush2.msra.mxu0 0.0
  %2264 = vmatprep.subr.mxu0 0.0
  %2265 = vmatpush2.msra.mxu0 0.0
  %2266 = vmatprep.subr.mxu0 0.0
  %2267 = vmatpush2.msra.mxu0 0.0
  %2268 = vmatprep.mubr.f32.mxu0 0.0
  %2269 = vmatmul.mubr.f32.gmra.mxu0 %v2196
  %v2270 = vpop.f32.mrf.mxu0
  %v2271 = vadd.f32 0.0, %v2270
  %v2272 = vpop.f32.mrf.mxu0
  %2273 = vmatprep.mubr.f32.mxu0 0.0
  %2274 = vmatmul.mubr.f32.gmra.mxu0 %v2199
  %v2275 = vpop.f32.mrf.mxu0
  %v2276 = vadd.f32 0.0, %v2275
  %v2277 = vpop.f32.mrf.mxu0
  %2278 = vmatprep.mubr.f32.mxu0 0.0
  %2279 = vmatmul.mubr.f32.gmra.mxu0 %v2202
  %v2280 = vpop.f32.mrf.mxu0
  %v2281 = vadd.f32 0.0, %v2280
  %v2282 = vpop.f32.mrf.mxu0
  %2283 = vdwg.mxu0
  %v2285 = vsel %vm2194, %v2096, 0
  %v2288 = vsel %vm2194, %v2101, 0
  %v2291 = vsel %vm2194, %v2106, 0
  %2293 = vmatprep.subr.mxu0 0.0
  %2294 = vmatpush1.msra.mxu0 0.0
  %2295 = vmatprep.subr.mxu0 0.0
  %2296 = vmatpush1.msra.mxu0 0.0
  %2297 = vmatprep.subr.mxu0 0.0
  %2298 = vmatpush1.msra.mxu0 0.0
  %2299 = vmatprep.subr.mxu0 0.0
  %2300 = vmatpush1.msra.mxu0 0.0
  %2301 = vmatprep.subr.mxu0 0.0
  %2302 = vmatpush1.msra.mxu0 0.0
  %2303 = vmatprep.subr.mxu0 0.0
  %2304 = vmatpush1.msra.mxu0 0.0
  %2305 = vmatprep.subr.mxu0 0.0
  %2306 = vmatpush1.msra.mxu0 0.0
  %2307 = vmatprep.subr.mxu0 0.0
  %2308 = vmatpush1.msra.mxu0 0.0
  %2309 = vmatprep.subr.mxu0 0.0
  %2310 = vmatpush1.msra.mxu0 0.0
  %2311 = vmatprep.subr.mxu0 0.0
  %2312 = vmatpush1.msra.mxu0 0.0
  %2313 = vmatprep.subr.mxu0 0.0
  %2314 = vmatpush1.msra.mxu0 0.0
  %2315 = vmatprep.subr.mxu0 0.0
  %2316 = vmatpush1.msra.mxu0 0.0
  %2317 = vmatprep.subr.mxu0 0.0
  %2318 = vmatpush1.msra.mxu0 0.0
  %2319 = vmatprep.subr.mxu0 0.0
  %2320 = vmatpush1.msra.mxu0 0.0
  %2321 = vmatprep.subr.mxu0 0.0
  %2322 = vmatpush1.msra.mxu0 %v2110
  %2323 = vmatprep.subr.mxu0 0.0
  %2324 = vmatpush1.msra.mxu0 %v2109
  %2325 = vmatprep.subr.mxu0 0.0
  %2326 = vmatpush2.msra.mxu0 0.0
  %2327 = vmatprep.subr.mxu0 0.0
  %2328 = vmatpush2.msra.mxu0 0.0
  %2329 = vmatprep.subr.mxu0 0.0
  %2330 = vmatpush2.msra.mxu0 0.0
  %2331 = vmatprep.subr.mxu0 0.0
  %2332 = vmatpush2.msra.mxu0 0.0
  %2333 = vmatprep.subr.mxu0 0.0
  %2334 = vmatpush2.msra.mxu0 0.0
  %2335 = vmatprep.subr.mxu0 0.0
  %2336 = vmatpush2.msra.mxu0 0.0
  %2337 = vmatprep.subr.mxu0 0.0
  %2338 = vmatpush2.msra.mxu0 0.0
  %2339 = vmatprep.subr.mxu0 0.0
  %2340 = vmatpush2.msra.mxu0 0.0
  %2341 = vmatprep.subr.mxu0 0.0
  %2342 = vmatpush2.msra.mxu0 0.0
  %2343 = vmatprep.subr.mxu0 0.0
  %2344 = vmatpush2.msra.mxu0 0.0
  %2345 = vmatprep.subr.mxu0 0.0
  %2346 = vmatpush2.msra.mxu0 0.0
  %2347 = vmatprep.subr.mxu0 0.0
  %2348 = vmatpush2.msra.mxu0 0.0
  %2349 = vmatprep.subr.mxu0 0.0
  %2350 = vmatpush2.msra.mxu0 0.0
  %2351 = vmatprep.subr.mxu0 0.0
  %2352 = vmatpush2.msra.mxu0 0.0
  %2353 = vmatprep.subr.mxu0 0.0
  %2354 = vmatpush2.msra.mxu0 0.0
  %2355 = vmatprep.subr.mxu0 0.0
  %2356 = vmatpush2.msra.mxu0 0.0
  %2357 = vmatprep.mubr.f32.mxu0 0.0
  %2358 = vmatmul.mubr.f32.gmra.mxu0 %v2285
  %v2359 = vpop.f32.mrf.mxu0
  %v2360 = vadd.f32 %v2271, %v2359
  %v2361 = vpop.f32.mrf.mxu0
  %2362 = vmatprep.mubr.f32.mxu0 0.0
  %2363 = vmatmul.mubr.f32.gmra.mxu0 %v2288
  %v2364 = vpop.f32.mrf.mxu0
  %v2365 = vadd.f32 %v2276, %v2364
  %v2366 = vpop.f32.mrf.mxu0
  %2367 = vmatprep.mubr.f32.mxu0 0.0
  %2368 = vmatmul.mubr.f32.gmra.mxu0 %v2291
  %v2369 = vpop.f32.mrf.mxu0
  %v2370 = vadd.f32 %v2281, %v2369
  %v2371 = vpop.f32.mrf.mxu0
  %2372 = vdwg.mxu0
  %2373 = vmatprep.subr.mxu0 0.0
  %2374 = vmatpush1.msra.mxu0 0.0
  %2375 = vmatprep.subr.mxu0 0.0
  %2376 = vmatpush1.msra.mxu0 0.0
  %2377 = vmatprep.subr.mxu0 0.0
  %2378 = vmatpush1.msra.mxu0 0.0
  %2379 = vmatprep.subr.mxu0 0.0
  %2380 = vmatpush1.msra.mxu0 0.0
  %2381 = vmatprep.subr.mxu0 0.0
  %2382 = vmatpush1.msra.mxu0 0.0
  %2383 = vmatprep.subr.mxu0 0.0
  %2384 = vmatpush1.msra.mxu0 0.0
  %2385 = vmatprep.subr.mxu0 0.0
  %2386 = vmatpush1.msra.mxu0 0.0
  %2387 = vmatprep.subr.mxu0 0.0
  %2388 = vmatpush1.msra.mxu0 0.0
  %2389 = vmatprep.subr.mxu0 0.0
  %2390 = vmatpush1.msra.mxu0 0.0
  %2391 = vmatprep.subr.mxu0 0.0
  %2392 = vmatpush1.msra.mxu0 0.0
  %2393 = vmatprep.subr.mxu0 0.0
  %2394 = vmatpush1.msra.mxu0 0.0
  %2395 = vmatprep.subr.mxu0 0.0
  %2396 = vmatpush1.msra.mxu0 0.0
  %2397 = vmatprep.subr.mxu0 0.0
  %2398 = vmatpush1.msra.mxu0 0.0
  %2399 = vmatprep.subr.mxu0 0.0
  %2400 = vmatpush1.msra.mxu0 %v2027
  %2401 = vmatprep.subr.mxu0 0.0
  %2402 = vmatpush1.msra.mxu0 %v2024
  %2403 = vmatprep.subr.mxu0 0.0
  %2404 = vmatpush1.msra.mxu0 %v2023
  %2405 = vmatprep.subr.mxu0 0.0
  %2406 = vmatpush2.msra.mxu0 0.0
  %2407 = vmatprep.subr.mxu0 0.0
  %2408 = vmatpush2.msra.mxu0 0.0
  %2409 = vmatprep.subr.mxu0 0.0
  %2410 = vmatpush2.msra.mxu0 0.0
  %2411 = vmatprep.subr.mxu0 0.0
  %2412 = vmatpush2.msra.mxu0 0.0
  %2413 = vmatprep.subr.mxu0 0.0
  %2414 = vmatpush2.msra.mxu0 0.0
  %2415 = vmatprep.subr.mxu0 0.0
  %2416 = vmatpush2.msra.mxu0 0.0
  %2417 = vmatprep.subr.mxu0 0.0
  %2418 = vmatpush2.msra.mxu0 0.0
  %2419 = vmatprep.subr.mxu0 0.0
  %2420 = vmatpush2.msra.mxu0 0.0
  %2421 = vmatprep.subr.mxu0 0.0
  %2422 = vmatpush2.msra.mxu0 0.0
  %2423 = vmatprep.subr.mxu0 0.0
  %2424 = vmatpush2.msra.mxu0 0.0
  %2425 = vmatprep.subr.mxu0 0.0
  %2426 = vmatpush2.msra.mxu0 0.0
  %2427 = vmatprep.subr.mxu0 0.0
  %2428 = vmatpush2.msra.mxu0 0.0
  %2429 = vmatprep.subr.mxu0 0.0
  %2430 = vmatpush2.msra.mxu0 0.0
  %2431 = vmatprep.subr.mxu0 0.0
  %2432 = vmatpush2.msra.mxu0 0.0
  %2433 = vmatprep.subr.mxu0 0.0
  %2434 = vmatpush2.msra.mxu0 0.0
  %2435 = vmatprep.subr.mxu0 0.0
  %2436 = vmatpush2.msra.mxu0 0.0
  %2437 = vmatprep.mubr.f32.mxu0 0.0
  %2438 = vmatmul.mubr.f32.gmra.mxu0 %v654
  %v2439 = vpop.f32.mrf.mxu0
  %v2440 = vadd.f32 0.0, %v2439
  %v2441 = vpop.f32.mrf.mxu0
  %2442 = vmatprep.mubr.f32.mxu0 0.0
  %2443 = vmatmul.mubr.f32.gmra.mxu0 %v657
  %v2444 = vpop.f32.mrf.mxu0
  %v2445 = vadd.f32 0.0, %v2444
  %v2446 = vpop.f32.mrf.mxu0
  %2447 = vmatprep.mubr.f32.mxu0 0.0
  %2448 = vmatmul.mubr.f32.gmra.mxu0 %v660
  %v2449 = vpop.f32.mrf.mxu0
  %v2450 = vadd.f32 0.0, %v2449
  %v2451 = vpop.f32.mrf.mxu0
  %2452 = vdwg.mxu0
  %s2453 = scalar_lea.vmem %s11, 32
  %v2454 = vld [vmem:[%s2453] sm:$0xff]
  %v2455 = vld [vmem:[%s2453 + $0x8] sm:$0xff]
  %v2457 = vsel %vm2194, %v2440, 0
  %v2460 = vsel %vm2194, %v2445, 0
  %v2463 = vsel %vm2194, %v2450, 0
  %2465 = vmatprep.subr.mxu0 0.0
  %2466 = vmatpush1.msra.mxu0 0.0
  %2467 = vmatprep.subr.mxu0 0.0
  %2468 = vmatpush1.msra.mxu0 0.0
  %2469 = vmatprep.subr.mxu0 0.0
  %2470 = vmatpush1.msra.mxu0 0.0
  %2471 = vmatprep.subr.mxu0 0.0
  %2472 = vmatpush1.msra.mxu0 0.0
  %2473 = vmatprep.subr.mxu0 0.0
  %2474 = vmatpush1.msra.mxu0 0.0
  %2475 = vmatprep.subr.mxu0 0.0
  %2476 = vmatpush1.msra.mxu0 0.0
  %2477 = vmatprep.subr.mxu0 0.0
  %2478 = vmatpush1.msra.mxu0 0.0
  %2479 = vmatprep.subr.mxu0 0.0
  %2480 = vmatpush1.msra.mxu0 0.0
  %2481 = vmatprep.subr.mxu0 0.0
  %2482 = vmatpush1.msra.mxu0 0.0
  %2483 = vmatprep.subr.mxu0 0.0
  %2484 = vmatpush1.msra.mxu0 0.0
  %2485 = vmatprep.subr.mxu0 0.0
  %2486 = vmatpush1.msra.mxu0 0.0
  %2487 = vmatprep.subr.mxu0 0.0
  %2488 = vmatpush1.msra.mxu0 0.0
  %2489 = vmatprep.subr.mxu0 0.0
  %2490 = vmatpush1.msra.mxu0 0.0
  %2491 = vmatprep.subr.mxu0 0.0
  %2492 = vmatpush1.msra.mxu0 0.0
  %2493 = vmatprep.subr.mxu0 0.0
  %2494 = vmatpush1.msra.mxu0 %v2455
  %2495 = vmatprep.subr.mxu0 0.0
  %2496 = vmatpush1.msra.mxu0 %v2454
  %2497 = vmatprep.subr.mxu0 0.0
  %2498 = vmatpush2.msra.mxu0 0.0
  %2499 = vmatprep.subr.mxu0 0.0
  %2500 = vmatpush2.msra.mxu0 0.0
  %2501 = vmatprep.subr.mxu0 0.0
  %2502 = vmatpush2.msra.mxu0 0.0
  %2503 = vmatprep.subr.mxu0 0.0
  %2504 = vmatpush2.msra.mxu0 0.0
  %2505 = vmatprep.subr.mxu0 0.0
  %2506 = vmatpush2.msra.mxu0 0.0
  %2507 = vmatprep.subr.mxu0 0.0
  %2508 = vmatpush2.msra.mxu0 0.0
  %2509 = vmatprep.subr.mxu0 0.0
  %2510 = vmatpush2.msra.mxu0 0.0
  %2511 = vmatprep.subr.mxu0 0.0
  %2512 = vmatpush2.msra.mxu0 0.0
  %2513 = vmatprep.subr.mxu0 0.0
  %2514 = vmatpush2.msra.mxu0 0.0
  %2515 = vmatprep.subr.mxu0 0.0
  %2516 = vmatpush2.msra.mxu0 0.0
  %2517 = vmatprep.subr.mxu0 0.0
  %2518 = vmatpush2.msra.mxu0 0.0
  %2519 = vmatprep.subr.mxu0 0.0
  %2520 = vmatpush2.msra.mxu0 0.0
  %2521 = vmatprep.subr.mxu0 0.0
  %2522 = vmatpush2.msra.mxu0 0.0
  %2523 = vmatprep.subr.mxu0 0.0
  %2524 = vmatpush2.msra.mxu0 0.0
  %2525 = vmatprep.subr.mxu0 0.0
  %2526 = vmatpush2.msra.mxu0 0.0
  %2527 = vmatprep.subr.mxu0 0.0
  %2528 = vmatpush2.msra.mxu0 0.0
  %2529 = vmatprep.mubr.f32.mxu0 0.0
  %2530 = vmatmul.mubr.f32.gmra.mxu0 %v2457
  %v2531 = vpop.f32.mrf.mxu0
  %v2532 = vadd.f32 0.0, %v2531
  %v2533 = vpop.f32.mrf.mxu0
  %2534 = vmatprep.mubr.f32.mxu0 0.0
  %2535 = vmatmul.mubr.f32.gmra.mxu0 %v2460
  %v2536 = vpop.f32.mrf.mxu0
  %v2537 = vadd.f32 0.0, %v2536
  %v2538 = vpop.f32.mrf.mxu0
  %2539 = vmatprep.mubr.f32.mxu0 0.0
  %2540 = vmatmul.mubr.f32.gmra.mxu0 %v2463
  %v2541 = vpop.f32.mrf.mxu0
  %v2542 = vadd.f32 0.0, %v2541
  %v2543 = vpop.f32.mrf.mxu0
  %2544 = vdwg.mxu0
  %v2545 = vadd.f32 %v2360, %v2532
  %v2546 = vadd.f32 %v2365, %v2537
  %v2547 = vadd.f32 %v2370, %v2542
  %2548 = vmatprep.subr.mxu0 0.0
  %2549 = vmatpush1.msra.mxu0 0.0
  %2550 = vmatprep.subr.mxu0 0.0
  %2551 = vmatpush1.msra.mxu0 0.0
  %2552 = vmatprep.subr.mxu0 0.0
  %2553 = vmatpush1.msra.mxu0 0.0
  %2554 = vmatprep.subr.mxu0 0.0
  %2555 = vmatpush1.msra.mxu0 0.0
  %2556 = vmatprep.subr.mxu0 0.0
  %2557 = vmatpush1.msra.mxu0 0.0
  %2558 = vmatprep.subr.mxu0 0.0
  %2559 = vmatpush1.msra.mxu0 0.0
  %2560 = vmatprep.subr.mxu0 0.0
  %2561 = vmatpush1.msra.mxu0 0.0
  %2562 = vmatprep.subr.mxu0 0.0
  %2563 = vmatpush1.msra.mxu0 0.0
  %2564 = vmatprep.subr.mxu0 0.0
  %2565 = vmatpush1.msra.mxu0 0.0
  %2566 = vmatprep.subr.mxu0 0.0
  %2567 = vmatpush1.msra.mxu0 0.0
  %2568 = vmatprep.subr.mxu0 0.0
  %2569 = vmatpush1.msra.mxu0 0.0
  %2570 = vmatprep.subr.mxu0 0.0
  %2571 = vmatpush1.msra.mxu0 0.0
  %2572 = vmatprep.subr.mxu0 0.0
  %2573 = vmatpush1.msra.mxu0 0.0
  %2574 = vmatprep.subr.mxu0 0.0
  %2575 = vmatpush1.msra.mxu0 %v2027
  %2576 = vmatprep.subr.mxu0 0.0
  %2577 = vmatpush1.msra.mxu0 %v2024
  %2578 = vmatprep.subr.mxu0 0.0
  %2579 = vmatpush1.msra.mxu0 %v2023
  %2580 = vmatprep.subr.mxu0 0.0
  %2581 = vmatpush2.msra.mxu0 0.0
  %2582 = vmatprep.subr.mxu0 0.0
  %2583 = vmatpush2.msra.mxu0 0.0
  %2584 = vmatprep.subr.mxu0 0.0
  %2585 = vmatpush2.msra.mxu0 0.0
  %2586 = vmatprep.subr.mxu0 0.0
  %2587 = vmatpush2.msra.mxu0 0.0
  %2588 = vmatprep.subr.mxu0 0.0
  %2589 = vmatpush2.msra.mxu0 0.0
  %2590 = vmatprep.subr.mxu0 0.0
  %2591 = vmatpush2.msra.mxu0 0.0
  %2592 = vmatprep.subr.mxu0 0.0
  %2593 = vmatpush2.msra.mxu0 0.0
  %2594 = vmatprep.subr.mxu0 0.0
  %2595 = vmatpush2.msra.mxu0 0.0
  %2596 = vmatprep.subr.mxu0 0.0
  %2597 = vmatpush2.msra.mxu0 0.0
  %2598 = vmatprep.subr.mxu0 0.0
  %2599 = vmatpush2.msra.mxu0 0.0
  %2600 = vmatprep.subr.mxu0 0.0
  %2601 = vmatpush2.msra.mxu0 0.0
  %2602 = vmatprep.subr.mxu0 0.0
  %2603 = vmatpush2.msra.mxu0 0.0
  %2604 = vmatprep.subr.mxu0 0.0
  %2605 = vmatpush2.msra.mxu0 0.0
  %2606 = vmatprep.subr.mxu0 0.0
  %2607 = vmatpush2.msra.mxu0 0.0
  %2608 = vmatprep.subr.mxu0 0.0
  %2609 = vmatpush2.msra.mxu0 0.0
  %2610 = vmatprep.subr.mxu0 0.0
  %2611 = vmatpush2.msra.mxu0 0.0
  %2612 = vmatprep.mubr.f32.mxu0 0.0
  %2613 = vmatmul.mubr.f32.gmra.mxu0 %v846
  %v2614 = vpop.f32.mrf.mxu0
  %v2615 = vadd.f32 0.0, %v2614
  %v2616 = vpop.f32.mrf.mxu0
  %2617 = vmatprep.mubr.f32.mxu0 0.0
  %2618 = vmatmul.mubr.f32.gmra.mxu0 %v849
  %v2619 = vpop.f32.mrf.mxu0
  %v2620 = vadd.f32 0.0, %v2619
  %v2621 = vpop.f32.mrf.mxu0
  %2622 = vmatprep.mubr.f32.mxu0 0.0
  %2623 = vmatmul.mubr.f32.gmra.mxu0 %v852
  %v2624 = vpop.f32.mrf.mxu0
  %v2625 = vadd.f32 0.0, %v2624
  %v2626 = vpop.f32.mrf.mxu0
  %2627 = vdwg.mxu0
  %s2628 = scalar_lea.vmem %s11, 48
  %v2629 = vld [vmem:[%s2628] sm:$0xff]
  %v2630 = vld [vmem:[%s2628 + $0x8] sm:$0xff]
  %v2632 = vsel %vm2194, %v2615, 0
  %v2635 = vsel %vm2194, %v2620, 0
  %v2638 = vsel %vm2194, %v2625, 0
  %2640 = vmatprep.subr.mxu0 0.0
  %2641 = vmatpush1.msra.mxu0 0.0
  %2642 = vmatprep.subr.mxu0 0.0
  %2643 = vmatpush1.msra.mxu0 0.0
  %2644 = vmatprep.subr.mxu0 0.0
  %2645 = vmatpush1.msra.mxu0 0.0
  %2646 = vmatprep.subr.mxu0 0.0
  %2647 = vmatpush1.msra.mxu0 0.0
  %2648 = vmatprep.subr.mxu0 0.0
  %2649 = vmatpush1.msra.mxu0 0.0
  %2650 = vmatprep.subr.mxu0 0.0
  %2651 = vmatpush1.msra.mxu0 0.0
  %2652 = vmatprep.subr.mxu0 0.0
  %2653 = vmatpush1.msra.mxu0 0.0
  %2654 = vmatprep.subr.mxu0 0.0
  %2655 = vmatpush1.msra.mxu0 0.0
  %2656 = vmatprep.subr.mxu0 0.0
  %2657 = vmatpush1.msra.mxu0 0.0
  %2658 = vmatprep.subr.mxu0 0.0
  %2659 = vmatpush1.msra.mxu0 0.0
  %2660 = vmatprep.subr.mxu0 0.0
  %2661 = vmatpush1.msra.mxu0 0.0
  %2662 = vmatprep.subr.mxu0 0.0
  %2663 = vmatpush1.msra.mxu0 0.0
  %2664 = vmatprep.subr.mxu0 0.0
  %2665 = vmatpush1.msra.mxu0 0.0
  %2666 = vmatprep.subr.mxu0 0.0
  %2667 = vmatpush1.msra.mxu0 0.0
  %2668 = vmatprep.subr.mxu0 0.0
  %2669 = vmatpush1.msra.mxu0 %v2630
  %2670 = vmatprep.subr.mxu0 0.0
  %2671 = vmatpush1.msra.mxu0 %v2629
  %2672 = vmatprep.subr.mxu0 0.0
  %2673 = vmatpush2.msra.mxu0 0.0
  %2674 = vmatprep.subr.mxu0 0.0
  %2675 = vmatpush2.msra.mxu0 0.0
  %2676 = vmatprep.subr.mxu0 0.0
  %2677 = vmatpush2.msra.mxu0 0.0
  %2678 = vmatprep.subr.mxu0 0.0
  %2679 = vmatpush2.msra.mxu0 0.0
  %2680 = vmatprep.subr.mxu0 0.0
  %2681 = vmatpush2.msra.mxu0 0.0
  %2682 = vmatprep.subr.mxu0 0.0
  %2683 = vmatpush2.msra.mxu0 0.0
  %2684 = vmatprep.subr.mxu0 0.0
  %2685 = vmatpush2.msra.mxu0 0.0
  %2686 = vmatprep.subr.mxu0 0.0
  %2687 = vmatpush2.msra.mxu0 0.0
  %2688 = vmatprep.subr.mxu0 0.0
  %2689 = vmatpush2.msra.mxu0 0.0
  %2690 = vmatprep.subr.mxu0 0.0
  %2691 = vmatpush2.msra.mxu0 0.0
  %2692 = vmatprep.subr.mxu0 0.0
  %2693 = vmatpush2.msra.mxu0 0.0
  %2694 = vmatprep.subr.mxu0 0.0
  %2695 = vmatpush2.msra.mxu0 0.0
  %2696 = vmatprep.subr.mxu0 0.0
  %2697 = vmatpush2.msra.mxu0 0.0
  %2698 = vmatprep.subr.mxu0 0.0
  %2699 = vmatpush2.msra.mxu0 0.0
  %2700 = vmatprep.subr.mxu0 0.0
  %2701 = vmatpush2.msra.mxu0 0.0
  %2702 = vmatprep.subr.mxu0 0.0
  %2703 = vmatpush2.msra.mxu0 0.0
  %2704 = vmatprep.mubr.f32.mxu0 0.0
  %2705 = vmatmul.mubr.f32.gmra.mxu0 %v2632
  %v2706 = vpop.f32.mrf.mxu0
  %v2707 = vadd.f32 0.0, %v2706
  %v2708 = vpop.f32.mrf.mxu0
  %2709 = vmatprep.mubr.f32.mxu0 0.0
  %2710 = vmatmul.mubr.f32.gmra.mxu0 %v2635
  %v2711 = vpop.f32.mrf.mxu0
  %v2712 = vadd.f32 0.0, %v2711
  %v2713 = vpop.f32.mrf.mxu0
  %2714 = vmatprep.mubr.f32.mxu0 0.0
  %2715 = vmatmul.mubr.f32.gmra.mxu0 %v2638
  %v2716 = vpop.f32.mrf.mxu0
  %v2717 = vadd.f32 0.0, %v2716
  %v2718 = vpop.f32.mrf.mxu0
  %2719 = vdwg.mxu0
  %v2720 = vadd.f32 %v2545, %v2707
  %v2721 = vadd.f32 %v2546, %v2712
  %v2722 = vadd.f32 %v2547, %v2717
  %2723 = vmatprep.subr.mxu0 0.0
  %2724 = vmatpush1.msra.mxu0 0.0
  %2725 = vmatprep.subr.mxu0 0.0
  %2726 = vmatpush1.msra.mxu0 0.0
  %2727 = vmatprep.subr.mxu0 0.0
  %2728 = vmatpush1.msra.mxu0 0.0
  %2729 = vmatprep.subr.mxu0 0.0
  %2730 = vmatpush1.msra.mxu0 0.0
  %2731 = vmatprep.subr.mxu0 0.0
  %2732 = vmatpush1.msra.mxu0 0.0
  %2733 = vmatprep.subr.mxu0 0.0
  %2734 = vmatpush1.msra.mxu0 0.0
  %2735 = vmatprep.subr.mxu0 0.0
  %2736 = vmatpush1.msra.mxu0 0.0
  %2737 = vmatprep.subr.mxu0 0.0
  %2738 = vmatpush1.msra.mxu0 0.0
  %2739 = vmatprep.subr.mxu0 0.0
  %2740 = vmatpush1.msra.mxu0 0.0
  %2741 = vmatprep.subr.mxu0 0.0
  %2742 = vmatpush1.msra.mxu0 0.0
  %2743 = vmatprep.subr.mxu0 0.0
  %2744 = vmatpush1.msra.mxu0 0.0
  %2745 = vmatprep.subr.mxu0 0.0
  %2746 = vmatpush1.msra.mxu0 0.0
  %2747 = vmatprep.subr.mxu0 0.0
  %2748 = vmatpush1.msra.mxu0 0.0
  %2749 = vmatprep.subr.mxu0 0.0
  %2750 = vmatpush1.msra.mxu0 %v2027
  %2751 = vmatprep.subr.mxu0 0.0
  %2752 = vmatpush1.msra.mxu0 %v2024
  %2753 = vmatprep.subr.mxu0 0.0
  %2754 = vmatpush1.msra.mxu0 %v2023
  %2755 = vmatprep.subr.mxu0 0.0
  %2756 = vmatpush2.msra.mxu0 0.0
  %2757 = vmatprep.subr.mxu0 0.0
  %2758 = vmatpush2.msra.mxu0 0.0
  %2759 = vmatprep.subr.mxu0 0.0
  %2760 = vmatpush2.msra.mxu0 0.0
  %2761 = vmatprep.subr.mxu0 0.0
  %2762 = vmatpush2.msra.mxu0 0.0
  %2763 = vmatprep.subr.mxu0 0.0
  %2764 = vmatpush2.msra.mxu0 0.0
  %2765 = vmatprep.subr.mxu0 0.0
  %2766 = vmatpush2.msra.mxu0 0.0
  %2767 = vmatprep.subr.mxu0 0.0
  %2768 = vmatpush2.msra.mxu0 0.0
  %2769 = vmatprep.subr.mxu0 0.0
  %2770 = vmatpush2.msra.mxu0 0.0
  %2771 = vmatprep.subr.mxu0 0.0
  %2772 = vmatpush2.msra.mxu0 0.0
  %2773 = vmatprep.subr.mxu0 0.0
  %2774 = vmatpush2.msra.mxu0 0.0
  %2775 = vmatprep.subr.mxu0 0.0
  %2776 = vmatpush2.msra.mxu0 0.0
  %2777 = vmatprep.subr.mxu0 0.0
  %2778 = vmatpush2.msra.mxu0 0.0
  %2779 = vmatprep.subr.mxu0 0.0
  %2780 = vmatpush2.msra.mxu0 0.0
  %2781 = vmatprep.subr.mxu0 0.0
  %2782 = vmatpush2.msra.mxu0 0.0
  %2783 = vmatprep.subr.mxu0 0.0
  %2784 = vmatpush2.msra.mxu0 0.0
  %2785 = vmatprep.subr.mxu0 0.0
  %2786 = vmatpush2.msra.mxu0 0.0
  %2787 = vmatprep.mubr.f32.mxu0 0.0
  %2788 = vmatmul.mubr.f32.gmra.mxu0 %v1038
  %v2789 = vpop.f32.mrf.mxu0
  %v2790 = vadd.f32 0.0, %v2789
  %v2791 = vpop.f32.mrf.mxu0
  %2792 = vmatprep.mubr.f32.mxu0 0.0
  %2793 = vmatmul.mubr.f32.gmra.mxu0 %v1041
  %v2794 = vpop.f32.mrf.mxu0
  %v2795 = vadd.f32 0.0, %v2794
  %v2796 = vpop.f32.mrf.mxu0
  %2797 = vmatprep.mubr.f32.mxu0 0.0
  %2798 = vmatmul.mubr.f32.gmra.mxu0 %v1044
  %v2799 = vpop.f32.mrf.mxu0
  %v2800 = vadd.f32 0.0, %v2799
  %v2801 = vpop.f32.mrf.mxu0
  %2802 = vdwg.mxu0
  %s2803 = scalar_lea.vmem %s11, 64
  %v2804 = vld [vmem:[%s2803] sm:$0xff]
  %v2805 = vld [vmem:[%s2803 + $0x8] sm:$0xff]
  %v2807 = vsel %vm2194, %v2790, 0
  %v2810 = vsel %vm2194, %v2795, 0
  %v2813 = vsel %vm2194, %v2800, 0
  %2815 = vmatprep.subr.mxu0 0.0
  %2816 = vmatpush1.msra.mxu0 0.0
  %2817 = vmatprep.subr.mxu0 0.0
  %2818 = vmatpush1.msra.mxu0 0.0
  %2819 = vmatprep.subr.mxu0 0.0
  %2820 = vmatpush1.msra.mxu0 0.0
  %2821 = vmatprep.subr.mxu0 0.0
  %2822 = vmatpush1.msra.mxu0 0.0
  %2823 = vmatprep.subr.mxu0 0.0
  %2824 = vmatpush1.msra.mxu0 0.0
  %2825 = vmatprep.subr.mxu0 0.0
  %2826 = vmatpush1.msra.mxu0 0.0
  %2827 = vmatprep.subr.mxu0 0.0
  %2828 = vmatpush1.msra.mxu0 0.0
  %2829 = vmatprep.subr.mxu0 0.0
  %2830 = vmatpush1.msra.mxu0 0.0
  %2831 = vmatprep.subr.mxu0 0.0
  %2832 = vmatpush1.msra.mxu0 0.0
  %2833 = vmatprep.subr.mxu0 0.0
  %2834 = vmatpush1.msra.mxu0 0.0
  %2835 = vmatprep.subr.mxu0 0.0
  %2836 = vmatpush1.msra.mxu0 0.0
  %2837 = vmatprep.subr.mxu0 0.0
  %2838 = vmatpush1.msra.mxu0 0.0
  %2839 = vmatprep.subr.mxu0 0.0
  %2840 = vmatpush1.msra.mxu0 0.0
  %2841 = vmatprep.subr.mxu0 0.0
  %2842 = vmatpush1.msra.mxu0 0.0
  %2843 = vmatprep.subr.mxu0 0.0
  %2844 = vmatpush1.msra.mxu0 %v2805
  %2845 = vmatprep.subr.mxu0 0.0
  %2846 = vmatpush1.msra.mxu0 %v2804
  %2847 = vmatprep.subr.mxu0 0.0
  %2848 = vmatpush2.msra.mxu0 0.0
  %2849 = vmatprep.subr.mxu0 0.0
  %2850 = vmatpush2.msra.mxu0 0.0
  %2851 = vmatprep.subr.mxu0 0.0
  %2852 = vmatpush2.msra.mxu0 0.0
  %2853 = vmatprep.subr.mxu0 0.0
  %2854 = vmatpush2.msra.mxu0 0.0
  %2855 = vmatprep.subr.mxu0 0.0
  %2856 = vmatpush2.msra.mxu0 0.0
  %2857 = vmatprep.subr.mxu0 0.0
  %2858 = vmatpush2.msra.mxu0 0.0
  %2859 = vmatprep.subr.mxu0 0.0
  %2860 = vmatpush2.msra.mxu0 0.0
  %2861 = vmatprep.subr.mxu0 0.0
  %2862 = vmatpush2.msra.mxu0 0.0
  %2863 = vmatprep.subr.mxu0 0.0
  %2864 = vmatpush2.msra.mxu0 0.0
  %2865 = vmatprep.subr.mxu0 0.0
  %2866 = vmatpush2.msra.mxu0 0.0
  %2867 = vmatprep.subr.mxu0 0.0
  %2868 = vmatpush2.msra.mxu0 0.0
  %2869 = vmatprep.subr.mxu0 0.0
  %2870 = vmatpush2.msra.mxu0 0.0
  %2871 = vmatprep.subr.mxu0 0.0
  %2872 = vmatpush2.msra.mxu0 0.0
  %2873 = vmatprep.subr.mxu0 0.0
  %2874 = vmatpush2.msra.mxu0 0.0
  %2875 = vmatprep.subr.mxu0 0.0
  %2876 = vmatpush2.msra.mxu0 0.0
  %2877 = vmatprep.subr.mxu0 0.0
  %2878 = vmatpush2.msra.mxu0 0.0
  %2879 = vmatprep.mubr.f32.mxu0 0.0
  %2880 = vmatmul.mubr.f32.gmra.mxu0 %v2807
  %v2881 = vpop.f32.mrf.mxu0
  %v2882 = vadd.f32 0.0, %v2881
  %v2883 = vpop.f32.mrf.mxu0
  %2884 = vmatprep.mubr.f32.mxu0 0.0
  %2885 = vmatmul.mubr.f32.gmra.mxu0 %v2810
  %v2886 = vpop.f32.mrf.mxu0
  %v2887 = vadd.f32 0.0, %v2886
  %v2888 = vpop.f32.mrf.mxu0
  %2889 = vmatprep.mubr.f32.mxu0 0.0
  %2890 = vmatmul.mubr.f32.gmra.mxu0 %v2813
  %v2891 = vpop.f32.mrf.mxu0
  %v2892 = vadd.f32 0.0, %v2891
  %v2893 = vpop.f32.mrf.mxu0
  %2894 = vdwg.mxu0
  %v2895 = vadd.f32 %v2720, %v2882
  %v2896 = vadd.f32 %v2721, %v2887
  %v2897 = vadd.f32 %v2722, %v2892
  %2898 = vmatprep.subr.mxu0 0.0
  %2899 = vmatpush1.msra.mxu0 0.0
  %2900 = vmatprep.subr.mxu0 0.0
  %2901 = vmatpush1.msra.mxu0 0.0
  %2902 = vmatprep.subr.mxu0 0.0
  %2903 = vmatpush1.msra.mxu0 0.0
  %2904 = vmatprep.subr.mxu0 0.0
  %2905 = vmatpush1.msra.mxu0 0.0
  %2906 = vmatprep.subr.mxu0 0.0
  %2907 = vmatpush1.msra.mxu0 0.0
  %2908 = vmatprep.subr.mxu0 0.0
  %2909 = vmatpush1.msra.mxu0 0.0
  %2910 = vmatprep.subr.mxu0 0.0
  %2911 = vmatpush1.msra.mxu0 0.0
  %2912 = vmatprep.subr.mxu0 0.0
  %2913 = vmatpush1.msra.mxu0 0.0
  %2914 = vmatprep.subr.mxu0 0.0
  %2915 = vmatpush1.msra.mxu0 0.0
  %2916 = vmatprep.subr.mxu0 0.0
  %2917 = vmatpush1.msra.mxu0 0.0
  %2918 = vmatprep.subr.mxu0 0.0
  %2919 = vmatpush1.msra.mxu0 0.0
  %2920 = vmatprep.subr.mxu0 0.0
  %2921 = vmatpush1.msra.mxu0 0.0
  %2922 = vmatprep.subr.mxu0 0.0
  %2923 = vmatpush1.msra.mxu0 0.0
  %2924 = vmatprep.subr.mxu0 0.0
  %2925 = vmatpush1.msra.mxu0 %v2027
  %2926 = vmatprep.subr.mxu0 0.0
  %2927 = vmatpush1.msra.mxu0 %v2024
  %2928 = vmatprep.subr.mxu0 0.0
  %2929 = vmatpush1.msra.mxu0 %v2023
  %2930 = vmatprep.subr.mxu0 0.0
  %2931 = vmatpush2.msra.mxu0 0.0
  %2932 = vmatprep.subr.mxu0 0.0
  %2933 = vmatpush2.msra.mxu0 0.0
  %2934 = vmatprep.subr.mxu0 0.0
  %2935 = vmatpush2.msra.mxu0 0.0
  %2936 = vmatprep.subr.mxu0 0.0
  %2937 = vmatpush2.msra.mxu0 0.0
  %2938 = vmatprep.subr.mxu0 0.0
  %2939 = vmatpush2.msra.mxu0 0.0
  %2940 = vmatprep.subr.mxu0 0.0
  %2941 = vmatpush2.msra.mxu0 0.0
  %2942 = vmatprep.subr.mxu0 0.0
  %2943 = vmatpush2.msra.mxu0 0.0
  %2944 = vmatprep.subr.mxu0 0.0
  %2945 = vmatpush2.msra.mxu0 0.0
  %2946 = vmatprep.subr.mxu0 0.0
  %2947 = vmatpush2.msra.mxu0 0.0
  %2948 = vmatprep.subr.mxu0 0.0
  %2949 = vmatpush2.msra.mxu0 0.0
  %2950 = vmatprep.subr.mxu0 0.0
  %2951 = vmatpush2.msra.mxu0 0.0
  %2952 = vmatprep.subr.mxu0 0.0
  %2953 = vmatpush2.msra.mxu0 0.0
  %2954 = vmatprep.subr.mxu0 0.0
  %2955 = vmatpush2.msra.mxu0 0.0
  %2956 = vmatprep.subr.mxu0 0.0
  %2957 = vmatpush2.msra.mxu0 0.0
  %2958 = vmatprep.subr.mxu0 0.0
  %2959 = vmatpush2.msra.mxu0 0.0
  %2960 = vmatprep.subr.mxu0 0.0
  %2961 = vmatpush2.msra.mxu0 0.0
  %2962 = vmatprep.mubr.f32.mxu0 0.0
  %2963 = vmatmul.mubr.f32.gmra.mxu0 %v1230
  %v2964 = vpop.f32.mrf.mxu0
  %v2965 = vadd.f32 0.0, %v2964
  %v2966 = vpop.f32.mrf.mxu0
  %2967 = vmatprep.mubr.f32.mxu0 0.0
  %2968 = vmatmul.mubr.f32.gmra.mxu0 %v1233
  %v2969 = vpop.f32.mrf.mxu0
  %v2970 = vadd.f32 0.0, %v2969
  %v2971 = vpop.f32.mrf.mxu0
  %2972 = vmatprep.mubr.f32.mxu0 0.0
  %2973 = vmatmul.mubr.f32.gmra.mxu0 %v1236
  %v2974 = vpop.f32.mrf.mxu0
  %v2975 = vadd.f32 0.0, %v2974
  %v2976 = vpop.f32.mrf.mxu0
  %2977 = vdwg.mxu0
  %s2978 = scalar_lea.vmem %s11, 80
  %v2979 = vld [vmem:[%s2978] sm:$0xff]
  %v2980 = vld [vmem:[%s2978 + $0x8] sm:$0xff]
  %v2982 = vsel %vm2194, %v2965, 0
  %v2985 = vsel %vm2194, %v2970, 0
  %v2988 = vsel %vm2194, %v2975, 0
  %2990 = vmatprep.subr.mxu0 0.0
  %2991 = vmatpush1.msra.mxu0 0.0
  %2992 = vmatprep.subr.mxu0 0.0
  %2993 = vmatpush1.msra.mxu0 0.0
  %2994 = vmatprep.subr.mxu0 0.0
  %2995 = vmatpush1.msra.mxu0 0.0
  %2996 = vmatprep.subr.mxu0 0.0
  %2997 = vmatpush1.msra.mxu0 0.0
  %2998 = vmatprep.subr.mxu0 0.0
  %2999 = vmatpush1.msra.mxu0 0.0
  %3000 = vmatprep.subr.mxu0 0.0
  %3001 = vmatpush1.msra.mxu0 0.0
  %3002 = vmatprep.subr.mxu0 0.0
  %3003 = vmatpush1.msra.mxu0 0.0
  %3004 = vmatprep.subr.mxu0 0.0
  %3005 = vmatpush1.msra.mxu0 0.0
  %3006 = vmatprep.subr.mxu0 0.0
  %3007 = vmatpush1.msra.mxu0 0.0
  %3008 = vmatprep.subr.mxu0 0.0
  %3009 = vmatpush1.msra.mxu0 0.0
  %3010 = vmatprep.subr.mxu0 0.0
  %3011 = vmatpush1.msra.mxu0 0.0
  %3012 = vmatprep.subr.mxu0 0.0
  %3013 = vmatpush1.msra.mxu0 0.0
  %3014 = vmatprep.subr.mxu0 0.0
  %3015 = vmatpush1.msra.mxu0 0.0
  %3016 = vmatprep.subr.mxu0 0.0
  %3017 = vmatpush1.msra.mxu0 0.0
  %3018 = vmatprep.subr.mxu0 0.0
  %3019 = vmatpush1.msra.mxu0 %v2980
  %3020 = vmatprep.subr.mxu0 0.0
  %3021 = vmatpush1.msra.mxu0 %v2979
  %3022 = vmatprep.subr.mxu0 0.0
  %3023 = vmatpush2.msra.mxu0 0.0
  %3024 = vmatprep.subr.mxu0 0.0
  %3025 = vmatpush2.msra.mxu0 0.0
  %3026 = vmatprep.subr.mxu0 0.0
  %3027 = vmatpush2.msra.mxu0 0.0
  %3028 = vmatprep.subr.mxu0 0.0
  %3029 = vmatpush2.msra.mxu0 0.0
  %3030 = vmatprep.subr.mxu0 0.0
  %3031 = vmatpush2.msra.mxu0 0.0
  %3032 = vmatprep.subr.mxu0 0.0
  %3033 = vmatpush2.msra.mxu0 0.0
  %3034 = vmatprep.subr.mxu0 0.0
  %3035 = vmatpush2.msra.mxu0 0.0
  %3036 = vmatprep.subr.mxu0 0.0
  %3037 = vmatpush2.msra.mxu0 0.0
  %3038 = vmatprep.subr.mxu0 0.0
  %3039 = vmatpush2.msra.mxu0 0.0
  %3040 = vmatprep.subr.mxu0 0.0
  %3041 = vmatpush2.msra.mxu0 0.0
  %3042 = vmatprep.subr.mxu0 0.0
  %3043 = vmatpush2.msra.mxu0 0.0
  %3044 = vmatprep.subr.mxu0 0.0
  %3045 = vmatpush2.msra.mxu0 0.0
  %3046 = vmatprep.subr.mxu0 0.0
  %3047 = vmatpush2.msra.mxu0 0.0
  %3048 = vmatprep.subr.mxu0 0.0
  %3049 = vmatpush2.msra.mxu0 0.0
  %3050 = vmatprep.subr.mxu0 0.0
  %3051 = vmatpush2.msra.mxu0 0.0
  %3052 = vmatprep.subr.mxu0 0.0
  %3053 = vmatpush2.msra.mxu0 0.0
  %3054 = vmatprep.mubr.f32.mxu0 0.0
  %3055 = vmatmul.mubr.f32.gmra.mxu0 %v2982
  %v3056 = vpop.f32.mrf.mxu0
  %v3057 = vadd.f32 0.0, %v3056
  %v3058 = vpop.f32.mrf.mxu0
  %3059 = vmatprep.mubr.f32.mxu0 0.0
  %3060 = vmatmul.mubr.f32.gmra.mxu0 %v2985
  %v3061 = vpop.f32.mrf.mxu0
  %v3062 = vadd.f32 0.0, %v3061
  %v3063 = vpop.f32.mrf.mxu0
  %3064 = vmatprep.mubr.f32.mxu0 0.0
  %3065 = vmatmul.mubr.f32.gmra.mxu0 %v2988
  %v3066 = vpop.f32.mrf.mxu0
  %v3067 = vadd.f32 0.0, %v3066
  %v3068 = vpop.f32.mrf.mxu0
  %3069 = vdwg.mxu0
  %v3070 = vadd.f32 %v2895, %v3057
  %v3071 = vadd.f32 %v2896, %v3062
  %v3072 = vadd.f32 %v2897, %v3067
  %3073 = vmatprep.subr.mxu0 0.0
  %3074 = vmatpush1.msra.mxu0 0.0
  %3075 = vmatprep.subr.mxu0 0.0
  %3076 = vmatpush1.msra.mxu0 0.0
  %3077 = vmatprep.subr.mxu0 0.0
  %3078 = vmatpush1.msra.mxu0 0.0
  %3079 = vmatprep.subr.mxu0 0.0
  %3080 = vmatpush1.msra.mxu0 0.0
  %3081 = vmatprep.subr.mxu0 0.0
  %3082 = vmatpush1.msra.mxu0 0.0
  %3083 = vmatprep.subr.mxu0 0.0
  %3084 = vmatpush1.msra.mxu0 0.0
  %3085 = vmatprep.subr.mxu0 0.0
  %3086 = vmatpush1.msra.mxu0 0.0
  %3087 = vmatprep.subr.mxu0 0.0
  %3088 = vmatpush1.msra.mxu0 0.0
  %3089 = vmatprep.subr.mxu0 0.0
  %3090 = vmatpush1.msra.mxu0 0.0
  %3091 = vmatprep.subr.mxu0 0.0
  %3092 = vmatpush1.msra.mxu0 0.0
  %3093 = vmatprep.subr.mxu0 0.0
  %3094 = vmatpush1.msra.mxu0 0.0
  %3095 = vmatprep.subr.mxu0 0.0
  %3096 = vmatpush1.msra.mxu0 0.0
  %3097 = vmatprep.subr.mxu0 0.0
  %3098 = vmatpush1.msra.mxu0 0.0
  %3099 = vmatprep.subr.mxu0 0.0
  %3100 = vmatpush1.msra.mxu0 %v2027
  %3101 = vmatprep.subr.mxu0 0.0
  %3102 = vmatpush1.msra.mxu0 %v2024
  %3103 = vmatprep.subr.mxu0 0.0
  %3104 = vmatpush1.msra.mxu0 %v2023
  %3105 = vmatprep.subr.mxu0 0.0
  %3106 = vmatpush2.msra.mxu0 0.0
  %3107 = vmatprep.subr.mxu0 0.0
  %3108 = vmatpush2.msra.mxu0 0.0
  %3109 = vmatprep.subr.mxu0 0.0
  %3110 = vmatpush2.msra.mxu0 0.0
  %3111 = vmatprep.subr.mxu0 0.0
  %3112 = vmatpush2.msra.mxu0 0.0
  %3113 = vmatprep.subr.mxu0 0.0
  %3114 = vmatpush2.msra.mxu0 0.0
  %3115 = vmatprep.subr.mxu0 0.0
  %3116 = vmatpush2.msra.mxu0 0.0
  %3117 = vmatprep.subr.mxu0 0.0
  %3118 = vmatpush2.msra.mxu0 0.0
  %3119 = vmatprep.subr.mxu0 0.0
  %3120 = vmatpush2.msra.mxu0 0.0
  %3121 = vmatprep.subr.mxu0 0.0
  %3122 = vmatpush2.msra.mxu0 0.0
  %3123 = vmatprep.subr.mxu0 0.0
  %3124 = vmatpush2.msra.mxu0 0.0
  %3125 = vmatprep.subr.mxu0 0.0
  %3126 = vmatpush2.msra.mxu0 0.0
  %3127 = vmatprep.subr.mxu0 0.0
  %3128 = vmatpush2.msra.mxu0 0.0
  %3129 = vmatprep.subr.mxu0 0.0
  %3130 = vmatpush2.msra.mxu0 0.0
  %3131 = vmatprep.subr.mxu0 0.0
  %3132 = vmatpush2.msra.mxu0 0.0
  %3133 = vmatprep.subr.mxu0 0.0
  %3134 = vmatpush2.msra.mxu0 0.0
  %3135 = vmatprep.subr.mxu0 0.0
  %3136 = vmatpush2.msra.mxu0 0.0
  %3137 = vmatprep.mubr.f32.mxu0 0.0
  %3138 = vmatmul.mubr.f32.gmra.mxu0 %v1422
  %v3139 = vpop.f32.mrf.mxu0
  %v3140 = vadd.f32 0.0, %v3139
  %v3141 = vpop.f32.mrf.mxu0
  %3142 = vmatprep.mubr.f32.mxu0 0.0
  %3143 = vmatmul.mubr.f32.gmra.mxu0 %v1425
  %v3144 = vpop.f32.mrf.mxu0
  %v3145 = vadd.f32 0.0, %v3144
  %v3146 = vpop.f32.mrf.mxu0
  %3147 = vmatprep.mubr.f32.mxu0 0.0
  %3148 = vmatmul.mubr.f32.gmra.mxu0 %v1428
  %v3149 = vpop.f32.mrf.mxu0
  %v3150 = vadd.f32 0.0, %v3149
  %v3151 = vpop.f32.mrf.mxu0
  %3152 = vdwg.mxu0
  %s3153 = scalar_lea.vmem %s11, 96
  %v3154 = vld [vmem:[%s3153] sm:$0xff]
  %v3155 = vld [vmem:[%s3153 + $0x8] sm:$0xff]
  %v3157 = vsel %vm2194, %v3140, 0
  %v3160 = vsel %vm2194, %v3145, 0
  %v3163 = vsel %vm2194, %v3150, 0
  %3165 = vmatprep.subr.mxu0 0.0
  %3166 = vmatpush1.msra.mxu0 0.0
  %3167 = vmatprep.subr.mxu0 0.0
  %3168 = vmatpush1.msra.mxu0 0.0
  %3169 = vmatprep.subr.mxu0 0.0
  %3170 = vmatpush1.msra.mxu0 0.0
  %3171 = vmatprep.subr.mxu0 0.0
  %3172 = vmatpush1.msra.mxu0 0.0
  %3173 = vmatprep.subr.mxu0 0.0
  %3174 = vmatpush1.msra.mxu0 0.0
  %3175 = vmatprep.subr.mxu0 0.0
  %3176 = vmatpush1.msra.mxu0 0.0
  %3177 = vmatprep.subr.mxu0 0.0
  %3178 = vmatpush1.msra.mxu0 0.0
  %3179 = vmatprep.subr.mxu0 0.0
  %3180 = vmatpush1.msra.mxu0 0.0
  %3181 = vmatprep.subr.mxu0 0.0
  %3182 = vmatpush1.msra.mxu0 0.0
  %3183 = vmatprep.subr.mxu0 0.0
  %3184 = vmatpush1.msra.mxu0 0.0
  %3185 = vmatprep.subr.mxu0 0.0
  %3186 = vmatpush1.msra.mxu0 0.0
  %3187 = vmatprep.subr.mxu0 0.0
  %3188 = vmatpush1.msra.mxu0 0.0
  %3189 = vmatprep.subr.mxu0 0.0
  %3190 = vmatpush1.msra.mxu0 0.0
  %3191 = vmatprep.subr.mxu0 0.0
  %3192 = vmatpush1.msra.mxu0 0.0
  %3193 = vmatprep.subr.mxu0 0.0
  %3194 = vmatpush1.msra.mxu0 %v3155
  %3195 = vmatprep.subr.mxu0 0.0
  %3196 = vmatpush1.msra.mxu0 %v3154
  %3197 = vmatprep.subr.mxu0 0.0
  %3198 = vmatpush2.msra.mxu0 0.0
  %3199 = vmatprep.subr.mxu0 0.0
  %3200 = vmatpush2.msra.mxu0 0.0
  %3201 = vmatprep.subr.mxu0 0.0
  %3202 = vmatpush2.msra.mxu0 0.0
  %3203 = vmatprep.subr.mxu0 0.0
  %3204 = vmatpush2.msra.mxu0 0.0
  %3205 = vmatprep.subr.mxu0 0.0
  %3206 = vmatpush2.msra.mxu0 0.0
  %3207 = vmatprep.subr.mxu0 0.0
  %3208 = vmatpush2.msra.mxu0 0.0
  %3209 = vmatprep.subr.mxu0 0.0
  %3210 = vmatpush2.msra.mxu0 0.0
  %3211 = vmatprep.subr.mxu0 0.0
  %3212 = vmatpush2.msra.mxu0 0.0
  %3213 = vmatprep.subr.mxu0 0.0
  %3214 = vmatpush2.msra.mxu0 0.0
  %3215 = vmatprep.subr.mxu0 0.0
  %3216 = vmatpush2.msra.mxu0 0.0
  %3217 = vmatprep.subr.mxu0 0.0
  %3218 = vmatpush2.msra.mxu0 0.0
  %3219 = vmatprep.subr.mxu0 0.0
  %3220 = vmatpush2.msra.mxu0 0.0
  %3221 = vmatprep.subr.mxu0 0.0
  %3222 = vmatpush2.msra.mxu0 0.0
  %3223 = vmatprep.subr.mxu0 0.0
  %3224 = vmatpush2.msra.mxu0 0.0
  %3225 = vmatprep.subr.mxu0 0.0
  %3226 = vmatpush2.msra.mxu0 0.0
  %3227 = vmatprep.subr.mxu0 0.0
  %3228 = vmatpush2.msra.mxu0 0.0
  %3229 = vmatprep.mubr.f32.mxu0 0.0
  %3230 = vmatmul.mubr.f32.gmra.mxu0 %v3157
  %v3231 = vpop.f32.mrf.mxu0
  %v3232 = vadd.f32 0.0, %v3231
  %v3233 = vpop.f32.mrf.mxu0
  %3234 = vmatprep.mubr.f32.mxu0 0.0
  %3235 = vmatmul.mubr.f32.gmra.mxu0 %v3160
  %v3236 = vpop.f32.mrf.mxu0
  %v3237 = vadd.f32 0.0, %v3236
  %v3238 = vpop.f32.mrf.mxu0
  %3239 = vmatprep.mubr.f32.mxu0 0.0
  %3240 = vmatmul.mubr.f32.gmra.mxu0 %v3163
  %v3241 = vpop.f32.mrf.mxu0
  %v3242 = vadd.f32 0.0, %v3241
  %v3243 = vpop.f32.mrf.mxu0
  %3244 = vdwg.mxu0
  %v3245 = vadd.f32 %v3070, %v3232
  %v3246 = vadd.f32 %v3071, %v3237
  %v3247 = vadd.f32 %v3072, %v3242
  %3248 = vmatprep.subr.mxu0 0.0
  %3249 = vmatpush1.msra.mxu0 0.0
  %3250 = vmatprep.subr.mxu0 0.0
  %3251 = vmatpush1.msra.mxu0 0.0
  %3252 = vmatprep.subr.mxu0 0.0
  %3253 = vmatpush1.msra.mxu0 0.0
  %3254 = vmatprep.subr.mxu0 0.0
  %3255 = vmatpush1.msra.mxu0 0.0
  %3256 = vmatprep.subr.mxu0 0.0
  %3257 = vmatpush1.msra.mxu0 0.0
  %3258 = vmatprep.subr.mxu0 0.0
  %3259 = vmatpush1.msra.mxu0 0.0
  %3260 = vmatprep.subr.mxu0 0.0
  %3261 = vmatpush1.msra.mxu0 0.0
  %3262 = vmatprep.subr.mxu0 0.0
  %3263 = vmatpush1.msra.mxu0 0.0
  %3264 = vmatprep.subr.mxu0 0.0
  %3265 = vmatpush1.msra.mxu0 0.0
  %3266 = vmatprep.subr.mxu0 0.0
  %3267 = vmatpush1.msra.mxu0 0.0
  %3268 = vmatprep.subr.mxu0 0.0
  %3269 = vmatpush1.msra.mxu0 0.0
  %3270 = vmatprep.subr.mxu0 0.0
  %3271 = vmatpush1.msra.mxu0 0.0
  %3272 = vmatprep.subr.mxu0 0.0
  %3273 = vmatpush1.msra.mxu0 0.0
  %3274 = vmatprep.subr.mxu0 0.0
  %3275 = vmatpush1.msra.mxu0 %v2027
  %3276 = vmatprep.subr.mxu0 0.0
  %3277 = vmatpush1.msra.mxu0 %v2024
  %3278 = vmatprep.subr.mxu0 0.0
  %3279 = vmatpush1.msra.mxu0 %v2023
  %3280 = vmatprep.subr.mxu0 0.0
  %3281 = vmatpush2.msra.mxu0 0.0
  %3282 = vmatprep.subr.mxu0 0.0
  %3283 = vmatpush2.msra.mxu0 0.0
  %3284 = vmatprep.subr.mxu0 0.0
  %3285 = vmatpush2.msra.mxu0 0.0
  %3286 = vmatprep.subr.mxu0 0.0
  %3287 = vmatpush2.msra.mxu0 0.0
  %3288 = vmatprep.subr.mxu0 0.0
  %3289 = vmatpush2.msra.mxu0 0.0
  %3290 = vmatprep.subr.mxu0 0.0
  %3291 = vmatpush2.msra.mxu0 0.0
  %3292 = vmatprep.subr.mxu0 0.0
  %3293 = vmatpush2.msra.mxu0 0.0
  %3294 = vmatprep.subr.mxu0 0.0
  %3295 = vmatpush2.msra.mxu0 0.0
  %3296 = vmatprep.subr.mxu0 0.0
  %3297 = vmatpush2.msra.mxu0 0.0
  %3298 = vmatprep.subr.mxu0 0.0
  %3299 = vmatpush2.msra.mxu0 0.0
  %3300 = vmatprep.subr.mxu0 0.0
  %3301 = vmatpush2.msra.mxu0 0.0
  %3302 = vmatprep.subr.mxu0 0.0
  %3303 = vmatpush2.msra.mxu0 0.0
  %3304 = vmatprep.subr.mxu0 0.0
  %3305 = vmatpush2.msra.mxu0 0.0
  %3306 = vmatprep.subr.mxu0 0.0
  %3307 = vmatpush2.msra.mxu0 0.0
  %3308 = vmatprep.subr.mxu0 0.0
  %3309 = vmatpush2.msra.mxu0 0.0
  %3310 = vmatprep.subr.mxu0 0.0
  %3311 = vmatpush2.msra.mxu0 0.0
  %3312 = vmatprep.mubr.f32.mxu0 0.0
  %3313 = vmatmul.mubr.f32.gmra.mxu0 %v1614
  %v3314 = vpop.f32.mrf.mxu0
  %v3315 = vadd.f32 0.0, %v3314
  %v3316 = vpop.f32.mrf.mxu0
  %3317 = vmatprep.mubr.f32.mxu0 0.0
  %3318 = vmatmul.mubr.f32.gmra.mxu0 %v1617
  %v3319 = vpop.f32.mrf.mxu0
  %v3320 = vadd.f32 0.0, %v3319
  %v3321 = vpop.f32.mrf.mxu0
  %3322 = vmatprep.mubr.f32.mxu0 0.0
  %3323 = vmatmul.mubr.f32.gmra.mxu0 %v1620
  %v3324 = vpop.f32.mrf.mxu0
  %v3325 = vadd.f32 0.0, %v3324
  %v3326 = vpop.f32.mrf.mxu0
  %3327 = vdwg.mxu0
  %s3328 = scalar_lea.vmem %s11, 112
  %v3329 = vld [vmem:[%s3328] sm:$0xff]
  %v3330 = vld [vmem:[%s3328 + $0x8] sm:$0xff]
  %v3332 = vsel %vm2194, %v3315, 0
  %v3335 = vsel %vm2194, %v3320, 0
  %v3338 = vsel %vm2194, %v3325, 0
  %3340 = vmatprep.subr.mxu0 0.0
  %3341 = vmatpush1.msra.mxu0 0.0
  %3342 = vmatprep.subr.mxu0 0.0
  %3343 = vmatpush1.msra.mxu0 0.0
  %3344 = vmatprep.subr.mxu0 0.0
  %3345 = vmatpush1.msra.mxu0 0.0
  %3346 = vmatprep.subr.mxu0 0.0
  %3347 = vmatpush1.msra.mxu0 0.0
  %3348 = vmatprep.subr.mxu0 0.0
  %3349 = vmatpush1.msra.mxu0 0.0
  %3350 = vmatprep.subr.mxu0 0.0
  %3351 = vmatpush1.msra.mxu0 0.0
  %3352 = vmatprep.subr.mxu0 0.0
  %3353 = vmatpush1.msra.mxu0 0.0
  %3354 = vmatprep.subr.mxu0 0.0
  %3355 = vmatpush1.msra.mxu0 0.0
  %3356 = vmatprep.subr.mxu0 0.0
  %3357 = vmatpush1.msra.mxu0 0.0
  %3358 = vmatprep.subr.mxu0 0.0
  %3359 = vmatpush1.msra.mxu0 0.0
  %3360 = vmatprep.subr.mxu0 0.0
  %3361 = vmatpush1.msra.mxu0 0.0
  %3362 = vmatprep.subr.mxu0 0.0
  %3363 = vmatpush1.msra.mxu0 0.0
  %3364 = vmatprep.subr.mxu0 0.0
  %3365 = vmatpush1.msra.mxu0 0.0
  %3366 = vmatprep.subr.mxu0 0.0
  %3367 = vmatpush1.msra.mxu0 0.0
  %3368 = vmatprep.subr.mxu0 0.0
  %3369 = vmatpush1.msra.mxu0 %v3330
  %3370 = vmatprep.subr.mxu0 0.0
  %3371 = vmatpush1.msra.mxu0 %v3329
  %3372 = vmatprep.subr.mxu0 0.0
  %3373 = vmatpush2.msra.mxu0 0.0
  %3374 = vmatprep.subr.mxu0 0.0
  %3375 = vmatpush2.msra.mxu0 0.0
  %3376 = vmatprep.subr.mxu0 0.0
  %3377 = vmatpush2.msra.mxu0 0.0
  %3378 = vmatprep.subr.mxu0 0.0
  %3379 = vmatpush2.msra.mxu0 0.0
  %3380 = vmatprep.subr.mxu0 0.0
  %3381 = vmatpush2.msra.mxu0 0.0
  %3382 = vmatprep.subr.mxu0 0.0
  %3383 = vmatpush2.msra.mxu0 0.0
  %3384 = vmatprep.subr.mxu0 0.0
  %3385 = vmatpush2.msra.mxu0 0.0
  %3386 = vmatprep.subr.mxu0 0.0
  %3387 = vmatpush2.msra.mxu0 0.0
  %3388 = vmatprep.subr.mxu0 0.0
  %3389 = vmatpush2.msra.mxu0 0.0
  %3390 = vmatprep.subr.mxu0 0.0
  %3391 = vmatpush2.msra.mxu0 0.0
  %3392 = vmatprep.subr.mxu0 0.0
  %3393 = vmatpush2.msra.mxu0 0.0
  %3394 = vmatprep.subr.mxu0 0.0
  %3395 = vmatpush2.msra.mxu0 0.0
  %3396 = vmatprep.subr.mxu0 0.0
  %3397 = vmatpush2.msra.mxu0 0.0
  %3398 = vmatprep.subr.mxu0 0.0
  %3399 = vmatpush2.msra.mxu0 0.0
  %3400 = vmatprep.subr.mxu0 0.0
  %3401 = vmatpush2.msra.mxu0 0.0
  %3402 = vmatprep.subr.mxu0 0.0
  %3403 = vmatpush2.msra.mxu0 0.0
  %3404 = vmatprep.mubr.f32.mxu0 0.0
  %3405 = vmatmul.mubr.f32.gmra.mxu0 %v3332
  %v3406 = vpop.f32.mrf.mxu0
  %v3407 = vadd.f32 0.0, %v3406
  %v3408 = vpop.f32.mrf.mxu0
  %3409 = vmatprep.mubr.f32.mxu0 0.0
  %3410 = vmatmul.mubr.f32.gmra.mxu0 %v3335
  %v3411 = vpop.f32.mrf.mxu0
  %v3412 = vadd.f32 0.0, %v3411
  %v3413 = vpop.f32.mrf.mxu0
  %3414 = vmatprep.mubr.f32.mxu0 0.0
  %3415 = vmatmul.mubr.f32.gmra.mxu0 %v3338
  %v3416 = vpop.f32.mrf.mxu0
  %v3417 = vadd.f32 0.0, %v3416
  %v3418 = vpop.f32.mrf.mxu0
  %3419 = vdwg.mxu0
  %v3420 = vadd.f32 %v3245, %v3407
  %v3421 = vadd.f32 %v3246, %v3412
  %v3422 = vadd.f32 %v3247, %v3417
  %3423 = vmatprep.subr.mxu0 0.0
  %3424 = vmatpush1.msra.mxu0 0.0
  %3425 = vmatprep.subr.mxu0 0.0
  %3426 = vmatpush1.msra.mxu0 0.0
  %3427 = vmatprep.subr.mxu0 0.0
  %3428 = vmatpush1.msra.mxu0 0.0
  %3429 = vmatprep.subr.mxu0 0.0
  %3430 = vmatpush1.msra.mxu0 0.0
  %3431 = vmatprep.subr.mxu0 0.0
  %3432 = vmatpush1.msra.mxu0 0.0
  %3433 = vmatprep.subr.mxu0 0.0
  %3434 = vmatpush1.msra.mxu0 0.0
  %3435 = vmatprep.subr.mxu0 0.0
  %3436 = vmatpush1.msra.mxu0 0.0
  %3437 = vmatprep.subr.mxu0 0.0
  %3438 = vmatpush1.msra.mxu0 0.0
  %3439 = vmatprep.subr.mxu0 0.0
  %3440 = vmatpush1.msra.mxu0 0.0
  %3441 = vmatprep.subr.mxu0 0.0
  %3442 = vmatpush1.msra.mxu0 0.0
  %3443 = vmatprep.subr.mxu0 0.0
  %3444 = vmatpush1.msra.mxu0 0.0
  %3445 = vmatprep.subr.mxu0 0.0
  %3446 = vmatpush1.msra.mxu0 0.0
  %3447 = vmatprep.subr.mxu0 0.0
  %3448 = vmatpush1.msra.mxu0 0.0
  %3449 = vmatprep.subr.mxu0 0.0
  %3450 = vmatpush1.msra.mxu0 %v2027
  %3451 = vmatprep.subr.mxu0 0.0
  %3452 = vmatpush1.msra.mxu0 %v2024
  %3453 = vmatprep.subr.mxu0 0.0
  %3454 = vmatpush1.msra.mxu0 %v2023
  %3455 = vmatprep.subr.mxu0 0.0
  %3456 = vmatpush2.msra.mxu0 0.0
  %3457 = vmatprep.subr.mxu0 0.0
  %3458 = vmatpush2.msra.mxu0 0.0
  %3459 = vmatprep.subr.mxu0 0.0
  %3460 = vmatpush2.msra.mxu0 0.0
  %3461 = vmatprep.subr.mxu0 0.0
  %3462 = vmatpush2.msra.mxu0 0.0
  %3463 = vmatprep.subr.mxu0 0.0
  %3464 = vmatpush2.msra.mxu0 0.0
  %3465 = vmatprep.subr.mxu0 0.0
  %3466 = vmatpush2.msra.mxu0 0.0
  %3467 = vmatprep.subr.mxu0 0.0
  %3468 = vmatpush2.msra.mxu0 0.0
  %3469 = vmatprep.subr.mxu0 0.0
  %3470 = vmatpush2.msra.mxu0 0.0
  %3471 = vmatprep.subr.mxu0 0.0
  %3472 = vmatpush2.msra.mxu0 0.0
  %3473 = vmatprep.subr.mxu0 0.0
  %3474 = vmatpush2.msra.mxu0 0.0
  %3475 = vmatprep.subr.mxu0 0.0
  %3476 = vmatpush2.msra.mxu0 0.0
  %3477 = vmatprep.subr.mxu0 0.0
  %3478 = vmatpush2.msra.mxu0 0.0
  %3479 = vmatprep.subr.mxu0 0.0
  %3480 = vmatpush2.msra.mxu0 0.0
  %3481 = vmatprep.subr.mxu0 0.0
  %3482 = vmatpush2.msra.mxu0 0.0
  %3483 = vmatprep.subr.mxu0 0.0
  %3484 = vmatpush2.msra.mxu0 0.0
  %3485 = vmatprep.subr.mxu0 0.0
  %3486 = vmatpush2.msra.mxu0 0.0
  %3487 = vmatprep.mubr.f32.mxu0 0.0
  %3488 = vmatmul.mubr.f32.gmra.mxu0 %v1806
  %v3489 = vpop.f32.mrf.mxu0
  %v3490 = vadd.f32 0.0, %v3489
  %v3491 = vpop.f32.mrf.mxu0
  %3492 = vmatprep.mubr.f32.mxu0 0.0
  %3493 = vmatmul.mubr.f32.gmra.mxu0 %v1809
  %v3494 = vpop.f32.mrf.mxu0
  %v3495 = vadd.f32 0.0, %v3494
  %v3496 = vpop.f32.mrf.mxu0
  %3497 = vmatprep.mubr.f32.mxu0 0.0
  %3498 = vmatmul.mubr.f32.gmra.mxu0 %v1812
  %v3499 = vpop.f32.mrf.mxu0
  %v3500 = vadd.f32 0.0, %v3499
  %v3501 = vpop.f32.mrf.mxu0
  %3502 = vdwg.mxu0
  %s3503 = scalar_lea.vmem %s11, 128
  %v3504 = vld [vmem:[%s3503] sm:$0xff]
  %v3505 = vld [vmem:[%s3503 + $0x8] sm:$0xff]
  %v3507 = vsel %vm2194, %v3490, 0
  %v3510 = vsel %vm2194, %v3495, 0
  %v3513 = vsel %vm2194, %v3500, 0
  %3515 = vmatprep.subr.mxu0 0.0
  %3516 = vmatpush1.msra.mxu0 0.0
  %3517 = vmatprep.subr.mxu0 0.0
  %3518 = vmatpush1.msra.mxu0 0.0
  %3519 = vmatprep.subr.mxu0 0.0
  %3520 = vmatpush1.msra.mxu0 0.0
  %3521 = vmatprep.subr.mxu0 0.0
  %3522 = vmatpush1.msra.mxu0 0.0
  %3523 = vmatprep.subr.mxu0 0.0
  %3524 = vmatpush1.msra.mxu0 0.0
  %3525 = vmatprep.subr.mxu0 0.0
  %3526 = vmatpush1.msra.mxu0 0.0
  %3527 = vmatprep.subr.mxu0 0.0
  %3528 = vmatpush1.msra.mxu0 0.0
  %3529 = vmatprep.subr.mxu0 0.0
  %3530 = vmatpush1.msra.mxu0 0.0
  %3531 = vmatprep.subr.mxu0 0.0
  %3532 = vmatpush1.msra.mxu0 0.0
  %3533 = vmatprep.subr.mxu0 0.0
  %3534 = vmatpush1.msra.mxu0 0.0
  %3535 = vmatprep.subr.mxu0 0.0
  %3536 = vmatpush1.msra.mxu0 0.0
  %3537 = vmatprep.subr.mxu0 0.0
  %3538 = vmatpush1.msra.mxu0 0.0
  %3539 = vmatprep.subr.mxu0 0.0
  %3540 = vmatpush1.msra.mxu0 0.0
  %3541 = vmatprep.subr.mxu0 0.0
  %3542 = vmatpush1.msra.mxu0 0.0
  %3543 = vmatprep.subr.mxu0 0.0
  %3544 = vmatpush1.msra.mxu0 %v3505
  %3545 = vmatprep.subr.mxu0 0.0
  %3546 = vmatpush1.msra.mxu0 %v3504
  %3547 = vmatprep.subr.mxu0 0.0
  %3548 = vmatpush2.msra.mxu0 0.0
  %3549 = vmatprep.subr.mxu0 0.0
  %3550 = vmatpush2.msra.mxu0 0.0
  %3551 = vmatprep.subr.mxu0 0.0
  %3552 = vmatpush2.msra.mxu0 0.0
  %3553 = vmatprep.subr.mxu0 0.0
  %3554 = vmatpush2.msra.mxu0 0.0
  %3555 = vmatprep.subr.mxu0 0.0
  %3556 = vmatpush2.msra.mxu0 0.0
  %3557 = vmatprep.subr.mxu0 0.0
  %3558 = vmatpush2.msra.mxu0 0.0
  %3559 = vmatprep.subr.mxu0 0.0
  %3560 = vmatpush2.msra.mxu0 0.0
  %3561 = vmatprep.subr.mxu0 0.0
  %3562 = vmatpush2.msra.mxu0 0.0
  %3563 = vmatprep.subr.mxu0 0.0
  %3564 = vmatpush2.msra.mxu0 0.0
  %3565 = vmatprep.subr.mxu0 0.0
  %3566 = vmatpush2.msra.mxu0 0.0
  %3567 = vmatprep.subr.mxu0 0.0
  %3568 = vmatpush2.msra.mxu0 0.0
  %3569 = vmatprep.subr.mxu0 0.0
  %3570 = vmatpush2.msra.mxu0 0.0
  %3571 = vmatprep.subr.mxu0 0.0
  %3572 = vmatpush2.msra.mxu0 0.0
  %3573 = vmatprep.subr.mxu0 0.0
  %3574 = vmatpush2.msra.mxu0 0.0
  %3575 = vmatprep.subr.mxu0 0.0
  %3576 = vmatpush2.msra.mxu0 0.0
  %3577 = vmatprep.subr.mxu0 0.0
  %3578 = vmatpush2.msra.mxu0 0.0
  %3579 = vmatprep.mubr.f32.mxu0 0.0
  %3580 = vmatmul.mubr.f32.gmra.mxu0 %v3507
  %v3581 = vpop.f32.mrf.mxu0
  %v3582 = vadd.f32 0.0, %v3581
  %v3583 = vpop.f32.mrf.mxu0
  %3584 = vmatprep.mubr.f32.mxu0 0.0
  %3585 = vmatmul.mubr.f32.gmra.mxu0 %v3510
  %v3586 = vpop.f32.mrf.mxu0
  %v3587 = vadd.f32 0.0, %v3586
  %v3588 = vpop.f32.mrf.mxu0
  %3589 = vmatprep.mubr.f32.mxu0 0.0
  %3590 = vmatmul.mubr.f32.gmra.mxu0 %v3513
  %v3591 = vpop.f32.mrf.mxu0
  %v3592 = vadd.f32 0.0, %v3591
  %v3593 = vpop.f32.mrf.mxu0
  %3594 = vdwg.mxu0
  %v3595 = vadd.f32 %v3420, %v3582
  %v3596 = vadd.f32 %v3421, %v3587
  %v3597 = vadd.f32 %v3422, %v3592
  %v3598 = vld [vmem:[%s12] sm:$0x1]
  %v3600 = vlaneseq
  %v3601 = vshrl.u32 %v3600, 7
  %v3602 = vsub.s32 0, %v3601
  %v3603 = vrot.slane %v3598, %v3602
  %v3605 = vadd.f32 %v3595, %v3603
  %v3606 = vadd.f32 %v3596, %v3603
  %v3607 = vadd.f32 %v3597, %v3603
  %v3608 = vld [vmem:[%s13] sm:$0x1]
  %v3610 = vlaneseq
  %v3611 = vshrl.u32 %v3610, 7
  %v3612 = vsub.s32 0, %v3611
  %v3613 = vrot.slane %v3608, %v3612
  %v3615 = vmul.f32 %v3605, %v3613
  %v3616 = vmul.f32 %v3606, %v3613
  %v3617 = vmul.f32 %v3607, %v3613
  %v3618 = vld [vmem:[%s14] sm:$0x1]
  %v3620 = vlaneseq
  %v3621 = vshrl.u32 %v3620, 7
  %v3622 = vsub.s32 0, %v3621
  %v3623 = vrot.slane %v3618, %v3622
  %v3625 = vadd.f32 %v3615, %v3623
  %v3626 = vadd.f32 %v3616, %v3623
  %v3627 = vadd.f32 %v3617, %v3623
  %v3628 = vmax.f32 %v3625, 0.0
  %v3629 = vmax.f32 %v3626, 0.0
  %v3630 = vmax.f32 %v3627, 0.0
  %v3632 = vsel %vm281, %v3630, 0
  %3634 = vmatprep.subr.mxu0 0.0
  %3635 = vmatpush1.msra.mxu0 0.0
  %3636 = vmatprep.subr.mxu0 0.0
  %3637 = vmatpush1.msra.mxu0 0.0
  %3638 = vmatprep.subr.mxu0 0.0
  %3639 = vmatpush1.msra.mxu0 0.0
  %3640 = vmatprep.subr.mxu0 0.0
  %3641 = vmatpush1.msra.mxu0 0.0
  %3642 = vmatprep.subr.mxu0 0.0
  %3643 = vmatpush1.msra.mxu0 0.0
  %3644 = vmatprep.subr.mxu0 0.0
  %3645 = vmatpush1.msra.mxu0 0.0
  %3646 = vmatprep.subr.mxu0 0.0
  %3647 = vmatpush1.msra.mxu0 0.0
  %3648 = vmatprep.subr.mxu0 0.0
  %3649 = vmatpush1.msra.mxu0 0.0
  %3650 = vmatprep.subr.mxu0 0.0
  %3651 = vmatpush1.msra.mxu0 0.0
  %3652 = vmatprep.subr.mxu0 0.0
  %3653 = vmatpush1.msra.mxu0 0.0
  %3654 = vmatprep.subr.mxu0 0.0
  %3655 = vmatpush1.msra.mxu0 0.0
  %3656 = vmatprep.subr.mxu0 0.0
  %3657 = vmatpush1.msra.mxu0 0.0
  %3658 = vmatprep.subr.mxu0 0.0
  %3659 = vmatpush1.msra.mxu0 0.0
  %3660 = vmatprep.subr.mxu0 0.0
  %3661 = vmatpush1.msra.mxu0 %v3632
  %3662 = vmatprep.subr.mxu0 0.0
  %3663 = vmatpush1.msra.mxu0 %v3629
  %3664 = vmatprep.subr.mxu0 0.0
  %3665 = vmatpush1.msra.mxu0 %v3628
  %3666 = vmatprep.subr.mxu0 0.0
  %3667 = vmatpush2.msra.mxu0 0.0
  %3668 = vmatprep.subr.mxu0 0.0
  %3669 = vmatpush2.msra.mxu0 0.0
  %3670 = vmatprep.subr.mxu0 0.0
  %3671 = vmatpush2.msra.mxu0 0.0
  %3672 = vmatprep.subr.mxu0 0.0
  %3673 = vmatpush2.msra.mxu0 0.0
  %3674 = vmatprep.subr.mxu0 0.0
  %3675 = vmatpush2.msra.mxu0 0.0
  %3676 = vmatprep.subr.mxu0 0.0
  %3677 = vmatpush2.msra.mxu0 0.0
  %3678 = vmatprep.subr.mxu0 0.0
  %3679 = vmatpush2.msra.mxu0 0.0
  %3680 = vmatprep.subr.mxu0 0.0
  %3681 = vmatpush2.msra.mxu0 0.0
  %3682 = vmatprep.subr.mxu0 0.0
  %3683 = vmatpush2.msra.mxu0 0.0
  %3684 = vmatprep.subr.mxu0 0.0
  %3685 = vmatpush2.msra.mxu0 0.0
  %3686 = vmatprep.subr.mxu0 0.0
  %3687 = vmatpush2.msra.mxu0 0.0
  %3688 = vmatprep.subr.mxu0 0.0
  %3689 = vmatpush2.msra.mxu0 0.0
  %3690 = vmatprep.subr.mxu0 0.0
  %3691 = vmatpush2.msra.mxu0 0.0
  %3692 = vmatprep.subr.mxu0 0.0
  %3693 = vmatpush2.msra.mxu0 0.0
  %3694 = vmatprep.subr.mxu0 0.0
  %3695 = vmatpush2.msra.mxu0 0.0
  %3696 = vmatprep.subr.mxu0 0.0
  %3697 = vmatpush2.msra.mxu0 0.0
  %3698 = vmatprep.mubr.f32.mxu0 0.0
  %3699 = vmatmul.mubr.f32.gmra.mxu0 %v273
  %v3700 = vpop.f32.mrf.mxu0
  %v3701 = vadd.f32 0.0, %v3700
  %v3702 = vpop.f32.mrf.mxu0
  %3703 = vmatprep.mubr.f32.mxu0 0.0
  %3704 = vmatmul.mubr.f32.gmra.mxu0 %v276
  %v3705 = vpop.f32.mrf.mxu0
  %v3706 = vadd.f32 0.0, %v3705
  %v3707 = vpop.f32.mrf.mxu0
  %3708 = vmatprep.mubr.f32.mxu0 0.0
  %3709 = vmatmul.mubr.f32.gmra.mxu0 %v279
  %v3710 = vpop.f32.mrf.mxu0
  %v3711 = vadd.f32 0.0, %v3710
  %v3712 = vpop.f32.mrf.mxu0
  %3713 = vdwg.mxu0
  %v3714 = vld [vmem:[%s15] sm:$0xff]
  %v3715 = vld [vmem:[%s15 + $0x8] sm:$0xff]
  %v3716 = vld [vmem:[%s17] sm:$0xff]
  %v3717 = vld [vmem:[%s17 + $0x8] sm:$0xff]
  %3718 = vmatprep.subr.mxu0 0.0
  %3719 = vmatpush1.msra.mxu0 0.0
  %3720 = vmatprep.subr.mxu0 0.0
  %3721 = vmatpush1.msra.mxu0 0.0
  %3722 = vmatprep.subr.mxu0 0.0
  %3723 = vmatpush1.msra.mxu0 0.0
  %3724 = vmatprep.subr.mxu0 0.0
  %3725 = vmatpush1.msra.mxu0 0.0
  %3726 = vmatprep.subr.mxu0 0.0
  %3727 = vmatpush1.msra.mxu0 0.0
  %3728 = vmatprep.subr.mxu0 0.0
  %3729 = vmatpush1.msra.mxu0 0.0
  %3730 = vmatprep.subr.mxu0 0.0
  %3731 = vmatpush1.msra.mxu0 0.0
  %3732 = vmatprep.subr.mxu0 0.0
  %3733 = vmatpush1.msra.mxu0 0.0
  %3734 = vmatprep.subr.mxu0 0.0
  %3735 = vmatpush1.msra.mxu0 0.0
  %3736 = vmatprep.subr.mxu0 0.0
  %3737 = vmatpush1.msra.mxu0 0.0
  %3738 = vmatprep.subr.mxu0 0.0
  %3739 = vmatpush1.msra.mxu0 0.0
  %3740 = vmatprep.subr.mxu0 0.0
  %3741 = vmatpush1.msra.mxu0 0.0
  %3742 = vmatprep.subr.mxu0 0.0
  %3743 = vmatpush1.msra.mxu0 0.0
  %3744 = vmatprep.subr.mxu0 0.0
  %3745 = vmatpush1.msra.mxu0 %v3632
  %3746 = vmatprep.subr.mxu0 0.0
  %3747 = vmatpush1.msra.mxu0 %v3629
  %3748 = vmatprep.subr.mxu0 0.0
  %3749 = vmatpush1.msra.mxu0 %v3628
  %3750 = vmatprep.subr.mxu0 0.0
  %3751 = vmatpush2.msra.mxu0 0.0
  %3752 = vmatprep.subr.mxu0 0.0
  %3753 = vmatpush2.msra.mxu0 0.0
  %3754 = vmatprep.subr.mxu0 0.0
  %3755 = vmatpush2.msra.mxu0 0.0
  %3756 = vmatprep.subr.mxu0 0.0
  %3757 = vmatpush2.msra.mxu0 0.0
  %3758 = vmatprep.subr.mxu0 0.0
  %3759 = vmatpush2.msra.mxu0 0.0
  %3760 = vmatprep.subr.mxu0 0.0
  %3761 = vmatpush2.msra.mxu0 0.0
  %3762 = vmatprep.subr.mxu0 0.0
  %3763 = vmatpush2.msra.mxu0 0.0
  %3764 = vmatprep.subr.mxu0 0.0
  %3765 = vmatpush2.msra.mxu0 0.0
  %3766 = vmatprep.subr.mxu0 0.0
  %3767 = vmatpush2.msra.mxu0 0.0
  %3768 = vmatprep.subr.mxu0 0.0
  %3769 = vmatpush2.msra.mxu0 0.0
  %3770 = vmatprep.subr.mxu0 0.0
  %3771 = vmatpush2.msra.mxu0 0.0
  %3772 = vmatprep.subr.mxu0 0.0
  %3773 = vmatpush2.msra.mxu0 0.0
  %3774 = vmatprep.subr.mxu0 0.0
  %3775 = vmatpush2.msra.mxu0 0.0
  %3776 = vmatprep.subr.mxu0 0.0
  %3777 = vmatpush2.msra.mxu0 0.0
  %3778 = vmatprep.subr.mxu0 0.0
  %3779 = vmatpush2.msra.mxu0 0.0
  %3780 = vmatprep.subr.mxu0 0.0
  %3781 = vmatpush2.msra.mxu0 0.0
  %3782 = vmatprep.mubr.f32.mxu0 0.0
  %3783 = vmatmul.mubr.f32.gmra.mxu0 %v373
  %v3784 = vpop.f32.mrf.mxu0
  %v3785 = vadd.f32 0.0, %v3784
  %v3786 = vpop.f32.mrf.mxu0
  %3787 = vmatprep.mubr.f32.mxu0 0.0
  %3788 = vmatmul.mubr.f32.gmra.mxu0 %v376
  %v3789 = vpop.f32.mrf.mxu0
  %v3790 = vadd.f32 0.0, %v3789
  %v3791 = vpop.f32.mrf.mxu0
  %3792 = vmatprep.mubr.f32.mxu0 0.0
  %3793 = vmatmul.mubr.f32.gmra.mxu0 %v379
  %v3794 = vpop.f32.mrf.mxu0
  %v3795 = vadd.f32 0.0, %v3794
  %v3796 = vpop.f32.mrf.mxu0
  %3797 = vdwg.mxu0
  %s3798 = scalar_lea.vmem %s15, 16
  %v3799 = vld [vmem:[%s3798] sm:$0xff]
  %v3800 = vld [vmem:[%s3798 + $0x8] sm:$0xff]
  %v3802 = vsel %vm2194, %v3785, 0
  %v3805 = vsel %vm2194, %v3790, 0
  %v3808 = vsel %vm2194, %v3795, 0
  %3810 = vmatprep.subr.mxu0 0.0
  %3811 = vmatpush1.msra.mxu0 0.0
  %3812 = vmatprep.subr.mxu0 0.0
  %3813 = vmatpush1.msra.mxu0 0.0
  %3814 = vmatprep.subr.mxu0 0.0
  %3815 = vmatpush1.msra.mxu0 0.0
  %3816 = vmatprep.subr.mxu0 0.0
  %3817 = vmatpush1.msra.mxu0 0.0
  %3818 = vmatprep.subr.mxu0 0.0
  %3819 = vmatpush1.msra.mxu0 0.0
  %3820 = vmatprep.subr.mxu0 0.0
  %3821 = vmatpush1.msra.mxu0 0.0
  %3822 = vmatprep.subr.mxu0 0.0
  %3823 = vmatpush1.msra.mxu0 0.0
  %3824 = vmatprep.subr.mxu0 0.0
  %3825 = vmatpush1.msra.mxu0 0.0
  %3826 = vmatprep.subr.mxu0 0.0
  %3827 = vmatpush1.msra.mxu0 0.0
  %3828 = vmatprep.subr.mxu0 0.0
  %3829 = vmatpush1.msra.mxu0 0.0
  %3830 = vmatprep.subr.mxu0 0.0
  %3831 = vmatpush1.msra.mxu0 0.0
  %3832 = vmatprep.subr.mxu0 0.0
  %3833 = vmatpush1.msra.mxu0 0.0
  %3834 = vmatprep.subr.mxu0 0.0
  %3835 = vmatpush1.msra.mxu0 0.0
  %3836 = vmatprep.subr.mxu0 0.0
  %3837 = vmatpush1.msra.mxu0 0.0
  %3838 = vmatprep.subr.mxu0 0.0
  %3839 = vmatpush1.msra.mxu0 %v3800
  %3840 = vmatprep.subr.mxu0 0.0
  %3841 = vmatpush1.msra.mxu0 %v3799
  %3842 = vmatprep.subr.mxu0 0.0
  %3843 = vmatpush2.msra.mxu0 0.0
  %3844 = vmatprep.subr.mxu0 0.0
  %3845 = vmatpush2.msra.mxu0 0.0
  %3846 = vmatprep.subr.mxu0 0.0
  %3847 = vmatpush2.msra.mxu0 0.0
  %3848 = vmatprep.subr.mxu0 0.0
  %3849 = vmatpush2.msra.mxu0 0.0
  %3850 = vmatprep.subr.mxu0 0.0
  %3851 = vmatpush2.msra.mxu0 0.0
  %3852 = vmatprep.subr.mxu0 0.0
  %3853 = vmatpush2.msra.mxu0 0.0
  %3854 = vmatprep.subr.mxu0 0.0
  %3855 = vmatpush2.msra.mxu0 0.0
  %3856 = vmatprep.subr.mxu0 0.0
  %3857 = vmatpush2.msra.mxu0 0.0
  %3858 = vmatprep.subr.mxu0 0.0
  %3859 = vmatpush2.msra.mxu0 0.0
  %3860 = vmatprep.subr.mxu0 0.0
  %3861 = vmatpush2.msra.mxu0 0.0
  %3862 = vmatprep.subr.mxu0 0.0
  %3863 = vmatpush2.msra.mxu0 0.0
  %3864 = vmatprep.subr.mxu0 0.0
  %3865 = vmatpush2.msra.mxu0 0.0
  %3866 = vmatprep.subr.mxu0 0.0
  %3867 = vmatpush2.msra.mxu0 0.0
  %3868 = vmatprep.subr.mxu0 0.0
  %3869 = vmatpush2.msra.mxu0 0.0
  %3870 = vmatprep.subr.mxu0 0.0
  %3871 = vmatpush2.msra.mxu0 0.0
  %3872 = vmatprep.subr.mxu0 0.0
  %3873 = vmatpush2.msra.mxu0 0.0
  %3874 = vmatprep.mubr.f32.mxu0 0.0
  %3875 = vmatmul.mubr.f32.gmra.mxu0 %v3802
  %v3876 = vpop.f32.mrf.mxu0
  %v3877 = vadd.f32 0.0, %v3876
  %v3878 = vpop.f32.mrf.mxu0
  %3879 = vmatprep.mubr.f32.mxu0 0.0
  %3880 = vmatmul.mubr.f32.gmra.mxu0 %v3805
  %v3881 = vpop.f32.mrf.mxu0
  %v3882 = vadd.f32 0.0, %v3881
  %v3883 = vpop.f32.mrf.mxu0
  %3884 = vmatprep.mubr.f32.mxu0 0.0
  %3885 = vmatmul.mubr.f32.gmra.mxu0 %v3808
  %v3886 = vpop.f32.mrf.mxu0
  %v3887 = vadd.f32 0.0, %v3886
  %v3888 = vpop.f32.mrf.mxu0
  %3889 = vdwg.mxu0
  %s3890 = scalar_lea.vmem %s17, 16
  %v3891 = vld [vmem:[%s3890] sm:$0xff]
  %v3892 = vld [vmem:[%s3890 + $0x8] sm:$0xff]
  %3893 = vmatprep.subr.mxu0 0.0
  %3894 = vmatpush1.msra.mxu0 0.0
  %3895 = vmatprep.subr.mxu0 0.0
  %3896 = vmatpush1.msra.mxu0 0.0
  %3897 = vmatprep.subr.mxu0 0.0
  %3898 = vmatpush1.msra.mxu0 0.0
  %3899 = vmatprep.subr.mxu0 0.0
  %3900 = vmatpush1.msra.mxu0 0.0
  %3901 = vmatprep.subr.mxu0 0.0
  %3902 = vmatpush1.msra.mxu0 0.0
  %3903 = vmatprep.subr.mxu0 0.0
  %3904 = vmatpush1.msra.mxu0 0.0
  %3905 = vmatprep.subr.mxu0 0.0
  %3906 = vmatpush1.msra.mxu0 0.0
  %3907 = vmatprep.subr.mxu0 0.0
  %3908 = vmatpush1.msra.mxu0 0.0
  %3909 = vmatprep.subr.mxu0 0.0
  %3910 = vmatpush1.msra.mxu0 0.0
  %3911 = vmatprep.subr.mxu0 0.0
  %3912 = vmatpush1.msra.mxu0 0.0
  %3913 = vmatprep.subr.mxu0 0.0
  %3914 = vmatpush1.msra.mxu0 0.0
  %3915 = vmatprep.subr.mxu0 0.0
  %3916 = vmatpush1.msra.mxu0 0.0
  %3917 = vmatprep.subr.mxu0 0.0
  %3918 = vmatpush1.msra.mxu0 0.0
  %3919 = vmatprep.subr.mxu0 0.0
  %3920 = vmatpush1.msra.mxu0 0.0
  %3921 = vmatprep.subr.mxu0 0.0
  %3922 = vmatpush1.msra.mxu0 %v3892
  %3923 = vmatprep.subr.mxu0 0.0
  %3924 = vmatpush1.msra.mxu0 %v3891
  %3925 = vmatprep.subr.mxu0 0.0
  %3926 = vmatpush2.msra.mxu0 0.0
  %3927 = vmatprep.subr.mxu0 0.0
  %3928 = vmatpush2.msra.mxu0 0.0
  %3929 = vmatprep.subr.mxu0 0.0
  %3930 = vmatpush2.msra.mxu0 0.0
  %3931 = vmatprep.subr.mxu0 0.0
  %3932 = vmatpush2.msra.mxu0 0.0
  %3933 = vmatprep.subr.mxu0 0.0
  %3934 = vmatpush2.msra.mxu0 0.0
  %3935 = vmatprep.subr.mxu0 0.0
  %3936 = vmatpush2.msra.mxu0 0.0
  %3937 = vmatprep.subr.mxu0 0.0
  %3938 = vmatpush2.msra.mxu0 0.0
  %3939 = vmatprep.subr.mxu0 0.0
  %3940 = vmatpush2.msra.mxu0 0.0
  %3941 = vmatprep.subr.mxu0 0.0
  %3942 = vmatpush2.msra.mxu0 0.0
  %3943 = vmatprep.subr.mxu0 0.0
  %3944 = vmatpush2.msra.mxu0 0.0
  %3945 = vmatprep.subr.mxu0 0.0
  %3946 = vmatpush2.msra.mxu0 0.0
  %3947 = vmatprep.subr.mxu0 0.0
  %3948 = vmatpush2.msra.mxu0 0.0
  %3949 = vmatprep.subr.mxu0 0.0
  %3950 = vmatpush2.msra.mxu0 0.0
  %3951 = vmatprep.subr.mxu0 0.0
  %3952 = vmatpush2.msra.mxu0 0.0
  %3953 = vmatprep.subr.mxu0 0.0
  %3954 = vmatpush2.msra.mxu0 0.0
  %3955 = vmatprep.subr.mxu0 0.0
  %3956 = vmatpush2.msra.mxu0 0.0
  %3957 = vmatprep.mubr.f32.mxu0 0.0
  %3958 = vmatmul.mubr.f32.gmra.mxu0 %v3802
  %v3959 = vpop.f32.mrf.mxu0
  %v3960 = vadd.f32 0.0, %v3959
  %v3961 = vpop.f32.mrf.mxu0
  %3962 = vmatprep.mubr.f32.mxu0 0.0
  %3963 = vmatmul.mubr.f32.gmra.mxu0 %v3805
  %v3964 = vpop.f32.mrf.mxu0
  %v3965 = vadd.f32 0.0, %v3964
  %v3966 = vpop.f32.mrf.mxu0
  %3967 = vmatprep.mubr.f32.mxu0 0.0
  %3968 = vmatmul.mubr.f32.gmra.mxu0 %v3808
  %v3969 = vpop.f32.mrf.mxu0
  %v3970 = vadd.f32 0.0, %v3969
  %v3971 = vpop.f32.mrf.mxu0
  %3972 = vdwg.mxu0
  %v3974 = vsel %vm2194, %v3701, 0
  %v3977 = vsel %vm2194, %v3706, 0
  %v3980 = vsel %vm2194, %v3711, 0
  %3982 = vmatprep.subr.mxu0 0.0
  %3983 = vmatpush1.msra.mxu0 0.0
  %3984 = vmatprep.subr.mxu0 0.0
  %3985 = vmatpush1.msra.mxu0 0.0
  %3986 = vmatprep.subr.mxu0 0.0
  %3987 = vmatpush1.msra.mxu0 0.0
  %3988 = vmatprep.subr.mxu0 0.0
  %3989 = vmatpush1.msra.mxu0 0.0
  %3990 = vmatprep.subr.mxu0 0.0
  %3991 = vmatpush1.msra.mxu0 0.0
  %3992 = vmatprep.subr.mxu0 0.0
  %3993 = vmatpush1.msra.mxu0 0.0
  %3994 = vmatprep.subr.mxu0 0.0
  %3995 = vmatpush1.msra.mxu0 0.0
  %3996 = vmatprep.subr.mxu0 0.0
  %3997 = vmatpush1.msra.mxu0 0.0
  %3998 = vmatprep.subr.mxu0 0.0
  %3999 = vmatpush1.msra.mxu0 0.0
  %4000 = vmatprep.subr.mxu0 0.0
  %4001 = vmatpush1.msra.mxu0 0.0
  %4002 = vmatprep.subr.mxu0 0.0
  %4003 = vmatpush1.msra.mxu0 0.0
  %4004 = vmatprep.subr.mxu0 0.0
  %4005 = vmatpush1.msra.mxu0 0.0
  %4006 = vmatprep.subr.mxu0 0.0
  %4007 = vmatpush1.msra.mxu0 0.0
  %4008 = vmatprep.subr.mxu0 0.0
  %4009 = vmatpush1.msra.mxu0 0.0
  %4010 = vmatprep.subr.mxu0 0.0
  %4011 = vmatpush1.msra.mxu0 %v3715
  %4012 = vmatprep.subr.mxu0 0.0
  %4013 = vmatpush1.msra.mxu0 %v3714
  %4014 = vmatprep.subr.mxu0 0.0
  %4015 = vmatpush2.msra.mxu0 0.0
  %4016 = vmatprep.subr.mxu0 0.0
  %4017 = vmatpush2.msra.mxu0 0.0
  %4018 = vmatprep.subr.mxu0 0.0
  %4019 = vmatpush2.msra.mxu0 0.0
  %4020 = vmatprep.subr.mxu0 0.0
  %4021 = vmatpush2.msra.mxu0 0.0
  %4022 = vmatprep.subr.mxu0 0.0
  %4023 = vmatpush2.msra.mxu0 0.0
  %4024 = vmatprep.subr.mxu0 0.0
  %4025 = vmatpush2.msra.mxu0 0.0
  %4026 = vmatprep.subr.mxu0 0.0
  %4027 = vmatpush2.msra.mxu0 0.0
  %4028 = vmatprep.subr.mxu0 0.0
  %4029 = vmatpush2.msra.mxu0 0.0
  %4030 = vmatprep.subr.mxu0 0.0
  %4031 = vmatpush2.msra.mxu0 0.0
  %4032 = vmatprep.subr.mxu0 0.0
  %4033 = vmatpush2.msra.mxu0 0.0
  %4034 = vmatprep.subr.mxu0 0.0
  %4035 = vmatpush2.msra.mxu0 0.0
  %4036 = vmatprep.subr.mxu0 0.0
  %4037 = vmatpush2.msra.mxu0 0.0
  %4038 = vmatprep.subr.mxu0 0.0
  %4039 = vmatpush2.msra.mxu0 0.0
  %4040 = vmatprep.subr.mxu0 0.0
  %4041 = vmatpush2.msra.mxu0 0.0
  %4042 = vmatprep.subr.mxu0 0.0
  %4043 = vmatpush2.msra.mxu0 0.0
  %4044 = vmatprep.subr.mxu0 0.0
  %4045 = vmatpush2.msra.mxu0 0.0
  %4046 = vmatprep.mubr.f32.mxu0 0.0
  %4047 = vmatmul.mubr.f32.gmra.mxu0 %v3974
  %v4048 = vpop.f32.mrf.mxu0
  %v4049 = vadd.f32 %v3877, %v4048
  %v4050 = vpop.f32.mrf.mxu0
  %4051 = vmatprep.mubr.f32.mxu0 0.0
  %4052 = vmatmul.mubr.f32.gmra.mxu0 %v3977
  %v4053 = vpop.f32.mrf.mxu0
  %v4054 = vadd.f32 %v3882, %v4053
  %v4055 = vpop.f32.mrf.mxu0
  %4056 = vmatprep.mubr.f32.mxu0 0.0
  %4057 = vmatmul.mubr.f32.gmra.mxu0 %v3980
  %v4058 = vpop.f32.mrf.mxu0
  %v4059 = vadd.f32 %v3887, %v4058
  %v4060 = vpop.f32.mrf.mxu0
  %4061 = vdwg.mxu0
  %4062 = vmatprep.subr.mxu0 0.0
  %4063 = vmatpush1.msra.mxu0 0.0
  %4064 = vmatprep.subr.mxu0 0.0
  %4065 = vmatpush1.msra.mxu0 0.0
  %4066 = vmatprep.subr.mxu0 0.0
  %4067 = vmatpush1.msra.mxu0 0.0
  %4068 = vmatprep.subr.mxu0 0.0
  %4069 = vmatpush1.msra.mxu0 0.0
  %4070 = vmatprep.subr.mxu0 0.0
  %4071 = vmatpush1.msra.mxu0 0.0
  %4072 = vmatprep.subr.mxu0 0.0
  %4073 = vmatpush1.msra.mxu0 0.0
  %4074 = vmatprep.subr.mxu0 0.0
  %4075 = vmatpush1.msra.mxu0 0.0
  %4076 = vmatprep.subr.mxu0 0.0
  %4077 = vmatpush1.msra.mxu0 0.0
  %4078 = vmatprep.subr.mxu0 0.0
  %4079 = vmatpush1.msra.mxu0 0.0
  %4080 = vmatprep.subr.mxu0 0.0
  %4081 = vmatpush1.msra.mxu0 0.0
  %4082 = vmatprep.subr.mxu0 0.0
  %4083 = vmatpush1.msra.mxu0 0.0
  %4084 = vmatprep.subr.mxu0 0.0
  %4085 = vmatpush1.msra.mxu0 0.0
  %4086 = vmatprep.subr.mxu0 0.0
  %4087 = vmatpush1.msra.mxu0 0.0
  %4088 = vmatprep.subr.mxu0 0.0
  %4089 = vmatpush1.msra.mxu0 0.0
  %4090 = vmatprep.subr.mxu0 0.0
  %4091 = vmatpush1.msra.mxu0 %v3717
  %4092 = vmatprep.subr.mxu0 0.0
  %4093 = vmatpush1.msra.mxu0 %v3716
  %4094 = vmatprep.subr.mxu0 0.0
  %4095 = vmatpush2.msra.mxu0 0.0
  %4096 = vmatprep.subr.mxu0 0.0
  %4097 = vmatpush2.msra.mxu0 0.0
  %4098 = vmatprep.subr.mxu0 0.0
  %4099 = vmatpush2.msra.mxu0 0.0
  %4100 = vmatprep.subr.mxu0 0.0
  %4101 = vmatpush2.msra.mxu0 0.0
  %4102 = vmatprep.subr.mxu0 0.0
  %4103 = vmatpush2.msra.mxu0 0.0
  %4104 = vmatprep.subr.mxu0 0.0
  %4105 = vmatpush2.msra.mxu0 0.0
  %4106 = vmatprep.subr.mxu0 0.0
  %4107 = vmatpush2.msra.mxu0 0.0
  %4108 = vmatprep.subr.mxu0 0.0
  %4109 = vmatpush2.msra.mxu0 0.0
  %4110 = vmatprep.subr.mxu0 0.0
  %4111 = vmatpush2.msra.mxu0 0.0
  %4112 = vmatprep.subr.mxu0 0.0
  %4113 = vmatpush2.msra.mxu0 0.0
  %4114 = vmatprep.subr.mxu0 0.0
  %4115 = vmatpush2.msra.mxu0 0.0
  %4116 = vmatprep.subr.mxu0 0.0
  %4117 = vmatpush2.msra.mxu0 0.0
  %4118 = vmatprep.subr.mxu0 0.0
  %4119 = vmatpush2.msra.mxu0 0.0
  %4120 = vmatprep.subr.mxu0 0.0
  %4121 = vmatpush2.msra.mxu0 0.0
  %4122 = vmatprep.subr.mxu0 0.0
  %4123 = vmatpush2.msra.mxu0 0.0
  %4124 = vmatprep.subr.mxu0 0.0
  %4125 = vmatpush2.msra.mxu0 0.0
  %4126 = vmatprep.mubr.f32.mxu0 0.0
  %4127 = vmatmul.mubr.f32.gmra.mxu0 %v3974
  %v4128 = vpop.f32.mrf.mxu0
  %v4129 = vadd.f32 %v3960, %v4128
  %v4130 = vpop.f32.mrf.mxu0
  %4131 = vmatprep.mubr.f32.mxu0 0.0
  %4132 = vmatmul.mubr.f32.gmra.mxu0 %v3977
  %v4133 = vpop.f32.mrf.mxu0
  %v4134 = vadd.f32 %v3965, %v4133
  %v4135 = vpop.f32.mrf.mxu0
  %4136 = vmatprep.mubr.f32.mxu0 0.0
  %4137 = vmatmul.mubr.f32.gmra.mxu0 %v3980
  %v4138 = vpop.f32.mrf.mxu0
  %v4139 = vadd.f32 %v3970, %v4138
  %v4140 = vpop.f32.mrf.mxu0
  %4141 = vdwg.mxu0
  %4142 = vmatprep.subr.mxu0 0.0
  %4143 = vmatpush1.msra.mxu0 0.0
  %4144 = vmatprep.subr.mxu0 0.0
  %4145 = vmatpush1.msra.mxu0 0.0
  %4146 = vmatprep.subr.mxu0 0.0
  %4147 = vmatpush1.msra.mxu0 0.0
  %4148 = vmatprep.subr.mxu0 0.0
  %4149 = vmatpush1.msra.mxu0 0.0
  %4150 = vmatprep.subr.mxu0 0.0
  %4151 = vmatpush1.msra.mxu0 0.0
  %4152 = vmatprep.subr.mxu0 0.0
  %4153 = vmatpush1.msra.mxu0 0.0
  %4154 = vmatprep.subr.mxu0 0.0
  %4155 = vmatpush1.msra.mxu0 0.0
  %4156 = vmatprep.subr.mxu0 0.0
  %4157 = vmatpush1.msra.mxu0 0.0
  %4158 = vmatprep.subr.mxu0 0.0
  %4159 = vmatpush1.msra.mxu0 0.0
  %4160 = vmatprep.subr.mxu0 0.0
  %4161 = vmatpush1.msra.mxu0 0.0
  %4162 = vmatprep.subr.mxu0 0.0
  %4163 = vmatpush1.msra.mxu0 0.0
  %4164 = vmatprep.subr.mxu0 0.0
  %4165 = vmatpush1.msra.mxu0 0.0
  %4166 = vmatprep.subr.mxu0 0.0
  %4167 = vmatpush1.msra.mxu0 0.0
  %4168 = vmatprep.subr.mxu0 0.0
  %4169 = vmatpush1.msra.mxu0 %v3632
  %4170 = vmatprep.subr.mxu0 0.0
  %4171 = vmatpush1.msra.mxu0 %v3629
  %4172 = vmatprep.subr.mxu0 0.0
  %4173 = vmatpush1.msra.mxu0 %v3628
  %4174 = vmatprep.subr.mxu0 0.0
  %4175 = vmatpush2.msra.mxu0 0.0
  %4176 = vmatprep.subr.mxu0 0.0
  %4177 = vmatpush2.msra.mxu0 0.0
  %4178 = vmatprep.subr.mxu0 0.0
  %4179 = vmatpush2.msra.mxu0 0.0
  %4180 = vmatprep.subr.mxu0 0.0
  %4181 = vmatpush2.msra.mxu0 0.0
  %4182 = vmatprep.subr.mxu0 0.0
  %4183 = vmatpush2.msra.mxu0 0.0
  %4184 = vmatprep.subr.mxu0 0.0
  %4185 = vmatpush2.msra.mxu0 0.0
  %4186 = vmatprep.subr.mxu0 0.0
  %4187 = vmatpush2.msra.mxu0 0.0
  %4188 = vmatprep.subr.mxu0 0.0
  %4189 = vmatpush2.msra.mxu0 0.0
  %4190 = vmatprep.subr.mxu0 0.0
  %4191 = vmatpush2.msra.mxu0 0.0
  %4192 = vmatprep.subr.mxu0 0.0
  %4193 = vmatpush2.msra.mxu0 0.0
  %4194 = vmatprep.subr.mxu0 0.0
  %4195 = vmatpush2.msra.mxu0 0.0
  %4196 = vmatprep.subr.mxu0 0.0
  %4197 = vmatpush2.msra.mxu0 0.0
  %4198 = vmatprep.subr.mxu0 0.0
  %4199 = vmatpush2.msra.mxu0 0.0
  %4200 = vmatprep.subr.mxu0 0.0
  %4201 = vmatpush2.msra.mxu0 0.0
  %4202 = vmatprep.subr.mxu0 0.0
  %4203 = vmatpush2.msra.mxu0 0.0
  %4204 = vmatprep.subr.mxu0 0.0
  %4205 = vmatpush2.msra.mxu0 0.0
  %4206 = vmatprep.mubr.f32.mxu0 0.0
  %4207 = vmatmul.mubr.f32.gmra.mxu0 %v654
  %v4208 = vpop.f32.mrf.mxu0
  %v4209 = vadd.f32 0.0, %v4208
  %v4210 = vpop.f32.mrf.mxu0
  %4211 = vmatprep.mubr.f32.mxu0 0.0
  %4212 = vmatmul.mubr.f32.gmra.mxu0 %v657
  %v4213 = vpop.f32.mrf.mxu0
  %v4214 = vadd.f32 0.0, %v4213
  %v4215 = vpop.f32.mrf.mxu0
  %4216 = vmatprep.mubr.f32.mxu0 0.0
  %4217 = vmatmul.mubr.f32.gmra.mxu0 %v660
  %v4218 = vpop.f32.mrf.mxu0
  %v4219 = vadd.f32 0.0, %v4218
  %v4220 = vpop.f32.mrf.mxu0
  %4221 = vdwg.mxu0
  %s4222 = scalar_lea.vmem %s15, 32
  %v4223 = vld [vmem:[%s4222] sm:$0xff]
  %v4224 = vld [vmem:[%s4222 + $0x8] sm:$0xff]
  %v4226 = vsel %vm2194, %v4209, 0
  %v4229 = vsel %vm2194, %v4214, 0
  %v4232 = vsel %vm2194, %v4219, 0
  %4234 = vmatprep.subr.mxu0 0.0
  %4235 = vmatpush1.msra.mxu0 0.0
  %4236 = vmatprep.subr.mxu0 0.0
  %4237 = vmatpush1.msra.mxu0 0.0
  %4238 = vmatprep.subr.mxu0 0.0
  %4239 = vmatpush1.msra.mxu0 0.0
  %4240 = vmatprep.subr.mxu0 0.0
  %4241 = vmatpush1.msra.mxu0 0.0
  %4242 = vmatprep.subr.mxu0 0.0
  %4243 = vmatpush1.msra.mxu0 0.0
  %4244 = vmatprep.subr.mxu0 0.0
  %4245 = vmatpush1.msra.mxu0 0.0
  %4246 = vmatprep.subr.mxu0 0.0
  %4247 = vmatpush1.msra.mxu0 0.0
  %4248 = vmatprep.subr.mxu0 0.0
  %4249 = vmatpush1.msra.mxu0 0.0
  %4250 = vmatprep.subr.mxu0 0.0
  %4251 = vmatpush1.msra.mxu0 0.0
  %4252 = vmatprep.subr.mxu0 0.0
  %4253 = vmatpush1.msra.mxu0 0.0
  %4254 = vmatprep.subr.mxu0 0.0
  %4255 = vmatpush1.msra.mxu0 0.0
  %4256 = vmatprep.subr.mxu0 0.0
  %4257 = vmatpush1.msra.mxu0 0.0
  %4258 = vmatprep.subr.mxu0 0.0
  %4259 = vmatpush1.msra.mxu0 0.0
  %4260 = vmatprep.subr.mxu0 0.0
  %4261 = vmatpush1.msra.mxu0 0.0
  %4262 = vmatprep.subr.mxu0 0.0
  %4263 = vmatpush1.msra.mxu0 %v4224
  %4264 = vmatprep.subr.mxu0 0.0
  %4265 = vmatpush1.msra.mxu0 %v4223
  %4266 = vmatprep.subr.mxu0 0.0
  %4267 = vmatpush2.msra.mxu0 0.0
  %4268 = vmatprep.subr.mxu0 0.0
  %4269 = vmatpush2.msra.mxu0 0.0
  %4270 = vmatprep.subr.mxu0 0.0
  %4271 = vmatpush2.msra.mxu0 0.0
  %4272 = vmatprep.subr.mxu0 0.0
  %4273 = vmatpush2.msra.mxu0 0.0
  %4274 = vmatprep.subr.mxu0 0.0
  %4275 = vmatpush2.msra.mxu0 0.0
  %4276 = vmatprep.subr.mxu0 0.0
  %4277 = vmatpush2.msra.mxu0 0.0
  %4278 = vmatprep.subr.mxu0 0.0
  %4279 = vmatpush2.msra.mxu0 0.0
  %4280 = vmatprep.subr.mxu0 0.0
  %4281 = vmatpush2.msra.mxu0 0.0
  %4282 = vmatprep.subr.mxu0 0.0
  %4283 = vmatpush2.msra.mxu0 0.0
  %4284 = vmatprep.subr.mxu0 0.0
  %4285 = vmatpush2.msra.mxu0 0.0
  %4286 = vmatprep.subr.mxu0 0.0
  %4287 = vmatpush2.msra.mxu0 0.0
  %4288 = vmatprep.subr.mxu0 0.0
  %4289 = vmatpush2.msra.mxu0 0.0
  %4290 = vmatprep.subr.mxu0 0.0
  %4291 = vmatpush2.msra.mxu0 0.0
  %4292 = vmatprep.subr.mxu0 0.0
  %4293 = vmatpush2.msra.mxu0 0.0
  %4294 = vmatprep.subr.mxu0 0.0
  %4295 = vmatpush2.msra.mxu0 0.0
  %4296 = vmatprep.subr.mxu0 0.0
  %4297 = vmatpush2.msra.mxu0 0.0
  %4298 = vmatprep.mubr.f32.mxu0 0.0
  %4299 = vmatmul.mubr.f32.gmra.mxu0 %v4226
  %v4300 = vpop.f32.mrf.mxu0
  %v4301 = vadd.f32 0.0, %v4300
  %v4302 = vpop.f32.mrf.mxu0
  %4303 = vmatprep.mubr.f32.mxu0 0.0
  %4304 = vmatmul.mubr.f32.gmra.mxu0 %v4229
  %v4305 = vpop.f32.mrf.mxu0
  %v4306 = vadd.f32 0.0, %v4305
  %v4307 = vpop.f32.mrf.mxu0
  %4308 = vmatprep.mubr.f32.mxu0 0.0
  %4309 = vmatmul.mubr.f32.gmra.mxu0 %v4232
  %v4310 = vpop.f32.mrf.mxu0
  %v4311 = vadd.f32 0.0, %v4310
  %v4312 = vpop.f32.mrf.mxu0
  %4313 = vdwg.mxu0
  %s4314 = scalar_lea.vmem %s17, 32
  %v4315 = vld [vmem:[%s4314] sm:$0xff]
  %v4316 = vld [vmem:[%s4314 + $0x8] sm:$0xff]
  %4317 = vmatprep.subr.mxu0 0.0
  %4318 = vmatpush1.msra.mxu0 0.0
  %4319 = vmatprep.subr.mxu0 0.0
  %4320 = vmatpush1.msra.mxu0 0.0
  %4321 = vmatprep.subr.mxu0 0.0
  %4322 = vmatpush1.msra.mxu0 0.0
  %4323 = vmatprep.subr.mxu0 0.0
  %4324 = vmatpush1.msra.mxu0 0.0
  %4325 = vmatprep.subr.mxu0 0.0
  %4326 = vmatpush1.msra.mxu0 0.0
  %4327 = vmatprep.subr.mxu0 0.0
  %4328 = vmatpush1.msra.mxu0 0.0
  %4329 = vmatprep.subr.mxu0 0.0
  %4330 = vmatpush1.msra.mxu0 0.0
  %4331 = vmatprep.subr.mxu0 0.0
  %4332 = vmatpush1.msra.mxu0 0.0
  %4333 = vmatprep.subr.mxu0 0.0
  %4334 = vmatpush1.msra.mxu0 0.0
  %4335 = vmatprep.subr.mxu0 0.0
  %4336 = vmatpush1.msra.mxu0 0.0
  %4337 = vmatprep.subr.mxu0 0.0
  %4338 = vmatpush1.msra.mxu0 0.0
  %4339 = vmatprep.subr.mxu0 0.0
  %4340 = vmatpush1.msra.mxu0 0.0
  %4341 = vmatprep.subr.mxu0 0.0
  %4342 = vmatpush1.msra.mxu0 0.0
  %4343 = vmatprep.subr.mxu0 0.0
  %4344 = vmatpush1.msra.mxu0 0.0
  %4345 = vmatprep.subr.mxu0 0.0
  %4346 = vmatpush1.msra.mxu0 %v4316
  %4347 = vmatprep.subr.mxu0 0.0
  %4348 = vmatpush1.msra.mxu0 %v4315
  %4349 = vmatprep.subr.mxu0 0.0
  %4350 = vmatpush2.msra.mxu0 0.0
  %4351 = vmatprep.subr.mxu0 0.0
  %4352 = vmatpush2.msra.mxu0 0.0
  %4353 = vmatprep.subr.mxu0 0.0
  %4354 = vmatpush2.msra.mxu0 0.0
  %4355 = vmatprep.subr.mxu0 0.0
  %4356 = vmatpush2.msra.mxu0 0.0
  %4357 = vmatprep.subr.mxu0 0.0
  %4358 = vmatpush2.msra.mxu0 0.0
  %4359 = vmatprep.subr.mxu0 0.0
  %4360 = vmatpush2.msra.mxu0 0.0
  %4361 = vmatprep.subr.mxu0 0.0
  %4362 = vmatpush2.msra.mxu0 0.0
  %4363 = vmatprep.subr.mxu0 0.0
  %4364 = vmatpush2.msra.mxu0 0.0
  %4365 = vmatprep.subr.mxu0 0.0
  %4366 = vmatpush2.msra.mxu0 0.0
  %4367 = vmatprep.subr.mxu0 0.0
  %4368 = vmatpush2.msra.mxu0 0.0
  %4369 = vmatprep.subr.mxu0 0.0
  %4370 = vmatpush2.msra.mxu0 0.0
  %4371 = vmatprep.subr.mxu0 0.0
  %4372 = vmatpush2.msra.mxu0 0.0
  %4373 = vmatprep.subr.mxu0 0.0
  %4374 = vmatpush2.msra.mxu0 0.0
  %4375 = vmatprep.subr.mxu0 0.0
  %4376 = vmatpush2.msra.mxu0 0.0
  %4377 = vmatprep.subr.mxu0 0.0
  %4378 = vmatpush2.msra.mxu0 0.0
  %4379 = vmatprep.subr.mxu0 0.0
  %4380 = vmatpush2.msra.mxu0 0.0
  %4381 = vmatprep.mubr.f32.mxu0 0.0
  %4382 = vmatmul.mubr.f32.gmra.mxu0 %v4226
  %v4383 = vpop.f32.mrf.mxu0
  %v4384 = vadd.f32 0.0, %v4383
  %v4385 = vpop.f32.mrf.mxu0
  %4386 = vmatprep.mubr.f32.mxu0 0.0
  %4387 = vmatmul.mubr.f32.gmra.mxu0 %v4229
  %v4388 = vpop.f32.mrf.mxu0
  %v4389 = vadd.f32 0.0, %v4388
  %v4390 = vpop.f32.mrf.mxu0
  %4391 = vmatprep.mubr.f32.mxu0 0.0
  %4392 = vmatmul.mubr.f32.gmra.mxu0 %v4232
  %v4393 = vpop.f32.mrf.mxu0
  %v4394 = vadd.f32 0.0, %v4393
  %v4395 = vpop.f32.mrf.mxu0
  %4396 = vdwg.mxu0
  %v4397 = vadd.f32 %v4049, %v4301
  %v4398 = vadd.f32 %v4054, %v4306
  %v4399 = vadd.f32 %v4059, %v4311
  %v4400 = vadd.f32 %v4129, %v4384
  %v4401 = vadd.f32 %v4134, %v4389
  %v4402 = vadd.f32 %v4139, %v4394
  %4403 = vmatprep.subr.mxu0 0.0
  %4404 = vmatpush1.msra.mxu0 0.0
  %4405 = vmatprep.subr.mxu0 0.0
  %4406 = vmatpush1.msra.mxu0 0.0
  %4407 = vmatprep.subr.mxu0 0.0
  %4408 = vmatpush1.msra.mxu0 0.0
  %4409 = vmatprep.subr.mxu0 0.0
  %4410 = vmatpush1.msra.mxu0 0.0
  %4411 = vmatprep.subr.mxu0 0.0
  %4412 = vmatpush1.msra.mxu0 0.0
  %4413 = vmatprep.subr.mxu0 0.0
  %4414 = vmatpush1.msra.mxu0 0.0
  %4415 = vmatprep.subr.mxu0 0.0
  %4416 = vmatpush1.msra.mxu0 0.0
  %4417 = vmatprep.subr.mxu0 0.0
  %4418 = vmatpush1.msra.mxu0 0.0
  %4419 = vmatprep.subr.mxu0 0.0
  %4420 = vmatpush1.msra.mxu0 0.0
  %4421 = vmatprep.subr.mxu0 0.0
  %4422 = vmatpush1.msra.mxu0 0.0
  %4423 = vmatprep.subr.mxu0 0.0
  %4424 = vmatpush1.msra.mxu0 0.0
  %4425 = vmatprep.subr.mxu0 0.0
  %4426 = vmatpush1.msra.mxu0 0.0
  %4427 = vmatprep.subr.mxu0 0.0
  %4428 = vmatpush1.msra.mxu0 0.0
  %4429 = vmatprep.subr.mxu0 0.0
  %4430 = vmatpush1.msra.mxu0 %v3632
  %4431 = vmatprep.subr.mxu0 0.0
  %4432 = vmatpush1.msra.mxu0 %v3629
  %4433 = vmatprep.subr.mxu0 0.0
  %4434 = vmatpush1.msra.mxu0 %v3628
  %4435 = vmatprep.subr.mxu0 0.0
  %4436 = vmatpush2.msra.mxu0 0.0
  %4437 = vmatprep.subr.mxu0 0.0
  %4438 = vmatpush2.msra.mxu0 0.0
  %4439 = vmatprep.subr.mxu0 0.0
  %4440 = vmatpush2.msra.mxu0 0.0
  %4441 = vmatprep.subr.mxu0 0.0
  %4442 = vmatpush2.msra.mxu0 0.0
  %4443 = vmatprep.subr.mxu0 0.0
  %4444 = vmatpush2.msra.mxu0 0.0
  %4445 = vmatprep.subr.mxu0 0.0
  %4446 = vmatpush2.msra.mxu0 0.0
  %4447 = vmatprep.subr.mxu0 0.0
  %4448 = vmatpush2.msra.mxu0 0.0
  %4449 = vmatprep.subr.mxu0 0.0
  %4450 = vmatpush2.msra.mxu0 0.0
  %4451 = vmatprep.subr.mxu0 0.0
  %4452 = vmatpush2.msra.mxu0 0.0
  %4453 = vmatprep.subr.mxu0 0.0
  %4454 = vmatpush2.msra.mxu0 0.0
  %4455 = vmatprep.subr.mxu0 0.0
  %4456 = vmatpush2.msra.mxu0 0.0
  %4457 = vmatprep.subr.mxu0 0.0
  %4458 = vmatpush2.msra.mxu0 0.0
  %4459 = vmatprep.subr.mxu0 0.0
  %4460 = vmatpush2.msra.mxu0 0.0
  %4461 = vmatprep.subr.mxu0 0.0
  %4462 = vmatpush2.msra.mxu0 0.0
  %4463 = vmatprep.subr.mxu0 0.0
  %4464 = vmatpush2.msra.mxu0 0.0
  %4465 = vmatprep.subr.mxu0 0.0
  %4466 = vmatpush2.msra.mxu0 0.0
  %4467 = vmatprep.mubr.f32.mxu0 0.0
  %4468 = vmatmul.mubr.f32.gmra.mxu0 %v846
  %v4469 = vpop.f32.mrf.mxu0
  %v4470 = vadd.f32 0.0, %v4469
  %v4471 = vpop.f32.mrf.mxu0
  %4472 = vmatprep.mubr.f32.mxu0 0.0
  %4473 = vmatmul.mubr.f32.gmra.mxu0 %v849
  %v4474 = vpop.f32.mrf.mxu0
  %v4475 = vadd.f32 0.0, %v4474
  %v4476 = vpop.f32.mrf.mxu0
  %4477 = vmatprep.mubr.f32.mxu0 0.0
  %4478 = vmatmul.mubr.f32.gmra.mxu0 %v852
  %v4479 = vpop.f32.mrf.mxu0
  %v4480 = vadd.f32 0.0, %v4479
  %v4481 = vpop.f32.mrf.mxu0
  %4482 = vdwg.mxu0
  %s4483 = scalar_lea.vmem %s15, 48
  %v4484 = vld [vmem:[%s4483] sm:$0xff]
  %v4485 = vld [vmem:[%s4483 + $0x8] sm:$0xff]
  %v4487 = vsel %vm2194, %v4470, 0
  %v4490 = vsel %vm2194, %v4475, 0
  %v4493 = vsel %vm2194, %v4480, 0
  %4495 = vmatprep.subr.mxu0 0.0
  %4496 = vmatpush1.msra.mxu0 0.0
  %4497 = vmatprep.subr.mxu0 0.0
  %4498 = vmatpush1.msra.mxu0 0.0
  %4499 = vmatprep.subr.mxu0 0.0
  %4500 = vmatpush1.msra.mxu0 0.0
  %4501 = vmatprep.subr.mxu0 0.0
  %4502 = vmatpush1.msra.mxu0 0.0
  %4503 = vmatprep.subr.mxu0 0.0
  %4504 = vmatpush1.msra.mxu0 0.0
  %4505 = vmatprep.subr.mxu0 0.0
  %4506 = vmatpush1.msra.mxu0 0.0
  %4507 = vmatprep.subr.mxu0 0.0
  %4508 = vmatpush1.msra.mxu0 0.0
  %4509 = vmatprep.subr.mxu0 0.0
  %4510 = vmatpush1.msra.mxu0 0.0
  %4511 = vmatprep.subr.mxu0 0.0
  %4512 = vmatpush1.msra.mxu0 0.0
  %4513 = vmatprep.subr.mxu0 0.0
  %4514 = vmatpush1.msra.mxu0 0.0
  %4515 = vmatprep.subr.mxu0 0.0
  %4516 = vmatpush1.msra.mxu0 0.0
  %4517 = vmatprep.subr.mxu0 0.0
  %4518 = vmatpush1.msra.mxu0 0.0
  %4519 = vmatprep.subr.mxu0 0.0
  %4520 = vmatpush1.msra.mxu0 0.0
  %4521 = vmatprep.subr.mxu0 0.0
  %4522 = vmatpush1.msra.mxu0 0.0
  %4523 = vmatprep.subr.mxu0 0.0
  %4524 = vmatpush1.msra.mxu0 %v4485
  %4525 = vmatprep.subr.mxu0 0.0
  %4526 = vmatpush1.msra.mxu0 %v4484
  %4527 = vmatprep.subr.mxu0 0.0
  %4528 = vmatpush2.msra.mxu0 0.0
  %4529 = vmatprep.subr.mxu0 0.0
  %4530 = vmatpush2.msra.mxu0 0.0
  %4531 = vmatprep.subr.mxu0 0.0
  %4532 = vmatpush2.msra.mxu0 0.0
  %4533 = vmatprep.subr.mxu0 0.0
  %4534 = vmatpush2.msra.mxu0 0.0
  %4535 = vmatprep.subr.mxu0 0.0
  %4536 = vmatpush2.msra.mxu0 0.0
  %4537 = vmatprep.subr.mxu0 0.0
  %4538 = vmatpush2.msra.mxu0 0.0
  %4539 = vmatprep.subr.mxu0 0.0
  %4540 = vmatpush2.msra.mxu0 0.0
  %4541 = vmatprep.subr.mxu0 0.0
  %4542 = vmatpush2.msra.mxu0 0.0
  %4543 = vmatprep.subr.mxu0 0.0
  %4544 = vmatpush2.msra.mxu0 0.0
  %4545 = vmatprep.subr.mxu0 0.0
  %4546 = vmatpush2.msra.mxu0 0.0
  %4547 = vmatprep.subr.mxu0 0.0
  %4548 = vmatpush2.msra.mxu0 0.0
  %4549 = vmatprep.subr.mxu0 0.0
  %4550 = vmatpush2.msra.mxu0 0.0
  %4551 = vmatprep.subr.mxu0 0.0
  %4552 = vmatpush2.msra.mxu0 0.0
  %4553 = vmatprep.subr.mxu0 0.0
  %4554 = vmatpush2.msra.mxu0 0.0
  %4555 = vmatprep.subr.mxu0 0.0
  %4556 = vmatpush2.msra.mxu0 0.0
  %4557 = vmatprep.subr.mxu0 0.0
  %4558 = vmatpush2.msra.mxu0 0.0
  %4559 = vmatprep.mubr.f32.mxu0 0.0
  %4560 = vmatmul.mubr.f32.gmra.mxu0 %v4487
  %v4561 = vpop.f32.mrf.mxu0
  %v4562 = vadd.f32 0.0, %v4561
  %v4563 = vpop.f32.mrf.mxu0
  %4564 = vmatprep.mubr.f32.mxu0 0.0
  %4565 = vmatmul.mubr.f32.gmra.mxu0 %v4490
  %v4566 = vpop.f32.mrf.mxu0
  %v4567 = vadd.f32 0.0, %v4566
  %v4568 = vpop.f32.mrf.mxu0
  %4569 = vmatprep.mubr.f32.mxu0 0.0
  %4570 = vmatmul.mubr.f32.gmra.mxu0 %v4493
  %v4571 = vpop.f32.mrf.mxu0
  %v4572 = vadd.f32 0.0, %v4571
  %v4573 = vpop.f32.mrf.mxu0
  %4574 = vdwg.mxu0
  %s4575 = scalar_lea.vmem %s17, 48
  %v4576 = vld [vmem:[%s4575] sm:$0xff]
  %v4577 = vld [vmem:[%s4575 + $0x8] sm:$0xff]
  %4578 = vmatprep.subr.mxu0 0.0
  %4579 = vmatpush1.msra.mxu0 0.0
  %4580 = vmatprep.subr.mxu0 0.0
  %4581 = vmatpush1.msra.mxu0 0.0
  %4582 = vmatprep.subr.mxu0 0.0
  %4583 = vmatpush1.msra.mxu0 0.0
  %4584 = vmatprep.subr.mxu0 0.0
  %4585 = vmatpush1.msra.mxu0 0.0
  %4586 = vmatprep.subr.mxu0 0.0
  %4587 = vmatpush1.msra.mxu0 0.0
  %4588 = vmatprep.subr.mxu0 0.0
  %4589 = vmatpush1.msra.mxu0 0.0
  %4590 = vmatprep.subr.mxu0 0.0
  %4591 = vmatpush1.msra.mxu0 0.0
  %4592 = vmatprep.subr.mxu0 0.0
  %4593 = vmatpush1.msra.mxu0 0.0
  %4594 = vmatprep.subr.mxu0 0.0
  %4595 = vmatpush1.msra.mxu0 0.0
  %4596 = vmatprep.subr.mxu0 0.0
  %4597 = vmatpush1.msra.mxu0 0.0
  %4598 = vmatprep.subr.mxu0 0.0
  %4599 = vmatpush1.msra.mxu0 0.0
  %4600 = vmatprep.subr.mxu0 0.0
  %4601 = vmatpush1.msra.mxu0 0.0
  %4602 = vmatprep.subr.mxu0 0.0
  %4603 = vmatpush1.msra.mxu0 0.0
  %4604 = vmatprep.subr.mxu0 0.0
  %4605 = vmatpush1.msra.mxu0 0.0
  %4606 = vmatprep.subr.mxu0 0.0
  %4607 = vmatpush1.msra.mxu0 %v4577
  %4608 = vmatprep.subr.mxu0 0.0
  %4609 = vmatpush1.msra.mxu0 %v4576
  %4610 = vmatprep.subr.mxu0 0.0
  %4611 = vmatpush2.msra.mxu0 0.0
  %4612 = vmatprep.subr.mxu0 0.0
  %4613 = vmatpush2.msra.mxu0 0.0
  %4614 = vmatprep.subr.mxu0 0.0
  %4615 = vmatpush2.msra.mxu0 0.0
  %4616 = vmatprep.subr.mxu0 0.0
  %4617 = vmatpush2.msra.mxu0 0.0
  %4618 = vmatprep.subr.mxu0 0.0
  %4619 = vmatpush2.msra.mxu0 0.0
  %4620 = vmatprep.subr.mxu0 0.0
  %4621 = vmatpush2.msra.mxu0 0.0
  %4622 = vmatprep.subr.mxu0 0.0
  %4623 = vmatpush2.msra.mxu0 0.0
  %4624 = vmatprep.subr.mxu0 0.0
  %4625 = vmatpush2.msra.mxu0 0.0
  %4626 = vmatprep.subr.mxu0 0.0
  %4627 = vmatpush2.msra.mxu0 0.0
  %4628 = vmatprep.subr.mxu0 0.0
  %4629 = vmatpush2.msra.mxu0 0.0
  %4630 = vmatprep.subr.mxu0 0.0
  %4631 = vmatpush2.msra.mxu0 0.0
  %4632 = vmatprep.subr.mxu0 0.0
  %4633 = vmatpush2.msra.mxu0 0.0
  %4634 = vmatprep.subr.mxu0 0.0
  %4635 = vmatpush2.msra.mxu0 0.0
  %4636 = vmatprep.subr.mxu0 0.0
  %4637 = vmatpush2.msra.mxu0 0.0
  %4638 = vmatprep.subr.mxu0 0.0
  %4639 = vmatpush2.msra.mxu0 0.0
  %4640 = vmatprep.subr.mxu0 0.0
  %4641 = vmatpush2.msra.mxu0 0.0
  %4642 = vmatprep.mubr.f32.mxu0 0.0
  %4643 = vmatmul.mubr.f32.gmra.mxu0 %v4487
  %v4644 = vpop.f32.mrf.mxu0
  %v4645 = vadd.f32 0.0, %v4644
  %v4646 = vpop.f32.mrf.mxu0
  %4647 = vmatprep.mubr.f32.mxu0 0.0
  %4648 = vmatmul.mubr.f32.gmra.mxu0 %v4490
  %v4649 = vpop.f32.mrf.mxu0
  %v4650 = vadd.f32 0.0, %v4649
  %v4651 = vpop.f32.mrf.mxu0
  %4652 = vmatprep.mubr.f32.mxu0 0.0
  %4653 = vmatmul.mubr.f32.gmra.mxu0 %v4493
  %v4654 = vpop.f32.mrf.mxu0
  %v4655 = vadd.f32 0.0, %v4654
  %v4656 = vpop.f32.mrf.mxu0
  %4657 = vdwg.mxu0
  %v4658 = vadd.f32 %v4397, %v4562
  %v4659 = vadd.f32 %v4398, %v4567
  %v4660 = vadd.f32 %v4399, %v4572
  %v4661 = vadd.f32 %v4400, %v4645
  %v4662 = vadd.f32 %v4401, %v4650
  %v4663 = vadd.f32 %v4402, %v4655
  %4664 = vmatprep.subr.mxu0 0.0
  %4665 = vmatpush1.msra.mxu0 0.0
  %4666 = vmatprep.subr.mxu0 0.0
  %4667 = vmatpush1.msra.mxu0 0.0
  %4668 = vmatprep.subr.mxu0 0.0
  %4669 = vmatpush1.msra.mxu0 0.0
  %4670 = vmatprep.subr.mxu0 0.0
  %4671 = vmatpush1.msra.mxu0 0.0
  %4672 = vmatprep.subr.mxu0 0.0
  %4673 = vmatpush1.msra.mxu0 0.0
  %4674 = vmatprep.subr.mxu0 0.0
  %4675 = vmatpush1.msra.mxu0 0.0
  %4676 = vmatprep.subr.mxu0 0.0
  %4677 = vmatpush1.msra.mxu0 0.0
  %4678 = vmatprep.subr.mxu0 0.0
  %4679 = vmatpush1.msra.mxu0 0.0
  %4680 = vmatprep.subr.mxu0 0.0
  %4681 = vmatpush1.msra.mxu0 0.0
  %4682 = vmatprep.subr.mxu0 0.0
  %4683 = vmatpush1.msra.mxu0 0.0
  %4684 = vmatprep.subr.mxu0 0.0
  %4685 = vmatpush1.msra.mxu0 0.0
  %4686 = vmatprep.subr.mxu0 0.0
  %4687 = vmatpush1.msra.mxu0 0.0
  %4688 = vmatprep.subr.mxu0 0.0
  %4689 = vmatpush1.msra.mxu0 0.0
  %4690 = vmatprep.subr.mxu0 0.0
  %4691 = vmatpush1.msra.mxu0 %v3632
  %4692 = vmatprep.subr.mxu0 0.0
  %4693 = vmatpush1.msra.mxu0 %v3629
  %4694 = vmatprep.subr.mxu0 0.0
  %4695 = vmatpush1.msra.mxu0 %v3628
  %4696 = vmatprep.subr.mxu0 0.0
  %4697 = vmatpush2.msra.mxu0 0.0
  %4698 = vmatprep.subr.mxu0 0.0
  %4699 = vmatpush2.msra.mxu0 0.0
  %4700 = vmatprep.subr.mxu0 0.0
  %4701 = vmatpush2.msra.mxu0 0.0
  %4702 = vmatprep.subr.mxu0 0.0
  %4703 = vmatpush2.msra.mxu0 0.0
  %4704 = vmatprep.subr.mxu0 0.0
  %4705 = vmatpush2.msra.mxu0 0.0
  %4706 = vmatprep.subr.mxu0 0.0
  %4707 = vmatpush2.msra.mxu0 0.0
  %4708 = vmatprep.subr.mxu0 0.0
  %4709 = vmatpush2.msra.mxu0 0.0
  %4710 = vmatprep.subr.mxu0 0.0
  %4711 = vmatpush2.msra.mxu0 0.0
  %4712 = vmatprep.subr.mxu0 0.0
  %4713 = vmatpush2.msra.mxu0 0.0
  %4714 = vmatprep.subr.mxu0 0.0
  %4715 = vmatpush2.msra.mxu0 0.0
  %4716 = vmatprep.subr.mxu0 0.0
  %4717 = vmatpush2.msra.mxu0 0.0
  %4718 = vmatprep.subr.mxu0 0.0
  %4719 = vmatpush2.msra.mxu0 0.0
  %4720 = vmatprep.subr.mxu0 0.0
  %4721 = vmatpush2.msra.mxu0 0.0
  %4722 = vmatprep.subr.mxu0 0.0
  %4723 = vmatpush2.msra.mxu0 0.0
  %4724 = vmatprep.subr.mxu0 0.0
  %4725 = vmatpush2.msra.mxu0 0.0
  %4726 = vmatprep.subr.mxu0 0.0
  %4727 = vmatpush2.msra.mxu0 0.0
  %4728 = vmatprep.mubr.f32.mxu0 0.0
  %4729 = vmatmul.mubr.f32.gmra.mxu0 %v1038
  %v4730 = vpop.f32.mrf.mxu0
  %v4731 = vadd.f32 0.0, %v4730
  %v4732 = vpop.f32.mrf.mxu0
  %4733 = vmatprep.mubr.f32.mxu0 0.0
  %4734 = vmatmul.mubr.f32.gmra.mxu0 %v1041
  %v4735 = vpop.f32.mrf.mxu0
  %v4736 = vadd.f32 0.0, %v4735
  %v4737 = vpop.f32.mrf.mxu0
  %4738 = vmatprep.mubr.f32.mxu0 0.0
  %4739 = vmatmul.mubr.f32.gmra.mxu0 %v1044
  %v4740 = vpop.f32.mrf.mxu0
  %v4741 = vadd.f32 0.0, %v4740
  %v4742 = vpop.f32.mrf.mxu0
  %4743 = vdwg.mxu0
  %s4744 = scalar_lea.vmem %s15, 64
  %v4745 = vld [vmem:[%s4744] sm:$0xff]
  %v4746 = vld [vmem:[%s4744 + $0x8] sm:$0xff]
  %v4748 = vsel %vm2194, %v4731, 0
  %v4751 = vsel %vm2194, %v4736, 0
  %v4754 = vsel %vm2194, %v4741, 0
  %4756 = vmatprep.subr.mxu0 0.0
  %4757 = vmatpush1.msra.mxu0 0.0
  %4758 = vmatprep.subr.mxu0 0.0
  %4759 = vmatpush1.msra.mxu0 0.0
  %4760 = vmatprep.subr.mxu0 0.0
  %4761 = vmatpush1.msra.mxu0 0.0
  %4762 = vmatprep.subr.mxu0 0.0
  %4763 = vmatpush1.msra.mxu0 0.0
  %4764 = vmatprep.subr.mxu0 0.0
  %4765 = vmatpush1.msra.mxu0 0.0
  %4766 = vmatprep.subr.mxu0 0.0
  %4767 = vmatpush1.msra.mxu0 0.0
  %4768 = vmatprep.subr.mxu0 0.0
  %4769 = vmatpush1.msra.mxu0 0.0
  %4770 = vmatprep.subr.mxu0 0.0
  %4771 = vmatpush1.msra.mxu0 0.0
  %4772 = vmatprep.subr.mxu0 0.0
  %4773 = vmatpush1.msra.mxu0 0.0
  %4774 = vmatprep.subr.mxu0 0.0
  %4775 = vmatpush1.msra.mxu0 0.0
  %4776 = vmatprep.subr.mxu0 0.0
  %4777 = vmatpush1.msra.mxu0 0.0
  %4778 = vmatprep.subr.mxu0 0.0
  %4779 = vmatpush1.msra.mxu0 0.0
  %4780 = vmatprep.subr.mxu0 0.0
  %4781 = vmatpush1.msra.mxu0 0.0
  %4782 = vmatprep.subr.mxu0 0.0
  %4783 = vmatpush1.msra.mxu0 0.0
  %4784 = vmatprep.subr.mxu0 0.0
  %4785 = vmatpush1.msra.mxu0 %v4746
  %4786 = vmatprep.subr.mxu0 0.0
  %4787 = vmatpush1.msra.mxu0 %v4745
  %4788 = vmatprep.subr.mxu0 0.0
  %4789 = vmatpush2.msra.mxu0 0.0
  %4790 = vmatprep.subr.mxu0 0.0
  %4791 = vmatpush2.msra.mxu0 0.0
  %4792 = vmatprep.subr.mxu0 0.0
  %4793 = vmatpush2.msra.mxu0 0.0
  %4794 = vmatprep.subr.mxu0 0.0
  %4795 = vmatpush2.msra.mxu0 0.0
  %4796 = vmatprep.subr.mxu0 0.0
  %4797 = vmatpush2.msra.mxu0 0.0
  %4798 = vmatprep.subr.mxu0 0.0
  %4799 = vmatpush2.msra.mxu0 0.0
  %4800 = vmatprep.subr.mxu0 0.0
  %4801 = vmatpush2.msra.mxu0 0.0
  %4802 = vmatprep.subr.mxu0 0.0
  %4803 = vmatpush2.msra.mxu0 0.0
  %4804 = vmatprep.subr.mxu0 0.0
  %4805 = vmatpush2.msra.mxu0 0.0
  %4806 = vmatprep.subr.mxu0 0.0
  %4807 = vmatpush2.msra.mxu0 0.0
  %4808 = vmatprep.subr.mxu0 0.0
  %4809 = vmatpush2.msra.mxu0 0.0
  %4810 = vmatprep.subr.mxu0 0.0
  %4811 = vmatpush2.msra.mxu0 0.0
  %4812 = vmatprep.subr.mxu0 0.0
  %4813 = vmatpush2.msra.mxu0 0.0
  %4814 = vmatprep.subr.mxu0 0.0
  %4815 = vmatpush2.msra.mxu0 0.0
  %4816 = vmatprep.subr.mxu0 0.0
  %4817 = vmatpush2.msra.mxu0 0.0
  %4818 = vmatprep.subr.mxu0 0.0
  %4819 = vmatpush2.msra.mxu0 0.0
  %4820 = vmatprep.mubr.f32.mxu0 0.0
  %4821 = vmatmul.mubr.f32.gmra.mxu0 %v4748
  %v4822 = vpop.f32.mrf.mxu0
  %v4823 = vadd.f32 0.0, %v4822
  %v4824 = vpop.f32.mrf.mxu0
  %4825 = vmatprep.mubr.f32.mxu0 0.0
  %4826 = vmatmul.mubr.f32.gmra.mxu0 %v4751
  %v4827 = vpop.f32.mrf.mxu0
  %v4828 = vadd.f32 0.0, %v4827
  %v4829 = vpop.f32.mrf.mxu0
  %4830 = vmatprep.mubr.f32.mxu0 0.0
  %4831 = vmatmul.mubr.f32.gmra.mxu0 %v4754
  %v4832 = vpop.f32.mrf.mxu0
  %v4833 = vadd.f32 0.0, %v4832
  %v4834 = vpop.f32.mrf.mxu0
  %4835 = vdwg.mxu0
  %s4836 = scalar_lea.vmem %s17, 64
  %v4837 = vld [vmem:[%s4836] sm:$0xff]
  %v4838 = vld [vmem:[%s4836 + $0x8] sm:$0xff]
  %4839 = vmatprep.subr.mxu0 0.0
  %4840 = vmatpush1.msra.mxu0 0.0
  %4841 = vmatprep.subr.mxu0 0.0
  %4842 = vmatpush1.msra.mxu0 0.0
  %4843 = vmatprep.subr.mxu0 0.0
  %4844 = vmatpush1.msra.mxu0 0.0
  %4845 = vmatprep.subr.mxu0 0.0
  %4846 = vmatpush1.msra.mxu0 0.0
  %4847 = vmatprep.subr.mxu0 0.0
  %4848 = vmatpush1.msra.mxu0 0.0
  %4849 = vmatprep.subr.mxu0 0.0
  %4850 = vmatpush1.msra.mxu0 0.0
  %4851 = vmatprep.subr.mxu0 0.0
  %4852 = vmatpush1.msra.mxu0 0.0
  %4853 = vmatprep.subr.mxu0 0.0
  %4854 = vmatpush1.msra.mxu0 0.0
  %4855 = vmatprep.subr.mxu0 0.0
  %4856 = vmatpush1.msra.mxu0 0.0
  %4857 = vmatprep.subr.mxu0 0.0
  %4858 = vmatpush1.msra.mxu0 0.0
  %4859 = vmatprep.subr.mxu0 0.0
  %4860 = vmatpush1.msra.mxu0 0.0
  %4861 = vmatprep.subr.mxu0 0.0
  %4862 = vmatpush1.msra.mxu0 0.0
  %4863 = vmatprep.subr.mxu0 0.0
  %4864 = vmatpush1.msra.mxu0 0.0
  %4865 = vmatprep.subr.mxu0 0.0
  %4866 = vmatpush1.msra.mxu0 0.0
  %4867 = vmatprep.subr.mxu0 0.0
  %4868 = vmatpush1.msra.mxu0 %v4838
  %4869 = vmatprep.subr.mxu0 0.0
  %4870 = vmatpush1.msra.mxu0 %v4837
  %4871 = vmatprep.subr.mxu0 0.0
  %4872 = vmatpush2.msra.mxu0 0.0
  %4873 = vmatprep.subr.mxu0 0.0
  %4874 = vmatpush2.msra.mxu0 0.0
  %4875 = vmatprep.subr.mxu0 0.0
  %4876 = vmatpush2.msra.mxu0 0.0
  %4877 = vmatprep.subr.mxu0 0.0
  %4878 = vmatpush2.msra.mxu0 0.0
  %4879 = vmatprep.subr.mxu0 0.0
  %4880 = vmatpush2.msra.mxu0 0.0
  %4881 = vmatprep.subr.mxu0 0.0
  %4882 = vmatpush2.msra.mxu0 0.0
  %4883 = vmatprep.subr.mxu0 0.0
  %4884 = vmatpush2.msra.mxu0 0.0
  %4885 = vmatprep.subr.mxu0 0.0
  %4886 = vmatpush2.msra.mxu0 0.0
  %4887 = vmatprep.subr.mxu0 0.0
  %4888 = vmatpush2.msra.mxu0 0.0
  %4889 = vmatprep.subr.mxu0 0.0
  %4890 = vmatpush2.msra.mxu0 0.0
  %4891 = vmatprep.subr.mxu0 0.0
  %4892 = vmatpush2.msra.mxu0 0.0
  %4893 = vmatprep.subr.mxu0 0.0
  %4894 = vmatpush2.msra.mxu0 0.0
  %4895 = vmatprep.subr.mxu0 0.0
  %4896 = vmatpush2.msra.mxu0 0.0
  %4897 = vmatprep.subr.mxu0 0.0
  %4898 = vmatpush2.msra.mxu0 0.0
  %4899 = vmatprep.subr.mxu0 0.0
  %4900 = vmatpush2.msra.mxu0 0.0
  %4901 = vmatprep.subr.mxu0 0.0
  %4902 = vmatpush2.msra.mxu0 0.0
  %4903 = vmatprep.mubr.f32.mxu0 0.0
  %4904 = vmatmul.mubr.f32.gmra.mxu0 %v4748
  %v4905 = vpop.f32.mrf.mxu0
  %v4906 = vadd.f32 0.0, %v4905
  %v4907 = vpop.f32.mrf.mxu0
  %4908 = vmatprep.mubr.f32.mxu0 0.0
  %4909 = vmatmul.mubr.f32.gmra.mxu0 %v4751
  %v4910 = vpop.f32.mrf.mxu0
  %v4911 = vadd.f32 0.0, %v4910
  %v4912 = vpop.f32.mrf.mxu0
  %4913 = vmatprep.mubr.f32.mxu0 0.0
  %4914 = vmatmul.mubr.f32.gmra.mxu0 %v4754
  %v4915 = vpop.f32.mrf.mxu0
  %v4916 = vadd.f32 0.0, %v4915
  %v4917 = vpop.f32.mrf.mxu0
  %4918 = vdwg.mxu0
  %v4919 = vadd.f32 %v4658, %v4823
  %v4920 = vadd.f32 %v4659, %v4828
  %v4921 = vadd.f32 %v4660, %v4833
  %v4922 = vadd.f32 %v4661, %v4906
  %v4923 = vadd.f32 %v4662, %v4911
  %v4924 = vadd.f32 %v4663, %v4916
  %4925 = vmatprep.subr.mxu0 0.0
  %4926 = vmatpush1.msra.mxu0 0.0
  %4927 = vmatprep.subr.mxu0 0.0
  %4928 = vmatpush1.msra.mxu0 0.0
  %4929 = vmatprep.subr.mxu0 0.0
  %4930 = vmatpush1.msra.mxu0 0.0
  %4931 = vmatprep.subr.mxu0 0.0
  %4932 = vmatpush1.msra.mxu0 0.0
  %4933 = vmatprep.subr.mxu0 0.0
  %4934 = vmatpush1.msra.mxu0 0.0
  %4935 = vmatprep.subr.mxu0 0.0
  %4936 = vmatpush1.msra.mxu0 0.0
  %4937 = vmatprep.subr.mxu0 0.0
  %4938 = vmatpush1.msra.mxu0 0.0
  %4939 = vmatprep.subr.mxu0 0.0
  %4940 = vmatpush1.msra.mxu0 0.0
  %4941 = vmatprep.subr.mxu0 0.0
  %4942 = vmatpush1.msra.mxu0 0.0
  %4943 = vmatprep.subr.mxu0 0.0
  %4944 = vmatpush1.msra.mxu0 0.0
  %4945 = vmatprep.subr.mxu0 0.0
  %4946 = vmatpush1.msra.mxu0 0.0
  %4947 = vmatprep.subr.mxu0 0.0
  %4948 = vmatpush1.msra.mxu0 0.0
  %4949 = vmatprep.subr.mxu0 0.0
  %4950 = vmatpush1.msra.mxu0 0.0
  %4951 = vmatprep.subr.mxu0 0.0
  %4952 = vmatpush1.msra.mxu0 %v3632
  %4953 = vmatprep.subr.mxu0 0.0
  %4954 = vmatpush1.msra.mxu0 %v3629
  %4955 = vmatprep.subr.mxu0 0.0
  %4956 = vmatpush1.msra.mxu0 %v3628
  %4957 = vmatprep.subr.mxu0 0.0
  %4958 = vmatpush2.msra.mxu0 0.0
  %4959 = vmatprep.subr.mxu0 0.0
  %4960 = vmatpush2.msra.mxu0 0.0
  %4961 = vmatprep.subr.mxu0 0.0
  %4962 = vmatpush2.msra.mxu0 0.0
  %4963 = vmatprep.subr.mxu0 0.0
  %4964 = vmatpush2.msra.mxu0 0.0
  %4965 = vmatprep.subr.mxu0 0.0
  %4966 = vmatpush2.msra.mxu0 0.0
  %4967 = vmatprep.subr.mxu0 0.0
  %4968 = vmatpush2.msra.mxu0 0.0
  %4969 = vmatprep.subr.mxu0 0.0
  %4970 = vmatpush2.msra.mxu0 0.0
  %4971 = vmatprep.subr.mxu0 0.0
  %4972 = vmatpush2.msra.mxu0 0.0
  %4973 = vmatprep.subr.mxu0 0.0
  %4974 = vmatpush2.msra.mxu0 0.0
  %4975 = vmatprep.subr.mxu0 0.0
  %4976 = vmatpush2.msra.mxu0 0.0
  %4977 = vmatprep.subr.mxu0 0.0
  %4978 = vmatpush2.msra.mxu0 0.0
  %4979 = vmatprep.subr.mxu0 0.0
  %4980 = vmatpush2.msra.mxu0 0.0
  %4981 = vmatprep.subr.mxu0 0.0
  %4982 = vmatpush2.msra.mxu0 0.0
  %4983 = vmatprep.subr.mxu0 0.0
  %4984 = vmatpush2.msra.mxu0 0.0
  %4985 = vmatprep.subr.mxu0 0.0
  %4986 = vmatpush2.msra.mxu0 0.0
  %4987 = vmatprep.subr.mxu0 0.0
  %4988 = vmatpush2.msra.mxu0 0.0
  %4989 = vmatprep.mubr.f32.mxu0 0.0
  %4990 = vmatmul.mubr.f32.gmra.mxu0 %v1230
  %v4991 = vpop.f32.mrf.mxu0
  %v4992 = vadd.f32 0.0, %v4991
  %v4993 = vpop.f32.mrf.mxu0
  %4994 = vmatprep.mubr.f32.mxu0 0.0
  %4995 = vmatmul.mubr.f32.gmra.mxu0 %v1233
  %v4996 = vpop.f32.mrf.mxu0
  %v4997 = vadd.f32 0.0, %v4996
  %v4998 = vpop.f32.mrf.mxu0
  %4999 = vmatprep.mubr.f32.mxu0 0.0
  %5000 = vmatmul.mubr.f32.gmra.mxu0 %v1236
  %v5001 = vpop.f32.mrf.mxu0
  %v5002 = vadd.f32 0.0, %v5001
  %v5003 = vpop.f32.mrf.mxu0
  %5004 = vdwg.mxu0
  %s5005 = scalar_lea.vmem %s15, 80
  %v5006 = vld [vmem:[%s5005] sm:$0xff]
  %v5007 = vld [vmem:[%s5005 + $0x8] sm:$0xff]
  %v5009 = vsel %vm2194, %v4992, 0
  %v5012 = vsel %vm2194, %v4997, 0
  %v5015 = vsel %vm2194, %v5002, 0
  %5017 = vmatprep.subr.mxu0 0.0
  %5018 = vmatpush1.msra.mxu0 0.0
  %5019 = vmatprep.subr.mxu0 0.0
  %5020 = vmatpush1.msra.mxu0 0.0
  %5021 = vmatprep.subr.mxu0 0.0
  %5022 = vmatpush1.msra.mxu0 0.0
  %5023 = vmatprep.subr.mxu0 0.0
  %5024 = vmatpush1.msra.mxu0 0.0
  %5025 = vmatprep.subr.mxu0 0.0
  %5026 = vmatpush1.msra.mxu0 0.0
  %5027 = vmatprep.subr.mxu0 0.0
  %5028 = vmatpush1.msra.mxu0 0.0
  %5029 = vmatprep.subr.mxu0 0.0
  %5030 = vmatpush1.msra.mxu0 0.0
  %5031 = vmatprep.subr.mxu0 0.0
  %5032 = vmatpush1.msra.mxu0 0.0
  %5033 = vmatprep.subr.mxu0 0.0
  %5034 = vmatpush1.msra.mxu0 0.0
  %5035 = vmatprep.subr.mxu0 0.0
  %5036 = vmatpush1.msra.mxu0 0.0
  %5037 = vmatprep.subr.mxu0 0.0
  %5038 = vmatpush1.msra.mxu0 0.0
  %5039 = vmatprep.subr.mxu0 0.0
  %5040 = vmatpush1.msra.mxu0 0.0
  %5041 = vmatprep.subr.mxu0 0.0
  %5042 = vmatpush1.msra.mxu0 0.0
  %5043 = vmatprep.subr.mxu0 0.0
  %5044 = vmatpush1.msra.mxu0 0.0
  %5045 = vmatprep.subr.mxu0 0.0
  %5046 = vmatpush1.msra.mxu0 %v5007
  %5047 = vmatprep.subr.mxu0 0.0
  %5048 = vmatpush1.msra.mxu0 %v5006
  %5049 = vmatprep.subr.mxu0 0.0
  %5050 = vmatpush2.msra.mxu0 0.0
  %5051 = vmatprep.subr.mxu0 0.0
  %5052 = vmatpush2.msra.mxu0 0.0
  %5053 = vmatprep.subr.mxu0 0.0
  %5054 = vmatpush2.msra.mxu0 0.0
  %5055 = vmatprep.subr.mxu0 0.0
  %5056 = vmatpush2.msra.mxu0 0.0
  %5057 = vmatprep.subr.mxu0 0.0
  %5058 = vmatpush2.msra.mxu0 0.0
  %5059 = vmatprep.subr.mxu0 0.0
  %5060 = vmatpush2.msra.mxu0 0.0
  %5061 = vmatprep.subr.mxu0 0.0
  %5062 = vmatpush2.msra.mxu0 0.0
  %5063 = vmatprep.subr.mxu0 0.0
  %5064 = vmatpush2.msra.mxu0 0.0
  %5065 = vmatprep.subr.mxu0 0.0
  %5066 = vmatpush2.msra.mxu0 0.0
  %5067 = vmatprep.subr.mxu0 0.0
  %5068 = vmatpush2.msra.mxu0 0.0
  %5069 = vmatprep.subr.mxu0 0.0
  %5070 = vmatpush2.msra.mxu0 0.0
  %5071 = vmatprep.subr.mxu0 0.0
  %5072 = vmatpush2.msra.mxu0 0.0
  %5073 = vmatprep.subr.mxu0 0.0
  %5074 = vmatpush2.msra.mxu0 0.0
  %5075 = vmatprep.subr.mxu0 0.0
  %5076 = vmatpush2.msra.mxu0 0.0
  %5077 = vmatprep.subr.mxu0 0.0
  %5078 = vmatpush2.msra.mxu0 0.0
  %5079 = vmatprep.subr.mxu0 0.0
  %5080 = vmatpush2.msra.mxu0 0.0
  %5081 = vmatprep.mubr.f32.mxu0 0.0
  %5082 = vmatmul.mubr.f32.gmra.mxu0 %v5009
  %v5083 = vpop.f32.mrf.mxu0
  %v5084 = vadd.f32 0.0, %v5083
  %v5085 = vpop.f32.mrf.mxu0
  %5086 = vmatprep.mubr.f32.mxu0 0.0
  %5087 = vmatmul.mubr.f32.gmra.mxu0 %v5012
  %v5088 = vpop.f32.mrf.mxu0
  %v5089 = vadd.f32 0.0, %v5088
  %v5090 = vpop.f32.mrf.mxu0
  %5091 = vmatprep.mubr.f32.mxu0 0.0
  %5092 = vmatmul.mubr.f32.gmra.mxu0 %v5015
  %v5093 = vpop.f32.mrf.mxu0
  %v5094 = vadd.f32 0.0, %v5093
  %v5095 = vpop.f32.mrf.mxu0
  %5096 = vdwg.mxu0
  %s5097 = scalar_lea.vmem %s17, 80
  %v5098 = vld [vmem:[%s5097] sm:$0xff]
  %v5099 = vld [vmem:[%s5097 + $0x8] sm:$0xff]
  %5100 = vmatprep.subr.mxu0 0.0
  %5101 = vmatpush1.msra.mxu0 0.0
  %5102 = vmatprep.subr.mxu0 0.0
  %5103 = vmatpush1.msra.mxu0 0.0
  %5104 = vmatprep.subr.mxu0 0.0
  %5105 = vmatpush1.msra.mxu0 0.0
  %5106 = vmatprep.subr.mxu0 0.0
  %5107 = vmatpush1.msra.mxu0 0.0
  %5108 = vmatprep.subr.mxu0 0.0
  %5109 = vmatpush1.msra.mxu0 0.0
  %5110 = vmatprep.subr.mxu0 0.0
  %5111 = vmatpush1.msra.mxu0 0.0
  %5112 = vmatprep.subr.mxu0 0.0
  %5113 = vmatpush1.msra.mxu0 0.0
  %5114 = vmatprep.subr.mxu0 0.0
  %5115 = vmatpush1.msra.mxu0 0.0
  %5116 = vmatprep.subr.mxu0 0.0
  %5117 = vmatpush1.msra.mxu0 0.0
  %5118 = vmatprep.subr.mxu0 0.0
  %5119 = vmatpush1.msra.mxu0 0.0
  %5120 = vmatprep.subr.mxu0 0.0
  %5121 = vmatpush1.msra.mxu0 0.0
  %5122 = vmatprep.subr.mxu0 0.0
  %5123 = vmatpush1.msra.mxu0 0.0
  %5124 = vmatprep.subr.mxu0 0.0
  %5125 = vmatpush1.msra.mxu0 0.0
  %5126 = vmatprep.subr.mxu0 0.0
  %5127 = vmatpush1.msra.mxu0 0.0
  %5128 = vmatprep.subr.mxu0 0.0
  %5129 = vmatpush1.msra.mxu0 %v5099
  %5130 = vmatprep.subr.mxu0 0.0
  %5131 = vmatpush1.msra.mxu0 %v5098
  %5132 = vmatprep.subr.mxu0 0.0
  %5133 = vmatpush2.msra.mxu0 0.0
  %5134 = vmatprep.subr.mxu0 0.0
  %5135 = vmatpush2.msra.mxu0 0.0
  %5136 = vmatprep.subr.mxu0 0.0
  %5137 = vmatpush2.msra.mxu0 0.0
  %5138 = vmatprep.subr.mxu0 0.0
  %5139 = vmatpush2.msra.mxu0 0.0
  %5140 = vmatprep.subr.mxu0 0.0
  %5141 = vmatpush2.msra.mxu0 0.0
  %5142 = vmatprep.subr.mxu0 0.0
  %5143 = vmatpush2.msra.mxu0 0.0
  %5144 = vmatprep.subr.mxu0 0.0
  %5145 = vmatpush2.msra.mxu0 0.0
  %5146 = vmatprep.subr.mxu0 0.0
  %5147 = vmatpush2.msra.mxu0 0.0
  %5148 = vmatprep.subr.mxu0 0.0
  %5149 = vmatpush2.msra.mxu0 0.0
  %5150 = vmatprep.subr.mxu0 0.0
  %5151 = vmatpush2.msra.mxu0 0.0
  %5152 = vmatprep.subr.mxu0 0.0
  %5153 = vmatpush2.msra.mxu0 0.0
  %5154 = vmatprep.subr.mxu0 0.0
  %5155 = vmatpush2.msra.mxu0 0.0
  %5156 = vmatprep.subr.mxu0 0.0
  %5157 = vmatpush2.msra.mxu0 0.0
  %5158 = vmatprep.subr.mxu0 0.0
  %5159 = vmatpush2.msra.mxu0 0.0
  %5160 = vmatprep.subr.mxu0 0.0
  %5161 = vmatpush2.msra.mxu0 0.0
  %5162 = vmatprep.subr.mxu0 0.0
  %5163 = vmatpush2.msra.mxu0 0.0
  %5164 = vmatprep.mubr.f32.mxu0 0.0
  %5165 = vmatmul.mubr.f32.gmra.mxu0 %v5009
  %v5166 = vpop.f32.mrf.mxu0
  %v5167 = vadd.f32 0.0, %v5166
  %v5168 = vpop.f32.mrf.mxu0
  %5169 = vmatprep.mubr.f32.mxu0 0.0
  %5170 = vmatmul.mubr.f32.gmra.mxu0 %v5012
  %v5171 = vpop.f32.mrf.mxu0
  %v5172 = vadd.f32 0.0, %v5171
  %v5173 = vpop.f32.mrf.mxu0
  %5174 = vmatprep.mubr.f32.mxu0 0.0
  %5175 = vmatmul.mubr.f32.gmra.mxu0 %v5015
  %v5176 = vpop.f32.mrf.mxu0
  %v5177 = vadd.f32 0.0, %v5176
  %v5178 = vpop.f32.mrf.mxu0
  %5179 = vdwg.mxu0
  %v5180 = vadd.f32 %v4919, %v5084
  %v5181 = vadd.f32 %v4920, %v5089
  %v5182 = vadd.f32 %v4921, %v5094
  %v5183 = vadd.f32 %v4922, %v5167
  %v5184 = vadd.f32 %v4923, %v5172
  %v5185 = vadd.f32 %v4924, %v5177
  %5186 = vmatprep.subr.mxu0 0.0
  %5187 = vmatpush1.msra.mxu0 0.0
  %5188 = vmatprep.subr.mxu0 0.0
  %5189 = vmatpush1.msra.mxu0 0.0
  %5190 = vmatprep.subr.mxu0 0.0
  %5191 = vmatpush1.msra.mxu0 0.0
  %5192 = vmatprep.subr.mxu0 0.0
  %5193 = vmatpush1.msra.mxu0 0.0
  %5194 = vmatprep.subr.mxu0 0.0
  %5195 = vmatpush1.msra.mxu0 0.0
  %5196 = vmatprep.subr.mxu0 0.0
  %5197 = vmatpush1.msra.mxu0 0.0
  %5198 = vmatprep.subr.mxu0 0.0
  %5199 = vmatpush1.msra.mxu0 0.0
  %5200 = vmatprep.subr.mxu0 0.0
  %5201 = vmatpush1.msra.mxu0 0.0
  %5202 = vmatprep.subr.mxu0 0.0
  %5203 = vmatpush1.msra.mxu0 0.0
  %5204 = vmatprep.subr.mxu0 0.0
  %5205 = vmatpush1.msra.mxu0 0.0
  %5206 = vmatprep.subr.mxu0 0.0
  %5207 = vmatpush1.msra.mxu0 0.0
  %5208 = vmatprep.subr.mxu0 0.0
  %5209 = vmatpush1.msra.mxu0 0.0
  %5210 = vmatprep.subr.mxu0 0.0
  %5211 = vmatpush1.msra.mxu0 0.0
  %5212 = vmatprep.subr.mxu0 0.0
  %5213 = vmatpush1.msra.mxu0 %v3632
  %5214 = vmatprep.subr.mxu0 0.0
  %5215 = vmatpush1.msra.mxu0 %v3629
  %5216 = vmatprep.subr.mxu0 0.0
  %5217 = vmatpush1.msra.mxu0 %v3628
  %5218 = vmatprep.subr.mxu0 0.0
  %5219 = vmatpush2.msra.mxu0 0.0
  %5220 = vmatprep.subr.mxu0 0.0
  %5221 = vmatpush2.msra.mxu0 0.0
  %5222 = vmatprep.subr.mxu0 0.0
  %5223 = vmatpush2.msra.mxu0 0.0
  %5224 = vmatprep.subr.mxu0 0.0
  %5225 = vmatpush2.msra.mxu0 0.0
  %5226 = vmatprep.subr.mxu0 0.0
  %5227 = vmatpush2.msra.mxu0 0.0
  %5228 = vmatprep.subr.mxu0 0.0
  %5229 = vmatpush2.msra.mxu0 0.0
  %5230 = vmatprep.subr.mxu0 0.0
  %5231 = vmatpush2.msra.mxu0 0.0
  %5232 = vmatprep.subr.mxu0 0.0
  %5233 = vmatpush2.msra.mxu0 0.0
  %5234 = vmatprep.subr.mxu0 0.0
  %5235 = vmatpush2.msra.mxu0 0.0
  %5236 = vmatprep.subr.mxu0 0.0
  %5237 = vmatpush2.msra.mxu0 0.0
  %5238 = vmatprep.subr.mxu0 0.0
  %5239 = vmatpush2.msra.mxu0 0.0
  %5240 = vmatprep.subr.mxu0 0.0
  %5241 = vmatpush2.msra.mxu0 0.0
  %5242 = vmatprep.subr.mxu0 0.0
  %5243 = vmatpush2.msra.mxu0 0.0
  %5244 = vmatprep.subr.mxu0 0.0
  %5245 = vmatpush2.msra.mxu0 0.0
  %5246 = vmatprep.subr.mxu0 0.0
  %5247 = vmatpush2.msra.mxu0 0.0
  %5248 = vmatprep.subr.mxu0 0.0
  %5249 = vmatpush2.msra.mxu0 0.0
  %5250 = vmatprep.mubr.f32.mxu0 0.0
  %5251 = vmatmul.mubr.f32.gmra.mxu0 %v1422
  %v5252 = vpop.f32.mrf.mxu0
  %v5253 = vadd.f32 0.0, %v5252
  %v5254 = vpop.f32.mrf.mxu0
  %5255 = vmatprep.mubr.f32.mxu0 0.0
  %5256 = vmatmul.mubr.f32.gmra.mxu0 %v1425
  %v5257 = vpop.f32.mrf.mxu0
  %v5258 = vadd.f32 0.0, %v5257
  %v5259 = vpop.f32.mrf.mxu0
  %5260 = vmatprep.mubr.f32.mxu0 0.0
  %5261 = vmatmul.mubr.f32.gmra.mxu0 %v1428
  %v5262 = vpop.f32.mrf.mxu0
  %v5263 = vadd.f32 0.0, %v5262
  %v5264 = vpop.f32.mrf.mxu0
  %5265 = vdwg.mxu0
  %s5266 = scalar_lea.vmem %s15, 96
  %v5267 = vld [vmem:[%s5266] sm:$0xff]
  %v5268 = vld [vmem:[%s5266 + $0x8] sm:$0xff]
  %v5270 = vsel %vm2194, %v5253, 0
  %v5273 = vsel %vm2194, %v5258, 0
  %v5276 = vsel %vm2194, %v5263, 0
  %5278 = vmatprep.subr.mxu0 0.0
  %5279 = vmatpush1.msra.mxu0 0.0
  %5280 = vmatprep.subr.mxu0 0.0
  %5281 = vmatpush1.msra.mxu0 0.0
  %5282 = vmatprep.subr.mxu0 0.0
  %5283 = vmatpush1.msra.mxu0 0.0
  %5284 = vmatprep.subr.mxu0 0.0
  %5285 = vmatpush1.msra.mxu0 0.0
  %5286 = vmatprep.subr.mxu0 0.0
  %5287 = vmatpush1.msra.mxu0 0.0
  %5288 = vmatprep.subr.mxu0 0.0
  %5289 = vmatpush1.msra.mxu0 0.0
  %5290 = vmatprep.subr.mxu0 0.0
  %5291 = vmatpush1.msra.mxu0 0.0
  %5292 = vmatprep.subr.mxu0 0.0
  %5293 = vmatpush1.msra.mxu0 0.0
  %5294 = vmatprep.subr.mxu0 0.0
  %5295 = vmatpush1.msra.mxu0 0.0
  %5296 = vmatprep.subr.mxu0 0.0
  %5297 = vmatpush1.msra.mxu0 0.0
  %5298 = vmatprep.subr.mxu0 0.0
  %5299 = vmatpush1.msra.mxu0 0.0
  %5300 = vmatprep.subr.mxu0 0.0
  %5301 = vmatpush1.msra.mxu0 0.0
  %5302 = vmatprep.subr.mxu0 0.0
  %5303 = vmatpush1.msra.mxu0 0.0
  %5304 = vmatprep.subr.mxu0 0.0
  %5305 = vmatpush1.msra.mxu0 0.0
  %5306 = vmatprep.subr.mxu0 0.0
  %5307 = vmatpush1.msra.mxu0 %v5268
  %5308 = vmatprep.subr.mxu0 0.0
  %5309 = vmatpush1.msra.mxu0 %v5267
  %5310 = vmatprep.subr.mxu0 0.0
  %5311 = vmatpush2.msra.mxu0 0.0
  %5312 = vmatprep.subr.mxu0 0.0
  %5313 = vmatpush2.msra.mxu0 0.0
  %5314 = vmatprep.subr.mxu0 0.0
  %5315 = vmatpush2.msra.mxu0 0.0
  %5316 = vmatprep.subr.mxu0 0.0
  %5317 = vmatpush2.msra.mxu0 0.0
  %5318 = vmatprep.subr.mxu0 0.0
  %5319 = vmatpush2.msra.mxu0 0.0
  %5320 = vmatprep.subr.mxu0 0.0
  %5321 = vmatpush2.msra.mxu0 0.0
  %5322 = vmatprep.subr.mxu0 0.0
  %5323 = vmatpush2.msra.mxu0 0.0
  %5324 = vmatprep.subr.mxu0 0.0
  %5325 = vmatpush2.msra.mxu0 0.0
  %5326 = vmatprep.subr.mxu0 0.0
  %5327 = vmatpush2.msra.mxu0 0.0
  %5328 = vmatprep.subr.mxu0 0.0
  %5329 = vmatpush2.msra.mxu0 0.0
  %5330 = vmatprep.subr.mxu0 0.0
  %5331 = vmatpush2.msra.mxu0 0.0
  %5332 = vmatprep.subr.mxu0 0.0
  %5333 = vmatpush2.msra.mxu0 0.0
  %5334 = vmatprep.subr.mxu0 0.0
  %5335 = vmatpush2.msra.mxu0 0.0
  %5336 = vmatprep.subr.mxu0 0.0
  %5337 = vmatpush2.msra.mxu0 0.0
  %5338 = vmatprep.subr.mxu0 0.0
  %5339 = vmatpush2.msra.mxu0 0.0
  %5340 = vmatprep.subr.mxu0 0.0
  %5341 = vmatpush2.msra.mxu0 0.0
  %5342 = vmatprep.mubr.f32.mxu0 0.0
  %5343 = vmatmul.mubr.f32.gmra.mxu0 %v5270
  %v5344 = vpop.f32.mrf.mxu0
  %v5345 = vadd.f32 0.0, %v5344
  %v5346 = vpop.f32.mrf.mxu0
  %5347 = vmatprep.mubr.f32.mxu0 0.0
  %5348 = vmatmul.mubr.f32.gmra.mxu0 %v5273
  %v5349 = vpop.f32.mrf.mxu0
  %v5350 = vadd.f32 0.0, %v5349
  %v5351 = vpop.f32.mrf.mxu0
  %5352 = vmatprep.mubr.f32.mxu0 0.0
  %5353 = vmatmul.mubr.f32.gmra.mxu0 %v5276
  %v5354 = vpop.f32.mrf.mxu0
  %v5355 = vadd.f32 0.0, %v5354
  %v5356 = vpop.f32.mrf.mxu0
  %5357 = vdwg.mxu0
  %s5358 = scalar_lea.vmem %s17, 96
  %v5359 = vld [vmem:[%s5358] sm:$0xff]
  %v5360 = vld [vmem:[%s5358 + $0x8] sm:$0xff]
  %5361 = vmatprep.subr.mxu0 0.0
  %5362 = vmatpush1.msra.mxu0 0.0
  %5363 = vmatprep.subr.mxu0 0.0
  %5364 = vmatpush1.msra.mxu0 0.0
  %5365 = vmatprep.subr.mxu0 0.0
  %5366 = vmatpush1.msra.mxu0 0.0
  %5367 = vmatprep.subr.mxu0 0.0
  %5368 = vmatpush1.msra.mxu0 0.0
  %5369 = vmatprep.subr.mxu0 0.0
  %5370 = vmatpush1.msra.mxu0 0.0
  %5371 = vmatprep.subr.mxu0 0.0
  %5372 = vmatpush1.msra.mxu0 0.0
  %5373 = vmatprep.subr.mxu0 0.0
  %5374 = vmatpush1.msra.mxu0 0.0
  %5375 = vmatprep.subr.mxu0 0.0
  %5376 = vmatpush1.msra.mxu0 0.0
  %5377 = vmatprep.subr.mxu0 0.0
  %5378 = vmatpush1.msra.mxu0 0.0
  %5379 = vmatprep.subr.mxu0 0.0
  %5380 = vmatpush1.msra.mxu0 0.0
  %5381 = vmatprep.subr.mxu0 0.0
  %5382 = vmatpush1.msra.mxu0 0.0
  %5383 = vmatprep.subr.mxu0 0.0
  %5384 = vmatpush1.msra.mxu0 0.0
  %5385 = vmatprep.subr.mxu0 0.0
  %5386 = vmatpush1.msra.mxu0 0.0
  %5387 = vmatprep.subr.mxu0 0.0
  %5388 = vmatpush1.msra.mxu0 0.0
  %5389 = vmatprep.subr.mxu0 0.0
  %5390 = vmatpush1.msra.mxu0 %v5360
  %5391 = vmatprep.subr.mxu0 0.0
  %5392 = vmatpush1.msra.mxu0 %v5359
  %5393 = vmatprep.subr.mxu0 0.0
  %5394 = vmatpush2.msra.mxu0 0.0
  %5395 = vmatprep.subr.mxu0 0.0
  %5396 = vmatpush2.msra.mxu0 0.0
  %5397 = vmatprep.subr.mxu0 0.0
  %5398 = vmatpush2.msra.mxu0 0.0
  %5399 = vmatprep.subr.mxu0 0.0
  %5400 = vmatpush2.msra.mxu0 0.0
  %5401 = vmatprep.subr.mxu0 0.0
  %5402 = vmatpush2.msra.mxu0 0.0
  %5403 = vmatprep.subr.mxu0 0.0
  %5404 = vmatpush2.msra.mxu0 0.0
  %5405 = vmatprep.subr.mxu0 0.0
  %5406 = vmatpush2.msra.mxu0 0.0
  %5407 = vmatprep.subr.mxu0 0.0
  %5408 = vmatpush2.msra.mxu0 0.0
  %5409 = vmatprep.subr.mxu0 0.0
  %5410 = vmatpush2.msra.mxu0 0.0
  %5411 = vmatprep.subr.mxu0 0.0
  %5412 = vmatpush2.msra.mxu0 0.0
  %5413 = vmatprep.subr.mxu0 0.0
  %5414 = vmatpush2.msra.mxu0 0.0
  %5415 = vmatprep.subr.mxu0 0.0
  %5416 = vmatpush2.msra.mxu0 0.0
  %5417 = vmatprep.subr.mxu0 0.0
  %5418 = vmatpush2.msra.mxu0 0.0
  %5419 = vmatprep.subr.mxu0 0.0
  %5420 = vmatpush2.msra.mxu0 0.0
  %5421 = vmatprep.subr.mxu0 0.0
  %5422 = vmatpush2.msra.mxu0 0.0
  %5423 = vmatprep.subr.mxu0 0.0
  %5424 = vmatpush2.msra.mxu0 0.0
  %5425 = vmatprep.mubr.f32.mxu0 0.0
  %5426 = vmatmul.mubr.f32.gmra.mxu0 %v5270
  %v5427 = vpop.f32.mrf.mxu0
  %v5428 = vadd.f32 0.0, %v5427
  %v5429 = vpop.f32.mrf.mxu0
  %5430 = vmatprep.mubr.f32.mxu0 0.0
  %5431 = vmatmul.mubr.f32.gmra.mxu0 %v5273
  %v5432 = vpop.f32.mrf.mxu0
  %v5433 = vadd.f32 0.0, %v5432
  %v5434 = vpop.f32.mrf.mxu0
  %5435 = vmatprep.mubr.f32.mxu0 0.0
  %5436 = vmatmul.mubr.f32.gmra.mxu0 %v5276
  %v5437 = vpop.f32.mrf.mxu0
  %v5438 = vadd.f32 0.0, %v5437
  %v5439 = vpop.f32.mrf.mxu0
  %5440 = vdwg.mxu0
  %v5441 = vadd.f32 %v5180, %v5345
  %v5442 = vadd.f32 %v5181, %v5350
  %v5443 = vadd.f32 %v5182, %v5355
  %v5444 = vadd.f32 %v5183, %v5428
  %v5445 = vadd.f32 %v5184, %v5433
  %v5446 = vadd.f32 %v5185, %v5438
  %5447 = vmatprep.subr.mxu0 0.0
  %5448 = vmatpush1.msra.mxu0 0.0
  %5449 = vmatprep.subr.mxu0 0.0
  %5450 = vmatpush1.msra.mxu0 0.0
  %5451 = vmatprep.subr.mxu0 0.0
  %5452 = vmatpush1.msra.mxu0 0.0
  %5453 = vmatprep.subr.mxu0 0.0
  %5454 = vmatpush1.msra.mxu0 0.0
  %5455 = vmatprep.subr.mxu0 0.0
  %5456 = vmatpush1.msra.mxu0 0.0
  %5457 = vmatprep.subr.mxu0 0.0
  %5458 = vmatpush1.msra.mxu0 0.0
  %5459 = vmatprep.subr.mxu0 0.0
  %5460 = vmatpush1.msra.mxu0 0.0
  %5461 = vmatprep.subr.mxu0 0.0
  %5462 = vmatpush1.msra.mxu0 0.0
  %5463 = vmatprep.subr.mxu0 0.0
  %5464 = vmatpush1.msra.mxu0 0.0
  %5465 = vmatprep.subr.mxu0 0.0
  %5466 = vmatpush1.msra.mxu0 0.0
  %5467 = vmatprep.subr.mxu0 0.0
  %5468 = vmatpush1.msra.mxu0 0.0
  %5469 = vmatprep.subr.mxu0 0.0
  %5470 = vmatpush1.msra.mxu0 0.0
  %5471 = vmatprep.subr.mxu0 0.0
  %5472 = vmatpush1.msra.mxu0 0.0
  %5473 = vmatprep.subr.mxu0 0.0
  %5474 = vmatpush1.msra.mxu0 %v3632
  %5475 = vmatprep.subr.mxu0 0.0
  %5476 = vmatpush1.msra.mxu0 %v3629
  %5477 = vmatprep.subr.mxu0 0.0
  %5478 = vmatpush1.msra.mxu0 %v3628
  %5479 = vmatprep.subr.mxu0 0.0
  %5480 = vmatpush2.msra.mxu0 0.0
  %5481 = vmatprep.subr.mxu0 0.0
  %5482 = vmatpush2.msra.mxu0 0.0
  %5483 = vmatprep.subr.mxu0 0.0
  %5484 = vmatpush2.msra.mxu0 0.0
  %5485 = vmatprep.subr.mxu0 0.0
  %5486 = vmatpush2.msra.mxu0 0.0
  %5487 = vmatprep.subr.mxu0 0.0
  %5488 = vmatpush2.msra.mxu0 0.0
  %5489 = vmatprep.subr.mxu0 0.0
  %5490 = vmatpush2.msra.mxu0 0.0
  %5491 = vmatprep.subr.mxu0 0.0
  %5492 = vmatpush2.msra.mxu0 0.0
  %5493 = vmatprep.subr.mxu0 0.0
  %5494 = vmatpush2.msra.mxu0 0.0
  %5495 = vmatprep.subr.mxu0 0.0
  %5496 = vmatpush2.msra.mxu0 0.0
  %5497 = vmatprep.subr.mxu0 0.0
  %5498 = vmatpush2.msra.mxu0 0.0
  %5499 = vmatprep.subr.mxu0 0.0
  %5500 = vmatpush2.msra.mxu0 0.0
  %5501 = vmatprep.subr.mxu0 0.0
  %5502 = vmatpush2.msra.mxu0 0.0
  %5503 = vmatprep.subr.mxu0 0.0
  %5504 = vmatpush2.msra.mxu0 0.0
  %5505 = vmatprep.subr.mxu0 0.0
  %5506 = vmatpush2.msra.mxu0 0.0
  %5507 = vmatprep.subr.mxu0 0.0
  %5508 = vmatpush2.msra.mxu0 0.0
  %5509 = vmatprep.subr.mxu0 0.0
  %5510 = vmatpush2.msra.mxu0 0.0
  %5511 = vmatprep.mubr.f32.mxu0 0.0
  %5512 = vmatmul.mubr.f32.gmra.mxu0 %v1614
  %v5513 = vpop.f32.mrf.mxu0
  %v5514 = vadd.f32 0.0, %v5513
  %v5515 = vpop.f32.mrf.mxu0
  %5516 = vmatprep.mubr.f32.mxu0 0.0
  %5517 = vmatmul.mubr.f32.gmra.mxu0 %v1617
  %v5518 = vpop.f32.mrf.mxu0
  %v5519 = vadd.f32 0.0, %v5518
  %v5520 = vpop.f32.mrf.mxu0
  %5521 = vmatprep.mubr.f32.mxu0 0.0
  %5522 = vmatmul.mubr.f32.gmra.mxu0 %v1620
  %v5523 = vpop.f32.mrf.mxu0
  %v5524 = vadd.f32 0.0, %v5523
  %v5525 = vpop.f32.mrf.mxu0
  %5526 = vdwg.mxu0
  %s5527 = scalar_lea.vmem %s15, 112
  %v5528 = vld [vmem:[%s5527] sm:$0xff]
  %v5529 = vld [vmem:[%s5527 + $0x8] sm:$0xff]
  %v5531 = vsel %vm2194, %v5514, 0
  %v5534 = vsel %vm2194, %v5519, 0
  %v5537 = vsel %vm2194, %v5524, 0
  %5539 = vmatprep.subr.mxu0 0.0
  %5540 = vmatpush1.msra.mxu0 0.0
  %5541 = vmatprep.subr.mxu0 0.0
  %5542 = vmatpush1.msra.mxu0 0.0
  %5543 = vmatprep.subr.mxu0 0.0
  %5544 = vmatpush1.msra.mxu0 0.0
  %5545 = vmatprep.subr.mxu0 0.0
  %5546 = vmatpush1.msra.mxu0 0.0
  %5547 = vmatprep.subr.mxu0 0.0
  %5548 = vmatpush1.msra.mxu0 0.0
  %5549 = vmatprep.subr.mxu0 0.0
  %5550 = vmatpush1.msra.mxu0 0.0
  %5551 = vmatprep.subr.mxu0 0.0
  %5552 = vmatpush1.msra.mxu0 0.0
  %5553 = vmatprep.subr.mxu0 0.0
  %5554 = vmatpush1.msra.mxu0 0.0
  %5555 = vmatprep.subr.mxu0 0.0
  %5556 = vmatpush1.msra.mxu0 0.0
  %5557 = vmatprep.subr.mxu0 0.0
  %5558 = vmatpush1.msra.mxu0 0.0
  %5559 = vmatprep.subr.mxu0 0.0
  %5560 = vmatpush1.msra.mxu0 0.0
  %5561 = vmatprep.subr.mxu0 0.0
  %5562 = vmatpush1.msra.mxu0 0.0
  %5563 = vmatprep.subr.mxu0 0.0
  %5564 = vmatpush1.msra.mxu0 0.0
  %5565 = vmatprep.subr.mxu0 0.0
  %5566 = vmatpush1.msra.mxu0 0.0
  %5567 = vmatprep.subr.mxu0 0.0
  %5568 = vmatpush1.msra.mxu0 %v5529
  %5569 = vmatprep.subr.mxu0 0.0
  %5570 = vmatpush1.msra.mxu0 %v5528
  %5571 = vmatprep.subr.mxu0 0.0
  %5572 = vmatpush2.msra.mxu0 0.0
  %5573 = vmatprep.subr.mxu0 0.0
  %5574 = vmatpush2.msra.mxu0 0.0
  %5575 = vmatprep.subr.mxu0 0.0
  %5576 = vmatpush2.msra.mxu0 0.0
  %5577 = vmatprep.subr.mxu0 0.0
  %5578 = vmatpush2.msra.mxu0 0.0
  %5579 = vmatprep.subr.mxu0 0.0
  %5580 = vmatpush2.msra.mxu0 0.0
  %5581 = vmatprep.subr.mxu0 0.0
  %5582 = vmatpush2.msra.mxu0 0.0
  %5583 = vmatprep.subr.mxu0 0.0
  %5584 = vmatpush2.msra.mxu0 0.0
  %5585 = vmatprep.subr.mxu0 0.0
  %5586 = vmatpush2.msra.mxu0 0.0
  %5587 = vmatprep.subr.mxu0 0.0
  %5588 = vmatpush2.msra.mxu0 0.0
  %5589 = vmatprep.subr.mxu0 0.0
  %5590 = vmatpush2.msra.mxu0 0.0
  %5591 = vmatprep.subr.mxu0 0.0
  %5592 = vmatpush2.msra.mxu0 0.0
  %5593 = vmatprep.subr.mxu0 0.0
  %5594 = vmatpush2.msra.mxu0 0.0
  %5595 = vmatprep.subr.mxu0 0.0
  %5596 = vmatpush2.msra.mxu0 0.0
  %5597 = vmatprep.subr.mxu0 0.0
  %5598 = vmatpush2.msra.mxu0 0.0
  %5599 = vmatprep.subr.mxu0 0.0
  %5600 = vmatpush2.msra.mxu0 0.0
  %5601 = vmatprep.subr.mxu0 0.0
  %5602 = vmatpush2.msra.mxu0 0.0
  %5603 = vmatprep.mubr.f32.mxu0 0.0
  %5604 = vmatmul.mubr.f32.gmra.mxu0 %v5531
  %v5605 = vpop.f32.mrf.mxu0
  %v5606 = vadd.f32 0.0, %v5605
  %v5607 = vpop.f32.mrf.mxu0
  %5608 = vmatprep.mubr.f32.mxu0 0.0
  %5609 = vmatmul.mubr.f32.gmra.mxu0 %v5534
  %v5610 = vpop.f32.mrf.mxu0
  %v5611 = vadd.f32 0.0, %v5610
  %v5612 = vpop.f32.mrf.mxu0
  %5613 = vmatprep.mubr.f32.mxu0 0.0
  %5614 = vmatmul.mubr.f32.gmra.mxu0 %v5537
  %v5615 = vpop.f32.mrf.mxu0
  %v5616 = vadd.f32 0.0, %v5615
  %v5617 = vpop.f32.mrf.mxu0
  %5618 = vdwg.mxu0
  %s5619 = scalar_lea.vmem %s17, 112
  %v5620 = vld [vmem:[%s5619] sm:$0xff]
  %v5621 = vld [vmem:[%s5619 + $0x8] sm:$0xff]
  %5622 = vmatprep.subr.mxu0 0.0
  %5623 = vmatpush1.msra.mxu0 0.0
  %5624 = vmatprep.subr.mxu0 0.0
  %5625 = vmatpush1.msra.mxu0 0.0
  %5626 = vmatprep.subr.mxu0 0.0
  %5627 = vmatpush1.msra.mxu0 0.0
  %5628 = vmatprep.subr.mxu0 0.0
  %5629 = vmatpush1.msra.mxu0 0.0
  %5630 = vmatprep.subr.mxu0 0.0
  %5631 = vmatpush1.msra.mxu0 0.0
  %5632 = vmatprep.subr.mxu0 0.0
  %5633 = vmatpush1.msra.mxu0 0.0
  %5634 = vmatprep.subr.mxu0 0.0
  %5635 = vmatpush1.msra.mxu0 0.0
  %5636 = vmatprep.subr.mxu0 0.0
  %5637 = vmatpush1.msra.mxu0 0.0
  %5638 = vmatprep.subr.mxu0 0.0
  %5639 = vmatpush1.msra.mxu0 0.0
  %5640 = vmatprep.subr.mxu0 0.0
  %5641 = vmatpush1.msra.mxu0 0.0
  %5642 = vmatprep.subr.mxu0 0.0
  %5643 = vmatpush1.msra.mxu0 0.0
  %5644 = vmatprep.subr.mxu0 0.0
  %5645 = vmatpush1.msra.mxu0 0.0
  %5646 = vmatprep.subr.mxu0 0.0
  %5647 = vmatpush1.msra.mxu0 0.0
  %5648 = vmatprep.subr.mxu0 0.0
  %5649 = vmatpush1.msra.mxu0 0.0
  %5650 = vmatprep.subr.mxu0 0.0
  %5651 = vmatpush1.msra.mxu0 %v5621
  %5652 = vmatprep.subr.mxu0 0.0
  %5653 = vmatpush1.msra.mxu0 %v5620
  %5654 = vmatprep.subr.mxu0 0.0
  %5655 = vmatpush2.msra.mxu0 0.0
  %5656 = vmatprep.subr.mxu0 0.0
  %5657 = vmatpush2.msra.mxu0 0.0
  %5658 = vmatprep.subr.mxu0 0.0
  %5659 = vmatpush2.msra.mxu0 0.0
  %5660 = vmatprep.subr.mxu0 0.0
  %5661 = vmatpush2.msra.mxu0 0.0
  %5662 = vmatprep.subr.mxu0 0.0
  %5663 = vmatpush2.msra.mxu0 0.0
  %5664 = vmatprep.subr.mxu0 0.0
  %5665 = vmatpush2.msra.mxu0 0.0
  %5666 = vmatprep.subr.mxu0 0.0
  %5667 = vmatpush2.msra.mxu0 0.0
  %5668 = vmatprep.subr.mxu0 0.0
  %5669 = vmatpush2.msra.mxu0 0.0
  %5670 = vmatprep.subr.mxu0 0.0
  %5671 = vmatpush2.msra.mxu0 0.0
  %5672 = vmatprep.subr.mxu0 0.0
  %5673 = vmatpush2.msra.mxu0 0.0
  %5674 = vmatprep.subr.mxu0 0.0
  %5675 = vmatpush2.msra.mxu0 0.0
  %5676 = vmatprep.subr.mxu0 0.0
  %5677 = vmatpush2.msra.mxu0 0.0
  %5678 = vmatprep.subr.mxu0 0.0
  %5679 = vmatpush2.msra.mxu0 0.0
  %5680 = vmatprep.subr.mxu0 0.0
  %5681 = vmatpush2.msra.mxu0 0.0
  %5682 = vmatprep.subr.mxu0 0.0
  %5683 = vmatpush2.msra.mxu0 0.0
  %5684 = vmatprep.subr.mxu0 0.0
  %5685 = vmatpush2.msra.mxu0 0.0
  %5686 = vmatprep.mubr.f32.mxu0 0.0
  %5687 = vmatmul.mubr.f32.gmra.mxu0 %v5531
  %v5688 = vpop.f32.mrf.mxu0
  %v5689 = vadd.f32 0.0, %v5688
  %v5690 = vpop.f32.mrf.mxu0
  %5691 = vmatprep.mubr.f32.mxu0 0.0
  %5692 = vmatmul.mubr.f32.gmra.mxu0 %v5534
  %v5693 = vpop.f32.mrf.mxu0
  %v5694 = vadd.f32 0.0, %v5693
  %v5695 = vpop.f32.mrf.mxu0
  %5696 = vmatprep.mubr.f32.mxu0 0.0
  %5697 = vmatmul.mubr.f32.gmra.mxu0 %v5537
  %v5698 = vpop.f32.mrf.mxu0
  %v5699 = vadd.f32 0.0, %v5698
  %v5700 = vpop.f32.mrf.mxu0
  %5701 = vdwg.mxu0
  %v5702 = vadd.f32 %v5441, %v5606
  %v5703 = vadd.f32 %v5442, %v5611
  %v5704 = vadd.f32 %v5443, %v5616
  %v5705 = vadd.f32 %v5444, %v5689
  %v5706 = vadd.f32 %v5445, %v5694
  %v5707 = vadd.f32 %v5446, %v5699
  %5708 = vmatprep.subr.mxu0 0.0
  %5709 = vmatpush1.msra.mxu0 0.0
  %5710 = vmatprep.subr.mxu0 0.0
  %5711 = vmatpush1.msra.mxu0 0.0
  %5712 = vmatprep.subr.mxu0 0.0
  %5713 = vmatpush1.msra.mxu0 0.0
  %5714 = vmatprep.subr.mxu0 0.0
  %5715 = vmatpush1.msra.mxu0 0.0
  %5716 = vmatprep.subr.mxu0 0.0
  %5717 = vmatpush1.msra.mxu0 0.0
  %5718 = vmatprep.subr.mxu0 0.0
  %5719 = vmatpush1.msra.mxu0 0.0
  %5720 = vmatprep.subr.mxu0 0.0
  %5721 = vmatpush1.msra.mxu0 0.0
  %5722 = vmatprep.subr.mxu0 0.0
  %5723 = vmatpush1.msra.mxu0 0.0
  %5724 = vmatprep.subr.mxu0 0.0
  %5725 = vmatpush1.msra.mxu0 0.0
  %5726 = vmatprep.subr.mxu0 0.0
  %5727 = vmatpush1.msra.mxu0 0.0
  %5728 = vmatprep.subr.mxu0 0.0
  %5729 = vmatpush1.msra.mxu0 0.0
  %5730 = vmatprep.subr.mxu0 0.0
  %5731 = vmatpush1.msra.mxu0 0.0
  %5732 = vmatprep.subr.mxu0 0.0
  %5733 = vmatpush1.msra.mxu0 0.0
  %5734 = vmatprep.subr.mxu0 0.0
  %5735 = vmatpush1.msra.mxu0 %v3632
  %5736 = vmatprep.subr.mxu0 0.0
  %5737 = vmatpush1.msra.mxu0 %v3629
  %5738 = vmatprep.subr.mxu0 0.0
  %5739 = vmatpush1.msra.mxu0 %v3628
  %5740 = vmatprep.subr.mxu0 0.0
  %5741 = vmatpush2.msra.mxu0 0.0
  %5742 = vmatprep.subr.mxu0 0.0
  %5743 = vmatpush2.msra.mxu0 0.0
  %5744 = vmatprep.subr.mxu0 0.0
  %5745 = vmatpush2.msra.mxu0 0.0
  %5746 = vmatprep.subr.mxu0 0.0
  %5747 = vmatpush2.msra.mxu0 0.0
  %5748 = vmatprep.subr.mxu0 0.0
  %5749 = vmatpush2.msra.mxu0 0.0
  %5750 = vmatprep.subr.mxu0 0.0
  %5751 = vmatpush2.msra.mxu0 0.0
  %5752 = vmatprep.subr.mxu0 0.0
  %5753 = vmatpush2.msra.mxu0 0.0
  %5754 = vmatprep.subr.mxu0 0.0
  %5755 = vmatpush2.msra.mxu0 0.0
  %5756 = vmatprep.subr.mxu0 0.0
  %5757 = vmatpush2.msra.mxu0 0.0
  %5758 = vmatprep.subr.mxu0 0.0
  %5759 = vmatpush2.msra.mxu0 0.0
  %5760 = vmatprep.subr.mxu0 0.0
  %5761 = vmatpush2.msra.mxu0 0.0
  %5762 = vmatprep.subr.mxu0 0.0
  %5763 = vmatpush2.msra.mxu0 0.0
  %5764 = vmatprep.subr.mxu0 0.0
  %5765 = vmatpush2.msra.mxu0 0.0
  %5766 = vmatprep.subr.mxu0 0.0
  %5767 = vmatpush2.msra.mxu0 0.0
  %5768 = vmatprep.subr.mxu0 0.0
  %5769 = vmatpush2.msra.mxu0 0.0
  %5770 = vmatprep.subr.mxu0 0.0
  %5771 = vmatpush2.msra.mxu0 0.0
  %5772 = vmatprep.mubr.f32.mxu0 0.0
  %5773 = vmatmul.mubr.f32.gmra.mxu0 %v1806
  %v5774 = vpop.f32.mrf.mxu0
  %v5775 = vadd.f32 0.0, %v5774
  %v5776 = vpop.f32.mrf.mxu0
  %5777 = vmatprep.mubr.f32.mxu0 0.0
  %5778 = vmatmul.mubr.f32.gmra.mxu0 %v1809
  %v5779 = vpop.f32.mrf.mxu0
  %v5780 = vadd.f32 0.0, %v5779
  %v5781 = vpop.f32.mrf.mxu0
  %5782 = vmatprep.mubr.f32.mxu0 0.0
  %5783 = vmatmul.mubr.f32.gmra.mxu0 %v1812
  %v5784 = vpop.f32.mrf.mxu0
  %v5785 = vadd.f32 0.0, %v5784
  %v5786 = vpop.f32.mrf.mxu0
  %5787 = vdwg.mxu0
  %s5788 = scalar_lea.vmem %s15, 128
  %v5789 = vld [vmem:[%s5788] sm:$0xff]
  %v5790 = vld [vmem:[%s5788 + $0x8] sm:$0xff]
  %v5792 = vsel %vm2194, %v5775, 0
  %v5795 = vsel %vm2194, %v5780, 0
  %v5798 = vsel %vm2194, %v5785, 0
  %5800 = vmatprep.subr.mxu0 0.0
  %5801 = vmatpush1.msra.mxu0 0.0
  %5802 = vmatprep.subr.mxu0 0.0
  %5803 = vmatpush1.msra.mxu0 0.0
  %5804 = vmatprep.subr.mxu0 0.0
  %5805 = vmatpush1.msra.mxu0 0.0
  %5806 = vmatprep.subr.mxu0 0.0
  %5807 = vmatpush1.msra.mxu0 0.0
  %5808 = vmatprep.subr.mxu0 0.0
  %5809 = vmatpush1.msra.mxu0 0.0
  %5810 = vmatprep.subr.mxu0 0.0
  %5811 = vmatpush1.msra.mxu0 0.0
  %5812 = vmatprep.subr.mxu0 0.0
  %5813 = vmatpush1.msra.mxu0 0.0
  %5814 = vmatprep.subr.mxu0 0.0
  %5815 = vmatpush1.msra.mxu0 0.0
  %5816 = vmatprep.subr.mxu0 0.0
  %5817 = vmatpush1.msra.mxu0 0.0
  %5818 = vmatprep.subr.mxu0 0.0
  %5819 = vmatpush1.msra.mxu0 0.0
  %5820 = vmatprep.subr.mxu0 0.0
  %5821 = vmatpush1.msra.mxu0 0.0
  %5822 = vmatprep.subr.mxu0 0.0
  %5823 = vmatpush1.msra.mxu0 0.0
  %5824 = vmatprep.subr.mxu0 0.0
  %5825 = vmatpush1.msra.mxu0 0.0
  %5826 = vmatprep.subr.mxu0 0.0
  %5827 = vmatpush1.msra.mxu0 0.0
  %5828 = vmatprep.subr.mxu0 0.0
  %5829 = vmatpush1.msra.mxu0 %v5790
  %5830 = vmatprep.subr.mxu0 0.0
  %5831 = vmatpush1.msra.mxu0 %v5789
  %5832 = vmatprep.subr.mxu0 0.0
  %5833 = vmatpush2.msra.mxu0 0.0
  %5834 = vmatprep.subr.mxu0 0.0
  %5835 = vmatpush2.msra.mxu0 0.0
  %5836 = vmatprep.subr.mxu0 0.0
  %5837 = vmatpush2.msra.mxu0 0.0
  %5838 = vmatprep.subr.mxu0 0.0
  %5839 = vmatpush2.msra.mxu0 0.0
  %5840 = vmatprep.subr.mxu0 0.0
  %5841 = vmatpush2.msra.mxu0 0.0
  %5842 = vmatprep.subr.mxu0 0.0
  %5843 = vmatpush2.msra.mxu0 0.0
  %5844 = vmatprep.subr.mxu0 0.0
  %5845 = vmatpush2.msra.mxu0 0.0
  %5846 = vmatprep.subr.mxu0 0.0
  %5847 = vmatpush2.msra.mxu0 0.0
  %5848 = vmatprep.subr.mxu0 0.0
  %5849 = vmatpush2.msra.mxu0 0.0
  %5850 = vmatprep.subr.mxu0 0.0
  %5851 = vmatpush2.msra.mxu0 0.0
  %5852 = vmatprep.subr.mxu0 0.0
  %5853 = vmatpush2.msra.mxu0 0.0
  %5854 = vmatprep.subr.mxu0 0.0
  %5855 = vmatpush2.msra.mxu0 0.0
  %5856 = vmatprep.subr.mxu0 0.0
  %5857 = vmatpush2.msra.mxu0 0.0
  %5858 = vmatprep.subr.mxu0 0.0
  %5859 = vmatpush2.msra.mxu0 0.0
  %5860 = vmatprep.subr.mxu0 0.0
  %5861 = vmatpush2.msra.mxu0 0.0
  %5862 = vmatprep.subr.mxu0 0.0
  %5863 = vmatpush2.msra.mxu0 0.0
  %5864 = vmatprep.mubr.f32.mxu0 0.0
  %5865 = vmatmul.mubr.f32.gmra.mxu0 %v5792
  %v5866 = vpop.f32.mrf.mxu0
  %v5867 = vadd.f32 0.0, %v5866
  %v5868 = vpop.f32.mrf.mxu0
  %5869 = vmatprep.mubr.f32.mxu0 0.0
  %5870 = vmatmul.mubr.f32.gmra.mxu0 %v5795
  %v5871 = vpop.f32.mrf.mxu0
  %v5872 = vadd.f32 0.0, %v5871
  %v5873 = vpop.f32.mrf.mxu0
  %5874 = vmatprep.mubr.f32.mxu0 0.0
  %5875 = vmatmul.mubr.f32.gmra.mxu0 %v5798
  %v5876 = vpop.f32.mrf.mxu0
  %v5877 = vadd.f32 0.0, %v5876
  %v5878 = vpop.f32.mrf.mxu0
  %5879 = vdwg.mxu0
  %s5880 = scalar_lea.vmem %s17, 128
  %v5881 = vld [vmem:[%s5880] sm:$0xff]
  %v5882 = vld [vmem:[%s5880 + $0x8] sm:$0xff]
  %5883 = vmatprep.subr.mxu0 0.0
  %5884 = vmatpush1.msra.mxu0 0.0
  %5885 = vmatprep.subr.mxu0 0.0
  %5886 = vmatpush1.msra.mxu0 0.0
  %5887 = vmatprep.subr.mxu0 0.0
  %5888 = vmatpush1.msra.mxu0 0.0
  %5889 = vmatprep.subr.mxu0 0.0
  %5890 = vmatpush1.msra.mxu0 0.0
  %5891 = vmatprep.subr.mxu0 0.0
  %5892 = vmatpush1.msra.mxu0 0.0
  %5893 = vmatprep.subr.mxu0 0.0
  %5894 = vmatpush1.msra.mxu0 0.0
  %5895 = vmatprep.subr.mxu0 0.0
  %5896 = vmatpush1.msra.mxu0 0.0
  %5897 = vmatprep.subr.mxu0 0.0
  %5898 = vmatpush1.msra.mxu0 0.0
  %5899 = vmatprep.subr.mxu0 0.0
  %5900 = vmatpush1.msra.mxu0 0.0
  %5901 = vmatprep.subr.mxu0 0.0
  %5902 = vmatpush1.msra.mxu0 0.0
  %5903 = vmatprep.subr.mxu0 0.0
  %5904 = vmatpush1.msra.mxu0 0.0
  %5905 = vmatprep.subr.mxu0 0.0
  %5906 = vmatpush1.msra.mxu0 0.0
  %5907 = vmatprep.subr.mxu0 0.0
  %5908 = vmatpush1.msra.mxu0 0.0
  %5909 = vmatprep.subr.mxu0 0.0
  %5910 = vmatpush1.msra.mxu0 0.0
  %5911 = vmatprep.subr.mxu0 0.0
  %5912 = vmatpush1.msra.mxu0 %v5882
  %5913 = vmatprep.subr.mxu0 0.0
  %5914 = vmatpush1.msra.mxu0 %v5881
  %5915 = vmatprep.subr.mxu0 0.0
  %5916 = vmatpush2.msra.mxu0 0.0
  %5917 = vmatprep.subr.mxu0 0.0
  %5918 = vmatpush2.msra.mxu0 0.0
  %5919 = vmatprep.subr.mxu0 0.0
  %5920 = vmatpush2.msra.mxu0 0.0
  %5921 = vmatprep.subr.mxu0 0.0
  %5922 = vmatpush2.msra.mxu0 0.0
  %5923 = vmatprep.subr.mxu0 0.0
  %5924 = vmatpush2.msra.mxu0 0.0
  %5925 = vmatprep.subr.mxu0 0.0
  %5926 = vmatpush2.msra.mxu0 0.0
  %5927 = vmatprep.subr.mxu0 0.0
  %5928 = vmatpush2.msra.mxu0 0.0
  %5929 = vmatprep.subr.mxu0 0.0
  %5930 = vmatpush2.msra.mxu0 0.0
  %5931 = vmatprep.subr.mxu0 0.0
  %5932 = vmatpush2.msra.mxu0 0.0
  %5933 = vmatprep.subr.mxu0 0.0
  %5934 = vmatpush2.msra.mxu0 0.0
  %5935 = vmatprep.subr.mxu0 0.0
  %5936 = vmatpush2.msra.mxu0 0.0
  %5937 = vmatprep.subr.mxu0 0.0
  %5938 = vmatpush2.msra.mxu0 0.0
  %5939 = vmatprep.subr.mxu0 0.0
  %5940 = vmatpush2.msra.mxu0 0.0
  %5941 = vmatprep.subr.mxu0 0.0
  %5942 = vmatpush2.msra.mxu0 0.0
  %5943 = vmatprep.subr.mxu0 0.0
  %5944 = vmatpush2.msra.mxu0 0.0
  %5945 = vmatprep.subr.mxu0 0.0
  %5946 = vmatpush2.msra.mxu0 0.0
  %5947 = vmatprep.mubr.f32.mxu0 0.0
  %5948 = vmatmul.mubr.f32.gmra.mxu0 %v5792
  %v5949 = vpop.f32.mrf.mxu0
  %v5950 = vadd.f32 0.0, %v5949
  %v5951 = vpop.f32.mrf.mxu0
  %5952 = vmatprep.mubr.f32.mxu0 0.0
  %5953 = vmatmul.mubr.f32.gmra.mxu0 %v5795
  %v5954 = vpop.f32.mrf.mxu0
  %v5955 = vadd.f32 0.0, %v5954
  %v5956 = vpop.f32.mrf.mxu0
  %5957 = vmatprep.mubr.f32.mxu0 0.0
  %5958 = vmatmul.mubr.f32.gmra.mxu0 %v5798
  %v5959 = vpop.f32.mrf.mxu0
  %v5960 = vadd.f32 0.0, %v5959
  %v5961 = vpop.f32.mrf.mxu0
  %5962 = vdwg.mxu0
  %v5963 = vadd.f32 %v5702, %v5867
  %v5964 = vadd.f32 %v5703, %v5872
  %v5965 = vadd.f32 %v5704, %v5877
  %v5966 = vadd.f32 %v5705, %v5950
  %v5967 = vadd.f32 %v5706, %v5955
  %v5968 = vadd.f32 %v5707, %v5960
  %v5969 = vld [vmem:[%s16] sm:$0x1]
  %v5971 = vlaneseq
  %v5972 = vshrl.u32 %v5971, 7
  %v5973 = vsub.s32 0, %v5972
  %v5974 = vrot.slane %v5969, %v5973
  %v5976 = vadd.f32 %v5963, %v5974
  %v5977 = vadd.f32 %v5964, %v5974
  %v5978 = vadd.f32 %v5965, %v5974
  %v5979 = vld [vmem:[%s18] sm:$0x1]
  %v5981 = vlaneseq
  %v5982 = vshrl.u32 %v5981, 7
  %v5983 = vsub.s32 0, %v5982
  %v5984 = vrot.slane %v5979, %v5983
  %v5986 = vadd.f32 %v5966, %v5984
  %v5987 = vadd.f32 %v5967, %v5984
  %v5988 = vadd.f32 %v5968, %v5984
  %v5989 = vmin.f32 %v5976, 0.0
  %v5990 = vmin.f32 %v5977, 0.0
  %v5991 = vmin.f32 %v5978, 0.0
  %v5992 = vand.u32 2147483647, %v5976
  %v5993 = vand.u32 2147483647, %v5977
  %v5994 = vand.u32 2147483647, %v5978
  %v5995 = vsub.f32 0.0, %v5992
  %v5996 = vsub.f32 0.0, %v5993
  %v5997 = vsub.f32 0.0, %v5994
  %v5998 = vmul.f32 %v5995, 1.442695
  %v5999 = vpow.pop %v5998
  %v6000 = vmul.f32 %v5996, 1.442695
  %v6001 = vpow.pop %v6000
  %v6002 = vmul.f32 %v5997, 1.442695
  %v6003 = vpow.pop %v6002
  %v6004 = vadd.f32 %v5999, 1.0
  %v6005 = vadd.f32 %v6001, 1.0
  %v6006 = vadd.f32 %v6003, 1.0
  %v6007 = vlog2.pop %v6004
  %v6008 = vmul.f32 %v6007, 0.6931472
  %v6009 = vlog2.pop %v6005
  %v6010 = vmul.f32 %v6009, 0.6931472
  %v6011 = vlog2.pop %v6006
  %v6012 = vmul.f32 %v6011, 0.6931472
  %v6013 = vsub.f32 %v5989, %v6008
  %v6014 = vsub.f32 %v5990, %v6010
  %v6015 = vsub.f32 %v5991, %v6012
  %v6016 = vadd.f32 %v255, %v5986
  %v6017 = vadd.f32 %v260, %v5987
  %v6018 = vadd.f32 %v265, %v5988
  %v6019 = vmul.f32 %v6013, 1.442695
  %v6020 = vpow.pop %v6019
  %v6021 = vmul.f32 %v6014, 1.442695
  %v6022 = vpow.pop %v6021
  %v6023 = vmul.f32 %v6015, 1.442695
  %v6024 = vpow.pop %v6023
  %v6025 = vmul.f32 %v6016, %v6020
  %v6026 = vmul.f32 %v6017, %v6022
  %v6027 = vmul.f32 %v6018, %v6024
  %6031 = vrot.lane.b32.xlu0 %v6025, 18
  %v6032 = vpop.permute.xlu0 %6031
  %6033 = vrot.lane.b32.xlu0 %v6026, 18
  %v6034 = vpop.permute.xlu0 %6033
  %6035 = vrot.lane.b32.xlu0 %v6027, 18
  %v6036 = vpop.permute.xlu0 %6035
  %v6040 = vsel %vm271, %v160, %v6032
  %v6041 = vsel %vm271, %v165, %v6034
  %v6042 = vsel %vm271, %v170, %v6036
  %6043 = vst.msk [vmem:[%s19] sm:$0xff] %vm79, %v6040
  %6044 = vst.msk [vmem:[%s19 + $0x8] sm:$0xff] %vm79, %v6041
  %vm6045 = vcmask 287744
  %6046 = vst.msk [vmem:[%s19 + $0x10] sm:$0x3] %vm6045, %v6042
  %v6047 = vld [vmem:[%s6] sm:$0x3]
  %v6049 = vsel %vm271, %v6047, 0
  %v6052 = vsel %vm281, %v6015, 0
  %6054 = vmatprep.subr.mxu0 0.0
  %6055 = vmatpush1.msra.mxu0 0.0
  %6056 = vmatprep.subr.mxu0 0.0
  %6057 = vmatpush1.msra.mxu0 0.0
  %6058 = vmatprep.subr.mxu0 0.0
  %6059 = vmatpush1.msra.mxu0 0.0
  %6060 = vmatprep.subr.mxu0 0.0
  %6061 = vmatpush1.msra.mxu0 0.0
  %6062 = vmatprep.subr.mxu0 0.0
  %6063 = vmatpush1.msra.mxu0 0.0
  %6064 = vmatprep.subr.mxu0 0.0
  %6065 = vmatpush1.msra.mxu0 0.0
  %6066 = vmatprep.subr.mxu0 0.0
  %6067 = vmatpush1.msra.mxu0 0.0
  %6068 = vmatprep.subr.mxu0 0.0
  %6069 = vmatpush1.msra.mxu0 0.0
  %6070 = vmatprep.subr.mxu0 0.0
  %6071 = vmatpush1.msra.mxu0 0.0
  %6072 = vmatprep.subr.mxu0 0.0
  %6073 = vmatpush1.msra.mxu0 0.0
  %6074 = vmatprep.subr.mxu0 0.0
  %6075 = vmatpush1.msra.mxu0 0.0
  %6076 = vmatprep.subr.mxu0 0.0
  %6077 = vmatpush1.msra.mxu0 0.0
  %6078 = vmatprep.subr.mxu0 0.0
  %6079 = vmatpush1.msra.mxu0 0.0
  %6080 = vmatprep.subr.mxu0 0.0
  %6081 = vmatpush1.msra.mxu0 %v6052
  %6082 = vmatprep.subr.mxu0 0.0
  %6083 = vmatpush1.msra.mxu0 %v6014
  %6084 = vmatprep.subr.mxu0 0.0
  %6085 = vmatpush1.msra.mxu0 %v6013
  %6086 = vmatprep.subr.mxu0 0.0
  %6087 = vmatpush2.msra.mxu0 0.0
  %6088 = vmatprep.subr.mxu0 0.0
  %6089 = vmatpush2.msra.mxu0 0.0
  %6090 = vmatprep.subr.mxu0 0.0
  %6091 = vmatpush2.msra.mxu0 0.0
  %6092 = vmatprep.subr.mxu0 0.0
  %6093 = vmatpush2.msra.mxu0 0.0
  %6094 = vmatprep.subr.mxu0 0.0
  %6095 = vmatpush2.msra.mxu0 0.0
  %6096 = vmatprep.subr.mxu0 0.0
  %6097 = vmatpush2.msra.mxu0 0.0
  %6098 = vmatprep.subr.mxu0 0.0
  %6099 = vmatpush2.msra.mxu0 0.0
  %6100 = vmatprep.subr.mxu0 0.0
  %6101 = vmatpush2.msra.mxu0 0.0
  %6102 = vmatprep.subr.mxu0 0.0
  %6103 = vmatpush2.msra.mxu0 0.0
  %6104 = vmatprep.subr.mxu0 0.0
  %6105 = vmatpush2.msra.mxu0 0.0
  %6106 = vmatprep.subr.mxu0 0.0
  %6107 = vmatpush2.msra.mxu0 0.0
  %6108 = vmatprep.subr.mxu0 0.0
  %6109 = vmatpush2.msra.mxu0 0.0
  %6110 = vmatprep.subr.mxu0 0.0
  %6111 = vmatpush2.msra.mxu0 0.0
  %6112 = vmatprep.subr.mxu0 0.0
  %6113 = vmatpush2.msra.mxu0 0.0
  %6114 = vmatprep.subr.mxu0 0.0
  %6115 = vmatpush2.msra.mxu0 0.0
  %6116 = vmatprep.subr.mxu0 0.0
  %6117 = vmatpush2.msra.mxu0 0.0
  %6118 = vmatprep.mubr.f32.mxu0 0.0
  %6119 = vmatmul.mubr.f32.gmra.mxu0 %v6049
  %v6120 = vpop.f32.mrf.mxu0
  %v6121 = vadd.f32 0.0, %v6120
  %v6122 = vpop.f32.mrf.mxu0
  %6123 = vdwg.mxu0
  %vm6124 = vcmask 140288
  %v6125 = vsel %vm6124, %v6121, 0.0
  %6126 = vadd.xlane.f32.xlu0 %v6125
  %v6127 = vpop.xlane.xlu0 %6126
  %vm6128 = vcmask 1024
  %6129 = vst.msk [vmem:[%s20] sm:$0x3] %vm6128, %v6127
  // Predicated region
  $region78: #{moflow_forward.6} parent=0 // pred_check
    _
  $region79: #{moflow_forward.6} parent=0 // pred_check_branch
    %6131 = sbr.rel (0) target = $region81
  $region80: #{moflow_forward.6} parent=0 // pred_region
    _
  $region81: #{moflow_forward.6} parent=0 // pred_fallthru
    _
  // Predicated region
  $region82: #{moflow_forward.6} parent=0 // pred_check
    _
  $region83: #{moflow_forward.6} parent=0 // pred_check_branch
    %6133 = sbr.rel (0) target = $region85
  $region84: #{moflow_forward.6} parent=0 // pred_region
    _
  $region85: #{moflow_forward.6} parent=0 // pred_fallthru
    _
  // Predicated region
  $region86: #{moflow_forward.6} parent=0 // pred_check
    _
  $region87: #{moflow_forward.6} parent=0 // pred_check_branch
    %6135 = sbr.rel (0) target = $region89
  $region88: #{moflow_forward.6} parent=0 // pred_region
    _
  $region89: #{moflow_forward.6} parent=0 // pred_fallthru
    _
  // Predicated region
  $region90: #{moflow_forward.6} parent=0 // pred_check
    _
  $region91: #{moflow_forward.6} parent=0 // pred_check_branch
    %6137 = sbr.rel (0) target = $region93
  $region92: #{moflow_forward.6} parent=0 // pred_region
    _
  $region93: #{moflow_forward.6} parent=0 // pred_fallthru
    _

</llo_original>
